<compile_context>
chip_gen: v7x
topology: tpu7x:2x2x1
jax: 0.10.0
libtpu: 0.0.40
codegen_flags: <defaults>
</compile_context>

<pallas_src>
import functools

import jax
import jax.numpy as jnp
from jax import lax
from jax.experimental import pallas as pl
from jax.experimental.pallas import tpu as pltpu


# ---------------------------------------------------------------------------
# helpers (traced inside the kernel)
# ---------------------------------------------------------------------------
def _layernorm(x, w, b, eps=1e-6):
    mu = jnp.mean(x, axis=-1, keepdims=True)
    xc = x - mu
    var = jnp.mean(xc * xc, axis=-1, keepdims=True)
    return xc * lax.rsqrt(var + eps) * w + b


def _gelu_exact(x):
    # torch nn.GELU() default = exact erf-based GELU
    return 0.5 * x * (1.0 + lax.erf(x * (1.0 / jnp.sqrt(2.0).astype(x.dtype))))


# ---------------------------------------------------------------------------
# Fused kernel:
#   x + depthwise Conv3d(3,3,3)  ->  norm1 -> MHSA -> gamma1 residual
#                                ->  norm2 -> MLP(GELU) -> gamma2 residual
# ---------------------------------------------------------------------------
def _fused_block_kernel(xp_ref, convw_ref, convb_ref,
                        wqkv_ref, wproj_ref, bproj_ref,
                        ln1w_ref, ln1b_ref, ln2w_ref, ln2b_ref,
                        w1_ref, b1_ref, w2_ref, b2_ref,
                        g1_ref, g2_ref,
                        o_ref,
                        attn_scr,
                        *, H, W, D, C, num_heads, BT):
    N = H * W * D
    M = BT * N
    hd = C // num_heads
    scale = float(hd) ** -0.5
    bf16 = jnp.bfloat16

    # ---- stage 1: x + depthwise conv3d(3x3x3, groups=C), f32 on the VPU ----
    xp = xp_ref[...]                                   # (BT, H+2, W+2, D+2, C)
    acc = jnp.zeros((BT, H, W, D, C), jnp.float32)
    for i in range(3):                                 # 27 shifted taps
        for j in range(3):
            for k in range(3):
                tap = xp[:, i:i + H, j:j + W, k:k + D, :]
                t = i * 9 + j * 3 + k
                acc = acc + tap * convw_ref[t:t + 1, :]          # (1, C) broadcast
    acc = acc + convb_ref[0:1, :]
    acc = acc + xp[:, 1:1 + H, 1:1 + W, 1:1 + D, :]    # residual: x + pos_embed(x)

    # flatten 'b h w d c -> (b h w d) c'; batch folded into the GEMM row dim
    x = acc.reshape(M, C)                              # (M, C) f32

    # ---- attention branch ----
    xn = _layernorm(x, ln1w_ref[0:1, :], ln1b_ref[0:1, :])
    qkv = jnp.dot(xn.astype(bf16), wqkv_ref[...].astype(bf16),
                  preferred_element_type=jnp.float32)            # (M, 3C) f32 acc
    qkvb = qkv.reshape(BT, N, 3 * C).astype(bf16)                # (BT, N, 3C)

    for h in range(num_heads):                                   # static unroll
        qh = qkvb[:, :, h * hd:(h + 1) * hd]                     # (BT, N, hd)
        kh = qkvb[:, :, C + h * hd:C + (h + 1) * hd]
        vh = qkvb[:, :, 2 * C + h * hd:2 * C + (h + 1) * hd]
        s = jnp.einsum('bnd,bmd->bnm', qh, kh,
                       preferred_element_type=jnp.float32) * scale   # (BT, N, N)
        m = jnp.max(s, axis=-1, keepdims=True)
        e = jnp.exp(s - m)
        p = e * pl.reciprocal(jnp.sum(e, axis=-1, keepdims=True), approx=True)
        oh = jnp.einsum('bnm,bmd->bnd', p.astype(bf16), vh,
                        preferred_element_type=jnp.float32)          # (BT, N, hd)
        # write head output directly into its column block of the (M, C) scratch
        attn_scr[:, h * hd:(h + 1) * hd] = oh.reshape(M, hd)

    attn_out = jnp.dot(attn_scr[...].astype(bf16), wproj_ref[...].astype(bf16),
                       preferred_element_type=jnp.float32) + bproj_ref[0:1, :]
    x = x + g1_ref[0:1, :] * attn_out

    # ---- MLP branch ----
    xn2 = _layernorm(x, ln2w_ref[0:1, :], ln2b_ref[0:1, :])
    h1 = jnp.dot(xn2.astype(bf16), w1_ref[...].astype(bf16),
                 preferred_element_type=jnp.float32) + b1_ref[0:1, :]
    h1 = _gelu_exact(h1)
    y = jnp.dot(h1.astype(bf16), w2_ref[...].astype(bf16),
                preferred_element_type=jnp.float32) + b2_ref[0:1, :]
    x = x + g2_ref[0:1, :] * y

    o_ref[...] = x


# ---------------------------------------------------------------------------
# Wrapper
# ---------------------------------------------------------------------------
def transformer_block_3d(x_ncdhw, params, num_heads=8, b_tile=None):
    B, C, H, W, D = x_ncdhw.shape
    N = H * W * D
    BT = B if b_tile is None else b_tile
    assert B % BT == 0, "batch must be divisible by the batch tile"

    # channels-last + halo pad for the depthwise conv (small, one-time HBM op)
    x_cl = jnp.transpose(x_ncdhw, (0, 2, 3, 4, 1)).astype(jnp.float32)
    xp = jnp.pad(x_cl, ((0, 0), (1, 1), (1, 1), (1, 1), (0, 0)))

    weight_names = ("conv_w_flat", "conv_b", "wqkv", "wproj", "bproj",
                    "ln1_w", "ln1_b", "ln2_w", "ln2_b",
                    "w1", "b1", "w2", "b2", "gamma1", "gamma2")
    weight_args = [params[k] for k in weight_names]
    weight_specs = [pl.BlockSpec(w.shape, lambda b, n=w.ndim: (0,) * n)
                    for w in weight_args]

    kernel = functools.partial(_fused_block_kernel, H=H, W=W, D=D, C=C,
                               num_heads=num_heads, BT=BT)

    out_seq = pl.pallas_call(
        kernel,
        out_shape=jax.ShapeDtypeStruct((B * N, C), jnp.float32),
        grid=(B // BT,),
        in_specs=[pl.BlockSpec((BT, H + 2, W + 2, D + 2, C),
                               lambda b: (b, 0, 0, 0, 0))] + weight_specs,
        out_specs=pl.BlockSpec((BT * N, C), lambda b: (b, 0)),
        scratch_shapes=[pltpu.VMEM((BT * N, C), jnp.float32)],
        compiler_params=pltpu.CompilerParams(
            dimension_semantics=("parallel",)),
    )(xp, *weight_args)

    out_cl = out_seq.reshape(B, H, W, D, C)            # '(b n) c -> b h w d c'
    return jnp.transpose(out_cl, (0, 4, 1, 2, 3))      # back to (B, C, H, W, D)


# ---------------------------------------------------------------------------
# Deterministic parameter initialization (synthetic, matches module shapes)
# ---------------------------------------------------------------------------
def init_params(key, dim, layer_scale_init_value=1e-6):
    ks = jax.random.split(key, 8)
    conv_w = 0.1 * jax.random.normal(ks[0], (dim, 3, 3, 3), jnp.float32)   # depthwise (C, kh, kw, kd)
    params = {
        "conv_w_flat": conv_w.reshape(dim, 27).T,                           # (27, C)
        "conv_b": 0.1 * jax.random.normal(ks[1], (1, dim), jnp.float32),
        # linear weights stored as (in, out) == torch weight.T ; qkv_bias=False
        "wqkv": 0.05 * jax.random.normal(ks[2], (dim, 3 * dim), jnp.float32),
        "wproj": 0.05 * jax.random.normal(ks[3], (dim, dim), jnp.float32),
        "bproj": 0.05 * jax.random.normal(ks[4], (1, dim), jnp.float32),
        "ln1_w": jnp.ones((1, dim), jnp.float32),
        "ln1_b": jnp.zeros((1, dim), jnp.float32),
        "ln2_w": jnp.ones((1, dim), jnp.float32),
        "ln2_b": jnp.zeros((1, dim), jnp.float32),
        "w1": 0.05 * jax.random.normal(ks[5], (dim, 4 * dim), jnp.float32),
        "b1": 0.05 * jax.random.normal(ks[6], (1, 4 * dim), jnp.float32),
        "w2": 0.05 * jax.random.normal(ks[7], (4 * dim, dim), jnp.float32),
        "b2": jnp.zeros((1, dim), jnp.float32),
        "gamma1": layer_scale_init_value * jnp.ones((1, dim), jnp.float32),
        "gamma2": layer_scale_init_value * jnp.ones((1, dim), jnp.float32),
    }
    return params


# ---------------------------------------------------------------------------
# Pure-JAX reference (mirrors the PyTorch forward semantics, f32 everywhere)
# ---------------------------------------------------------------------------
def ref_forward(x_ncdhw, params, num_heads=8):
    B, C, H, W, D = x_ncdhw.shape
    x = jnp.transpose(x_ncdhw, (0, 2, 3, 4, 1)).astype(jnp.float32)
    xp = jnp.pad(x, ((0, 0), (1, 1), (1, 1), (1, 1), (0, 0)))
    conv = jnp.zeros_like(x)
    for i in range(3):
        for j in range(3):
            for k in range(3):
                conv = conv + xp[:, i:i + H, j:j + W, k:k + D, :] * params["conv_w_flat"][i * 9 + j * 3 + k]
    conv = conv + params["conv_b"][0]
    x = x + conv
    x = x.reshape(B, H * W * D, C)

    def ln(z, w, b):
        mu = z.mean(-1, keepdims=True)
        var = ((z - mu) ** 2).mean(-1, keepdims=True)
        return (z - mu) / jnp.sqrt(var + 1e-6) * w[0] + b[0]

    hd = C // num_heads
    xn = ln(x, params["ln1_w"], params["ln1_b"])
    qkv = xn @ params["wqkv"]
    q = qkv[..., :C].reshape(B, -1, num_heads, hd).transpose(0, 2, 1, 3)
    k = qkv[..., C:2 * C].reshape(B, -1, num_heads, hd).transpose(0, 2, 1, 3)
    v = qkv[..., 2 * C:].reshape(B, -1, num_heads, hd).transpose(0, 2, 1, 3)
    attn = jax.nn.softmax((q @ k.transpose(0, 1, 3, 2)) * hd ** -0.5, axis=-1)
    o = (attn @ v).transpose(0, 2, 1, 3).reshape(B, -1, C)
    o = o @ params["wproj"] + params["bproj"][0]
    x = x + params["gamma1"][0] * o

    xn2 = ln(x, params["ln2_w"], params["ln2_b"])
    h1 = xn2 @ params["w1"] + params["b1"][0]
    h1 = 0.5 * h1 * (1.0 + lax.erf(h1 / jnp.sqrt(2.0)))
    y = h1 @ params["w2"] + params["b2"][0]
    x = x + params["gamma2"][0] * y
    x = x.reshape(B, H, W, D, C)
    return jnp.transpose(x, (0, 4, 1, 2, 3))


if __name__ == "__main__":
    B, dim, H, W, D = 2, 64, 4, 4, 4           # x: (B, C, H, W, D) like PyTorch Conv3d input
    key = jax.random.PRNGKey(0)
    kx, kp = jax.random.split(key)
    x = jax.random.normal(kx, (B, dim, H, W, D), jnp.float32)
    params = init_params(kp, dim)

    out = transformer_block_3d(x, params, num_heads=8)
    out = jax.block_until_ready(out)

    ref = ref_forward(x, params, num_heads=8)
    assert out.shape == (B, dim, H, W, D)
    max_err = float(jnp.max(jnp.abs(out - ref)))
    assert max_err < 1e-3, f"mismatch vs reference: max_err={max_err}"
    print("KERNEL_OK")
</pallas_src>

<mosaic_0001>
module attributes {stable_mosaic.version = 11 : i64} {
  func.func @_fused_block_kernel(%arg0: i32, %arg1: memref<2x6x6x6x64xf32, #tpu.memory_space<vmem>>, %arg2: memref<27x64xf32, #tpu.memory_space<vmem>>, %arg3: memref<1x64xf32, #tpu.memory_space<vmem>>, %arg4: memref<64x192xf32, #tpu.memory_space<vmem>>, %arg5: memref<64x64xf32, #tpu.memory_space<vmem>>, %arg6: memref<1x64xf32, #tpu.memory_space<vmem>>, %arg7: memref<1x64xf32, #tpu.memory_space<vmem>>, %arg8: memref<1x64xf32, #tpu.memory_space<vmem>>, %arg9: memref<1x64xf32, #tpu.memory_space<vmem>>, %arg10: memref<1x64xf32, #tpu.memory_space<vmem>>, %arg11: memref<64x256xf32, #tpu.memory_space<vmem>>, %arg12: memref<1x256xf32, #tpu.memory_space<vmem>>, %arg13: memref<256x64xf32, #tpu.memory_space<vmem>>, %arg14: memref<1x64xf32, #tpu.memory_space<vmem>>, %arg15: memref<1x64xf32, #tpu.memory_space<vmem>>, %arg16: memref<1x64xf32, #tpu.memory_space<vmem>>, %arg17: memref<128x64xf32, #tpu.memory_space<vmem>>, %arg18: memref<128x64xf32, #tpu.memory_space<vmem>>) attributes {dimension_semantics = [#tpu.dimension_semantics<parallel>], iteration_bounds = array<i64: 1>, scalar_prefetch = 0 : i64, scratch_operands = 1 : i64, tpu.core_type = #tpu.core_type<tc>, window_params = [{transform_indices = @transform_0, window_bounds = array<i64: 2, 6, 6, 6, 64>}, {pipeline_mode = #tpu.pipeline_mode<synchronous>, transform_indices = @transform_1, window_bounds = array<i64: 27, 64>}, {pipeline_mode = #tpu.pipeline_mode<synchronous>, transform_indices = @transform_2, window_bounds = array<i64: 1, 64>}, {pipeline_mode = #tpu.pipeline_mode<synchronous>, transform_indices = @transform_3, window_bounds = array<i64: 64, 192>}, {pipeline_mode = #tpu.pipeline_mode<synchronous>, transform_indices = @transform_4, window_bounds = array<i64: 64, 64>}, {pipeline_mode = #tpu.pipeline_mode<synchronous>, transform_indices = @transform_5, window_bounds = array<i64: 1, 64>}, {pipeline_mode = #tpu.pipeline_mode<synchronous>, transform_indices = @transform_6, window_bounds = array<i64: 1, 64>}, {pipeline_mode = #tpu.pipeline_mode<synchronous>, transform_indices = @transform_7, window_bounds = array<i64: 1, 64>}, {pipeline_mode = #tpu.pipeline_mode<synchronous>, transform_indices = @transform_8, window_bounds = array<i64: 1, 64>}, {pipeline_mode = #tpu.pipeline_mode<synchronous>, transform_indices = @transform_9, window_bounds = array<i64: 1, 64>}, {pipeline_mode = #tpu.pipeline_mode<synchronous>, transform_indices = @transform_10, window_bounds = array<i64: 64, 256>}, {pipeline_mode = #tpu.pipeline_mode<synchronous>, transform_indices = @transform_11, window_bounds = array<i64: 1, 256>}, {pipeline_mode = #tpu.pipeline_mode<synchronous>, transform_indices = @transform_12, window_bounds = array<i64: 256, 64>}, {pipeline_mode = #tpu.pipeline_mode<synchronous>, transform_indices = @transform_13, window_bounds = array<i64: 1, 64>}, {pipeline_mode = #tpu.pipeline_mode<synchronous>, transform_indices = @transform_14, window_bounds = array<i64: 1, 64>}, {pipeline_mode = #tpu.pipeline_mode<synchronous>, transform_indices = @transform_15, window_bounds = array<i64: 1, 64>}, {transform_indices = @transform_16, window_bounds = array<i64: 128, 64>}]} {
    %c0 = arith.constant 0 : index
    %c0_0 = arith.constant 0 : index
    %c0_1 = arith.constant 0 : index
    %c0_2 = arith.constant 0 : index
    %c0_3 = arith.constant 0 : index
    %0 = vector.load %arg1[%c0, %c0_0, %c0_1, %c0_2, %c0_3] : memref<2x6x6x6x64xf32, #tpu.memory_space<vmem>>, vector<2x6x6x6x64xf32>
    %cst = arith.constant 0.000000e+00 : f32
    %1 = vector.broadcast %cst : f32 to vector<2x4x4x4x64xf32>
    %2 = vector.extract_strided_slice %0 {offsets = [0, 0, 0, 0, 0], sizes = [2, 4, 4, 4, 64], strides = [1, 1, 1, 1, 1]} : vector<2x6x6x6x64xf32> to vector<2x4x4x4x64xf32>
    %c0_4 = arith.constant 0 : index
    %c0_5 = arith.constant 0 : index
    %3 = vector.load %arg2[%c0_4, %c0_5] : memref<27x64xf32, #tpu.memory_space<vmem>>, vector<1x64xf32>
    %4 = vector.shape_cast %3 : vector<1x64xf32> to vector<1x1x1x1x64xf32>
    %5 = vector.broadcast %4 : vector<1x1x1x1x64xf32> to vector<2x4x4x4x64xf32>
    %6 = arith.mulf %2, %5 : vector<2x4x4x4x64xf32>
    %7 = arith.addf %1, %6 : vector<2x4x4x4x64xf32>
    %8 = vector.extract_strided_slice %0 {offsets = [0, 0, 0, 1, 0], sizes = [2, 4, 4, 4, 64], strides = [1, 1, 1, 1, 1]} : vector<2x6x6x6x64xf32> to vector<2x4x4x4x64xf32>
    %c1 = arith.constant 1 : index
    %c0_6 = arith.constant 0 : index
    %9 = vector.load %arg2[%c1, %c0_6] : memref<27x64xf32, #tpu.memory_space<vmem>>, vector<1x64xf32>
    %10 = vector.shape_cast %9 : vector<1x64xf32> to vector<1x1x1x1x64xf32>
    %11 = vector.broadcast %10 : vector<1x1x1x1x64xf32> to vector<2x4x4x4x64xf32>
    %12 = arith.mulf %8, %11 : vector<2x4x4x4x64xf32>
    %13 = arith.addf %7, %12 : vector<2x4x4x4x64xf32>
    %14 = vector.extract_strided_slice %0 {offsets = [0, 0, 0, 2, 0], sizes = [2, 4, 4, 4, 64], strides = [1, 1, 1, 1, 1]} : vector<2x6x6x6x64xf32> to vector<2x4x4x4x64xf32>
    %c2 = arith.constant 2 : index
    %c0_7 = arith.constant 0 : index
    %15 = vector.load %arg2[%c2, %c0_7] : memref<27x64xf32, #tpu.memory_space<vmem>>, vector<1x64xf32>
    %16 = vector.shape_cast %15 : vector<1x64xf32> to vector<1x1x1x1x64xf32>
    %17 = vector.broadcast %16 : vector<1x1x1x1x64xf32> to vector<2x4x4x4x64xf32>
    %18 = arith.mulf %14, %17 : vector<2x4x4x4x64xf32>
    %19 = arith.addf %13, %18 : vector<2x4x4x4x64xf32>
    %20 = vector.extract_strided_slice %0 {offsets = [0, 0, 1, 0, 0], sizes = [2, 4, 4, 4, 64], strides = [1, 1, 1, 1, 1]} : vector<2x6x6x6x64xf32> to vector<2x4x4x4x64xf32>
    %c3 = arith.constant 3 : index
    %c0_8 = arith.constant 0 : index
    %21 = vector.load %arg2[%c3, %c0_8] : memref<27x64xf32, #tpu.memory_space<vmem>>, vector<1x64xf32>
    %22 = vector.shape_cast %21 : vector<1x64xf32> to vector<1x1x1x1x64xf32>
    %23 = vector.broadcast %22 : vector<1x1x1x1x64xf32> to vector<2x4x4x4x64xf32>
    %24 = arith.mulf %20, %23 : vector<2x4x4x4x64xf32>
    %25 = arith.addf %19, %24 : vector<2x4x4x4x64xf32>
    %26 = vector.extract_strided_slice %0 {offsets = [0, 0, 1, 1, 0], sizes = [2, 4, 4, 4, 64], strides = [1, 1, 1, 1, 1]} : vector<2x6x6x6x64xf32> to vector<2x4x4x4x64xf32>
    %c4 = arith.constant 4 : index
    %c0_9 = arith.constant 0 : index
    %27 = vector.load %arg2[%c4, %c0_9] : memref<27x64xf32, #tpu.memory_space<vmem>>, vector<1x64xf32>
    %28 = vector.shape_cast %27 : vector<1x64xf32> to vector<1x1x1x1x64xf32>
    %29 = vector.broadcast %28 : vector<1x1x1x1x64xf32> to vector<2x4x4x4x64xf32>
    %30 = arith.mulf %26, %29 : vector<2x4x4x4x64xf32>
    %31 = arith.addf %25, %30 : vector<2x4x4x4x64xf32>
    %32 = vector.extract_strided_slice %0 {offsets = [0, 0, 1, 2, 0], sizes = [2, 4, 4, 4, 64], strides = [1, 1, 1, 1, 1]} : vector<2x6x6x6x64xf32> to vector<2x4x4x4x64xf32>
    %c5 = arith.constant 5 : index
    %c0_10 = arith.constant 0 : index
    %33 = vector.load %arg2[%c5, %c0_10] : memref<27x64xf32, #tpu.memory_space<vmem>>, vector<1x64xf32>
    %34 = vector.shape_cast %33 : vector<1x64xf32> to vector<1x1x1x1x64xf32>
    %35 = vector.broadcast %34 : vector<1x1x1x1x64xf32> to vector<2x4x4x4x64xf32>
    %36 = arith.mulf %32, %35 : vector<2x4x4x4x64xf32>
    %37 = arith.addf %31, %36 : vector<2x4x4x4x64xf32>
    %38 = vector.extract_strided_slice %0 {offsets = [0, 0, 2, 0, 0], sizes = [2, 4, 4, 4, 64], strides = [1, 1, 1, 1, 1]} : vector<2x6x6x6x64xf32> to vector<2x4x4x4x64xf32>
    %c6 = arith.constant 6 : index
    %c0_11 = arith.constant 0 : index
    %39 = vector.load %arg2[%c6, %c0_11] : memref<27x64xf32, #tpu.memory_space<vmem>>, vector<1x64xf32>
    %40 = vector.shape_cast %39 : vector<1x64xf32> to vector<1x1x1x1x64xf32>
    %41 = vector.broadcast %40 : vector<1x1x1x1x64xf32> to vector<2x4x4x4x64xf32>
    %42 = arith.mulf %38, %41 : vector<2x4x4x4x64xf32>
    %43 = arith.addf %37, %42 : vector<2x4x4x4x64xf32>
    %44 = vector.extract_strided_slice %0 {offsets = [0, 0, 2, 1, 0], sizes = [2, 4, 4, 4, 64], strides = [1, 1, 1, 1, 1]} : vector<2x6x6x6x64xf32> to vector<2x4x4x4x64xf32>
    %c7 = arith.constant 7 : index
    %c0_12 = arith.constant 0 : index
    %45 = vector.load %arg2[%c7, %c0_12] : memref<27x64xf32, #tpu.memory_space<vmem>>, vector<1x64xf32>
    %46 = vector.shape_cast %45 : vector<1x64xf32> to vector<1x1x1x1x64xf32>
    %47 = vector.broadcast %46 : vector<1x1x1x1x64xf32> to vector<2x4x4x4x64xf32>
    %48 = arith.mulf %44, %47 : vector<2x4x4x4x64xf32>
    %49 = arith.addf %43, %48 : vector<2x4x4x4x64xf32>
    %50 = vector.extract_strided_slice %0 {offsets = [0, 0, 2, 2, 0], sizes = [2, 4, 4, 4, 64], strides = [1, 1, 1, 1, 1]} : vector<2x6x6x6x64xf32> to vector<2x4x4x4x64xf32>
    %c8 = arith.constant 8 : index
    %c0_13 = arith.constant 0 : index
    %51 = vector.load %arg2[%c8, %c0_13] : memref<27x64xf32, #tpu.memory_space<vmem>>, vector<1x64xf32>
    %52 = vector.shape_cast %51 : vector<1x64xf32> to vector<1x1x1x1x64xf32>
    %53 = vector.broadcast %52 : vector<1x1x1x1x64xf32> to vector<2x4x4x4x64xf32>
    %54 = arith.mulf %50, %53 : vector<2x4x4x4x64xf32>
    %55 = arith.addf %49, %54 : vector<2x4x4x4x64xf32>
    %56 = vector.extract_strided_slice %0 {offsets = [0, 1, 0, 0, 0], sizes = [2, 4, 4, 4, 64], strides = [1, 1, 1, 1, 1]} : vector<2x6x6x6x64xf32> to vector<2x4x4x4x64xf32>
    %c9 = arith.constant 9 : index
    %c0_14 = arith.constant 0 : index
    %57 = vector.load %arg2[%c9, %c0_14] : memref<27x64xf32, #tpu.memory_space<vmem>>, vector<1x64xf32>
    %58 = vector.shape_cast %57 : vector<1x64xf32> to vector<1x1x1x1x64xf32>
    %59 = vector.broadcast %58 : vector<1x1x1x1x64xf32> to vector<2x4x4x4x64xf32>
    %60 = arith.mulf %56, %59 : vector<2x4x4x4x64xf32>
    %61 = arith.addf %55, %60 : vector<2x4x4x4x64xf32>
    %62 = vector.extract_strided_slice %0 {offsets = [0, 1, 0, 1, 0], sizes = [2, 4, 4, 4, 64], strides = [1, 1, 1, 1, 1]} : vector<2x6x6x6x64xf32> to vector<2x4x4x4x64xf32>
    %c10 = arith.constant 10 : index
    %c0_15 = arith.constant 0 : index
    %63 = vector.load %arg2[%c10, %c0_15] : memref<27x64xf32, #tpu.memory_space<vmem>>, vector<1x64xf32>
    %64 = vector.shape_cast %63 : vector<1x64xf32> to vector<1x1x1x1x64xf32>
    %65 = vector.broadcast %64 : vector<1x1x1x1x64xf32> to vector<2x4x4x4x64xf32>
    %66 = arith.mulf %62, %65 : vector<2x4x4x4x64xf32>
    %67 = arith.addf %61, %66 : vector<2x4x4x4x64xf32>
    %68 = vector.extract_strided_slice %0 {offsets = [0, 1, 0, 2, 0], sizes = [2, 4, 4, 4, 64], strides = [1, 1, 1, 1, 1]} : vector<2x6x6x6x64xf32> to vector<2x4x4x4x64xf32>
    %c11 = arith.constant 11 : index
    %c0_16 = arith.constant 0 : index
    %69 = vector.load %arg2[%c11, %c0_16] : memref<27x64xf32, #tpu.memory_space<vmem>>, vector<1x64xf32>
    %70 = vector.shape_cast %69 : vector<1x64xf32> to vector<1x1x1x1x64xf32>
    %71 = vector.broadcast %70 : vector<1x1x1x1x64xf32> to vector<2x4x4x4x64xf32>
    %72 = arith.mulf %68, %71 : vector<2x4x4x4x64xf32>
    %73 = arith.addf %67, %72 : vector<2x4x4x4x64xf32>
    %74 = vector.extract_strided_slice %0 {offsets = [0, 1, 1, 0, 0], sizes = [2, 4, 4, 4, 64], strides = [1, 1, 1, 1, 1]} : vector<2x6x6x6x64xf32> to vector<2x4x4x4x64xf32>
    %c12 = arith.constant 12 : index
    %c0_17 = arith.constant 0 : index
    %75 = vector.load %arg2[%c12, %c0_17] : memref<27x64xf32, #tpu.memory_space<vmem>>, vector<1x64xf32>
    %76 = vector.shape_cast %75 : vector<1x64xf32> to vector<1x1x1x1x64xf32>
    %77 = vector.broadcast %76 : vector<1x1x1x1x64xf32> to vector<2x4x4x4x64xf32>
    %78 = arith.mulf %74, %77 : vector<2x4x4x4x64xf32>
    %79 = arith.addf %73, %78 : vector<2x4x4x4x64xf32>
    %80 = vector.extract_strided_slice %0 {offsets = [0, 1, 1, 1, 0], sizes = [2, 4, 4, 4, 64], strides = [1, 1, 1, 1, 1]} : vector<2x6x6x6x64xf32> to vector<2x4x4x4x64xf32>
    %c13 = arith.constant 13 : index
    %c0_18 = arith.constant 0 : index
    %81 = vector.load %arg2[%c13, %c0_18] : memref<27x64xf32, #tpu.memory_space<vmem>>, vector<1x64xf32>
    %82 = vector.shape_cast %81 : vector<1x64xf32> to vector<1x1x1x1x64xf32>
    %83 = vector.broadcast %82 : vector<1x1x1x1x64xf32> to vector<2x4x4x4x64xf32>
    %84 = arith.mulf %80, %83 : vector<2x4x4x4x64xf32>
    %85 = arith.addf %79, %84 : vector<2x4x4x4x64xf32>
    %86 = vector.extract_strided_slice %0 {offsets = [0, 1, 1, 2, 0], sizes = [2, 4, 4, 4, 64], strides = [1, 1, 1, 1, 1]} : vector<2x6x6x6x64xf32> to vector<2x4x4x4x64xf32>
    %c14 = arith.constant 14 : index
    %c0_19 = arith.constant 0 : index
    %87 = vector.load %arg2[%c14, %c0_19] : memref<27x64xf32, #tpu.memory_space<vmem>>, vector<1x64xf32>
    %88 = vector.shape_cast %87 : vector<1x64xf32> to vector<1x1x1x1x64xf32>
    %89 = vector.broadcast %88 : vector<1x1x1x1x64xf32> to vector<2x4x4x4x64xf32>
    %90 = arith.mulf %86, %89 : vector<2x4x4x4x64xf32>
    %91 = arith.addf %85, %90 : vector<2x4x4x4x64xf32>
    %92 = vector.extract_strided_slice %0 {offsets = [0, 1, 2, 0, 0], sizes = [2, 4, 4, 4, 64], strides = [1, 1, 1, 1, 1]} : vector<2x6x6x6x64xf32> to vector<2x4x4x4x64xf32>
    %c15 = arith.constant 15 : index
    %c0_20 = arith.constant 0 : index
    %93 = vector.load %arg2[%c15, %c0_20] : memref<27x64xf32, #tpu.memory_space<vmem>>, vector<1x64xf32>
    %94 = vector.shape_cast %93 : vector<1x64xf32> to vector<1x1x1x1x64xf32>
    %95 = vector.broadcast %94 : vector<1x1x1x1x64xf32> to vector<2x4x4x4x64xf32>
    %96 = arith.mulf %92, %95 : vector<2x4x4x4x64xf32>
    %97 = arith.addf %91, %96 : vector<2x4x4x4x64xf32>
    %98 = vector.extract_strided_slice %0 {offsets = [0, 1, 2, 1, 0], sizes = [2, 4, 4, 4, 64], strides = [1, 1, 1, 1, 1]} : vector<2x6x6x6x64xf32> to vector<2x4x4x4x64xf32>
    %c16 = arith.constant 16 : index
    %c0_21 = arith.constant 0 : index
    %99 = vector.load %arg2[%c16, %c0_21] : memref<27x64xf32, #tpu.memory_space<vmem>>, vector<1x64xf32>
    %100 = vector.shape_cast %99 : vector<1x64xf32> to vector<1x1x1x1x64xf32>
    %101 = vector.broadcast %100 : vector<1x1x1x1x64xf32> to vector<2x4x4x4x64xf32>
    %102 = arith.mulf %98, %101 : vector<2x4x4x4x64xf32>
    %103 = arith.addf %97, %102 : vector<2x4x4x4x64xf32>
    %104 = vector.extract_strided_slice %0 {offsets = [0, 1, 2, 2, 0], sizes = [2, 4, 4, 4, 64], strides = [1, 1, 1, 1, 1]} : vector<2x6x6x6x64xf32> to vector<2x4x4x4x64xf32>
    %c17 = arith.constant 17 : index
    %c0_22 = arith.constant 0 : index
    %105 = vector.load %arg2[%c17, %c0_22] : memref<27x64xf32, #tpu.memory_space<vmem>>, vector<1x64xf32>
    %106 = vector.shape_cast %105 : vector<1x64xf32> to vector<1x1x1x1x64xf32>
    %107 = vector.broadcast %106 : vector<1x1x1x1x64xf32> to vector<2x4x4x4x64xf32>
    %108 = arith.mulf %104, %107 : vector<2x4x4x4x64xf32>
    %109 = arith.addf %103, %108 : vector<2x4x4x4x64xf32>
    %110 = vector.extract_strided_slice %0 {offsets = [0, 2, 0, 0, 0], sizes = [2, 4, 4, 4, 64], strides = [1, 1, 1, 1, 1]} : vector<2x6x6x6x64xf32> to vector<2x4x4x4x64xf32>
    %c18 = arith.constant 18 : index
    %c0_23 = arith.constant 0 : index
    %111 = vector.load %arg2[%c18, %c0_23] : memref<27x64xf32, #tpu.memory_space<vmem>>, vector<1x64xf32>
    %112 = vector.shape_cast %111 : vector<1x64xf32> to vector<1x1x1x1x64xf32>
    %113 = vector.broadcast %112 : vector<1x1x1x1x64xf32> to vector<2x4x4x4x64xf32>
    %114 = arith.mulf %110, %113 : vector<2x4x4x4x64xf32>
    %115 = arith.addf %109, %114 : vector<2x4x4x4x64xf32>
    %116 = vector.extract_strided_slice %0 {offsets = [0, 2, 0, 1, 0], sizes = [2, 4, 4, 4, 64], strides = [1, 1, 1, 1, 1]} : vector<2x6x6x6x64xf32> to vector<2x4x4x4x64xf32>
    %c19 = arith.constant 19 : index
    %c0_24 = arith.constant 0 : index
    %117 = vector.load %arg2[%c19, %c0_24] : memref<27x64xf32, #tpu.memory_space<vmem>>, vector<1x64xf32>
    %118 = vector.shape_cast %117 : vector<1x64xf32> to vector<1x1x1x1x64xf32>
    %119 = vector.broadcast %118 : vector<1x1x1x1x64xf32> to vector<2x4x4x4x64xf32>
    %120 = arith.mulf %116, %119 : vector<2x4x4x4x64xf32>
    %121 = arith.addf %115, %120 : vector<2x4x4x4x64xf32>
    %122 = vector.extract_strided_slice %0 {offsets = [0, 2, 0, 2, 0], sizes = [2, 4, 4, 4, 64], strides = [1, 1, 1, 1, 1]} : vector<2x6x6x6x64xf32> to vector<2x4x4x4x64xf32>
    %c20 = arith.constant 20 : index
    %c0_25 = arith.constant 0 : index
    %123 = vector.load %arg2[%c20, %c0_25] : memref<27x64xf32, #tpu.memory_space<vmem>>, vector<1x64xf32>
    %124 = vector.shape_cast %123 : vector<1x64xf32> to vector<1x1x1x1x64xf32>
    %125 = vector.broadcast %124 : vector<1x1x1x1x64xf32> to vector<2x4x4x4x64xf32>
    %126 = arith.mulf %122, %125 : vector<2x4x4x4x64xf32>
    %127 = arith.addf %121, %126 : vector<2x4x4x4x64xf32>
    %128 = vector.extract_strided_slice %0 {offsets = [0, 2, 1, 0, 0], sizes = [2, 4, 4, 4, 64], strides = [1, 1, 1, 1, 1]} : vector<2x6x6x6x64xf32> to vector<2x4x4x4x64xf32>
    %c21 = arith.constant 21 : index
    %c0_26 = arith.constant 0 : index
    %129 = vector.load %arg2[%c21, %c0_26] : memref<27x64xf32, #tpu.memory_space<vmem>>, vector<1x64xf32>
    %130 = vector.shape_cast %129 : vector<1x64xf32> to vector<1x1x1x1x64xf32>
    %131 = vector.broadcast %130 : vector<1x1x1x1x64xf32> to vector<2x4x4x4x64xf32>
    %132 = arith.mulf %128, %131 : vector<2x4x4x4x64xf32>
    %133 = arith.addf %127, %132 : vector<2x4x4x4x64xf32>
    %134 = vector.extract_strided_slice %0 {offsets = [0, 2, 1, 1, 0], sizes = [2, 4, 4, 4, 64], strides = [1, 1, 1, 1, 1]} : vector<2x6x6x6x64xf32> to vector<2x4x4x4x64xf32>
    %c22 = arith.constant 22 : index
    %c0_27 = arith.constant 0 : index
    %135 = vector.load %arg2[%c22, %c0_27] : memref<27x64xf32, #tpu.memory_space<vmem>>, vector<1x64xf32>
    %136 = vector.shape_cast %135 : vector<1x64xf32> to vector<1x1x1x1x64xf32>
    %137 = vector.broadcast %136 : vector<1x1x1x1x64xf32> to vector<2x4x4x4x64xf32>
    %138 = arith.mulf %134, %137 : vector<2x4x4x4x64xf32>
    %139 = arith.addf %133, %138 : vector<2x4x4x4x64xf32>
    %140 = vector.extract_strided_slice %0 {offsets = [0, 2, 1, 2, 0], sizes = [2, 4, 4, 4, 64], strides = [1, 1, 1, 1, 1]} : vector<2x6x6x6x64xf32> to vector<2x4x4x4x64xf32>
    %c23 = arith.constant 23 : index
    %c0_28 = arith.constant 0 : index
    %141 = vector.load %arg2[%c23, %c0_28] : memref<27x64xf32, #tpu.memory_space<vmem>>, vector<1x64xf32>
    %142 = vector.shape_cast %141 : vector<1x64xf32> to vector<1x1x1x1x64xf32>
    %143 = vector.broadcast %142 : vector<1x1x1x1x64xf32> to vector<2x4x4x4x64xf32>
    %144 = arith.mulf %140, %143 : vector<2x4x4x4x64xf32>
    %145 = arith.addf %139, %144 : vector<2x4x4x4x64xf32>
    %146 = vector.extract_strided_slice %0 {offsets = [0, 2, 2, 0, 0], sizes = [2, 4, 4, 4, 64], strides = [1, 1, 1, 1, 1]} : vector<2x6x6x6x64xf32> to vector<2x4x4x4x64xf32>
    %c24 = arith.constant 24 : index
    %c0_29 = arith.constant 0 : index
    %147 = vector.load %arg2[%c24, %c0_29] : memref<27x64xf32, #tpu.memory_space<vmem>>, vector<1x64xf32>
    %148 = vector.shape_cast %147 : vector<1x64xf32> to vector<1x1x1x1x64xf32>
    %149 = vector.broadcast %148 : vector<1x1x1x1x64xf32> to vector<2x4x4x4x64xf32>
    %150 = arith.mulf %146, %149 : vector<2x4x4x4x64xf32>
    %151 = arith.addf %145, %150 : vector<2x4x4x4x64xf32>
    %152 = vector.extract_strided_slice %0 {offsets = [0, 2, 2, 1, 0], sizes = [2, 4, 4, 4, 64], strides = [1, 1, 1, 1, 1]} : vector<2x6x6x6x64xf32> to vector<2x4x4x4x64xf32>
    %c25 = arith.constant 25 : index
    %c0_30 = arith.constant 0 : index
    %153 = vector.load %arg2[%c25, %c0_30] : memref<27x64xf32, #tpu.memory_space<vmem>>, vector<1x64xf32>
    %154 = vector.shape_cast %153 : vector<1x64xf32> to vector<1x1x1x1x64xf32>
    %155 = vector.broadcast %154 : vector<1x1x1x1x64xf32> to vector<2x4x4x4x64xf32>
    %156 = arith.mulf %152, %155 : vector<2x4x4x4x64xf32>
    %157 = arith.addf %151, %156 : vector<2x4x4x4x64xf32>
    %158 = vector.extract_strided_slice %0 {offsets = [0, 2, 2, 2, 0], sizes = [2, 4, 4, 4, 64], strides = [1, 1, 1, 1, 1]} : vector<2x6x6x6x64xf32> to vector<2x4x4x4x64xf32>
    %c26 = arith.constant 26 : index
    %c0_31 = arith.constant 0 : index
    %159 = vector.load %arg2[%c26, %c0_31] : memref<27x64xf32, #tpu.memory_space<vmem>>, vector<1x64xf32>
    %160 = vector.shape_cast %159 : vector<1x64xf32> to vector<1x1x1x1x64xf32>
    %161 = vector.broadcast %160 : vector<1x1x1x1x64xf32> to vector<2x4x4x4x64xf32>
    %162 = arith.mulf %158, %161 : vector<2x4x4x4x64xf32>
    %163 = arith.addf %157, %162 : vector<2x4x4x4x64xf32>
    %c0_32 = arith.constant 0 : index
    %c0_33 = arith.constant 0 : index
    %164 = vector.load %arg3[%c0_32, %c0_33] : memref<1x64xf32, #tpu.memory_space<vmem>>, vector<1x64xf32>
    %165 = vector.shape_cast %164 : vector<1x64xf32> to vector<1x1x1x1x64xf32>
    %166 = vector.broadcast %165 : vector<1x1x1x1x64xf32> to vector<2x4x4x4x64xf32>
    %167 = arith.addf %163, %166 : vector<2x4x4x4x64xf32>
    %168 = vector.extract_strided_slice %0 {offsets = [0, 1, 1, 1, 0], sizes = [2, 4, 4, 4, 64], strides = [1, 1, 1, 1, 1]} : vector<2x6x6x6x64xf32> to vector<2x4x4x4x64xf32>
    %169 = arith.addf %167, %168 : vector<2x4x4x4x64xf32>
    %170 = vector.shape_cast %169 : vector<2x4x4x4x64xf32> to vector<128x64xf32>
    %c0_34 = arith.constant 0 : index
    %c0_35 = arith.constant 0 : index
    %171 = vector.load %arg7[%c0_34, %c0_35] : memref<1x64xf32, #tpu.memory_space<vmem>>, vector<1x64xf32>
    %c0_36 = arith.constant 0 : index
    %c0_37 = arith.constant 0 : index
    %172 = vector.load %arg8[%c0_36, %c0_37] : memref<1x64xf32, #tpu.memory_space<vmem>>, vector<1x64xf32>
    %cst_38 = arith.constant dense<0.000000e+00> : vector<128xf32>
    %173 = vector.multi_reduction <add>, %170, %cst_38 [1] : vector<128x64xf32> to vector<128xf32>
    %174 = vector.shape_cast %173 : vector<128xf32> to vector<128x1xf32>
    %cst_39 = arith.constant 6.400000e+01 : f32
    %175 = vector.broadcast %cst_39 : f32 to vector<128x1xf32>
    %176 = arith.divf %174, %175 : vector<128x1xf32>
    %177 = vector.broadcast %176 : vector<128x1xf32> to vector<128x64xf32>
    %178 = arith.subf %170, %177 : vector<128x64xf32>
    %179 = arith.mulf %178, %178 : vector<128x64xf32>
    %cst_40 = arith.constant dense<0.000000e+00> : vector<128xf32>
    %180 = vector.multi_reduction <add>, %179, %cst_40 [1] : vector<128x64xf32> to vector<128xf32>
    %181 = vector.shape_cast %180 : vector<128xf32> to vector<128x1xf32>
    %cst_41 = arith.constant 6.400000e+01 : f32
    %182 = vector.broadcast %cst_41 : f32 to vector<128x1xf32>
    %183 = arith.divf %181, %182 : vector<128x1xf32>
    %cst_42 = arith.constant 9.99999997E-7 : f32
    %184 = vector.broadcast %cst_42 : f32 to vector<128x1xf32>
    %185 = arith.addf %183, %184 : vector<128x1xf32>
    %186 = math.rsqrt %185 : vector<128x1xf32>
    %187 = vector.broadcast %186 : vector<128x1xf32> to vector<128x64xf32>
    %188 = arith.mulf %178, %187 : vector<128x64xf32>
    %189 = vector.broadcast %171 : vector<1x64xf32> to vector<128x64xf32>
    %190 = arith.mulf %188, %189 : vector<128x64xf32>
    %191 = vector.broadcast %172 : vector<1x64xf32> to vector<128x64xf32>
    %192 = arith.addf %190, %191 : vector<128x64xf32>
    %193 = arith.truncf %192 : vector<128x64xf32> to vector<128x64xbf16>
    %c0_43 = arith.constant 0 : index
    %c0_44 = arith.constant 0 : index
    %194 = vector.load %arg4[%c0_43, %c0_44] : memref<64x192xf32, #tpu.memory_space<vmem>>, vector<64x192xf32>
    %195 = arith.truncf %194 : vector<64x192xf32> to vector<64x192xbf16>
    %cst_45 = arith.constant dense<0.000000e+00> : vector<128x192xf32>
    %196 = tpu.matmul %193, %195, %cst_45 {dimension_numbers = #tpu.dot_dimension_numbers<[1], [0], [0], [1], [0, 0, 1, 1], [], []>} : vector<128x64xbf16>, vector<64x192xbf16>, vector<128x192xf32> -> vector<128x192xf32>
    %197 = vector.shape_cast %196 : vector<128x192xf32> to vector<2x64x192xf32>
    %198 = arith.truncf %197 : vector<2x64x192xf32> to vector<2x64x192xbf16>
    %199 = vector.extract_strided_slice %198 {offsets = [0, 0, 0], sizes = [2, 64, 8], strides = [1, 1, 1]} : vector<2x64x192xbf16> to vector<2x64x8xbf16>
    %200 = vector.extract_strided_slice %198 {offsets = [0, 0, 64], sizes = [2, 64, 8], strides = [1, 1, 1]} : vector<2x64x192xbf16> to vector<2x64x8xbf16>
    %201 = vector.extract_strided_slice %198 {offsets = [0, 0, 128], sizes = [2, 64, 8], strides = [1, 1, 1]} : vector<2x64x192xbf16> to vector<2x64x8xbf16>
    "tpu.trace_start"() <{level = 10 : i32, message = "bnd,bmd->bnm"}> : () -> ()
    %cst_46 = arith.constant dense<0.000000e+00> : vector<2x64x64xf32>
    %202 = tpu.matmul %199, %200, %cst_46 {dimension_numbers = #tpu.dot_dimension_numbers<[2], [2], [1], [1], [0, 0, 0, 1, 1, 1], [0], [0]>} : vector<2x64x8xbf16>, vector<2x64x8xbf16>, vector<2x64x64xf32> -> vector<2x64x64xf32>
    "tpu.trace_stop"() : () -> ()
    %cst_47 = arith.constant 0.353553385 : f32
    %203 = vector.broadcast %cst_47 : f32 to vector<2x64x64xf32>
    %204 = arith.mulf %202, %203 : vector<2x64x64xf32>
    %cst_48 = arith.constant dense<0xFF800000> : vector<2x64xf32>
    %205 = vector.multi_reduction <maximumf>, %204, %cst_48 [2] : vector<2x64x64xf32> to vector<2x64xf32>
    %206 = vector.shape_cast %205 : vector<2x64xf32> to vector<2x64x1xf32>
    %207 = vector.broadcast %206 : vector<2x64x1xf32> to vector<2x64x64xf32>
    %208 = arith.subf %204, %207 : vector<2x64x64xf32>
    %209 = math.exp %208 : vector<2x64x64xf32>
    %cst_49 = arith.constant dense<0.000000e+00> : vector<2x64xf32>
    %210 = vector.multi_reduction <add>, %209, %cst_49 [2] : vector<2x64x64xf32> to vector<2x64xf32>
    %211 = vector.shape_cast %210 : vector<2x64xf32> to vector<2x64x1xf32>
    %212 = tpu.reciprocal %211 {approx = true} : vector<2x64x1xf32> -> vector<2x64x1xf32>
    %213 = vector.broadcast %212 : vector<2x64x1xf32> to vector<2x64x64xf32>
    %214 = arith.mulf %209, %213 : vector<2x64x64xf32>
    %215 = arith.truncf %214 : vector<2x64x64xf32> to vector<2x64x64xbf16>
    "tpu.trace_start"() <{level = 10 : i32, message = "bnm,bmd->bnd"}> : () -> ()
    %cst_50 = arith.constant dense<0.000000e+00> : vector<2x64x8xf32>
    %216 = tpu.matmul %215, %201, %cst_50 {dimension_numbers = #tpu.dot_dimension_numbers<[2], [1], [1], [2], [0, 0, 0, 1, 1, 2], [0], [0]>} : vector<2x64x64xbf16>, vector<2x64x8xbf16>, vector<2x64x8xf32> -> vector<2x64x8xf32>
    "tpu.trace_stop"() : () -> ()
    %217 = vector.shape_cast %216 : vector<2x64x8xf32> to vector<128x8xf32>
    %c0_51 = arith.constant 0 : index
    %c0_52 = arith.constant 0 : index
    %218 = vector.load %arg18[%c0_51, %c0_52] : memref<128x64xf32, #tpu.memory_space<vmem>>, vector<128x8xf32>
    tpu.vector_store %arg18[%c0_51, %c0_52], %217 {strides = array<i32>} : memref<128x64xf32, #tpu.memory_space<vmem>>, vector<128x8xf32>,
    %219 = vector.extract_strided_slice %198 {offsets = [0, 0, 8], sizes = [2, 64, 8], strides = [1, 1, 1]} : vector<2x64x192xbf16> to vector<2x64x8xbf16>
    %220 = vector.extract_strided_slice %198 {offsets = [0, 0, 72], sizes = [2, 64, 8], strides = [1, 1, 1]} : vector<2x64x192xbf16> to vector<2x64x8xbf16>
    %221 = vector.extract_strided_slice %198 {offsets = [0, 0, 136], sizes = [2, 64, 8], strides = [1, 1, 1]} : vector<2x64x192xbf16> to vector<2x64x8xbf16>
    "tpu.trace_start"() <{level = 10 : i32, message = "bnd,bmd->bnm"}> : () -> ()
    %cst_53 = arith.constant dense<0.000000e+00> : vector<2x64x64xf32>
    %222 = tpu.matmul %219, %220, %cst_53 {dimension_numbers = #tpu.dot_dimension_numbers<[2], [2], [1], [1], [0, 0, 0, 1, 1, 1], [0], [0]>} : vector<2x64x8xbf16>, vector<2x64x8xbf16>, vector<2x64x64xf32> -> vector<2x64x64xf32>
    "tpu.trace_stop"() : () -> ()
    %cst_54 = arith.constant 0.353553385 : f32
    %223 = vector.broadcast %cst_54 : f32 to vector<2x64x64xf32>
    %224 = arith.mulf %222, %223 : vector<2x64x64xf32>
    %cst_55 = arith.constant dense<0xFF800000> : vector<2x64xf32>
    %225 = vector.multi_reduction <maximumf>, %224, %cst_55 [2] : vector<2x64x64xf32> to vector<2x64xf32>
    %226 = vector.shape_cast %225 : vector<2x64xf32> to vector<2x64x1xf32>
    %227 = vector.broadcast %226 : vector<2x64x1xf32> to vector<2x64x64xf32>
    %228 = arith.subf %224, %227 : vector<2x64x64xf32>
    %229 = math.exp %228 : vector<2x64x64xf32>
    %cst_56 = arith.constant dense<0.000000e+00> : vector<2x64xf32>
    %230 = vector.multi_reduction <add>, %229, %cst_56 [2] : vector<2x64x64xf32> to vector<2x64xf32>
    %231 = vector.shape_cast %230 : vector<2x64xf32> to vector<2x64x1xf32>
    %232 = tpu.reciprocal %231 {approx = true} : vector<2x64x1xf32> -> vector<2x64x1xf32>
    %233 = vector.broadcast %232 : vector<2x64x1xf32> to vector<2x64x64xf32>
    %234 = arith.mulf %229, %233 : vector<2x64x64xf32>
    %235 = arith.truncf %234 : vector<2x64x64xf32> to vector<2x64x64xbf16>
    "tpu.trace_start"() <{level = 10 : i32, message = "bnm,bmd->bnd"}> : () -> ()
    %cst_57 = arith.constant dense<0.000000e+00> : vector<2x64x8xf32>
    %236 = tpu.matmul %235, %221, %cst_57 {dimension_numbers = #tpu.dot_dimension_numbers<[2], [1], [1], [2], [0, 0, 0, 1, 1, 2], [0], [0]>} : vector<2x64x64xbf16>, vector<2x64x8xbf16>, vector<2x64x8xf32> -> vector<2x64x8xf32>
    "tpu.trace_stop"() : () -> ()
    %237 = vector.shape_cast %236 : vector<2x64x8xf32> to vector<128x8xf32>
    %c0_58 = arith.constant 0 : index
    %c8_59 = arith.constant 8 : index
    %238 = vector.load %arg18[%c0_58, %c8_59] : memref<128x64xf32, #tpu.memory_space<vmem>>, vector<128x8xf32>
    tpu.vector_store %arg18[%c0_58, %c8_59], %237 {strides = array<i32>} : memref<128x64xf32, #tpu.memory_space<vmem>>, vector<128x8xf32>,
    %239 = vector.extract_strided_slice %198 {offsets = [0, 0, 16], sizes = [2, 64, 8], strides = [1, 1, 1]} : vector<2x64x192xbf16> to vector<2x64x8xbf16>
    %240 = vector.extract_strided_slice %198 {offsets = [0, 0, 80], sizes = [2, 64, 8], strides = [1, 1, 1]} : vector<2x64x192xbf16> to vector<2x64x8xbf16>
    %241 = vector.extract_strided_slice %198 {offsets = [0, 0, 144], sizes = [2, 64, 8], strides = [1, 1, 1]} : vector<2x64x192xbf16> to vector<2x64x8xbf16>
    "tpu.trace_start"() <{level = 10 : i32, message = "bnd,bmd->bnm"}> : () -> ()
    %cst_60 = arith.constant dense<0.000000e+00> : vector<2x64x64xf32>
    %242 = tpu.matmul %239, %240, %cst_60 {dimension_numbers = #tpu.dot_dimension_numbers<[2], [2], [1], [1], [0, 0, 0, 1, 1, 1], [0], [0]>} : vector<2x64x8xbf16>, vector<2x64x8xbf16>, vector<2x64x64xf32> -> vector<2x64x64xf32>
    "tpu.trace_stop"() : () -> ()
    %cst_61 = arith.constant 0.353553385 : f32
    %243 = vector.broadcast %cst_61 : f32 to vector<2x64x64xf32>
    %244 = arith.mulf %242, %243 : vector<2x64x64xf32>
    %cst_62 = arith.constant dense<0xFF800000> : vector<2x64xf32>
    %245 = vector.multi_reduction <maximumf>, %244, %cst_62 [2] : vector<2x64x64xf32> to vector<2x64xf32>
    %246 = vector.shape_cast %245 : vector<2x64xf32> to vector<2x64x1xf32>
    %247 = vector.broadcast %246 : vector<2x64x1xf32> to vector<2x64x64xf32>
    %248 = arith.subf %244, %247 : vector<2x64x64xf32>
    %249 = math.exp %248 : vector<2x64x64xf32>
    %cst_63 = arith.constant dense<0.000000e+00> : vector<2x64xf32>
    %250 = vector.multi_reduction <add>, %249, %cst_63 [2] : vector<2x64x64xf32> to vector<2x64xf32>
    %251 = vector.shape_cast %250 : vector<2x64xf32> to vector<2x64x1xf32>
    %252 = tpu.reciprocal %251 {approx = true} : vector<2x64x1xf32> -> vector<2x64x1xf32>
    %253 = vector.broadcast %252 : vector<2x64x1xf32> to vector<2x64x64xf32>
    %254 = arith.mulf %249, %253 : vector<2x64x64xf32>
    %255 = arith.truncf %254 : vector<2x64x64xf32> to vector<2x64x64xbf16>
    "tpu.trace_start"() <{level = 10 : i32, message = "bnm,bmd->bnd"}> : () -> ()
    %cst_64 = arith.constant dense<0.000000e+00> : vector<2x64x8xf32>
    %256 = tpu.matmul %255, %241, %cst_64 {dimension_numbers = #tpu.dot_dimension_numbers<[2], [1], [1], [2], [0, 0, 0, 1, 1, 2], [0], [0]>} : vector<2x64x64xbf16>, vector<2x64x8xbf16>, vector<2x64x8xf32> -> vector<2x64x8xf32>
    "tpu.trace_stop"() : () -> ()
    %257 = vector.shape_cast %256 : vector<2x64x8xf32> to vector<128x8xf32>
    %c0_65 = arith.constant 0 : index
    %c16_66 = arith.constant 16 : index
    %258 = vector.load %arg18[%c0_65, %c16_66] : memref<128x64xf32, #tpu.memory_space<vmem>>, vector<128x8xf32>
    tpu.vector_store %arg18[%c0_65, %c16_66], %257 {strides = array<i32>} : memref<128x64xf32, #tpu.memory_space<vmem>>, vector<128x8xf32>,
    %259 = vector.extract_strided_slice %198 {offsets = [0, 0, 24], sizes = [2, 64, 8], strides = [1, 1, 1]} : vector<2x64x192xbf16> to vector<2x64x8xbf16>
    %260 = vector.extract_strided_slice %198 {offsets = [0, 0, 88], sizes = [2, 64, 8], strides = [1, 1, 1]} : vector<2x64x192xbf16> to vector<2x64x8xbf16>
    %261 = vector.extract_strided_slice %198 {offsets = [0, 0, 152], sizes = [2, 64, 8], strides = [1, 1, 1]} : vector<2x64x192xbf16> to vector<2x64x8xbf16>
    "tpu.trace_start"() <{level = 10 : i32, message = "bnd,bmd->bnm"}> : () -> ()
    %cst_67 = arith.constant dense<0.000000e+00> : vector<2x64x64xf32>
    %262 = tpu.matmul %259, %260, %cst_67 {dimension_numbers = #tpu.dot_dimension_numbers<[2], [2], [1], [1], [0, 0, 0, 1, 1, 1], [0], [0]>} : vector<2x64x8xbf16>, vector<2x64x8xbf16>, vector<2x64x64xf32> -> vector<2x64x64xf32>
    "tpu.trace_stop"() : () -> ()
    %cst_68 = arith.constant 0.353553385 : f32
    %263 = vector.broadcast %cst_68 : f32 to vector<2x64x64xf32>
    %264 = arith.mulf %262, %263 : vector<2x64x64xf32>
    %cst_69 = arith.constant dense<0xFF800000> : vector<2x64xf32>
    %265 = vector.multi_reduction <maximumf>, %264, %cst_69 [2] : vector<2x64x64xf32> to vector<2x64xf32>
    %266 = vector.shape_cast %265 : vector<2x64xf32> to vector<2x64x1xf32>
    %267 = vector.broadcast %266 : vector<2x64x1xf32> to vector<2x64x64xf32>
    %268 = arith.subf %264, %267 : vector<2x64x64xf32>
    %269 = math.exp %268 : vector<2x64x64xf32>
    %cst_70 = arith.constant dense<0.000000e+00> : vector<2x64xf32>
    %270 = vector.multi_reduction <add>, %269, %cst_70 [2] : vector<2x64x64xf32> to vector<2x64xf32>
    %271 = vector.shape_cast %270 : vector<2x64xf32> to vector<2x64x1xf32>
    %272 = tpu.reciprocal %271 {approx = true} : vector<2x64x1xf32> -> vector<2x64x1xf32>
    %273 = vector.broadcast %272 : vector<2x64x1xf32> to vector<2x64x64xf32>
    %274 = arith.mulf %269, %273 : vector<2x64x64xf32>
    %275 = arith.truncf %274 : vector<2x64x64xf32> to vector<2x64x64xbf16>
    "tpu.trace_start"() <{level = 10 : i32, message = "bnm,bmd->bnd"}> : () -> ()
    %cst_71 = arith.constant dense<0.000000e+00> : vector<2x64x8xf32>
    %276 = tpu.matmul %275, %261, %cst_71 {dimension_numbers = #tpu.dot_dimension_numbers<[2], [1], [1], [2], [0, 0, 0, 1, 1, 2], [0], [0]>} : vector<2x64x64xbf16>, vector<2x64x8xbf16>, vector<2x64x8xf32> -> vector<2x64x8xf32>
    "tpu.trace_stop"() : () -> ()
    %277 = vector.shape_cast %276 : vector<2x64x8xf32> to vector<128x8xf32>
    %c0_72 = arith.constant 0 : index
    %c24_73 = arith.constant 24 : index
    %278 = vector.load %arg18[%c0_72, %c24_73] : memref<128x64xf32, #tpu.memory_space<vmem>>, vector<128x8xf32>
    tpu.vector_store %arg18[%c0_72, %c24_73], %277 {strides = array<i32>} : memref<128x64xf32, #tpu.memory_space<vmem>>, vector<128x8xf32>,
    %279 = vector.extract_strided_slice %198 {offsets = [0, 0, 32], sizes = [2, 64, 8], strides = [1, 1, 1]} : vector<2x64x192xbf16> to vector<2x64x8xbf16>
    %280 = vector.extract_strided_slice %198 {offsets = [0, 0, 96], sizes = [2, 64, 8], strides = [1, 1, 1]} : vector<2x64x192xbf16> to vector<2x64x8xbf16>
    %281 = vector.extract_strided_slice %198 {offsets = [0, 0, 160], sizes = [2, 64, 8], strides = [1, 1, 1]} : vector<2x64x192xbf16> to vector<2x64x8xbf16>
    "tpu.trace_start"() <{level = 10 : i32, message = "bnd,bmd->bnm"}> : () -> ()
    %cst_74 = arith.constant dense<0.000000e+00> : vector<2x64x64xf32>
    %282 = tpu.matmul %279, %280, %cst_74 {dimension_numbers = #tpu.dot_dimension_numbers<[2], [2], [1], [1], [0, 0, 0, 1, 1, 1], [0], [0]>} : vector<2x64x8xbf16>, vector<2x64x8xbf16>, vector<2x64x64xf32> -> vector<2x64x64xf32>
    "tpu.trace_stop"() : () -> ()
    %cst_75 = arith.constant 0.353553385 : f32
    %283 = vector.broadcast %cst_75 : f32 to vector<2x64x64xf32>
    %284 = arith.mulf %282, %283 : vector<2x64x64xf32>
    %cst_76 = arith.constant dense<0xFF800000> : vector<2x64xf32>
    %285 = vector.multi_reduction <maximumf>, %284, %cst_76 [2] : vector<2x64x64xf32> to vector<2x64xf32>
    %286 = vector.shape_cast %285 : vector<2x64xf32> to vector<2x64x1xf32>
    %287 = vector.broadcast %286 : vector<2x64x1xf32> to vector<2x64x64xf32>
    %288 = arith.subf %284, %287 : vector<2x64x64xf32>
    %289 = math.exp %288 : vector<2x64x64xf32>
    %cst_77 = arith.constant dense<0.000000e+00> : vector<2x64xf32>
    %290 = vector.multi_reduction <add>, %289, %cst_77 [2] : vector<2x64x64xf32> to vector<2x64xf32>
    %291 = vector.shape_cast %290 : vector<2x64xf32> to vector<2x64x1xf32>
    %292 = tpu.reciprocal %291 {approx = true} : vector<2x64x1xf32> -> vector<2x64x1xf32>
    %293 = vector.broadcast %292 : vector<2x64x1xf32> to vector<2x64x64xf32>
    %294 = arith.mulf %289, %293 : vector<2x64x64xf32>
    %295 = arith.truncf %294 : vector<2x64x64xf32> to vector<2x64x64xbf16>
    "tpu.trace_start"() <{level = 10 : i32, message = "bnm,bmd->bnd"}> : () -> ()
    %cst_78 = arith.constant dense<0.000000e+00> : vector<2x64x8xf32>
    %296 = tpu.matmul %295, %281, %cst_78 {dimension_numbers = #tpu.dot_dimension_numbers<[2], [1], [1], [2], [0, 0, 0, 1, 1, 2], [0], [0]>} : vector<2x64x64xbf16>, vector<2x64x8xbf16>, vector<2x64x8xf32> -> vector<2x64x8xf32>
    "tpu.trace_stop"() : () -> ()
    %297 = vector.shape_cast %296 : vector<2x64x8xf32> to vector<128x8xf32>
    %c0_79 = arith.constant 0 : index
    %c32 = arith.constant 32 : index
    %298 = vector.load %arg18[%c0_79, %c32] : memref<128x64xf32, #tpu.memory_space<vmem>>, vector<128x8xf32>
    tpu.vector_store %arg18[%c0_79, %c32], %297 {strides = array<i32>} : memref<128x64xf32, #tpu.memory_space<vmem>>, vector<128x8xf32>,
    %299 = vector.extract_strided_slice %198 {offsets = [0, 0, 40], sizes = [2, 64, 8], strides = [1, 1, 1]} : vector<2x64x192xbf16> to vector<2x64x8xbf16>
    %300 = vector.extract_strided_slice %198 {offsets = [0, 0, 104], sizes = [2, 64, 8], strides = [1, 1, 1]} : vector<2x64x192xbf16> to vector<2x64x8xbf16>
    %301 = vector.extract_strided_slice %198 {offsets = [0, 0, 168], sizes = [2, 64, 8], strides = [1, 1, 1]} : vector<2x64x192xbf16> to vector<2x64x8xbf16>
    "tpu.trace_start"() <{level = 10 : i32, message = "bnd,bmd->bnm"}> : () -> ()
    %cst_80 = arith.constant dense<0.000000e+00> : vector<2x64x64xf32>
    %302 = tpu.matmul %299, %300, %cst_80 {dimension_numbers = #tpu.dot_dimension_numbers<[2], [2], [1], [1], [0, 0, 0, 1, 1, 1], [0], [0]>} : vector<2x64x8xbf16>, vector<2x64x8xbf16>, vector<2x64x64xf32> -> vector<2x64x64xf32>
    "tpu.trace_stop"() : () -> ()
    %cst_81 = arith.constant 0.353553385 : f32
    %303 = vector.broadcast %cst_81 : f32 to vector<2x64x64xf32>
    %304 = arith.mulf %302, %303 : vector<2x64x64xf32>
    %cst_82 = arith.constant dense<0xFF800000> : vector<2x64xf32>
    %305 = vector.multi_reduction <maximumf>, %304, %cst_82 [2] : vector<2x64x64xf32> to vector<2x64xf32>
    %306 = vector.shape_cast %305 : vector<2x64xf32> to vector<2x64x1xf32>
    %307 = vector.broadcast %306 : vector<2x64x1xf32> to vector<2x64x64xf32>
    %308 = arith.subf %304, %307 : vector<2x64x64xf32>
    %309 = math.exp %308 : vector<2x64x64xf32>
    %cst_83 = arith.constant dense<0.000000e+00> : vector<2x64xf32>
    %310 = vector.multi_reduction <add>, %309, %cst_83 [2] : vector<2x64x64xf32> to vector<2x64xf32>
    %311 = vector.shape_cast %310 : vector<2x64xf32> to vector<2x64x1xf32>
    %312 = tpu.reciprocal %311 {approx = true} : vector<2x64x1xf32> -> vector<2x64x1xf32>
    %313 = vector.broadcast %312 : vector<2x64x1xf32> to vector<2x64x64xf32>
    %314 = arith.mulf %309, %313 : vector<2x64x64xf32>
    %315 = arith.truncf %314 : vector<2x64x64xf32> to vector<2x64x64xbf16>
    "tpu.trace_start"() <{level = 10 : i32, message = "bnm,bmd->bnd"}> : () -> ()
    %cst_84 = arith.constant dense<0.000000e+00> : vector<2x64x8xf32>
    %316 = tpu.matmul %315, %301, %cst_84 {dimension_numbers = #tpu.dot_dimension_numbers<[2], [1], [1], [2], [0, 0, 0, 1, 1, 2], [0], [0]>} : vector<2x64x64xbf16>, vector<2x64x8xbf16>, vector<2x64x8xf32> -> vector<2x64x8xf32>
    "tpu.trace_stop"() : () -> ()
    %317 = vector.shape_cast %316 : vector<2x64x8xf32> to vector<128x8xf32>
    %c0_85 = arith.constant 0 : index
    %c40 = arith.constant 40 : index
    %318 = vector.load %arg18[%c0_85, %c40] : memref<128x64xf32, #tpu.memory_space<vmem>>, vector<128x8xf32>
    tpu.vector_store %arg18[%c0_85, %c40], %317 {strides = array<i32>} : memref<128x64xf32, #tpu.memory_space<vmem>>, vector<128x8xf32>,
    %319 = vector.extract_strided_slice %198 {offsets = [0, 0, 48], sizes = [2, 64, 8], strides = [1, 1, 1]} : vector<2x64x192xbf16> to vector<2x64x8xbf16>
    %320 = vector.extract_strided_slice %198 {offsets = [0, 0, 112], sizes = [2, 64, 8], strides = [1, 1, 1]} : vector<2x64x192xbf16> to vector<2x64x8xbf16>
    %321 = vector.extract_strided_slice %198 {offsets = [0, 0, 176], sizes = [2, 64, 8], strides = [1, 1, 1]} : vector<2x64x192xbf16> to vector<2x64x8xbf16>
    "tpu.trace_start"() <{level = 10 : i32, message = "bnd,bmd->bnm"}> : () -> ()
    %cst_86 = arith.constant dense<0.000000e+00> : vector<2x64x64xf32>
    %322 = tpu.matmul %319, %320, %cst_86 {dimension_numbers = #tpu.dot_dimension_numbers<[2], [2], [1], [1], [0, 0, 0, 1, 1, 1], [0], [0]>} : vector<2x64x8xbf16>, vector<2x64x8xbf16>, vector<2x64x64xf32> -> vector<2x64x64xf32>
    "tpu.trace_stop"() : () -> ()
    %cst_87 = arith.constant 0.353553385 : f32
    %323 = vector.broadcast %cst_87 : f32 to vector<2x64x64xf32>
    %324 = arith.mulf %322, %323 : vector<2x64x64xf32>
    %cst_88 = arith.constant dense<0xFF800000> : vector<2x64xf32>
    %325 = vector.multi_reduction <maximumf>, %324, %cst_88 [2] : vector<2x64x64xf32> to vector<2x64xf32>
    %326 = vector.shape_cast %325 : vector<2x64xf32> to vector<2x64x1xf32>
    %327 = vector.broadcast %326 : vector<2x64x1xf32> to vector<2x64x64xf32>
    %328 = arith.subf %324, %327 : vector<2x64x64xf32>
    %329 = math.exp %328 : vector<2x64x64xf32>
    %cst_89 = arith.constant dense<0.000000e+00> : vector<2x64xf32>
    %330 = vector.multi_reduction <add>, %329, %cst_89 [2] : vector<2x64x64xf32> to vector<2x64xf32>
    %331 = vector.shape_cast %330 : vector<2x64xf32> to vector<2x64x1xf32>
    %332 = tpu.reciprocal %331 {approx = true} : vector<2x64x1xf32> -> vector<2x64x1xf32>
    %333 = vector.broadcast %332 : vector<2x64x1xf32> to vector<2x64x64xf32>
    %334 = arith.mulf %329, %333 : vector<2x64x64xf32>
    %335 = arith.truncf %334 : vector<2x64x64xf32> to vector<2x64x64xbf16>
    "tpu.trace_start"() <{level = 10 : i32, message = "bnm,bmd->bnd"}> : () -> ()
    %cst_90 = arith.constant dense<0.000000e+00> : vector<2x64x8xf32>
    %336 = tpu.matmul %335, %321, %cst_90 {dimension_numbers = #tpu.dot_dimension_numbers<[2], [1], [1], [2], [0, 0, 0, 1, 1, 2], [0], [0]>} : vector<2x64x64xbf16>, vector<2x64x8xbf16>, vector<2x64x8xf32> -> vector<2x64x8xf32>
    "tpu.trace_stop"() : () -> ()
    %337 = vector.shape_cast %336 : vector<2x64x8xf32> to vector<128x8xf32>
    %c0_91 = arith.constant 0 : index
    %c48 = arith.constant 48 : index
    %338 = vector.load %arg18[%c0_91, %c48] : memref<128x64xf32, #tpu.memory_space<vmem>>, vector<128x8xf32>
    tpu.vector_store %arg18[%c0_91, %c48], %337 {strides = array<i32>} : memref<128x64xf32, #tpu.memory_space<vmem>>, vector<128x8xf32>,
    %339 = vector.extract_strided_slice %198 {offsets = [0, 0, 56], sizes = [2, 64, 8], strides = [1, 1, 1]} : vector<2x64x192xbf16> to vector<2x64x8xbf16>
    %340 = vector.extract_strided_slice %198 {offsets = [0, 0, 120], sizes = [2, 64, 8], strides = [1, 1, 1]} : vector<2x64x192xbf16> to vector<2x64x8xbf16>
    %341 = vector.extract_strided_slice %198 {offsets = [0, 0, 184], sizes = [2, 64, 8], strides = [1, 1, 1]} : vector<2x64x192xbf16> to vector<2x64x8xbf16>
    "tpu.trace_start"() <{level = 10 : i32, message = "bnd,bmd->bnm"}> : () -> ()
    %cst_92 = arith.constant dense<0.000000e+00> : vector<2x64x64xf32>
    %342 = tpu.matmul %339, %340, %cst_92 {dimension_numbers = #tpu.dot_dimension_numbers<[2], [2], [1], [1], [0, 0, 0, 1, 1, 1], [0], [0]>} : vector<2x64x8xbf16>, vector<2x64x8xbf16>, vector<2x64x64xf32> -> vector<2x64x64xf32>
    "tpu.trace_stop"() : () -> ()
    %cst_93 = arith.constant 0.353553385 : f32
    %343 = vector.broadcast %cst_93 : f32 to vector<2x64x64xf32>
    %344 = arith.mulf %342, %343 : vector<2x64x64xf32>
    %cst_94 = arith.constant dense<0xFF800000> : vector<2x64xf32>
    %345 = vector.multi_reduction <maximumf>, %344, %cst_94 [2] : vector<2x64x64xf32> to vector<2x64xf32>
    %346 = vector.shape_cast %345 : vector<2x64xf32> to vector<2x64x1xf32>
    %347 = vector.broadcast %346 : vector<2x64x1xf32> to vector<2x64x64xf32>
    %348 = arith.subf %344, %347 : vector<2x64x64xf32>
    %349 = math.exp %348 : vector<2x64x64xf32>
    %cst_95 = arith.constant dense<0.000000e+00> : vector<2x64xf32>
    %350 = vector.multi_reduction <add>, %349, %cst_95 [2] : vector<2x64x64xf32> to vector<2x64xf32>
    %351 = vector.shape_cast %350 : vector<2x64xf32> to vector<2x64x1xf32>
    %352 = tpu.reciprocal %351 {approx = true} : vector<2x64x1xf32> -> vector<2x64x1xf32>
    %353 = vector.broadcast %352 : vector<2x64x1xf32> to vector<2x64x64xf32>
    %354 = arith.mulf %349, %353 : vector<2x64x64xf32>
    %355 = arith.truncf %354 : vector<2x64x64xf32> to vector<2x64x64xbf16>
    "tpu.trace_start"() <{level = 10 : i32, message = "bnm,bmd->bnd"}> : () -> ()
    %cst_96 = arith.constant dense<0.000000e+00> : vector<2x64x8xf32>
    %356 = tpu.matmul %355, %341, %cst_96 {dimension_numbers = #tpu.dot_dimension_numbers<[2], [1], [1], [2], [0, 0, 0, 1, 1, 2], [0], [0]>} : vector<2x64x64xbf16>, vector<2x64x8xbf16>, vector<2x64x8xf32> -> vector<2x64x8xf32>
    "tpu.trace_stop"() : () -> ()
    %357 = vector.shape_cast %356 : vector<2x64x8xf32> to vector<128x8xf32>
    %c0_97 = arith.constant 0 : index
    %c56 = arith.constant 56 : index
    %358 = vector.load %arg18[%c0_97, %c56] : memref<128x64xf32, #tpu.memory_space<vmem>>, vector<128x8xf32>
    tpu.vector_store %arg18[%c0_97, %c56], %357 {strides = array<i32>} : memref<128x64xf32, #tpu.memory_space<vmem>>, vector<128x8xf32>,
    %c0_98 = arith.constant 0 : index
    %c0_99 = arith.constant 0 : index
    %359 = vector.load %arg18[%c0_98, %c0_99] : memref<128x64xf32, #tpu.memory_space<vmem>>, vector<128x64xf32>
    %360 = arith.truncf %359 : vector<128x64xf32> to vector<128x64xbf16>
    %c0_100 = arith.constant 0 : index
    %c0_101 = arith.constant 0 : index
    %361 = vector.load %arg5[%c0_100, %c0_101] : memref<64x64xf32, #tpu.memory_space<vmem>>, vector<64x64xf32>
    %362 = arith.truncf %361 : vector<64x64xf32> to vector<64x64xbf16>
    %cst_102 = arith.constant dense<0.000000e+00> : vector<128x64xf32>
    %363 = tpu.matmul %360, %362, %cst_102 {dimension_numbers = #tpu.dot_dimension_numbers<[1], [0], [0], [1], [0, 0, 1, 1], [], []>} : vector<128x64xbf16>, vector<64x64xbf16>, vector<128x64xf32> -> vector<128x64xf32>
    %c0_103 = arith.constant 0 : index
    %c0_104 = arith.constant 0 : index
    %364 = vector.load %arg6[%c0_103, %c0_104] : memref<1x64xf32, #tpu.memory_space<vmem>>, vector<1x64xf32>
    %365 = vector.broadcast %364 : vector<1x64xf32> to vector<128x64xf32>
    %366 = arith.addf %363, %365 : vector<128x64xf32>
    %c0_105 = arith.constant 0 : index
    %c0_106 = arith.constant 0 : index
    %367 = vector.load %arg15[%c0_105, %c0_106] : memref<1x64xf32, #tpu.memory_space<vmem>>, vector<1x64xf32>
    %368 = vector.broadcast %367 : vector<1x64xf32> to vector<128x64xf32>
    %369 = arith.mulf %368, %366 : vector<128x64xf32>
    %370 = arith.addf %170, %369 : vector<128x64xf32>
    %c0_107 = arith.constant 0 : index
    %c0_108 = arith.constant 0 : index
    %371 = vector.load %arg9[%c0_107, %c0_108] : memref<1x64xf32, #tpu.memory_space<vmem>>, vector<1x64xf32>
    %c0_109 = arith.constant 0 : index
    %c0_110 = arith.constant 0 : index
    %372 = vector.load %arg10[%c0_109, %c0_110] : memref<1x64xf32, #tpu.memory_space<vmem>>, vector<1x64xf32>
    %cst_111 = arith.constant dense<0.000000e+00> : vector<128xf32>
    %373 = vector.multi_reduction <add>, %370, %cst_111 [1] : vector<128x64xf32> to vector<128xf32>
    %374 = vector.shape_cast %373 : vector<128xf32> to vector<128x1xf32>
    %cst_112 = arith.constant 6.400000e+01 : f32
    %375 = vector.broadcast %cst_112 : f32 to vector<128x1xf32>
    %376 = arith.divf %374, %375 : vector<128x1xf32>
    %377 = vector.broadcast %376 : vector<128x1xf32> to vector<128x64xf32>
    %378 = arith.subf %370, %377 : vector<128x64xf32>
    %379 = arith.mulf %378, %378 : vector<128x64xf32>
    %cst_113 = arith.constant dense<0.000000e+00> : vector<128xf32>
    %380 = vector.multi_reduction <add>, %379, %cst_113 [1] : vector<128x64xf32> to vector<128xf32>
    %381 = vector.shape_cast %380 : vector<128xf32> to vector<128x1xf32>
    %cst_114 = arith.constant 6.400000e+01 : f32
    %382 = vector.broadcast %cst_114 : f32 to vector<128x1xf32>
    %383 = arith.divf %381, %382 : vector<128x1xf32>
    %cst_115 = arith.constant 9.99999997E-7 : f32
    %384 = vector.broadcast %cst_115 : f32 to vector<128x1xf32>
    %385 = arith.addf %383, %384 : vector<128x1xf32>
    %386 = math.rsqrt %385 : vector<128x1xf32>
    %387 = vector.broadcast %386 : vector<128x1xf32> to vector<128x64xf32>
    %388 = arith.mulf %378, %387 : vector<128x64xf32>
    %389 = vector.broadcast %371 : vector<1x64xf32> to vector<128x64xf32>
    %390 = arith.mulf %388, %389 : vector<128x64xf32>
    %391 = vector.broadcast %372 : vector<1x64xf32> to vector<128x64xf32>
    %392 = arith.addf %390, %391 : vector<128x64xf32>
    %393 = arith.truncf %392 : vector<128x64xf32> to vector<128x64xbf16>
    %c0_116 = arith.constant 0 : index
    %c0_117 = arith.constant 0 : index
    %394 = vector.load %arg11[%c0_116, %c0_117] : memref<64x256xf32, #tpu.memory_space<vmem>>, vector<64x256xf32>
    %395 = arith.truncf %394 : vector<64x256xf32> to vector<64x256xbf16>
    %cst_118 = arith.constant dense<0.000000e+00> : vector<128x256xf32>
    %396 = tpu.matmul %393, %395, %cst_118 {dimension_numbers = #tpu.dot_dimension_numbers<[1], [0], [0], [1], [0, 0, 1, 1], [], []>} : vector<128x64xbf16>, vector<64x256xbf16>, vector<128x256xf32> -> vector<128x256xf32>
    %c0_119 = arith.constant 0 : index
    %c0_120 = arith.constant 0 : index
    %397 = vector.load %arg12[%c0_119, %c0_120] : memref<1x256xf32, #tpu.memory_space<vmem>>, vector<1x256xf32>
    %398 = vector.broadcast %397 : vector<1x256xf32> to vector<128x256xf32>
    %399 = arith.addf %396, %398 : vector<128x256xf32>
    %cst_121 = arith.constant 5.000000e-01 : f32
    %400 = vector.broadcast %cst_121 : f32 to vector<128x256xf32>
    %401 = arith.mulf %400, %399 : vector<128x256xf32>
    %cst_122 = arith.constant 2.000000e+00 : f32
    %402 = math.sqrt %cst_122 : f32
    %cst_123 = arith.constant 1.000000e+00 : f32
    %403 = arith.divf %cst_123, %402 : f32
    %404 = vector.broadcast %403 : f32 to vector<128x256xf32>
    %405 = arith.mulf %399, %404 : vector<128x256xf32>
    %406 = math.erf %405 : vector<128x256xf32>
    %cst_124 = arith.constant 1.000000e+00 : f32
    %407 = vector.broadcast %cst_124 : f32 to vector<128x256xf32>
    %408 = arith.addf %407, %406 : vector<128x256xf32>
    %409 = arith.mulf %401, %408 : vector<128x256xf32>
    %410 = arith.truncf %409 : vector<128x256xf32> to vector<128x256xbf16>
    %c0_125 = arith.constant 0 : index
    %c0_126 = arith.constant 0 : index
    %411 = vector.load %arg13[%c0_125, %c0_126] : memref<256x64xf32, #tpu.memory_space<vmem>>, vector<256x64xf32>
    %412 = arith.truncf %411 : vector<256x64xf32> to vector<256x64xbf16>
    %cst_127 = arith.constant dense<0.000000e+00> : vector<128x64xf32>
    %413 = tpu.matmul %410, %412, %cst_127 {dimension_numbers = #tpu.dot_dimension_numbers<[1], [0], [0], [1], [0, 0, 1, 1], [], []>} : vector<128x256xbf16>, vector<256x64xbf16>, vector<128x64xf32> -> vector<128x64xf32>
    %c0_128 = arith.constant 0 : index
    %c0_129 = arith.constant 0 : index
    %414 = vector.load %arg14[%c0_128, %c0_129] : memref<1x64xf32, #tpu.memory_space<vmem>>, vector<1x64xf32>
    %415 = vector.broadcast %414 : vector<1x64xf32> to vector<128x64xf32>
    %416 = arith.addf %413, %415 : vector<128x64xf32>
    %c0_130 = arith.constant 0 : index
    %c0_131 = arith.constant 0 : index
    %417 = vector.load %arg16[%c0_130, %c0_131] : memref<1x64xf32, #tpu.memory_space<vmem>>, vector<1x64xf32>
    %418 = vector.broadcast %417 : vector<1x64xf32> to vector<128x64xf32>
    %419 = arith.mulf %418, %416 : vector<128x64xf32>
    %420 = arith.addf %370, %419 : vector<128x64xf32>
    %c0_132 = arith.constant 0 : index
    %c0_133 = arith.constant 0 : index
    %421 = vector.load %arg17[%c0_132, %c0_133] : memref<128x64xf32, #tpu.memory_space<vmem>>, vector<128x64xf32>
    tpu.vector_store %arg17[%c0_132, %c0_133], %420 {strides = array<i32>} : memref<128x64xf32, #tpu.memory_space<vmem>>, vector<128x64xf32>,
    return
  }
  func.func @transform_0(%arg0: i32) -> (i32, i32, i32, i32, i32) {
    %c0_i32 = arith.constant 0 : i32
    %c0_i32_0 = arith.constant 0 : i32
    %c0_i32_1 = arith.constant 0 : i32
    %c0_i32_2 = arith.constant 0 : i32
    %c0_i32_3 = arith.constant 0 : i32
    return %arg0, %c0_i32, %c0_i32_0, %c0_i32_1, %c0_i32_2 : i32, i32, i32, i32, i32
  }
  func.func @transform_1(%arg0: i32) -> (i32, i32) {
    %c0_i32 = arith.constant 0 : i32
    %c0_i32_0 = arith.constant 0 : i32
    %c0_i32_1 = arith.constant 0 : i32
    return %c0_i32, %c0_i32_0 : i32, i32
  }
  func.func @transform_2(%arg0: i32) -> (i32, i32) {
    %c0_i32 = arith.constant 0 : i32
    %c0_i32_0 = arith.constant 0 : i32
    %c0_i32_1 = arith.constant 0 : i32
    return %c0_i32, %c0_i32_0 : i32, i32
  }
  func.func @transform_3(%arg0: i32) -> (i32, i32) {
    %c0_i32 = arith.constant 0 : i32
    %c0_i32_0 = arith.constant 0 : i32
    %c0_i32_1 = arith.constant 0 : i32
    return %c0_i32, %c0_i32_0 : i32, i32
  }
  func.func @transform_4(%arg0: i32) -> (i32, i32) {
    %c0_i32 = arith.constant 0 : i32
    %c0_i32_0 = arith.constant 0 : i32
    %c0_i32_1 = arith.constant 0 : i32
    return %c0_i32, %c0_i32_0 : i32, i32
  }
  func.func @transform_5(%arg0: i32) -> (i32, i32) {
    %c0_i32 = arith.constant 0 : i32
    %c0_i32_0 = arith.constant 0 : i32
    %c0_i32_1 = arith.constant 0 : i32
    return %c0_i32, %c0_i32_0 : i32, i32
  }
  func.func @transform_6(%arg0: i32) -> (i32, i32) {
    %c0_i32 = arith.constant 0 : i32
    %c0_i32_0 = arith.constant 0 : i32
    %c0_i32_1 = arith.constant 0 : i32
    return %c0_i32, %c0_i32_0 : i32, i32
  }
  func.func @transform_7(%arg0: i32) -> (i32, i32) {
    %c0_i32 = arith.constant 0 : i32
    %c0_i32_0 = arith.constant 0 : i32
    %c0_i32_1 = arith.constant 0 : i32
    return %c0_i32, %c0_i32_0 : i32, i32
  }
  func.func @transform_8(%arg0: i32) -> (i32, i32) {
    %c0_i32 = arith.constant 0 : i32
    %c0_i32_0 = arith.constant 0 : i32
    %c0_i32_1 = arith.constant 0 : i32
    return %c0_i32, %c0_i32_0 : i32, i32
  }
  func.func @transform_9(%arg0: i32) -> (i32, i32) {
    %c0_i32 = arith.constant 0 : i32
    %c0_i32_0 = arith.constant 0 : i32
    %c0_i32_1 = arith.constant 0 : i32
    return %c0_i32, %c0_i32_0 : i32, i32
  }
  func.func @transform_10(%arg0: i32) -> (i32, i32) {
    %c0_i32 = arith.constant 0 : i32
    %c0_i32_0 = arith.constant 0 : i32
    %c0_i32_1 = arith.constant 0 : i32
    return %c0_i32, %c0_i32_0 : i32, i32
  }
  func.func @transform_11(%arg0: i32) -> (i32, i32) {
    %c0_i32 = arith.constant 0 : i32
    %c0_i32_0 = arith.constant 0 : i32
    %c0_i32_1 = arith.constant 0 : i32
    return %c0_i32, %c0_i32_0 : i32, i32
  }
  func.func @transform_12(%arg0: i32) -> (i32, i32) {
    %c0_i32 = arith.constant 0 : i32
    %c0_i32_0 = arith.constant 0 : i32
    %c0_i32_1 = arith.constant 0 : i32
    return %c0_i32, %c0_i32_0 : i32, i32
  }
  func.func @transform_13(%arg0: i32) -> (i32, i32) {
    %c0_i32 = arith.constant 0 : i32
    %c0_i32_0 = arith.constant 0 : i32
    %c0_i32_1 = arith.constant 0 : i32
    return %c0_i32, %c0_i32_0 : i32, i32
  }
  func.func @transform_14(%arg0: i32) -> (i32, i32) {
    %c0_i32 = arith.constant 0 : i32
    %c0_i32_0 = arith.constant 0 : i32
    %c0_i32_1 = arith.constant 0 : i32
    return %c0_i32, %c0_i32_0 : i32, i32
  }
  func.func @transform_15(%arg0: i32) -> (i32, i32) {
    %c0_i32 = arith.constant 0 : i32
    %c0_i32_0 = arith.constant 0 : i32
    %c0_i32_1 = arith.constant 0 : i32
    return %c0_i32, %c0_i32_0 : i32, i32
  }
  func.func @transform_16(%arg0: i32) -> (i32, i32) {
    %c0_i32 = arith.constant 0 : i32
    %c0_i32_0 = arith.constant 0 : i32
    return %arg0, %c0_i32 : i32, i32
  }
}

</mosaic_0001>

<llo_original>
// kernel: tpu_custom_call.1
$region0: #{tpu_custom_call.1}
  #allocation0 [shape = 'u32[]', space=smem, size = 0x4, offset = 0x4, fixed_abs, tag = 'smem constant byte address 0x4 - core index']
  #allocation1 [shape = 'u32[144,128]{1,0:T(1,128)}', space=vmem, size = 0x12000, scoped, tag = 'internal scratch']
  #allocation2 [shape = 'f32[128,64]{1,0:T(8,128)}', space=vmem, size = 0x10000, scoped, tag = 'scratch operand']
  %s0 = inlined_call_operand.vmem [shape: f32[2,6,6,6,64], index: 0, kind: input, shape index: {}]
  %s1 = inlined_call_operand.vmem [shape: f32[27,64], index: 1, kind: input, shape index: {}]
  %s2 = inlined_call_operand.vmem [shape: f32[1,64], index: 2, kind: input, shape index: {}]
  %s3 = inlined_call_operand.vmem [shape: f32[64,192], index: 3, kind: input, shape index: {}]
  %s4 = inlined_call_operand.vmem [shape: f32[64,64], index: 4, kind: input, shape index: {}]
  %s5 = inlined_call_operand.vmem [shape: f32[1,64], index: 5, kind: input, shape index: {}]
  %s6 = inlined_call_operand.vmem [shape: f32[1,64], index: 6, kind: input, shape index: {}]
  %s7 = inlined_call_operand.vmem [shape: f32[1,64], index: 7, kind: input, shape index: {}]
  %s8 = inlined_call_operand.vmem [shape: f32[1,64], index: 8, kind: input, shape index: {}]
  %s9 = inlined_call_operand.vmem [shape: f32[1,64], index: 9, kind: input, shape index: {}]
  %s10 = inlined_call_operand.vmem [shape: f32[64,256], index: 10, kind: input, shape index: {}]
  %s11 = inlined_call_operand.vmem [shape: f32[1,256], index: 11, kind: input, shape index: {}]
  %s12 = inlined_call_operand.vmem [shape: f32[256,64], index: 12, kind: input, shape index: {}]
  %s13 = inlined_call_operand.vmem [shape: f32[1,64], index: 13, kind: input, shape index: {}]
  %s14 = inlined_call_operand.vmem [shape: f32[1,64], index: 14, kind: input, shape index: {}]
  %s15 = inlined_call_operand.vmem [shape: f32[1,64], index: 15, kind: input, shape index: {}]
  %s16 = inlined_call_operand.vmem [shape: f32[128,64], index: 16, kind: output, shape index: {}]
  %s17 = sld [smem:[#allocation0]]
  $region74: #{tpu_custom_call.1} parent=0
    _
  %s19 = ssub.s32 1, %s17
  %s20 = scalar_select 0, %s19, %s17
  // Predicated region
  $region2: #{tpu_custom_call.1} parent=0 // pred_check
    _
  $region3: #{tpu_custom_call.1} parent=0 // pred_check_branch
    %22 = sbr.rel (0) target = $region5
  $region4: #{tpu_custom_call.1} parent=0 // pred_region
    _
  $region5: #{tpu_custom_call.1} parent=0 // pred_fallthru
    _
  // Predicated region
  $region6: #{tpu_custom_call.1} parent=0 // pred_check
    _
  $region7: #{tpu_custom_call.1} parent=0 // pred_check_branch
    %24 = sbr.rel (0) target = $region9
  $region8: #{tpu_custom_call.1} parent=0 // pred_region
    _
  $region9: #{tpu_custom_call.1} parent=0 // pred_fallthru
    _
  // Predicated region
  $region10: #{tpu_custom_call.1} parent=0 // pred_check
    _
  $region11: #{tpu_custom_call.1} parent=0 // pred_check_branch
    %26 = sbr.rel (0) target = $region13
  $region12: #{tpu_custom_call.1} parent=0 // pred_region
    _
  $region13: #{tpu_custom_call.1} parent=0 // pred_fallthru
    _
  // Predicated region
  $region14: #{tpu_custom_call.1} parent=0 // pred_check
    _
  $region15: #{tpu_custom_call.1} parent=0 // pred_check_branch
    %28 = sbr.rel (0) target = $region17
  $region16: #{tpu_custom_call.1} parent=0 // pred_region
    _
  $region17: #{tpu_custom_call.1} parent=0 // pred_fallthru
    _
  // Predicated region
  $region18: #{tpu_custom_call.1} parent=0 // pred_check
    _
  $region19: #{tpu_custom_call.1} parent=0 // pred_check_branch
    %30 = sbr.rel (0) target = $region21
  $region20: #{tpu_custom_call.1} parent=0 // pred_region
    _
  $region21: #{tpu_custom_call.1} parent=0 // pred_fallthru
    _
  // Predicated region
  $region22: #{tpu_custom_call.1} parent=0 // pred_check
    _
  $region23: #{tpu_custom_call.1} parent=0 // pred_check_branch
    %32 = sbr.rel (0) target = $region25
  $region24: #{tpu_custom_call.1} parent=0 // pred_region
    _
  $region25: #{tpu_custom_call.1} parent=0 // pred_fallthru
    _
  // Predicated region
  $region26: #{tpu_custom_call.1} parent=0 // pred_check
    _
  $region27: #{tpu_custom_call.1} parent=0 // pred_check_branch
    %34 = sbr.rel (0) target = $region29
  $region28: #{tpu_custom_call.1} parent=0 // pred_region
    _
  $region29: #{tpu_custom_call.1} parent=0 // pred_fallthru
    _
  // Predicated region
  $region30: #{tpu_custom_call.1} parent=0 // pred_check
    _
  $region31: #{tpu_custom_call.1} parent=0 // pred_check_branch
    %36 = sbr.rel (0) target = $region33
  $region32: #{tpu_custom_call.1} parent=0 // pred_region
    _
  $region33: #{tpu_custom_call.1} parent=0 // pred_fallthru
    _
  // Predicated region
  $region34: #{tpu_custom_call.1} parent=0 // pred_check
    _
  $region35: #{tpu_custom_call.1} parent=0 // pred_check_branch
    %38 = sbr.rel (0) target = $region37
  $region36: #{tpu_custom_call.1} parent=0 // pred_region
    _
  $region37: #{tpu_custom_call.1} parent=0 // pred_fallthru
    _
  // Predicated region
  $region38: #{tpu_custom_call.1} parent=0 // pred_check
    _
  $region39: #{tpu_custom_call.1} parent=0 // pred_check_branch
    %40 = sbr.rel (0) target = $region41
  $region40: #{tpu_custom_call.1} parent=0 // pred_region
    _
  $region41: #{tpu_custom_call.1} parent=0 // pred_fallthru
    _
  // Predicated region
  $region42: #{tpu_custom_call.1} parent=0 // pred_check
    _
  $region43: #{tpu_custom_call.1} parent=0 // pred_check_branch
    %42 = sbr.rel (0) target = $region45
  $region44: #{tpu_custom_call.1} parent=0 // pred_region
    _
  $region45: #{tpu_custom_call.1} parent=0 // pred_fallthru
    _
  // Predicated region
  $region46: #{tpu_custom_call.1} parent=0 // pred_check
    _
  $region47: #{tpu_custom_call.1} parent=0 // pred_check_branch
    %44 = sbr.rel (0) target = $region49
  $region48: #{tpu_custom_call.1} parent=0 // pred_region
    _
  $region49: #{tpu_custom_call.1} parent=0 // pred_fallthru
    _
  // Predicated region
  $region50: #{tpu_custom_call.1} parent=0 // pred_check
    _
  $region51: #{tpu_custom_call.1} parent=0 // pred_check_branch
    %46 = sbr.rel (0) target = $region53
  $region52: #{tpu_custom_call.1} parent=0 // pred_region
    _
  $region53: #{tpu_custom_call.1} parent=0 // pred_fallthru
    _
  // Predicated region
  $region54: #{tpu_custom_call.1} parent=0 // pred_check
    _
  $region55: #{tpu_custom_call.1} parent=0 // pred_check_branch
    %48 = sbr.rel (0) target = $region57
  $region56: #{tpu_custom_call.1} parent=0 // pred_region
    _
  $region57: #{tpu_custom_call.1} parent=0 // pred_fallthru
    _
  // Predicated region
  $region58: #{tpu_custom_call.1} parent=0 // pred_check
    _
  $region59: #{tpu_custom_call.1} parent=0 // pred_check_branch
    %50 = sbr.rel (0) target = $region61
  $region60: #{tpu_custom_call.1} parent=0 // pred_region
    _
  $region61: #{tpu_custom_call.1} parent=0 // pred_fallthru
    _
  // Predicated region
  $region62: #{tpu_custom_call.1} parent=0 // pred_check
    _
  $region63: #{tpu_custom_call.1} parent=0 // pred_check_branch
    %52 = sbr.rel (0) target = $region65
  $region64: #{tpu_custom_call.1} parent=0 // pred_region
    _
  $region65: #{tpu_custom_call.1} parent=0 // pred_fallthru
    _
  %v54 = vld [vmem:[%s0] sm:$0x3f]
  %v55 = vld [vmem:[%s0 + $0x8] sm:$0x3f]
  %v56 = vld [vmem:[%s0 + $0x10] sm:$0x3f]
  %v57 = vld [vmem:[%s0 + $0x18] sm:$0x3f]
  %v58 = vld [vmem:[%s0 + $0x20] sm:$0x3f]
  %v59 = vld [vmem:[%s0 + $0x28] sm:$0x3f]
  %v60 = vld [vmem:[%s0 + $0x30] sm:$0x3f]
  %v61 = vld [vmem:[%s0 + $0x38] sm:$0x3f]
  %v62 = vld [vmem:[%s0 + $0x40] sm:$0x3f]
  %v63 = vld [vmem:[%s0 + $0x48] sm:$0x3f]
  %v64 = vld [vmem:[%s0 + $0x50] sm:$0x3f]
  %v65 = vld [vmem:[%s0 + $0x58] sm:$0x3f]
  %v66 = vld [vmem:[%s0 + $0x60] sm:$0x3f]
  %v67 = vld [vmem:[%s0 + $0x68] sm:$0x3f]
  %v68 = vld [vmem:[%s0 + $0x70] sm:$0x3f]
  %v69 = vld [vmem:[%s0 + $0x78] sm:$0x3f]
  %v70 = vld [vmem:[%s0 + $0x80] sm:$0x3f]
  %v71 = vld [vmem:[%s0 + $0x88] sm:$0x3f]
  %v72 = vld [vmem:[%s0 + $0x90] sm:$0x3f]
  %v73 = vld [vmem:[%s0 + $0x98] sm:$0x3f]
  %v74 = vld [vmem:[%s0 + $0xa0] sm:$0x3f]
  %v75 = vld [vmem:[%s0 + $0xa8] sm:$0x3f]
  %v76 = vld [vmem:[%s0 + $0xb0] sm:$0x3f]
  %v77 = vld [vmem:[%s0 + $0xb8] sm:$0x3f]
  %v78 = vld [vmem:[%s0 + $0xc0] sm:$0x3f]
  %v79 = vld [vmem:[%s0 + $0xc8] sm:$0x3f]
  %v80 = vld [vmem:[%s0 + $0xd0] sm:$0x3f]
  %v81 = vld [vmem:[%s0 + $0xd8] sm:$0x3f]
  %v82 = vld [vmem:[%s0 + $0xe0] sm:$0x3f]
  %v83 = vld [vmem:[%s0 + $0xe8] sm:$0x3f]
  %v84 = vld [vmem:[%s0 + $0xf0] sm:$0x3f]
  %v85 = vld [vmem:[%s0 + $0xf8] sm:$0x3f]
  %v86 = vld [vmem:[%s0 + $0x100] sm:$0x3f]
  %v87 = vld [vmem:[%s0 + $0x108] sm:$0x3f]
  %v88 = vld [vmem:[%s0 + $0x110] sm:$0x3f]
  %v89 = vld [vmem:[%s0 + $0x118] sm:$0x3f]
  %v90 = vld [vmem:[%s0 + $0x120] sm:$0x3f]
  %v91 = vld [vmem:[%s0 + $0x128] sm:$0x3f]
  %v92 = vld [vmem:[%s0 + $0x130] sm:$0x3f]
  %v93 = vld [vmem:[%s0 + $0x138] sm:$0x3f]
  %v94 = vld [vmem:[%s0 + $0x140] sm:$0x3f]
  %v95 = vld [vmem:[%s0 + $0x148] sm:$0x3f]
  %v96 = vld [vmem:[%s0 + $0x150] sm:$0x3f]
  %v97 = vld [vmem:[%s0 + $0x158] sm:$0x3f]
  %v98 = vld [vmem:[%s0 + $0x160] sm:$0x3f]
  %v99 = vld [vmem:[%s0 + $0x168] sm:$0x3f]
  %v100 = vld [vmem:[%s0 + $0x170] sm:$0x3f]
  %v101 = vld [vmem:[%s0 + $0x178] sm:$0x3f]
  %v102 = vld [vmem:[%s0 + $0x180] sm:$0x3f]
  %v103 = vld [vmem:[%s0 + $0x188] sm:$0x3f]
  %v104 = vld [vmem:[%s0 + $0x190] sm:$0x3f]
  %v105 = vld [vmem:[%s0 + $0x198] sm:$0x3f]
  %v106 = vld [vmem:[%s0 + $0x1a0] sm:$0x3f]
  %v107 = vld [vmem:[%s0 + $0x1a8] sm:$0x3f]
  %v108 = vld [vmem:[%s0 + $0x1b0] sm:$0x3f]
  %v109 = vld [vmem:[%s0 + $0x1b8] sm:$0x3f]
  %v110 = vld [vmem:[%s0 + $0x1c0] sm:$0x3f]
  %v111 = vld [vmem:[%s0 + $0x1c8] sm:$0x3f]
  %v112 = vld [vmem:[%s0 + $0x1d0] sm:$0x3f]
  %v113 = vld [vmem:[%s0 + $0x1d8] sm:$0x3f]
  %v114 = vld [vmem:[%s0 + $0x1e0] sm:$0x3f]
  %v115 = vld [vmem:[%s0 + $0x1e8] sm:$0x3f]
  %v116 = vld [vmem:[%s0 + $0x1f0] sm:$0x3f]
  %v117 = vld [vmem:[%s0 + $0x1f8] sm:$0x3f]
  %v118 = vld [vmem:[%s0 + $0x200] sm:$0x3f]
  %v119 = vld [vmem:[%s0 + $0x208] sm:$0x3f]
  %v120 = vld [vmem:[%s0 + $0x210] sm:$0x3f]
  %v121 = vld [vmem:[%s0 + $0x218] sm:$0x3f]
  %v122 = vld [vmem:[%s0 + $0x220] sm:$0x3f]
  %v123 = vld [vmem:[%s0 + $0x228] sm:$0x3f]
  %v124 = vld [vmem:[%s0 + $0x230] sm:$0x3f]
  %v125 = vld [vmem:[%s0 + $0x238] sm:$0x3f]
  %v126 = vld [vmem:[%s1] sm:$0x1]
  %v127 = vlaneseq
  %v128 = vshrl.u32 %v127, 7
  %v129 = vsub.s32 0, %v128
  %v130 = vrot.slane %v126, %v129
  %v131 = vmul.f32 %v54, %v130
  %v132 = vmul.f32 %v55, %v130
  %v133 = vmul.f32 %v56, %v130
  %v134 = vmul.f32 %v57, %v130
  %v135 = vmul.f32 %v60, %v130
  %v136 = vmul.f32 %v61, %v130
  %v137 = vmul.f32 %v62, %v130
  %v138 = vmul.f32 %v63, %v130
  %v139 = vmul.f32 %v66, %v130
  %v140 = vmul.f32 %v67, %v130
  %v141 = vmul.f32 %v68, %v130
  %v142 = vmul.f32 %v69, %v130
  %v143 = vmul.f32 %v72, %v130
  %v144 = vmul.f32 %v73, %v130
  %v145 = vmul.f32 %v74, %v130
  %v146 = vmul.f32 %v75, %v130
  %v147 = vmul.f32 %v90, %v130
  %v148 = vmul.f32 %v91, %v130
  %v149 = vmul.f32 %v92, %v130
  %v150 = vmul.f32 %v93, %v130
  %v151 = vmul.f32 %v96, %v130
  %v152 = vmul.f32 %v97, %v130
  %v153 = vmul.f32 %v98, %v130
  %v154 = vmul.f32 %v99, %v130
  %v155 = vmul.f32 %v102, %v130
  %v156 = vmul.f32 %v103, %v130
  %v157 = vmul.f32 %v104, %v130
  %v158 = vmul.f32 %v105, %v130
  %v159 = vmul.f32 %v108, %v130
  %v160 = vmul.f32 %v109, %v130
  %v161 = vmul.f32 %v110, %v130
  %v162 = vmul.f32 %v111, %v130
  %v163 = vadd.f32 %v131, 0.0
  %v164 = vadd.f32 %v132, 0.0
  %v165 = vadd.f32 %v133, 0.0
  %v166 = vadd.f32 %v134, 0.0
  %v167 = vadd.f32 %v135, 0.0
  %v168 = vadd.f32 %v136, 0.0
  %v169 = vadd.f32 %v137, 0.0
  %v170 = vadd.f32 %v138, 0.0
  %v171 = vadd.f32 %v139, 0.0
  %v172 = vadd.f32 %v140, 0.0
  %v173 = vadd.f32 %v141, 0.0
  %v174 = vadd.f32 %v142, 0.0
  %v175 = vadd.f32 %v143, 0.0
  %v176 = vadd.f32 %v144, 0.0
  %v177 = vadd.f32 %v145, 0.0
  %v178 = vadd.f32 %v146, 0.0
  %v179 = vadd.f32 %v147, 0.0
  %v180 = vadd.f32 %v148, 0.0
  %v181 = vadd.f32 %v149, 0.0
  %v182 = vadd.f32 %v150, 0.0
  %v183 = vadd.f32 %v151, 0.0
  %v184 = vadd.f32 %v152, 0.0
  %v185 = vadd.f32 %v153, 0.0
  %v186 = vadd.f32 %v154, 0.0
  %v187 = vadd.f32 %v155, 0.0
  %v188 = vadd.f32 %v156, 0.0
  %v189 = vadd.f32 %v157, 0.0
  %v190 = vadd.f32 %v158, 0.0
  %v191 = vadd.f32 %v159, 0.0
  %v192 = vadd.f32 %v160, 0.0
  %v193 = vadd.f32 %v161, 0.0
  %v194 = vadd.f32 %v162, 0.0
  %v195 = vld [vmem:[%s1 + $0x1] sm:$0x1]
  %v196 = vlaneseq
  %v197 = vshrl.u32 %v196, 7
  %v198 = vsub.s32 0, %v197
  %v199 = vrot.slane %v195, %v198
  %v200 = vmul.f32 %v54, %v199
  %v201 = vmul.f32 %v55, %v199
  %v202 = vmul.f32 %v56, %v199
  %v203 = vmul.f32 %v57, %v199
  %v204 = vmul.f32 %v60, %v199
  %v205 = vmul.f32 %v61, %v199
  %v206 = vmul.f32 %v62, %v199
  %v207 = vmul.f32 %v63, %v199
  %v208 = vmul.f32 %v66, %v199
  %v209 = vmul.f32 %v67, %v199
  %v210 = vmul.f32 %v68, %v199
  %v211 = vmul.f32 %v69, %v199
  %v212 = vmul.f32 %v72, %v199
  %v213 = vmul.f32 %v73, %v199
  %v214 = vmul.f32 %v74, %v199
  %v215 = vmul.f32 %v75, %v199
  %v216 = vmul.f32 %v90, %v199
  %v217 = vmul.f32 %v91, %v199
  %v218 = vmul.f32 %v92, %v199
  %v219 = vmul.f32 %v93, %v199
  %v220 = vmul.f32 %v96, %v199
  %v221 = vmul.f32 %v97, %v199
  %v222 = vmul.f32 %v98, %v199
  %v223 = vmul.f32 %v99, %v199
  %v224 = vmul.f32 %v102, %v199
  %v225 = vmul.f32 %v103, %v199
  %v226 = vmul.f32 %v104, %v199
  %v227 = vmul.f32 %v105, %v199
  %v228 = vmul.f32 %v108, %v199
  %v229 = vmul.f32 %v109, %v199
  %v230 = vmul.f32 %v110, %v199
  %v231 = vmul.f32 %v111, %v199
  %v264 = vrot.slane %v200, 1
  %v265 = vrot.slane %v201, 1
  %v266 = vrot.slane %v202, 1
  %v267 = vrot.slane %v203, 1
  %v268 = vrot.slane %v204, 1
  %v269 = vrot.slane %v205, 1
  %v270 = vrot.slane %v206, 1
  %v271 = vrot.slane %v207, 1
  %v272 = vrot.slane %v208, 1
  %v273 = vrot.slane %v209, 1
  %v274 = vrot.slane %v210, 1
  %v275 = vrot.slane %v211, 1
  %v276 = vrot.slane %v212, 1
  %v277 = vrot.slane %v213, 1
  %v278 = vrot.slane %v214, 1
  %v279 = vrot.slane %v215, 1
  %v280 = vrot.slane %v216, 1
  %v281 = vrot.slane %v217, 1
  %v282 = vrot.slane %v218, 1
  %v283 = vrot.slane %v219, 1
  %v284 = vrot.slane %v220, 1
  %v285 = vrot.slane %v221, 1
  %v286 = vrot.slane %v222, 1
  %v287 = vrot.slane %v223, 1
  %v288 = vrot.slane %v224, 1
  %v289 = vrot.slane %v225, 1
  %v290 = vrot.slane %v226, 1
  %v291 = vrot.slane %v227, 1
  %v292 = vrot.slane %v228, 1
  %v293 = vrot.slane %v229, 1
  %v294 = vrot.slane %v230, 1
  %v295 = vrot.slane %v231, 1
  %v328 = vadd.f32 %v163, %v264
  %v329 = vadd.f32 %v164, %v265
  %v330 = vadd.f32 %v165, %v266
  %v331 = vadd.f32 %v166, %v267
  %v332 = vadd.f32 %v167, %v268
  %v333 = vadd.f32 %v168, %v269
  %v334 = vadd.f32 %v169, %v270
  %v335 = vadd.f32 %v170, %v271
  %v336 = vadd.f32 %v171, %v272
  %v337 = vadd.f32 %v172, %v273
  %v338 = vadd.f32 %v173, %v274
  %v339 = vadd.f32 %v174, %v275
  %v340 = vadd.f32 %v175, %v276
  %v341 = vadd.f32 %v176, %v277
  %v342 = vadd.f32 %v177, %v278
  %v343 = vadd.f32 %v178, %v279
  %v344 = vadd.f32 %v179, %v280
  %v345 = vadd.f32 %v180, %v281
  %v346 = vadd.f32 %v181, %v282
  %v347 = vadd.f32 %v182, %v283
  %v348 = vadd.f32 %v183, %v284
  %v349 = vadd.f32 %v184, %v285
  %v350 = vadd.f32 %v185, %v286
  %v351 = vadd.f32 %v186, %v287
  %v352 = vadd.f32 %v187, %v288
  %v353 = vadd.f32 %v188, %v289
  %v354 = vadd.f32 %v189, %v290
  %v355 = vadd.f32 %v190, %v291
  %v356 = vadd.f32 %v191, %v292
  %v357 = vadd.f32 %v192, %v293
  %v358 = vadd.f32 %v193, %v294
  %v359 = vadd.f32 %v194, %v295
  %v360 = vld [vmem:[%s1 + $0x2] sm:$0x1]
  %v361 = vlaneseq
  %v362 = vshrl.u32 %v361, 7
  %v363 = vsub.s32 0, %v362
  %v364 = vrot.slane %v360, %v363
  %v365 = vmul.f32 %v54, %v364
  %v366 = vmul.f32 %v55, %v364
  %v367 = vmul.f32 %v56, %v364
  %v368 = vmul.f32 %v57, %v364
  %v369 = vmul.f32 %v60, %v364
  %v370 = vmul.f32 %v61, %v364
  %v371 = vmul.f32 %v62, %v364
  %v372 = vmul.f32 %v63, %v364
  %v373 = vmul.f32 %v66, %v364
  %v374 = vmul.f32 %v67, %v364
  %v375 = vmul.f32 %v68, %v364
  %v376 = vmul.f32 %v69, %v364
  %v377 = vmul.f32 %v72, %v364
  %v378 = vmul.f32 %v73, %v364
  %v379 = vmul.f32 %v74, %v364
  %v380 = vmul.f32 %v75, %v364
  %v381 = vmul.f32 %v90, %v364
  %v382 = vmul.f32 %v91, %v364
  %v383 = vmul.f32 %v92, %v364
  %v384 = vmul.f32 %v93, %v364
  %v385 = vmul.f32 %v96, %v364
  %v386 = vmul.f32 %v97, %v364
  %v387 = vmul.f32 %v98, %v364
  %v388 = vmul.f32 %v99, %v364
  %v389 = vmul.f32 %v102, %v364
  %v390 = vmul.f32 %v103, %v364
  %v391 = vmul.f32 %v104, %v364
  %v392 = vmul.f32 %v105, %v364
  %v393 = vmul.f32 %v108, %v364
  %v394 = vmul.f32 %v109, %v364
  %v395 = vmul.f32 %v110, %v364
  %v396 = vmul.f32 %v111, %v364
  %v429 = vrot.slane %v365, 2
  %v430 = vrot.slane %v366, 2
  %v431 = vrot.slane %v367, 2
  %v432 = vrot.slane %v368, 2
  %v433 = vrot.slane %v369, 2
  %v434 = vrot.slane %v370, 2
  %v435 = vrot.slane %v371, 2
  %v436 = vrot.slane %v372, 2
  %v437 = vrot.slane %v373, 2
  %v438 = vrot.slane %v374, 2
  %v439 = vrot.slane %v375, 2
  %v440 = vrot.slane %v376, 2
  %v441 = vrot.slane %v377, 2
  %v442 = vrot.slane %v378, 2
  %v443 = vrot.slane %v379, 2
  %v444 = vrot.slane %v380, 2
  %v445 = vrot.slane %v381, 2
  %v446 = vrot.slane %v382, 2
  %v447 = vrot.slane %v383, 2
  %v448 = vrot.slane %v384, 2
  %v449 = vrot.slane %v385, 2
  %v450 = vrot.slane %v386, 2
  %v451 = vrot.slane %v387, 2
  %v452 = vrot.slane %v388, 2
  %v453 = vrot.slane %v389, 2
  %v454 = vrot.slane %v390, 2
  %v455 = vrot.slane %v391, 2
  %v456 = vrot.slane %v392, 2
  %v457 = vrot.slane %v393, 2
  %v458 = vrot.slane %v394, 2
  %v459 = vrot.slane %v395, 2
  %v460 = vrot.slane %v396, 2
  %v493 = vadd.f32 %v328, %v429
  %v494 = vadd.f32 %v329, %v430
  %v495 = vadd.f32 %v330, %v431
  %v496 = vadd.f32 %v331, %v432
  %v497 = vadd.f32 %v332, %v433
  %v498 = vadd.f32 %v333, %v434
  %v499 = vadd.f32 %v334, %v435
  %v500 = vadd.f32 %v335, %v436
  %v501 = vadd.f32 %v336, %v437
  %v502 = vadd.f32 %v337, %v438
  %v503 = vadd.f32 %v338, %v439
  %v504 = vadd.f32 %v339, %v440
  %v505 = vadd.f32 %v340, %v441
  %v506 = vadd.f32 %v341, %v442
  %v507 = vadd.f32 %v342, %v443
  %v508 = vadd.f32 %v343, %v444
  %v509 = vadd.f32 %v344, %v445
  %v510 = vadd.f32 %v345, %v446
  %v511 = vadd.f32 %v346, %v447
  %v512 = vadd.f32 %v347, %v448
  %v513 = vadd.f32 %v348, %v449
  %v514 = vadd.f32 %v349, %v450
  %v515 = vadd.f32 %v350, %v451
  %v516 = vadd.f32 %v351, %v452
  %v517 = vadd.f32 %v352, %v453
  %v518 = vadd.f32 %v353, %v454
  %v519 = vadd.f32 %v354, %v455
  %v520 = vadd.f32 %v355, %v456
  %v521 = vadd.f32 %v356, %v457
  %v522 = vadd.f32 %v357, %v458
  %v523 = vadd.f32 %v358, %v459
  %v524 = vadd.f32 %v359, %v460
  %v525 = vld [vmem:[%s1 + $0x3] sm:$0x1]
  %v526 = vlaneseq
  %v527 = vshrl.u32 %v526, 7
  %v528 = vsub.s32 0, %v527
  %v529 = vrot.slane %v525, %v528
  %v530 = vmul.f32 %v55, %v529
  %v531 = vmul.f32 %v56, %v529
  %v532 = vmul.f32 %v57, %v529
  %v533 = vmul.f32 %v58, %v529
  %v534 = vmul.f32 %v61, %v529
  %v535 = vmul.f32 %v62, %v529
  %v536 = vmul.f32 %v63, %v529
  %v537 = vmul.f32 %v64, %v529
  %v538 = vmul.f32 %v67, %v529
  %v539 = vmul.f32 %v68, %v529
  %v540 = vmul.f32 %v69, %v529
  %v541 = vmul.f32 %v70, %v529
  %v542 = vmul.f32 %v73, %v529
  %v543 = vmul.f32 %v74, %v529
  %v544 = vmul.f32 %v75, %v529
  %v545 = vmul.f32 %v76, %v529
  %v546 = vmul.f32 %v91, %v529
  %v547 = vmul.f32 %v92, %v529
  %v548 = vmul.f32 %v93, %v529
  %v549 = vmul.f32 %v94, %v529
  %v550 = vmul.f32 %v97, %v529
  %v551 = vmul.f32 %v98, %v529
  %v552 = vmul.f32 %v99, %v529
  %v553 = vmul.f32 %v100, %v529
  %v554 = vmul.f32 %v103, %v529
  %v555 = vmul.f32 %v104, %v529
  %v556 = vmul.f32 %v105, %v529
  %v557 = vmul.f32 %v106, %v529
  %v558 = vmul.f32 %v109, %v529
  %v559 = vmul.f32 %v110, %v529
  %v560 = vmul.f32 %v111, %v529
  %v561 = vmul.f32 %v112, %v529
  %v562 = vadd.f32 %v493, %v530
  %v563 = vadd.f32 %v494, %v531
  %v564 = vadd.f32 %v495, %v532
  %v565 = vadd.f32 %v496, %v533
  %v566 = vadd.f32 %v497, %v534
  %v567 = vadd.f32 %v498, %v535
  %v568 = vadd.f32 %v499, %v536
  %v569 = vadd.f32 %v500, %v537
  %v570 = vadd.f32 %v501, %v538
  %v571 = vadd.f32 %v502, %v539
  %v572 = vadd.f32 %v503, %v540
  %v573 = vadd.f32 %v504, %v541
  %v574 = vadd.f32 %v505, %v542
  %v575 = vadd.f32 %v506, %v543
  %v576 = vadd.f32 %v507, %v544
  %v577 = vadd.f32 %v508, %v545
  %v578 = vadd.f32 %v509, %v546
  %v579 = vadd.f32 %v510, %v547
  %v580 = vadd.f32 %v511, %v548
  %v581 = vadd.f32 %v512, %v549
  %v582 = vadd.f32 %v513, %v550
  %v583 = vadd.f32 %v514, %v551
  %v584 = vadd.f32 %v515, %v552
  %v585 = vadd.f32 %v516, %v553
  %v586 = vadd.f32 %v517, %v554
  %v587 = vadd.f32 %v518, %v555
  %v588 = vadd.f32 %v519, %v556
  %v589 = vadd.f32 %v520, %v557
  %v590 = vadd.f32 %v521, %v558
  %v591 = vadd.f32 %v522, %v559
  %v592 = vadd.f32 %v523, %v560
  %v593 = vadd.f32 %v524, %v561
  %v594 = vld [vmem:[%s1 + $0x4] sm:$0x1]
  %v595 = vlaneseq
  %v596 = vshrl.u32 %v595, 7
  %v597 = vsub.s32 0, %v596
  %v598 = vrot.slane %v594, %v597
  %v599 = vmul.f32 %v55, %v598
  %v600 = vmul.f32 %v56, %v598
  %v601 = vmul.f32 %v57, %v598
  %v602 = vmul.f32 %v58, %v598
  %v603 = vmul.f32 %v61, %v598
  %v604 = vmul.f32 %v62, %v598
  %v605 = vmul.f32 %v63, %v598
  %v606 = vmul.f32 %v64, %v598
  %v607 = vmul.f32 %v67, %v598
  %v608 = vmul.f32 %v68, %v598
  %v609 = vmul.f32 %v69, %v598
  %v610 = vmul.f32 %v70, %v598
  %v611 = vmul.f32 %v73, %v598
  %v612 = vmul.f32 %v74, %v598
  %v613 = vmul.f32 %v75, %v598
  %v614 = vmul.f32 %v76, %v598
  %v615 = vmul.f32 %v91, %v598
  %v616 = vmul.f32 %v92, %v598
  %v617 = vmul.f32 %v93, %v598
  %v618 = vmul.f32 %v94, %v598
  %v619 = vmul.f32 %v97, %v598
  %v620 = vmul.f32 %v98, %v598
  %v621 = vmul.f32 %v99, %v598
  %v622 = vmul.f32 %v100, %v598
  %v623 = vmul.f32 %v103, %v598
  %v624 = vmul.f32 %v104, %v598
  %v625 = vmul.f32 %v105, %v598
  %v626 = vmul.f32 %v106, %v598
  %v627 = vmul.f32 %v109, %v598
  %v628 = vmul.f32 %v110, %v598
  %v629 = vmul.f32 %v111, %v598
  %v630 = vmul.f32 %v112, %v598
  %v663 = vrot.slane %v599, 1
  %v664 = vrot.slane %v600, 1
  %v665 = vrot.slane %v601, 1
  %v666 = vrot.slane %v602, 1
  %v667 = vrot.slane %v603, 1
  %v668 = vrot.slane %v604, 1
  %v669 = vrot.slane %v605, 1
  %v670 = vrot.slane %v606, 1
  %v671 = vrot.slane %v607, 1
  %v672 = vrot.slane %v608, 1
  %v673 = vrot.slane %v609, 1
  %v674 = vrot.slane %v610, 1
  %v675 = vrot.slane %v611, 1
  %v676 = vrot.slane %v612, 1
  %v677 = vrot.slane %v613, 1
  %v678 = vrot.slane %v614, 1
  %v679 = vrot.slane %v615, 1
  %v680 = vrot.slane %v616, 1
  %v681 = vrot.slane %v617, 1
  %v682 = vrot.slane %v618, 1
  %v683 = vrot.slane %v619, 1
  %v684 = vrot.slane %v620, 1
  %v685 = vrot.slane %v621, 1
  %v686 = vrot.slane %v622, 1
  %v687 = vrot.slane %v623, 1
  %v688 = vrot.slane %v624, 1
  %v689 = vrot.slane %v625, 1
  %v690 = vrot.slane %v626, 1
  %v691 = vrot.slane %v627, 1
  %v692 = vrot.slane %v628, 1
  %v693 = vrot.slane %v629, 1
  %v694 = vrot.slane %v630, 1
  %v727 = vadd.f32 %v562, %v663
  %v728 = vadd.f32 %v563, %v664
  %v729 = vadd.f32 %v564, %v665
  %v730 = vadd.f32 %v565, %v666
  %v731 = vadd.f32 %v566, %v667
  %v732 = vadd.f32 %v567, %v668
  %v733 = vadd.f32 %v568, %v669
  %v734 = vadd.f32 %v569, %v670
  %v735 = vadd.f32 %v570, %v671
  %v736 = vadd.f32 %v571, %v672
  %v737 = vadd.f32 %v572, %v673
  %v738 = vadd.f32 %v573, %v674
  %v739 = vadd.f32 %v574, %v675
  %v740 = vadd.f32 %v575, %v676
  %v741 = vadd.f32 %v576, %v677
  %v742 = vadd.f32 %v577, %v678
  %v743 = vadd.f32 %v578, %v679
  %v744 = vadd.f32 %v579, %v680
  %v745 = vadd.f32 %v580, %v681
  %v746 = vadd.f32 %v581, %v682
  %v747 = vadd.f32 %v582, %v683
  %v748 = vadd.f32 %v583, %v684
  %v749 = vadd.f32 %v584, %v685
  %v750 = vadd.f32 %v585, %v686
  %v751 = vadd.f32 %v586, %v687
  %v752 = vadd.f32 %v587, %v688
  %v753 = vadd.f32 %v588, %v689
  %v754 = vadd.f32 %v589, %v690
  %v755 = vadd.f32 %v590, %v691
  %v756 = vadd.f32 %v591, %v692
  %v757 = vadd.f32 %v592, %v693
  %v758 = vadd.f32 %v593, %v694
  %v759 = vld [vmem:[%s1 + $0x5] sm:$0x1]
  %v760 = vlaneseq
  %v761 = vshrl.u32 %v760, 7
  %v762 = vsub.s32 0, %v761
  %v763 = vrot.slane %v759, %v762
  %v764 = vmul.f32 %v55, %v763
  %v765 = vmul.f32 %v56, %v763
  %v766 = vmul.f32 %v57, %v763
  %v767 = vmul.f32 %v58, %v763
  %v768 = vmul.f32 %v61, %v763
  %v769 = vmul.f32 %v62, %v763
  %v770 = vmul.f32 %v63, %v763
  %v771 = vmul.f32 %v64, %v763
  %v772 = vmul.f32 %v67, %v763
  %v773 = vmul.f32 %v68, %v763
  %v774 = vmul.f32 %v69, %v763
  %v775 = vmul.f32 %v70, %v763
  %v776 = vmul.f32 %v73, %v763
  %v777 = vmul.f32 %v74, %v763
  %v778 = vmul.f32 %v75, %v763
  %v779 = vmul.f32 %v76, %v763
  %v780 = vmul.f32 %v91, %v763
  %v781 = vmul.f32 %v92, %v763
  %v782 = vmul.f32 %v93, %v763
  %v783 = vmul.f32 %v94, %v763
  %v784 = vmul.f32 %v97, %v763
  %v785 = vmul.f32 %v98, %v763
  %v786 = vmul.f32 %v99, %v763
  %v787 = vmul.f32 %v100, %v763
  %v788 = vmul.f32 %v103, %v763
  %v789 = vmul.f32 %v104, %v763
  %v790 = vmul.f32 %v105, %v763
  %v791 = vmul.f32 %v106, %v763
  %v792 = vmul.f32 %v109, %v763
  %v793 = vmul.f32 %v110, %v763
  %v794 = vmul.f32 %v111, %v763
  %v795 = vmul.f32 %v112, %v763
  %v828 = vrot.slane %v764, 2
  %v829 = vrot.slane %v765, 2
  %v830 = vrot.slane %v766, 2
  %v831 = vrot.slane %v767, 2
  %v832 = vrot.slane %v768, 2
  %v833 = vrot.slane %v769, 2
  %v834 = vrot.slane %v770, 2
  %v835 = vrot.slane %v771, 2
  %v836 = vrot.slane %v772, 2
  %v837 = vrot.slane %v773, 2
  %v838 = vrot.slane %v774, 2
  %v839 = vrot.slane %v775, 2
  %v840 = vrot.slane %v776, 2
  %v841 = vrot.slane %v777, 2
  %v842 = vrot.slane %v778, 2
  %v843 = vrot.slane %v779, 2
  %v844 = vrot.slane %v780, 2
  %v845 = vrot.slane %v781, 2
  %v846 = vrot.slane %v782, 2
  %v847 = vrot.slane %v783, 2
  %v848 = vrot.slane %v784, 2
  %v849 = vrot.slane %v785, 2
  %v850 = vrot.slane %v786, 2
  %v851 = vrot.slane %v787, 2
  %v852 = vrot.slane %v788, 2
  %v853 = vrot.slane %v789, 2
  %v854 = vrot.slane %v790, 2
  %v855 = vrot.slane %v791, 2
  %v856 = vrot.slane %v792, 2
  %v857 = vrot.slane %v793, 2
  %v858 = vrot.slane %v794, 2
  %v859 = vrot.slane %v795, 2
  %v892 = vadd.f32 %v727, %v828
  %v893 = vadd.f32 %v728, %v829
  %v894 = vadd.f32 %v729, %v830
  %v895 = vadd.f32 %v730, %v831
  %v896 = vadd.f32 %v731, %v832
  %v897 = vadd.f32 %v732, %v833
  %v898 = vadd.f32 %v733, %v834
  %v899 = vadd.f32 %v734, %v835
  %v900 = vadd.f32 %v735, %v836
  %v901 = vadd.f32 %v736, %v837
  %v902 = vadd.f32 %v737, %v838
  %v903 = vadd.f32 %v738, %v839
  %v904 = vadd.f32 %v739, %v840
  %v905 = vadd.f32 %v740, %v841
  %v906 = vadd.f32 %v741, %v842
  %v907 = vadd.f32 %v742, %v843
  %v908 = vadd.f32 %v743, %v844
  %v909 = vadd.f32 %v744, %v845
  %v910 = vadd.f32 %v745, %v846
  %v911 = vadd.f32 %v746, %v847
  %v912 = vadd.f32 %v747, %v848
  %v913 = vadd.f32 %v748, %v849
  %v914 = vadd.f32 %v749, %v850
  %v915 = vadd.f32 %v750, %v851
  %v916 = vadd.f32 %v751, %v852
  %v917 = vadd.f32 %v752, %v853
  %v918 = vadd.f32 %v753, %v854
  %v919 = vadd.f32 %v754, %v855
  %v920 = vadd.f32 %v755, %v856
  %v921 = vadd.f32 %v756, %v857
  %v922 = vadd.f32 %v757, %v858
  %v923 = vadd.f32 %v758, %v859
  %v924 = vld [vmem:[%s1 + $0x6] sm:$0x1]
  %v925 = vlaneseq
  %v926 = vshrl.u32 %v925, 7
  %v927 = vsub.s32 0, %v926
  %v928 = vrot.slane %v924, %v927
  %v929 = vmul.f32 %v56, %v928
  %v930 = vmul.f32 %v57, %v928
  %v931 = vmul.f32 %v58, %v928
  %v932 = vmul.f32 %v59, %v928
  %v933 = vmul.f32 %v62, %v928
  %v934 = vmul.f32 %v63, %v928
  %v935 = vmul.f32 %v64, %v928
  %v936 = vmul.f32 %v65, %v928
  %v937 = vmul.f32 %v68, %v928
  %v938 = vmul.f32 %v69, %v928
  %v939 = vmul.f32 %v70, %v928
  %v940 = vmul.f32 %v71, %v928
  %v941 = vmul.f32 %v74, %v928
  %v942 = vmul.f32 %v75, %v928
  %v943 = vmul.f32 %v76, %v928
  %v944 = vmul.f32 %v77, %v928
  %v945 = vmul.f32 %v92, %v928
  %v946 = vmul.f32 %v93, %v928
  %v947 = vmul.f32 %v94, %v928
  %v948 = vmul.f32 %v95, %v928
  %v949 = vmul.f32 %v98, %v928
  %v950 = vmul.f32 %v99, %v928
  %v951 = vmul.f32 %v100, %v928
  %v952 = vmul.f32 %v101, %v928
  %v953 = vmul.f32 %v104, %v928
  %v954 = vmul.f32 %v105, %v928
  %v955 = vmul.f32 %v106, %v928
  %v956 = vmul.f32 %v107, %v928
  %v957 = vmul.f32 %v110, %v928
  %v958 = vmul.f32 %v111, %v928
  %v959 = vmul.f32 %v112, %v928
  %v960 = vmul.f32 %v113, %v928
  %v961 = vadd.f32 %v892, %v929
  %v962 = vadd.f32 %v893, %v930
  %v963 = vadd.f32 %v894, %v931
  %v964 = vadd.f32 %v895, %v932
  %v965 = vadd.f32 %v896, %v933
  %v966 = vadd.f32 %v897, %v934
  %v967 = vadd.f32 %v898, %v935
  %v968 = vadd.f32 %v899, %v936
  %v969 = vadd.f32 %v900, %v937
  %v970 = vadd.f32 %v901, %v938
  %v971 = vadd.f32 %v902, %v939
  %v972 = vadd.f32 %v903, %v940
  %v973 = vadd.f32 %v904, %v941
  %v974 = vadd.f32 %v905, %v942
  %v975 = vadd.f32 %v906, %v943
  %v976 = vadd.f32 %v907, %v944
  %v977 = vadd.f32 %v908, %v945
  %v978 = vadd.f32 %v909, %v946
  %v979 = vadd.f32 %v910, %v947
  %v980 = vadd.f32 %v911, %v948
  %v981 = vadd.f32 %v912, %v949
  %v982 = vadd.f32 %v913, %v950
  %v983 = vadd.f32 %v914, %v951
  %v984 = vadd.f32 %v915, %v952
  %v985 = vadd.f32 %v916, %v953
  %v986 = vadd.f32 %v917, %v954
  %v987 = vadd.f32 %v918, %v955
  %v988 = vadd.f32 %v919, %v956
  %v989 = vadd.f32 %v920, %v957
  %v990 = vadd.f32 %v921, %v958
  %v991 = vadd.f32 %v922, %v959
  %v992 = vadd.f32 %v923, %v960
  %v993 = vld [vmem:[%s1 + $0x7] sm:$0x1]
  %v994 = vlaneseq
  %v995 = vshrl.u32 %v994, 7
  %v996 = vsub.s32 0, %v995
  %v997 = vrot.slane %v993, %v996
  %v998 = vmul.f32 %v56, %v997
  %v999 = vmul.f32 %v57, %v997
  %v1000 = vmul.f32 %v58, %v997
  %v1001 = vmul.f32 %v59, %v997
  %v1002 = vmul.f32 %v62, %v997
  %v1003 = vmul.f32 %v63, %v997
  %v1004 = vmul.f32 %v64, %v997
  %v1005 = vmul.f32 %v65, %v997
  %v1006 = vmul.f32 %v68, %v997
  %v1007 = vmul.f32 %v69, %v997
  %v1008 = vmul.f32 %v70, %v997
  %v1009 = vmul.f32 %v71, %v997
  %v1010 = vmul.f32 %v74, %v997
  %v1011 = vmul.f32 %v75, %v997
  %v1012 = vmul.f32 %v76, %v997
  %v1013 = vmul.f32 %v77, %v997
  %v1014 = vmul.f32 %v92, %v997
  %v1015 = vmul.f32 %v93, %v997
  %v1016 = vmul.f32 %v94, %v997
  %v1017 = vmul.f32 %v95, %v997
  %v1018 = vmul.f32 %v98, %v997
  %v1019 = vmul.f32 %v99, %v997
  %v1020 = vmul.f32 %v100, %v997
  %v1021 = vmul.f32 %v101, %v997
  %v1022 = vmul.f32 %v104, %v997
  %v1023 = vmul.f32 %v105, %v997
  %v1024 = vmul.f32 %v106, %v997
  %v1025 = vmul.f32 %v107, %v997
  %v1026 = vmul.f32 %v110, %v997
  %v1027 = vmul.f32 %v111, %v997
  %v1028 = vmul.f32 %v112, %v997
  %v1029 = vmul.f32 %v113, %v997
  %v1062 = vrot.slane %v998, 1
  %v1063 = vrot.slane %v999, 1
  %v1064 = vrot.slane %v1000, 1
  %v1065 = vrot.slane %v1001, 1
  %v1066 = vrot.slane %v1002, 1
  %v1067 = vrot.slane %v1003, 1
  %v1068 = vrot.slane %v1004, 1
  %v1069 = vrot.slane %v1005, 1
  %v1070 = vrot.slane %v1006, 1
  %v1071 = vrot.slane %v1007, 1
  %v1072 = vrot.slane %v1008, 1
  %v1073 = vrot.slane %v1009, 1
  %v1074 = vrot.slane %v1010, 1
  %v1075 = vrot.slane %v1011, 1
  %v1076 = vrot.slane %v1012, 1
  %v1077 = vrot.slane %v1013, 1
  %v1078 = vrot.slane %v1014, 1
  %v1079 = vrot.slane %v1015, 1
  %v1080 = vrot.slane %v1016, 1
  %v1081 = vrot.slane %v1017, 1
  %v1082 = vrot.slane %v1018, 1
  %v1083 = vrot.slane %v1019, 1
  %v1084 = vrot.slane %v1020, 1
  %v1085 = vrot.slane %v1021, 1
  %v1086 = vrot.slane %v1022, 1
  %v1087 = vrot.slane %v1023, 1
  %v1088 = vrot.slane %v1024, 1
  %v1089 = vrot.slane %v1025, 1
  %v1090 = vrot.slane %v1026, 1
  %v1091 = vrot.slane %v1027, 1
  %v1092 = vrot.slane %v1028, 1
  %v1093 = vrot.slane %v1029, 1
  %v1126 = vadd.f32 %v961, %v1062
  %v1127 = vadd.f32 %v962, %v1063
  %v1128 = vadd.f32 %v963, %v1064
  %v1129 = vadd.f32 %v964, %v1065
  %v1130 = vadd.f32 %v965, %v1066
  %v1131 = vadd.f32 %v966, %v1067
  %v1132 = vadd.f32 %v967, %v1068
  %v1133 = vadd.f32 %v968, %v1069
  %v1134 = vadd.f32 %v969, %v1070
  %v1135 = vadd.f32 %v970, %v1071
  %v1136 = vadd.f32 %v971, %v1072
  %v1137 = vadd.f32 %v972, %v1073
  %v1138 = vadd.f32 %v973, %v1074
  %v1139 = vadd.f32 %v974, %v1075
  %v1140 = vadd.f32 %v975, %v1076
  %v1141 = vadd.f32 %v976, %v1077
  %v1142 = vadd.f32 %v977, %v1078
  %v1143 = vadd.f32 %v978, %v1079
  %v1144 = vadd.f32 %v979, %v1080
  %v1145 = vadd.f32 %v980, %v1081
  %v1146 = vadd.f32 %v981, %v1082
  %v1147 = vadd.f32 %v982, %v1083
  %v1148 = vadd.f32 %v983, %v1084
  %v1149 = vadd.f32 %v984, %v1085
  %v1150 = vadd.f32 %v985, %v1086
  %v1151 = vadd.f32 %v986, %v1087
  %v1152 = vadd.f32 %v987, %v1088
  %v1153 = vadd.f32 %v988, %v1089
  %v1154 = vadd.f32 %v989, %v1090
  %v1155 = vadd.f32 %v990, %v1091
  %v1156 = vadd.f32 %v991, %v1092
  %v1157 = vadd.f32 %v992, %v1093
  %v1158 = vld [vmem:[%s1 + $0x8] sm:$0x1]
  %v1159 = vlaneseq
  %v1160 = vshrl.u32 %v1159, 7
  %v1161 = vsub.s32 0, %v1160
  %v1162 = vrot.slane %v1158, %v1161
  %v1163 = vmul.f32 %v56, %v1162
  %v1164 = vmul.f32 %v57, %v1162
  %v1165 = vmul.f32 %v58, %v1162
  %v1166 = vmul.f32 %v59, %v1162
  %v1167 = vmul.f32 %v62, %v1162
  %v1168 = vmul.f32 %v63, %v1162
  %v1169 = vmul.f32 %v64, %v1162
  %v1170 = vmul.f32 %v65, %v1162
  %v1171 = vmul.f32 %v68, %v1162
  %v1172 = vmul.f32 %v69, %v1162
  %v1173 = vmul.f32 %v70, %v1162
  %v1174 = vmul.f32 %v71, %v1162
  %v1175 = vmul.f32 %v74, %v1162
  %v1176 = vmul.f32 %v75, %v1162
  %v1177 = vmul.f32 %v76, %v1162
  %v1178 = vmul.f32 %v77, %v1162
  %v1179 = vmul.f32 %v92, %v1162
  %v1180 = vmul.f32 %v93, %v1162
  %v1181 = vmul.f32 %v94, %v1162
  %v1182 = vmul.f32 %v95, %v1162
  %v1183 = vmul.f32 %v98, %v1162
  %v1184 = vmul.f32 %v99, %v1162
  %v1185 = vmul.f32 %v100, %v1162
  %v1186 = vmul.f32 %v101, %v1162
  %v1187 = vmul.f32 %v104, %v1162
  %v1188 = vmul.f32 %v105, %v1162
  %v1189 = vmul.f32 %v106, %v1162
  %v1190 = vmul.f32 %v107, %v1162
  %v1191 = vmul.f32 %v110, %v1162
  %v1192 = vmul.f32 %v111, %v1162
  %v1193 = vmul.f32 %v112, %v1162
  %v1194 = vmul.f32 %v113, %v1162
  %v1227 = vrot.slane %v1163, 2
  %v1228 = vrot.slane %v1164, 2
  %v1229 = vrot.slane %v1165, 2
  %v1230 = vrot.slane %v1166, 2
  %v1231 = vrot.slane %v1167, 2
  %v1232 = vrot.slane %v1168, 2
  %v1233 = vrot.slane %v1169, 2
  %v1234 = vrot.slane %v1170, 2
  %v1235 = vrot.slane %v1171, 2
  %v1236 = vrot.slane %v1172, 2
  %v1237 = vrot.slane %v1173, 2
  %v1238 = vrot.slane %v1174, 2
  %v1239 = vrot.slane %v1175, 2
  %v1240 = vrot.slane %v1176, 2
  %v1241 = vrot.slane %v1177, 2
  %v1242 = vrot.slane %v1178, 2
  %v1243 = vrot.slane %v1179, 2
  %v1244 = vrot.slane %v1180, 2
  %v1245 = vrot.slane %v1181, 2
  %v1246 = vrot.slane %v1182, 2
  %v1247 = vrot.slane %v1183, 2
  %v1248 = vrot.slane %v1184, 2
  %v1249 = vrot.slane %v1185, 2
  %v1250 = vrot.slane %v1186, 2
  %v1251 = vrot.slane %v1187, 2
  %v1252 = vrot.slane %v1188, 2
  %v1253 = vrot.slane %v1189, 2
  %v1254 = vrot.slane %v1190, 2
  %v1255 = vrot.slane %v1191, 2
  %v1256 = vrot.slane %v1192, 2
  %v1257 = vrot.slane %v1193, 2
  %v1258 = vrot.slane %v1194, 2
  %v1291 = vadd.f32 %v1126, %v1227
  %v1292 = vadd.f32 %v1127, %v1228
  %v1293 = vadd.f32 %v1128, %v1229
  %v1294 = vadd.f32 %v1129, %v1230
  %v1295 = vadd.f32 %v1130, %v1231
  %v1296 = vadd.f32 %v1131, %v1232
  %v1297 = vadd.f32 %v1132, %v1233
  %v1298 = vadd.f32 %v1133, %v1234
  %v1299 = vadd.f32 %v1134, %v1235
  %v1300 = vadd.f32 %v1135, %v1236
  %v1301 = vadd.f32 %v1136, %v1237
  %v1302 = vadd.f32 %v1137, %v1238
  %v1303 = vadd.f32 %v1138, %v1239
  %v1304 = vadd.f32 %v1139, %v1240
  %v1305 = vadd.f32 %v1140, %v1241
  %v1306 = vadd.f32 %v1141, %v1242
  %v1307 = vadd.f32 %v1142, %v1243
  %v1308 = vadd.f32 %v1143, %v1244
  %v1309 = vadd.f32 %v1144, %v1245
  %v1310 = vadd.f32 %v1145, %v1246
  %v1311 = vadd.f32 %v1146, %v1247
  %v1312 = vadd.f32 %v1147, %v1248
  %v1313 = vadd.f32 %v1148, %v1249
  %v1314 = vadd.f32 %v1149, %v1250
  %v1315 = vadd.f32 %v1150, %v1251
  %v1316 = vadd.f32 %v1151, %v1252
  %v1317 = vadd.f32 %v1152, %v1253
  %v1318 = vadd.f32 %v1153, %v1254
  %v1319 = vadd.f32 %v1154, %v1255
  %v1320 = vadd.f32 %v1155, %v1256
  %v1321 = vadd.f32 %v1156, %v1257
  %v1322 = vadd.f32 %v1157, %v1258
  %v1323 = vld [vmem:[%s1 + $0x9] sm:$0x1]
  %v1324 = vlaneseq
  %v1325 = vshrl.u32 %v1324, 7
  %v1326 = vsub.s32 0, %v1325
  %v1327 = vrot.slane %v1323, %v1326
  %v1328 = vmul.f32 %v60, %v1327
  %v1329 = vmul.f32 %v61, %v1327
  %v1330 = vmul.f32 %v62, %v1327
  %v1331 = vmul.f32 %v63, %v1327
  %v1332 = vmul.f32 %v66, %v1327
  %v1333 = vmul.f32 %v67, %v1327
  %v1334 = vmul.f32 %v68, %v1327
  %v1335 = vmul.f32 %v69, %v1327
  %v1336 = vmul.f32 %v72, %v1327
  %v1337 = vmul.f32 %v73, %v1327
  %v1338 = vmul.f32 %v74, %v1327
  %v1339 = vmul.f32 %v75, %v1327
  %v1340 = vmul.f32 %v78, %v1327
  %v1341 = vmul.f32 %v79, %v1327
  %v1342 = vmul.f32 %v80, %v1327
  %v1343 = vmul.f32 %v81, %v1327
  %v1344 = vmul.f32 %v96, %v1327
  %v1345 = vmul.f32 %v97, %v1327
  %v1346 = vmul.f32 %v98, %v1327
  %v1347 = vmul.f32 %v99, %v1327
  %v1348 = vmul.f32 %v102, %v1327
  %v1349 = vmul.f32 %v103, %v1327
  %v1350 = vmul.f32 %v104, %v1327
  %v1351 = vmul.f32 %v105, %v1327
  %v1352 = vmul.f32 %v108, %v1327
  %v1353 = vmul.f32 %v109, %v1327
  %v1354 = vmul.f32 %v110, %v1327
  %v1355 = vmul.f32 %v111, %v1327
  %v1356 = vmul.f32 %v114, %v1327
  %v1357 = vmul.f32 %v115, %v1327
  %v1358 = vmul.f32 %v116, %v1327
  %v1359 = vmul.f32 %v117, %v1327
  %v1360 = vadd.f32 %v1291, %v1328
  %v1361 = vadd.f32 %v1292, %v1329
  %v1362 = vadd.f32 %v1293, %v1330
  %v1363 = vadd.f32 %v1294, %v1331
  %v1364 = vadd.f32 %v1295, %v1332
  %v1365 = vadd.f32 %v1296, %v1333
  %v1366 = vadd.f32 %v1297, %v1334
  %v1367 = vadd.f32 %v1298, %v1335
  %v1368 = vadd.f32 %v1299, %v1336
  %v1369 = vadd.f32 %v1300, %v1337
  %v1370 = vadd.f32 %v1301, %v1338
  %v1371 = vadd.f32 %v1302, %v1339
  %v1372 = vadd.f32 %v1303, %v1340
  %v1373 = vadd.f32 %v1304, %v1341
  %v1374 = vadd.f32 %v1305, %v1342
  %v1375 = vadd.f32 %v1306, %v1343
  %v1376 = vadd.f32 %v1307, %v1344
  %v1377 = vadd.f32 %v1308, %v1345
  %v1378 = vadd.f32 %v1309, %v1346
  %v1379 = vadd.f32 %v1310, %v1347
  %v1380 = vadd.f32 %v1311, %v1348
  %v1381 = vadd.f32 %v1312, %v1349
  %v1382 = vadd.f32 %v1313, %v1350
  %v1383 = vadd.f32 %v1314, %v1351
  %v1384 = vadd.f32 %v1315, %v1352
  %v1385 = vadd.f32 %v1316, %v1353
  %v1386 = vadd.f32 %v1317, %v1354
  %v1387 = vadd.f32 %v1318, %v1355
  %v1388 = vadd.f32 %v1319, %v1356
  %v1389 = vadd.f32 %v1320, %v1357
  %v1390 = vadd.f32 %v1321, %v1358
  %v1391 = vadd.f32 %v1322, %v1359
  %v1392 = vld [vmem:[%s1 + $0xa] sm:$0x1]
  %v1393 = vlaneseq
  %v1394 = vshrl.u32 %v1393, 7
  %v1395 = vsub.s32 0, %v1394
  %v1396 = vrot.slane %v1392, %v1395
  %v1397 = vmul.f32 %v60, %v1396
  %v1398 = vmul.f32 %v61, %v1396
  %v1399 = vmul.f32 %v62, %v1396
  %v1400 = vmul.f32 %v63, %v1396
  %v1401 = vmul.f32 %v66, %v1396
  %v1402 = vmul.f32 %v67, %v1396
  %v1403 = vmul.f32 %v68, %v1396
  %v1404 = vmul.f32 %v69, %v1396
  %v1405 = vmul.f32 %v72, %v1396
  %v1406 = vmul.f32 %v73, %v1396
  %v1407 = vmul.f32 %v74, %v1396
  %v1408 = vmul.f32 %v75, %v1396
  %v1409 = vmul.f32 %v78, %v1396
  %v1410 = vmul.f32 %v79, %v1396
  %v1411 = vmul.f32 %v80, %v1396
  %v1412 = vmul.f32 %v81, %v1396
  %v1413 = vmul.f32 %v96, %v1396
  %v1414 = vmul.f32 %v97, %v1396
  %v1415 = vmul.f32 %v98, %v1396
  %v1416 = vmul.f32 %v99, %v1396
  %v1417 = vmul.f32 %v102, %v1396
  %v1418 = vmul.f32 %v103, %v1396
  %v1419 = vmul.f32 %v104, %v1396
  %v1420 = vmul.f32 %v105, %v1396
  %v1421 = vmul.f32 %v108, %v1396
  %v1422 = vmul.f32 %v109, %v1396
  %v1423 = vmul.f32 %v110, %v1396
  %v1424 = vmul.f32 %v111, %v1396
  %v1425 = vmul.f32 %v114, %v1396
  %v1426 = vmul.f32 %v115, %v1396
  %v1427 = vmul.f32 %v116, %v1396
  %v1428 = vmul.f32 %v117, %v1396
  %v1461 = vrot.slane %v1397, 1
  %v1462 = vrot.slane %v1398, 1
  %v1463 = vrot.slane %v1399, 1
  %v1464 = vrot.slane %v1400, 1
  %v1465 = vrot.slane %v1401, 1
  %v1466 = vrot.slane %v1402, 1
  %v1467 = vrot.slane %v1403, 1
  %v1468 = vrot.slane %v1404, 1
  %v1469 = vrot.slane %v1405, 1
  %v1470 = vrot.slane %v1406, 1
  %v1471 = vrot.slane %v1407, 1
  %v1472 = vrot.slane %v1408, 1
  %v1473 = vrot.slane %v1409, 1
  %v1474 = vrot.slane %v1410, 1
  %v1475 = vrot.slane %v1411, 1
  %v1476 = vrot.slane %v1412, 1
  %v1477 = vrot.slane %v1413, 1
  %v1478 = vrot.slane %v1414, 1
  %v1479 = vrot.slane %v1415, 1
  %v1480 = vrot.slane %v1416, 1
  %v1481 = vrot.slane %v1417, 1
  %v1482 = vrot.slane %v1418, 1
  %v1483 = vrot.slane %v1419, 1
  %v1484 = vrot.slane %v1420, 1
  %v1485 = vrot.slane %v1421, 1
  %v1486 = vrot.slane %v1422, 1
  %v1487 = vrot.slane %v1423, 1
  %v1488 = vrot.slane %v1424, 1
  %v1489 = vrot.slane %v1425, 1
  %v1490 = vrot.slane %v1426, 1
  %v1491 = vrot.slane %v1427, 1
  %v1492 = vrot.slane %v1428, 1
  %v1525 = vadd.f32 %v1360, %v1461
  %v1526 = vadd.f32 %v1361, %v1462
  %v1527 = vadd.f32 %v1362, %v1463
  %v1528 = vadd.f32 %v1363, %v1464
  %v1529 = vadd.f32 %v1364, %v1465
  %v1530 = vadd.f32 %v1365, %v1466
  %v1531 = vadd.f32 %v1366, %v1467
  %v1532 = vadd.f32 %v1367, %v1468
  %v1533 = vadd.f32 %v1368, %v1469
  %v1534 = vadd.f32 %v1369, %v1470
  %v1535 = vadd.f32 %v1370, %v1471
  %v1536 = vadd.f32 %v1371, %v1472
  %v1537 = vadd.f32 %v1372, %v1473
  %v1538 = vadd.f32 %v1373, %v1474
  %v1539 = vadd.f32 %v1374, %v1475
  %v1540 = vadd.f32 %v1375, %v1476
  %v1541 = vadd.f32 %v1376, %v1477
  %v1542 = vadd.f32 %v1377, %v1478
  %v1543 = vadd.f32 %v1378, %v1479
  %v1544 = vadd.f32 %v1379, %v1480
  %v1545 = vadd.f32 %v1380, %v1481
  %v1546 = vadd.f32 %v1381, %v1482
  %v1547 = vadd.f32 %v1382, %v1483
  %v1548 = vadd.f32 %v1383, %v1484
  %v1549 = vadd.f32 %v1384, %v1485
  %v1550 = vadd.f32 %v1385, %v1486
  %v1551 = vadd.f32 %v1386, %v1487
  %v1552 = vadd.f32 %v1387, %v1488
  %v1553 = vadd.f32 %v1388, %v1489
  %v1554 = vadd.f32 %v1389, %v1490
  %v1555 = vadd.f32 %v1390, %v1491
  %v1556 = vadd.f32 %v1391, %v1492
  %v1557 = vld [vmem:[%s1 + $0xb] sm:$0x1]
  %v1558 = vlaneseq
  %v1559 = vshrl.u32 %v1558, 7
  %v1560 = vsub.s32 0, %v1559
  %v1561 = vrot.slane %v1557, %v1560
  %v1562 = vmul.f32 %v60, %v1561
  %v1563 = vmul.f32 %v61, %v1561
  %v1564 = vmul.f32 %v62, %v1561
  %v1565 = vmul.f32 %v63, %v1561
  %v1566 = vmul.f32 %v66, %v1561
  %v1567 = vmul.f32 %v67, %v1561
  %v1568 = vmul.f32 %v68, %v1561
  %v1569 = vmul.f32 %v69, %v1561
  %v1570 = vmul.f32 %v72, %v1561
  %v1571 = vmul.f32 %v73, %v1561
  %v1572 = vmul.f32 %v74, %v1561
  %v1573 = vmul.f32 %v75, %v1561
  %v1574 = vmul.f32 %v78, %v1561
  %v1575 = vmul.f32 %v79, %v1561
  %v1576 = vmul.f32 %v80, %v1561
  %v1577 = vmul.f32 %v81, %v1561
  %v1578 = vmul.f32 %v96, %v1561
  %v1579 = vmul.f32 %v97, %v1561
  %v1580 = vmul.f32 %v98, %v1561
  %v1581 = vmul.f32 %v99, %v1561
  %v1582 = vmul.f32 %v102, %v1561
  %v1583 = vmul.f32 %v103, %v1561
  %v1584 = vmul.f32 %v104, %v1561
  %v1585 = vmul.f32 %v105, %v1561
  %v1586 = vmul.f32 %v108, %v1561
  %v1587 = vmul.f32 %v109, %v1561
  %v1588 = vmul.f32 %v110, %v1561
  %v1589 = vmul.f32 %v111, %v1561
  %v1590 = vmul.f32 %v114, %v1561
  %v1591 = vmul.f32 %v115, %v1561
  %v1592 = vmul.f32 %v116, %v1561
  %v1593 = vmul.f32 %v117, %v1561
  %v1626 = vrot.slane %v1562, 2
  %v1627 = vrot.slane %v1563, 2
  %v1628 = vrot.slane %v1564, 2
  %v1629 = vrot.slane %v1565, 2
  %v1630 = vrot.slane %v1566, 2
  %v1631 = vrot.slane %v1567, 2
  %v1632 = vrot.slane %v1568, 2
  %v1633 = vrot.slane %v1569, 2
  %v1634 = vrot.slane %v1570, 2
  %v1635 = vrot.slane %v1571, 2
  %v1636 = vrot.slane %v1572, 2
  %v1637 = vrot.slane %v1573, 2
  %v1638 = vrot.slane %v1574, 2
  %v1639 = vrot.slane %v1575, 2
  %v1640 = vrot.slane %v1576, 2
  %v1641 = vrot.slane %v1577, 2
  %v1642 = vrot.slane %v1578, 2
  %v1643 = vrot.slane %v1579, 2
  %v1644 = vrot.slane %v1580, 2
  %v1645 = vrot.slane %v1581, 2
  %v1646 = vrot.slane %v1582, 2
  %v1647 = vrot.slane %v1583, 2
  %v1648 = vrot.slane %v1584, 2
  %v1649 = vrot.slane %v1585, 2
  %v1650 = vrot.slane %v1586, 2
  %v1651 = vrot.slane %v1587, 2
  %v1652 = vrot.slane %v1588, 2
  %v1653 = vrot.slane %v1589, 2
  %v1654 = vrot.slane %v1590, 2
  %v1655 = vrot.slane %v1591, 2
  %v1656 = vrot.slane %v1592, 2
  %v1657 = vrot.slane %v1593, 2
  %v1690 = vadd.f32 %v1525, %v1626
  %v1691 = vadd.f32 %v1526, %v1627
  %v1692 = vadd.f32 %v1527, %v1628
  %v1693 = vadd.f32 %v1528, %v1629
  %v1694 = vadd.f32 %v1529, %v1630
  %v1695 = vadd.f32 %v1530, %v1631
  %v1696 = vadd.f32 %v1531, %v1632
  %v1697 = vadd.f32 %v1532, %v1633
  %v1698 = vadd.f32 %v1533, %v1634
  %v1699 = vadd.f32 %v1534, %v1635
  %v1700 = vadd.f32 %v1535, %v1636
  %v1701 = vadd.f32 %v1536, %v1637
  %v1702 = vadd.f32 %v1537, %v1638
  %v1703 = vadd.f32 %v1538, %v1639
  %v1704 = vadd.f32 %v1539, %v1640
  %v1705 = vadd.f32 %v1540, %v1641
  %v1706 = vadd.f32 %v1541, %v1642
  %v1707 = vadd.f32 %v1542, %v1643
  %v1708 = vadd.f32 %v1543, %v1644
  %v1709 = vadd.f32 %v1544, %v1645
  %v1710 = vadd.f32 %v1545, %v1646
  %v1711 = vadd.f32 %v1546, %v1647
  %v1712 = vadd.f32 %v1547, %v1648
  %v1713 = vadd.f32 %v1548, %v1649
  %v1714 = vadd.f32 %v1549, %v1650
  %v1715 = vadd.f32 %v1550, %v1651
  %v1716 = vadd.f32 %v1551, %v1652
  %v1717 = vadd.f32 %v1552, %v1653
  %v1718 = vadd.f32 %v1553, %v1654
  %v1719 = vadd.f32 %v1554, %v1655
  %v1720 = vadd.f32 %v1555, %v1656
  %v1721 = vadd.f32 %v1556, %v1657
  %v1722 = vld [vmem:[%s1 + $0xc] sm:$0x1]
  %v1723 = vlaneseq
  %v1724 = vshrl.u32 %v1723, 7
  %v1725 = vsub.s32 0, %v1724
  %v1726 = vrot.slane %v1722, %v1725
  %v1727 = vmul.f32 %v61, %v1726
  %v1728 = vmul.f32 %v62, %v1726
  %v1729 = vmul.f32 %v63, %v1726
  %v1730 = vmul.f32 %v64, %v1726
  %v1731 = vmul.f32 %v67, %v1726
  %v1732 = vmul.f32 %v68, %v1726
  %v1733 = vmul.f32 %v69, %v1726
  %v1734 = vmul.f32 %v70, %v1726
  %v1735 = vmul.f32 %v73, %v1726
  %v1736 = vmul.f32 %v74, %v1726
  %v1737 = vmul.f32 %v75, %v1726
  %v1738 = vmul.f32 %v76, %v1726
  %v1739 = vmul.f32 %v79, %v1726
  %v1740 = vmul.f32 %v80, %v1726
  %v1741 = vmul.f32 %v81, %v1726
  %v1742 = vmul.f32 %v82, %v1726
  %v1743 = vmul.f32 %v97, %v1726
  %v1744 = vmul.f32 %v98, %v1726
  %v1745 = vmul.f32 %v99, %v1726
  %v1746 = vmul.f32 %v100, %v1726
  %v1747 = vmul.f32 %v103, %v1726
  %v1748 = vmul.f32 %v104, %v1726
  %v1749 = vmul.f32 %v105, %v1726
  %v1750 = vmul.f32 %v106, %v1726
  %v1751 = vmul.f32 %v109, %v1726
  %v1752 = vmul.f32 %v110, %v1726
  %v1753 = vmul.f32 %v111, %v1726
  %v1754 = vmul.f32 %v112, %v1726
  %v1755 = vmul.f32 %v115, %v1726
  %v1756 = vmul.f32 %v116, %v1726
  %v1757 = vmul.f32 %v117, %v1726
  %v1758 = vmul.f32 %v118, %v1726
  %v1759 = vadd.f32 %v1690, %v1727
  %v1760 = vadd.f32 %v1691, %v1728
  %v1761 = vadd.f32 %v1692, %v1729
  %v1762 = vadd.f32 %v1693, %v1730
  %v1763 = vadd.f32 %v1694, %v1731
  %v1764 = vadd.f32 %v1695, %v1732
  %v1765 = vadd.f32 %v1696, %v1733
  %v1766 = vadd.f32 %v1697, %v1734
  %v1767 = vadd.f32 %v1698, %v1735
  %v1768 = vadd.f32 %v1699, %v1736
  %v1769 = vadd.f32 %v1700, %v1737
  %v1770 = vadd.f32 %v1701, %v1738
  %v1771 = vadd.f32 %v1702, %v1739
  %v1772 = vadd.f32 %v1703, %v1740
  %v1773 = vadd.f32 %v1704, %v1741
  %v1774 = vadd.f32 %v1705, %v1742
  %v1775 = vadd.f32 %v1706, %v1743
  %v1776 = vadd.f32 %v1707, %v1744
  %v1777 = vadd.f32 %v1708, %v1745
  %v1778 = vadd.f32 %v1709, %v1746
  %v1779 = vadd.f32 %v1710, %v1747
  %v1780 = vadd.f32 %v1711, %v1748
  %v1781 = vadd.f32 %v1712, %v1749
  %v1782 = vadd.f32 %v1713, %v1750
  %v1783 = vadd.f32 %v1714, %v1751
  %v1784 = vadd.f32 %v1715, %v1752
  %v1785 = vadd.f32 %v1716, %v1753
  %v1786 = vadd.f32 %v1717, %v1754
  %v1787 = vadd.f32 %v1718, %v1755
  %v1788 = vadd.f32 %v1719, %v1756
  %v1789 = vadd.f32 %v1720, %v1757
  %v1790 = vadd.f32 %v1721, %v1758
  %v1791 = vld [vmem:[%s1 + $0xd] sm:$0x1]
  %v1792 = vlaneseq
  %v1793 = vshrl.u32 %v1792, 7
  %v1794 = vsub.s32 0, %v1793
  %v1795 = vrot.slane %v1791, %v1794
  %v1796 = vmul.f32 %v61, %v1795
  %v1797 = vmul.f32 %v62, %v1795
  %v1798 = vmul.f32 %v63, %v1795
  %v1799 = vmul.f32 %v64, %v1795
  %v1800 = vmul.f32 %v67, %v1795
  %v1801 = vmul.f32 %v68, %v1795
  %v1802 = vmul.f32 %v69, %v1795
  %v1803 = vmul.f32 %v70, %v1795
  %v1804 = vmul.f32 %v73, %v1795
  %v1805 = vmul.f32 %v74, %v1795
  %v1806 = vmul.f32 %v75, %v1795
  %v1807 = vmul.f32 %v76, %v1795
  %v1808 = vmul.f32 %v79, %v1795
  %v1809 = vmul.f32 %v80, %v1795
  %v1810 = vmul.f32 %v81, %v1795
  %v1811 = vmul.f32 %v82, %v1795
  %v1812 = vmul.f32 %v97, %v1795
  %v1813 = vmul.f32 %v98, %v1795
  %v1814 = vmul.f32 %v99, %v1795
  %v1815 = vmul.f32 %v100, %v1795
  %v1816 = vmul.f32 %v103, %v1795
  %v1817 = vmul.f32 %v104, %v1795
  %v1818 = vmul.f32 %v105, %v1795
  %v1819 = vmul.f32 %v106, %v1795
  %v1820 = vmul.f32 %v109, %v1795
  %v1821 = vmul.f32 %v110, %v1795
  %v1822 = vmul.f32 %v111, %v1795
  %v1823 = vmul.f32 %v112, %v1795
  %v1824 = vmul.f32 %v115, %v1795
  %v1825 = vmul.f32 %v116, %v1795
  %v1826 = vmul.f32 %v117, %v1795
  %v1827 = vmul.f32 %v118, %v1795
  %v1860 = vrot.slane %v1796, 1
  %v1861 = vrot.slane %v1797, 1
  %v1862 = vrot.slane %v1798, 1
  %v1863 = vrot.slane %v1799, 1
  %v1864 = vrot.slane %v1800, 1
  %v1865 = vrot.slane %v1801, 1
  %v1866 = vrot.slane %v1802, 1
  %v1867 = vrot.slane %v1803, 1
  %v1868 = vrot.slane %v1804, 1
  %v1869 = vrot.slane %v1805, 1
  %v1870 = vrot.slane %v1806, 1
  %v1871 = vrot.slane %v1807, 1
  %v1872 = vrot.slane %v1808, 1
  %v1873 = vrot.slane %v1809, 1
  %v1874 = vrot.slane %v1810, 1
  %v1875 = vrot.slane %v1811, 1
  %v1876 = vrot.slane %v1812, 1
  %v1877 = vrot.slane %v1813, 1
  %v1878 = vrot.slane %v1814, 1
  %v1879 = vrot.slane %v1815, 1
  %v1880 = vrot.slane %v1816, 1
  %v1881 = vrot.slane %v1817, 1
  %v1882 = vrot.slane %v1818, 1
  %v1883 = vrot.slane %v1819, 1
  %v1884 = vrot.slane %v1820, 1
  %v1885 = vrot.slane %v1821, 1
  %v1886 = vrot.slane %v1822, 1
  %v1887 = vrot.slane %v1823, 1
  %v1888 = vrot.slane %v1824, 1
  %v1889 = vrot.slane %v1825, 1
  %v1890 = vrot.slane %v1826, 1
  %v1891 = vrot.slane %v1827, 1
  %v1924 = vadd.f32 %v1759, %v1860
  %v1925 = vadd.f32 %v1760, %v1861
  %v1926 = vadd.f32 %v1761, %v1862
  %v1927 = vadd.f32 %v1762, %v1863
  %v1928 = vadd.f32 %v1763, %v1864
  %v1929 = vadd.f32 %v1764, %v1865
  %v1930 = vadd.f32 %v1765, %v1866
  %v1931 = vadd.f32 %v1766, %v1867
  %v1932 = vadd.f32 %v1767, %v1868
  %v1933 = vadd.f32 %v1768, %v1869
  %v1934 = vadd.f32 %v1769, %v1870
  %v1935 = vadd.f32 %v1770, %v1871
  %v1936 = vadd.f32 %v1771, %v1872
  %v1937 = vadd.f32 %v1772, %v1873
  %v1938 = vadd.f32 %v1773, %v1874
  %v1939 = vadd.f32 %v1774, %v1875
  %v1940 = vadd.f32 %v1775, %v1876
  %v1941 = vadd.f32 %v1776, %v1877
  %v1942 = vadd.f32 %v1777, %v1878
  %v1943 = vadd.f32 %v1778, %v1879
  %v1944 = vadd.f32 %v1779, %v1880
  %v1945 = vadd.f32 %v1780, %v1881
  %v1946 = vadd.f32 %v1781, %v1882
  %v1947 = vadd.f32 %v1782, %v1883
  %v1948 = vadd.f32 %v1783, %v1884
  %v1949 = vadd.f32 %v1784, %v1885
  %v1950 = vadd.f32 %v1785, %v1886
  %v1951 = vadd.f32 %v1786, %v1887
  %v1952 = vadd.f32 %v1787, %v1888
  %v1953 = vadd.f32 %v1788, %v1889
  %v1954 = vadd.f32 %v1789, %v1890
  %v1955 = vadd.f32 %v1790, %v1891
  %v1956 = vld [vmem:[%s1 + $0xe] sm:$0x1]
  %v1957 = vlaneseq
  %v1958 = vshrl.u32 %v1957, 7
  %v1959 = vsub.s32 0, %v1958
  %v1960 = vrot.slane %v1956, %v1959
  %v1961 = vmul.f32 %v61, %v1960
  %v1962 = vmul.f32 %v62, %v1960
  %v1963 = vmul.f32 %v63, %v1960
  %v1964 = vmul.f32 %v64, %v1960
  %v1965 = vmul.f32 %v67, %v1960
  %v1966 = vmul.f32 %v68, %v1960
  %v1967 = vmul.f32 %v69, %v1960
  %v1968 = vmul.f32 %v70, %v1960
  %v1969 = vmul.f32 %v73, %v1960
  %v1970 = vmul.f32 %v74, %v1960
  %v1971 = vmul.f32 %v75, %v1960
  %v1972 = vmul.f32 %v76, %v1960
  %v1973 = vmul.f32 %v79, %v1960
  %v1974 = vmul.f32 %v80, %v1960
  %v1975 = vmul.f32 %v81, %v1960
  %v1976 = vmul.f32 %v82, %v1960
  %v1977 = vmul.f32 %v97, %v1960
  %v1978 = vmul.f32 %v98, %v1960
  %v1979 = vmul.f32 %v99, %v1960
  %v1980 = vmul.f32 %v100, %v1960
  %v1981 = vmul.f32 %v103, %v1960
  %v1982 = vmul.f32 %v104, %v1960
  %v1983 = vmul.f32 %v105, %v1960
  %v1984 = vmul.f32 %v106, %v1960
  %v1985 = vmul.f32 %v109, %v1960
  %v1986 = vmul.f32 %v110, %v1960
  %v1987 = vmul.f32 %v111, %v1960
  %v1988 = vmul.f32 %v112, %v1960
  %v1989 = vmul.f32 %v115, %v1960
  %v1990 = vmul.f32 %v116, %v1960
  %v1991 = vmul.f32 %v117, %v1960
  %v1992 = vmul.f32 %v118, %v1960
  %v2025 = vrot.slane %v1961, 2
  %v2026 = vrot.slane %v1962, 2
  %v2027 = vrot.slane %v1963, 2
  %v2028 = vrot.slane %v1964, 2
  %v2029 = vrot.slane %v1965, 2
  %v2030 = vrot.slane %v1966, 2
  %v2031 = vrot.slane %v1967, 2
  %v2032 = vrot.slane %v1968, 2
  %v2033 = vrot.slane %v1969, 2
  %v2034 = vrot.slane %v1970, 2
  %v2035 = vrot.slane %v1971, 2
  %v2036 = vrot.slane %v1972, 2
  %v2037 = vrot.slane %v1973, 2
  %v2038 = vrot.slane %v1974, 2
  %v2039 = vrot.slane %v1975, 2
  %v2040 = vrot.slane %v1976, 2
  %v2041 = vrot.slane %v1977, 2
  %v2042 = vrot.slane %v1978, 2
  %v2043 = vrot.slane %v1979, 2
  %v2044 = vrot.slane %v1980, 2
  %v2045 = vrot.slane %v1981, 2
  %v2046 = vrot.slane %v1982, 2
  %v2047 = vrot.slane %v1983, 2
  %v2048 = vrot.slane %v1984, 2
  %v2049 = vrot.slane %v1985, 2
  %v2050 = vrot.slane %v1986, 2
  %v2051 = vrot.slane %v1987, 2
  %v2052 = vrot.slane %v1988, 2
  %v2053 = vrot.slane %v1989, 2
  %v2054 = vrot.slane %v1990, 2
  %v2055 = vrot.slane %v1991, 2
  %v2056 = vrot.slane %v1992, 2
  %v2089 = vadd.f32 %v1924, %v2025
  %v2090 = vadd.f32 %v1925, %v2026
  %v2091 = vadd.f32 %v1926, %v2027
  %v2092 = vadd.f32 %v1927, %v2028
  %v2093 = vadd.f32 %v1928, %v2029
  %v2094 = vadd.f32 %v1929, %v2030
  %v2095 = vadd.f32 %v1930, %v2031
  %v2096 = vadd.f32 %v1931, %v2032
  %v2097 = vadd.f32 %v1932, %v2033
  %v2098 = vadd.f32 %v1933, %v2034
  %v2099 = vadd.f32 %v1934, %v2035
  %v2100 = vadd.f32 %v1935, %v2036
  %v2101 = vadd.f32 %v1936, %v2037
  %v2102 = vadd.f32 %v1937, %v2038
  %v2103 = vadd.f32 %v1938, %v2039
  %v2104 = vadd.f32 %v1939, %v2040
  %v2105 = vadd.f32 %v1940, %v2041
  %v2106 = vadd.f32 %v1941, %v2042
  %v2107 = vadd.f32 %v1942, %v2043
  %v2108 = vadd.f32 %v1943, %v2044
  %v2109 = vadd.f32 %v1944, %v2045
  %v2110 = vadd.f32 %v1945, %v2046
  %v2111 = vadd.f32 %v1946, %v2047
  %v2112 = vadd.f32 %v1947, %v2048
  %v2113 = vadd.f32 %v1948, %v2049
  %v2114 = vadd.f32 %v1949, %v2050
  %v2115 = vadd.f32 %v1950, %v2051
  %v2116 = vadd.f32 %v1951, %v2052
  %v2117 = vadd.f32 %v1952, %v2053
  %v2118 = vadd.f32 %v1953, %v2054
  %v2119 = vadd.f32 %v1954, %v2055
  %v2120 = vadd.f32 %v1955, %v2056
  %v2121 = vld [vmem:[%s1 + $0xf] sm:$0x1]
  %v2122 = vlaneseq
  %v2123 = vshrl.u32 %v2122, 7
  %v2124 = vsub.s32 0, %v2123
  %v2125 = vrot.slane %v2121, %v2124
  %v2126 = vmul.f32 %v62, %v2125
  %v2127 = vmul.f32 %v63, %v2125
  %v2128 = vmul.f32 %v64, %v2125
  %v2129 = vmul.f32 %v65, %v2125
  %v2130 = vmul.f32 %v68, %v2125
  %v2131 = vmul.f32 %v69, %v2125
  %v2132 = vmul.f32 %v70, %v2125
  %v2133 = vmul.f32 %v71, %v2125
  %v2134 = vmul.f32 %v74, %v2125
  %v2135 = vmul.f32 %v75, %v2125
  %v2136 = vmul.f32 %v76, %v2125
  %v2137 = vmul.f32 %v77, %v2125
  %v2138 = vmul.f32 %v80, %v2125
  %v2139 = vmul.f32 %v81, %v2125
  %v2140 = vmul.f32 %v82, %v2125
  %v2141 = vmul.f32 %v83, %v2125
  %v2142 = vmul.f32 %v98, %v2125
  %v2143 = vmul.f32 %v99, %v2125
  %v2144 = vmul.f32 %v100, %v2125
  %v2145 = vmul.f32 %v101, %v2125
  %v2146 = vmul.f32 %v104, %v2125
  %v2147 = vmul.f32 %v105, %v2125
  %v2148 = vmul.f32 %v106, %v2125
  %v2149 = vmul.f32 %v107, %v2125
  %v2150 = vmul.f32 %v110, %v2125
  %v2151 = vmul.f32 %v111, %v2125
  %v2152 = vmul.f32 %v112, %v2125
  %v2153 = vmul.f32 %v113, %v2125
  %v2154 = vmul.f32 %v116, %v2125
  %v2155 = vmul.f32 %v117, %v2125
  %v2156 = vmul.f32 %v118, %v2125
  %v2157 = vmul.f32 %v119, %v2125
  %v2158 = vadd.f32 %v2089, %v2126
  %v2159 = vadd.f32 %v2090, %v2127
  %v2160 = vadd.f32 %v2091, %v2128
  %v2161 = vadd.f32 %v2092, %v2129
  %v2162 = vadd.f32 %v2093, %v2130
  %v2163 = vadd.f32 %v2094, %v2131
  %v2164 = vadd.f32 %v2095, %v2132
  %v2165 = vadd.f32 %v2096, %v2133
  %v2166 = vadd.f32 %v2097, %v2134
  %v2167 = vadd.f32 %v2098, %v2135
  %v2168 = vadd.f32 %v2099, %v2136
  %v2169 = vadd.f32 %v2100, %v2137
  %v2170 = vadd.f32 %v2101, %v2138
  %v2171 = vadd.f32 %v2102, %v2139
  %v2172 = vadd.f32 %v2103, %v2140
  %v2173 = vadd.f32 %v2104, %v2141
  %v2174 = vadd.f32 %v2105, %v2142
  %v2175 = vadd.f32 %v2106, %v2143
  %v2176 = vadd.f32 %v2107, %v2144
  %v2177 = vadd.f32 %v2108, %v2145
  %v2178 = vadd.f32 %v2109, %v2146
  %v2179 = vadd.f32 %v2110, %v2147
  %v2180 = vadd.f32 %v2111, %v2148
  %v2181 = vadd.f32 %v2112, %v2149
  %v2182 = vadd.f32 %v2113, %v2150
  %v2183 = vadd.f32 %v2114, %v2151
  %v2184 = vadd.f32 %v2115, %v2152
  %v2185 = vadd.f32 %v2116, %v2153
  %v2186 = vadd.f32 %v2117, %v2154
  %v2187 = vadd.f32 %v2118, %v2155
  %v2188 = vadd.f32 %v2119, %v2156
  %v2189 = vadd.f32 %v2120, %v2157
  %v2190 = vld [vmem:[%s1 + $0x10] sm:$0x1]
  %v2191 = vlaneseq
  %v2192 = vshrl.u32 %v2191, 7
  %v2193 = vsub.s32 0, %v2192
  %v2194 = vrot.slane %v2190, %v2193
  %v2195 = vmul.f32 %v62, %v2194
  %v2196 = vmul.f32 %v63, %v2194
  %v2197 = vmul.f32 %v64, %v2194
  %v2198 = vmul.f32 %v65, %v2194
  %v2199 = vmul.f32 %v68, %v2194
  %v2200 = vmul.f32 %v69, %v2194
  %v2201 = vmul.f32 %v70, %v2194
  %v2202 = vmul.f32 %v71, %v2194
  %v2203 = vmul.f32 %v74, %v2194
  %v2204 = vmul.f32 %v75, %v2194
  %v2205 = vmul.f32 %v76, %v2194
  %v2206 = vmul.f32 %v77, %v2194
  %v2207 = vmul.f32 %v80, %v2194
  %v2208 = vmul.f32 %v81, %v2194
  %v2209 = vmul.f32 %v82, %v2194
  %v2210 = vmul.f32 %v83, %v2194
  %v2211 = vmul.f32 %v98, %v2194
  %v2212 = vmul.f32 %v99, %v2194
  %v2213 = vmul.f32 %v100, %v2194
  %v2214 = vmul.f32 %v101, %v2194
  %v2215 = vmul.f32 %v104, %v2194
  %v2216 = vmul.f32 %v105, %v2194
  %v2217 = vmul.f32 %v106, %v2194
  %v2218 = vmul.f32 %v107, %v2194
  %v2219 = vmul.f32 %v110, %v2194
  %v2220 = vmul.f32 %v111, %v2194
  %v2221 = vmul.f32 %v112, %v2194
  %v2222 = vmul.f32 %v113, %v2194
  %v2223 = vmul.f32 %v116, %v2194
  %v2224 = vmul.f32 %v117, %v2194
  %v2225 = vmul.f32 %v118, %v2194
  %v2226 = vmul.f32 %v119, %v2194
  %v2259 = vrot.slane %v2195, 1
  %v2260 = vrot.slane %v2196, 1
  %v2261 = vrot.slane %v2197, 1
  %v2262 = vrot.slane %v2198, 1
  %v2263 = vrot.slane %v2199, 1
  %v2264 = vrot.slane %v2200, 1
  %v2265 = vrot.slane %v2201, 1
  %v2266 = vrot.slane %v2202, 1
  %v2267 = vrot.slane %v2203, 1
  %v2268 = vrot.slane %v2204, 1
  %v2269 = vrot.slane %v2205, 1
  %v2270 = vrot.slane %v2206, 1
  %v2271 = vrot.slane %v2207, 1
  %v2272 = vrot.slane %v2208, 1
  %v2273 = vrot.slane %v2209, 1
  %v2274 = vrot.slane %v2210, 1
  %v2275 = vrot.slane %v2211, 1
  %v2276 = vrot.slane %v2212, 1
  %v2277 = vrot.slane %v2213, 1
  %v2278 = vrot.slane %v2214, 1
  %v2279 = vrot.slane %v2215, 1
  %v2280 = vrot.slane %v2216, 1
  %v2281 = vrot.slane %v2217, 1
  %v2282 = vrot.slane %v2218, 1
  %v2283 = vrot.slane %v2219, 1
  %v2284 = vrot.slane %v2220, 1
  %v2285 = vrot.slane %v2221, 1
  %v2286 = vrot.slane %v2222, 1
  %v2287 = vrot.slane %v2223, 1
  %v2288 = vrot.slane %v2224, 1
  %v2289 = vrot.slane %v2225, 1
  %v2290 = vrot.slane %v2226, 1
  %v2323 = vadd.f32 %v2158, %v2259
  %v2324 = vadd.f32 %v2159, %v2260
  %v2325 = vadd.f32 %v2160, %v2261
  %v2326 = vadd.f32 %v2161, %v2262
  %v2327 = vadd.f32 %v2162, %v2263
  %v2328 = vadd.f32 %v2163, %v2264
  %v2329 = vadd.f32 %v2164, %v2265
  %v2330 = vadd.f32 %v2165, %v2266
  %v2331 = vadd.f32 %v2166, %v2267
  %v2332 = vadd.f32 %v2167, %v2268
  %v2333 = vadd.f32 %v2168, %v2269
  %v2334 = vadd.f32 %v2169, %v2270
  %v2335 = vadd.f32 %v2170, %v2271
  %v2336 = vadd.f32 %v2171, %v2272
  %v2337 = vadd.f32 %v2172, %v2273
  %v2338 = vadd.f32 %v2173, %v2274
  %v2339 = vadd.f32 %v2174, %v2275
  %v2340 = vadd.f32 %v2175, %v2276
  %v2341 = vadd.f32 %v2176, %v2277
  %v2342 = vadd.f32 %v2177, %v2278
  %v2343 = vadd.f32 %v2178, %v2279
  %v2344 = vadd.f32 %v2179, %v2280
  %v2345 = vadd.f32 %v2180, %v2281
  %v2346 = vadd.f32 %v2181, %v2282
  %v2347 = vadd.f32 %v2182, %v2283
  %v2348 = vadd.f32 %v2183, %v2284
  %v2349 = vadd.f32 %v2184, %v2285
  %v2350 = vadd.f32 %v2185, %v2286
  %v2351 = vadd.f32 %v2186, %v2287
  %v2352 = vadd.f32 %v2187, %v2288
  %v2353 = vadd.f32 %v2188, %v2289
  %v2354 = vadd.f32 %v2189, %v2290
  %v2355 = vld [vmem:[%s1 + $0x11] sm:$0x1]
  %v2356 = vlaneseq
  %v2357 = vshrl.u32 %v2356, 7
  %v2358 = vsub.s32 0, %v2357
  %v2359 = vrot.slane %v2355, %v2358
  %v2360 = vmul.f32 %v62, %v2359
  %v2361 = vmul.f32 %v63, %v2359
  %v2362 = vmul.f32 %v64, %v2359
  %v2363 = vmul.f32 %v65, %v2359
  %v2364 = vmul.f32 %v68, %v2359
  %v2365 = vmul.f32 %v69, %v2359
  %v2366 = vmul.f32 %v70, %v2359
  %v2367 = vmul.f32 %v71, %v2359
  %v2368 = vmul.f32 %v74, %v2359
  %v2369 = vmul.f32 %v75, %v2359
  %v2370 = vmul.f32 %v76, %v2359
  %v2371 = vmul.f32 %v77, %v2359
  %v2372 = vmul.f32 %v80, %v2359
  %v2373 = vmul.f32 %v81, %v2359
  %v2374 = vmul.f32 %v82, %v2359
  %v2375 = vmul.f32 %v83, %v2359
  %v2376 = vmul.f32 %v98, %v2359
  %v2377 = vmul.f32 %v99, %v2359
  %v2378 = vmul.f32 %v100, %v2359
  %v2379 = vmul.f32 %v101, %v2359
  %v2380 = vmul.f32 %v104, %v2359
  %v2381 = vmul.f32 %v105, %v2359
  %v2382 = vmul.f32 %v106, %v2359
  %v2383 = vmul.f32 %v107, %v2359
  %v2384 = vmul.f32 %v110, %v2359
  %v2385 = vmul.f32 %v111, %v2359
  %v2386 = vmul.f32 %v112, %v2359
  %v2387 = vmul.f32 %v113, %v2359
  %v2388 = vmul.f32 %v116, %v2359
  %v2389 = vmul.f32 %v117, %v2359
  %v2390 = vmul.f32 %v118, %v2359
  %v2391 = vmul.f32 %v119, %v2359
  %v2424 = vrot.slane %v2360, 2
  %v2425 = vrot.slane %v2361, 2
  %v2426 = vrot.slane %v2362, 2
  %v2427 = vrot.slane %v2363, 2
  %v2428 = vrot.slane %v2364, 2
  %v2429 = vrot.slane %v2365, 2
  %v2430 = vrot.slane %v2366, 2
  %v2431 = vrot.slane %v2367, 2
  %v2432 = vrot.slane %v2368, 2
  %v2433 = vrot.slane %v2369, 2
  %v2434 = vrot.slane %v2370, 2
  %v2435 = vrot.slane %v2371, 2
  %v2436 = vrot.slane %v2372, 2
  %v2437 = vrot.slane %v2373, 2
  %v2438 = vrot.slane %v2374, 2
  %v2439 = vrot.slane %v2375, 2
  %v2440 = vrot.slane %v2376, 2
  %v2441 = vrot.slane %v2377, 2
  %v2442 = vrot.slane %v2378, 2
  %v2443 = vrot.slane %v2379, 2
  %v2444 = vrot.slane %v2380, 2
  %v2445 = vrot.slane %v2381, 2
  %v2446 = vrot.slane %v2382, 2
  %v2447 = vrot.slane %v2383, 2
  %v2448 = vrot.slane %v2384, 2
  %v2449 = vrot.slane %v2385, 2
  %v2450 = vrot.slane %v2386, 2
  %v2451 = vrot.slane %v2387, 2
  %v2452 = vrot.slane %v2388, 2
  %v2453 = vrot.slane %v2389, 2
  %v2454 = vrot.slane %v2390, 2
  %v2455 = vrot.slane %v2391, 2
  %v2488 = vadd.f32 %v2323, %v2424
  %v2489 = vadd.f32 %v2324, %v2425
  %v2490 = vadd.f32 %v2325, %v2426
  %v2491 = vadd.f32 %v2326, %v2427
  %v2492 = vadd.f32 %v2327, %v2428
  %v2493 = vadd.f32 %v2328, %v2429
  %v2494 = vadd.f32 %v2329, %v2430
  %v2495 = vadd.f32 %v2330, %v2431
  %v2496 = vadd.f32 %v2331, %v2432
  %v2497 = vadd.f32 %v2332, %v2433
  %v2498 = vadd.f32 %v2333, %v2434
  %v2499 = vadd.f32 %v2334, %v2435
  %v2500 = vadd.f32 %v2335, %v2436
  %v2501 = vadd.f32 %v2336, %v2437
  %v2502 = vadd.f32 %v2337, %v2438
  %v2503 = vadd.f32 %v2338, %v2439
  %v2504 = vadd.f32 %v2339, %v2440
  %v2505 = vadd.f32 %v2340, %v2441
  %v2506 = vadd.f32 %v2341, %v2442
  %v2507 = vadd.f32 %v2342, %v2443
  %v2508 = vadd.f32 %v2343, %v2444
  %v2509 = vadd.f32 %v2344, %v2445
  %v2510 = vadd.f32 %v2345, %v2446
  %v2511 = vadd.f32 %v2346, %v2447
  %v2512 = vadd.f32 %v2347, %v2448
  %v2513 = vadd.f32 %v2348, %v2449
  %v2514 = vadd.f32 %v2349, %v2450
  %v2515 = vadd.f32 %v2350, %v2451
  %v2516 = vadd.f32 %v2351, %v2452
  %v2517 = vadd.f32 %v2352, %v2453
  %v2518 = vadd.f32 %v2353, %v2454
  %v2519 = vadd.f32 %v2354, %v2455
  %v2520 = vld [vmem:[%s1 + $0x12] sm:$0x1]
  %v2521 = vlaneseq
  %v2522 = vshrl.u32 %v2521, 7
  %v2523 = vsub.s32 0, %v2522
  %v2524 = vrot.slane %v2520, %v2523
  %v2525 = vmul.f32 %v66, %v2524
  %v2526 = vmul.f32 %v67, %v2524
  %v2527 = vmul.f32 %v68, %v2524
  %v2528 = vmul.f32 %v69, %v2524
  %v2529 = vmul.f32 %v72, %v2524
  %v2530 = vmul.f32 %v73, %v2524
  %v2531 = vmul.f32 %v74, %v2524
  %v2532 = vmul.f32 %v75, %v2524
  %v2533 = vmul.f32 %v78, %v2524
  %v2534 = vmul.f32 %v79, %v2524
  %v2535 = vmul.f32 %v80, %v2524
  %v2536 = vmul.f32 %v81, %v2524
  %v2537 = vmul.f32 %v84, %v2524
  %v2538 = vmul.f32 %v85, %v2524
  %v2539 = vmul.f32 %v86, %v2524
  %v2540 = vmul.f32 %v87, %v2524
  %v2541 = vmul.f32 %v102, %v2524
  %v2542 = vmul.f32 %v103, %v2524
  %v2543 = vmul.f32 %v104, %v2524
  %v2544 = vmul.f32 %v105, %v2524
  %v2545 = vmul.f32 %v108, %v2524
  %v2546 = vmul.f32 %v109, %v2524
  %v2547 = vmul.f32 %v110, %v2524
  %v2548 = vmul.f32 %v111, %v2524
  %v2549 = vmul.f32 %v114, %v2524
  %v2550 = vmul.f32 %v115, %v2524
  %v2551 = vmul.f32 %v116, %v2524
  %v2552 = vmul.f32 %v117, %v2524
  %v2553 = vmul.f32 %v120, %v2524
  %v2554 = vmul.f32 %v121, %v2524
  %v2555 = vmul.f32 %v122, %v2524
  %v2556 = vmul.f32 %v123, %v2524
  %v2557 = vadd.f32 %v2488, %v2525
  %v2558 = vadd.f32 %v2489, %v2526
  %v2559 = vadd.f32 %v2490, %v2527
  %v2560 = vadd.f32 %v2491, %v2528
  %v2561 = vadd.f32 %v2492, %v2529
  %v2562 = vadd.f32 %v2493, %v2530
  %v2563 = vadd.f32 %v2494, %v2531
  %v2564 = vadd.f32 %v2495, %v2532
  %v2565 = vadd.f32 %v2496, %v2533
  %v2566 = vadd.f32 %v2497, %v2534
  %v2567 = vadd.f32 %v2498, %v2535
  %v2568 = vadd.f32 %v2499, %v2536
  %v2569 = vadd.f32 %v2500, %v2537
  %v2570 = vadd.f32 %v2501, %v2538
  %v2571 = vadd.f32 %v2502, %v2539
  %v2572 = vadd.f32 %v2503, %v2540
  %v2573 = vadd.f32 %v2504, %v2541
  %v2574 = vadd.f32 %v2505, %v2542
  %v2575 = vadd.f32 %v2506, %v2543
  %v2576 = vadd.f32 %v2507, %v2544
  %v2577 = vadd.f32 %v2508, %v2545
  %v2578 = vadd.f32 %v2509, %v2546
  %v2579 = vadd.f32 %v2510, %v2547
  %v2580 = vadd.f32 %v2511, %v2548
  %v2581 = vadd.f32 %v2512, %v2549
  %v2582 = vadd.f32 %v2513, %v2550
  %v2583 = vadd.f32 %v2514, %v2551
  %v2584 = vadd.f32 %v2515, %v2552
  %v2585 = vadd.f32 %v2516, %v2553
  %v2586 = vadd.f32 %v2517, %v2554
  %v2587 = vadd.f32 %v2518, %v2555
  %v2588 = vadd.f32 %v2519, %v2556
  %v2589 = vld [vmem:[%s1 + $0x13] sm:$0x1]
  %v2590 = vlaneseq
  %v2591 = vshrl.u32 %v2590, 7
  %v2592 = vsub.s32 0, %v2591
  %v2593 = vrot.slane %v2589, %v2592
  %v2594 = vmul.f32 %v66, %v2593
  %v2595 = vmul.f32 %v67, %v2593
  %v2596 = vmul.f32 %v68, %v2593
  %v2597 = vmul.f32 %v69, %v2593
  %v2598 = vmul.f32 %v72, %v2593
  %v2599 = vmul.f32 %v73, %v2593
  %v2600 = vmul.f32 %v74, %v2593
  %v2601 = vmul.f32 %v75, %v2593
  %v2602 = vmul.f32 %v78, %v2593
  %v2603 = vmul.f32 %v79, %v2593
  %v2604 = vmul.f32 %v80, %v2593
  %v2605 = vmul.f32 %v81, %v2593
  %v2606 = vmul.f32 %v84, %v2593
  %v2607 = vmul.f32 %v85, %v2593
  %v2608 = vmul.f32 %v86, %v2593
  %v2609 = vmul.f32 %v87, %v2593
  %v2610 = vmul.f32 %v102, %v2593
  %v2611 = vmul.f32 %v103, %v2593
  %v2612 = vmul.f32 %v104, %v2593
  %v2613 = vmul.f32 %v105, %v2593
  %v2614 = vmul.f32 %v108, %v2593
  %v2615 = vmul.f32 %v109, %v2593
  %v2616 = vmul.f32 %v110, %v2593
  %v2617 = vmul.f32 %v111, %v2593
  %v2618 = vmul.f32 %v114, %v2593
  %v2619 = vmul.f32 %v115, %v2593
  %v2620 = vmul.f32 %v116, %v2593
  %v2621 = vmul.f32 %v117, %v2593
  %v2622 = vmul.f32 %v120, %v2593
  %v2623 = vmul.f32 %v121, %v2593
  %v2624 = vmul.f32 %v122, %v2593
  %v2625 = vmul.f32 %v123, %v2593
  %v2658 = vrot.slane %v2594, 1
  %v2659 = vrot.slane %v2595, 1
  %v2660 = vrot.slane %v2596, 1
  %v2661 = vrot.slane %v2597, 1
  %v2662 = vrot.slane %v2598, 1
  %v2663 = vrot.slane %v2599, 1
  %v2664 = vrot.slane %v2600, 1
  %v2665 = vrot.slane %v2601, 1
  %v2666 = vrot.slane %v2602, 1
  %v2667 = vrot.slane %v2603, 1
  %v2668 = vrot.slane %v2604, 1
  %v2669 = vrot.slane %v2605, 1
  %v2670 = vrot.slane %v2606, 1
  %v2671 = vrot.slane %v2607, 1
  %v2672 = vrot.slane %v2608, 1
  %v2673 = vrot.slane %v2609, 1
  %v2674 = vrot.slane %v2610, 1
  %v2675 = vrot.slane %v2611, 1
  %v2676 = vrot.slane %v2612, 1
  %v2677 = vrot.slane %v2613, 1
  %v2678 = vrot.slane %v2614, 1
  %v2679 = vrot.slane %v2615, 1
  %v2680 = vrot.slane %v2616, 1
  %v2681 = vrot.slane %v2617, 1
  %v2682 = vrot.slane %v2618, 1
  %v2683 = vrot.slane %v2619, 1
  %v2684 = vrot.slane %v2620, 1
  %v2685 = vrot.slane %v2621, 1
  %v2686 = vrot.slane %v2622, 1
  %v2687 = vrot.slane %v2623, 1
  %v2688 = vrot.slane %v2624, 1
  %v2689 = vrot.slane %v2625, 1
  %v2722 = vadd.f32 %v2557, %v2658
  %v2723 = vadd.f32 %v2558, %v2659
  %v2724 = vadd.f32 %v2559, %v2660
  %v2725 = vadd.f32 %v2560, %v2661
  %v2726 = vadd.f32 %v2561, %v2662
  %v2727 = vadd.f32 %v2562, %v2663
  %v2728 = vadd.f32 %v2563, %v2664
  %v2729 = vadd.f32 %v2564, %v2665
  %v2730 = vadd.f32 %v2565, %v2666
  %v2731 = vadd.f32 %v2566, %v2667
  %v2732 = vadd.f32 %v2567, %v2668
  %v2733 = vadd.f32 %v2568, %v2669
  %v2734 = vadd.f32 %v2569, %v2670
  %v2735 = vadd.f32 %v2570, %v2671
  %v2736 = vadd.f32 %v2571, %v2672
  %v2737 = vadd.f32 %v2572, %v2673
  %v2738 = vadd.f32 %v2573, %v2674
  %v2739 = vadd.f32 %v2574, %v2675
  %v2740 = vadd.f32 %v2575, %v2676
  %v2741 = vadd.f32 %v2576, %v2677
  %v2742 = vadd.f32 %v2577, %v2678
  %v2743 = vadd.f32 %v2578, %v2679
  %v2744 = vadd.f32 %v2579, %v2680
  %v2745 = vadd.f32 %v2580, %v2681
  %v2746 = vadd.f32 %v2581, %v2682
  %v2747 = vadd.f32 %v2582, %v2683
  %v2748 = vadd.f32 %v2583, %v2684
  %v2749 = vadd.f32 %v2584, %v2685
  %v2750 = vadd.f32 %v2585, %v2686
  %v2751 = vadd.f32 %v2586, %v2687
  %v2752 = vadd.f32 %v2587, %v2688
  %v2753 = vadd.f32 %v2588, %v2689
  %v2754 = vld [vmem:[%s1 + $0x14] sm:$0x1]
  %v2755 = vlaneseq
  %v2756 = vshrl.u32 %v2755, 7
  %v2757 = vsub.s32 0, %v2756
  %v2758 = vrot.slane %v2754, %v2757
  %v2759 = vmul.f32 %v66, %v2758
  %v2760 = vmul.f32 %v67, %v2758
  %v2761 = vmul.f32 %v68, %v2758
  %v2762 = vmul.f32 %v69, %v2758
  %v2763 = vmul.f32 %v72, %v2758
  %v2764 = vmul.f32 %v73, %v2758
  %v2765 = vmul.f32 %v74, %v2758
  %v2766 = vmul.f32 %v75, %v2758
  %v2767 = vmul.f32 %v78, %v2758
  %v2768 = vmul.f32 %v79, %v2758
  %v2769 = vmul.f32 %v80, %v2758
  %v2770 = vmul.f32 %v81, %v2758
  %v2771 = vmul.f32 %v84, %v2758
  %v2772 = vmul.f32 %v85, %v2758
  %v2773 = vmul.f32 %v86, %v2758
  %v2774 = vmul.f32 %v87, %v2758
  %v2775 = vmul.f32 %v102, %v2758
  %v2776 = vmul.f32 %v103, %v2758
  %v2777 = vmul.f32 %v104, %v2758
  %v2778 = vmul.f32 %v105, %v2758
  %v2779 = vmul.f32 %v108, %v2758
  %v2780 = vmul.f32 %v109, %v2758
  %v2781 = vmul.f32 %v110, %v2758
  %v2782 = vmul.f32 %v111, %v2758
  %v2783 = vmul.f32 %v114, %v2758
  %v2784 = vmul.f32 %v115, %v2758
  %v2785 = vmul.f32 %v116, %v2758
  %v2786 = vmul.f32 %v117, %v2758
  %v2787 = vmul.f32 %v120, %v2758
  %v2788 = vmul.f32 %v121, %v2758
  %v2789 = vmul.f32 %v122, %v2758
  %v2790 = vmul.f32 %v123, %v2758
  %v2823 = vrot.slane %v2759, 2
  %v2824 = vrot.slane %v2760, 2
  %v2825 = vrot.slane %v2761, 2
  %v2826 = vrot.slane %v2762, 2
  %v2827 = vrot.slane %v2763, 2
  %v2828 = vrot.slane %v2764, 2
  %v2829 = vrot.slane %v2765, 2
  %v2830 = vrot.slane %v2766, 2
  %v2831 = vrot.slane %v2767, 2
  %v2832 = vrot.slane %v2768, 2
  %v2833 = vrot.slane %v2769, 2
  %v2834 = vrot.slane %v2770, 2
  %v2835 = vrot.slane %v2771, 2
  %v2836 = vrot.slane %v2772, 2
  %v2837 = vrot.slane %v2773, 2
  %v2838 = vrot.slane %v2774, 2
  %v2839 = vrot.slane %v2775, 2
  %v2840 = vrot.slane %v2776, 2
  %v2841 = vrot.slane %v2777, 2
  %v2842 = vrot.slane %v2778, 2
  %v2843 = vrot.slane %v2779, 2
  %v2844 = vrot.slane %v2780, 2
  %v2845 = vrot.slane %v2781, 2
  %v2846 = vrot.slane %v2782, 2
  %v2847 = vrot.slane %v2783, 2
  %v2848 = vrot.slane %v2784, 2
  %v2849 = vrot.slane %v2785, 2
  %v2850 = vrot.slane %v2786, 2
  %v2851 = vrot.slane %v2787, 2
  %v2852 = vrot.slane %v2788, 2
  %v2853 = vrot.slane %v2789, 2
  %v2854 = vrot.slane %v2790, 2
  %v2887 = vadd.f32 %v2722, %v2823
  %v2888 = vadd.f32 %v2723, %v2824
  %v2889 = vadd.f32 %v2724, %v2825
  %v2890 = vadd.f32 %v2725, %v2826
  %v2891 = vadd.f32 %v2726, %v2827
  %v2892 = vadd.f32 %v2727, %v2828
  %v2893 = vadd.f32 %v2728, %v2829
  %v2894 = vadd.f32 %v2729, %v2830
  %v2895 = vadd.f32 %v2730, %v2831
  %v2896 = vadd.f32 %v2731, %v2832
  %v2897 = vadd.f32 %v2732, %v2833
  %v2898 = vadd.f32 %v2733, %v2834
  %v2899 = vadd.f32 %v2734, %v2835
  %v2900 = vadd.f32 %v2735, %v2836
  %v2901 = vadd.f32 %v2736, %v2837
  %v2902 = vadd.f32 %v2737, %v2838
  %v2903 = vadd.f32 %v2738, %v2839
  %v2904 = vadd.f32 %v2739, %v2840
  %v2905 = vadd.f32 %v2740, %v2841
  %v2906 = vadd.f32 %v2741, %v2842
  %v2907 = vadd.f32 %v2742, %v2843
  %v2908 = vadd.f32 %v2743, %v2844
  %v2909 = vadd.f32 %v2744, %v2845
  %v2910 = vadd.f32 %v2745, %v2846
  %v2911 = vadd.f32 %v2746, %v2847
  %v2912 = vadd.f32 %v2747, %v2848
  %v2913 = vadd.f32 %v2748, %v2849
  %v2914 = vadd.f32 %v2749, %v2850
  %v2915 = vadd.f32 %v2750, %v2851
  %v2916 = vadd.f32 %v2751, %v2852
  %v2917 = vadd.f32 %v2752, %v2853
  %v2918 = vadd.f32 %v2753, %v2854
  %v2919 = vld [vmem:[%s1 + $0x15] sm:$0x1]
  %v2920 = vlaneseq
  %v2921 = vshrl.u32 %v2920, 7
  %v2922 = vsub.s32 0, %v2921
  %v2923 = vrot.slane %v2919, %v2922
  %v2924 = vmul.f32 %v67, %v2923
  %v2925 = vmul.f32 %v68, %v2923
  %v2926 = vmul.f32 %v69, %v2923
  %v2927 = vmul.f32 %v70, %v2923
  %v2928 = vmul.f32 %v73, %v2923
  %v2929 = vmul.f32 %v74, %v2923
  %v2930 = vmul.f32 %v75, %v2923
  %v2931 = vmul.f32 %v76, %v2923
  %v2932 = vmul.f32 %v79, %v2923
  %v2933 = vmul.f32 %v80, %v2923
  %v2934 = vmul.f32 %v81, %v2923
  %v2935 = vmul.f32 %v82, %v2923
  %v2936 = vmul.f32 %v85, %v2923
  %v2937 = vmul.f32 %v86, %v2923
  %v2938 = vmul.f32 %v87, %v2923
  %v2939 = vmul.f32 %v88, %v2923
  %v2940 = vmul.f32 %v103, %v2923
  %v2941 = vmul.f32 %v104, %v2923
  %v2942 = vmul.f32 %v105, %v2923
  %v2943 = vmul.f32 %v106, %v2923
  %v2944 = vmul.f32 %v109, %v2923
  %v2945 = vmul.f32 %v110, %v2923
  %v2946 = vmul.f32 %v111, %v2923
  %v2947 = vmul.f32 %v112, %v2923
  %v2948 = vmul.f32 %v115, %v2923
  %v2949 = vmul.f32 %v116, %v2923
  %v2950 = vmul.f32 %v117, %v2923
  %v2951 = vmul.f32 %v118, %v2923
  %v2952 = vmul.f32 %v121, %v2923
  %v2953 = vmul.f32 %v122, %v2923
  %v2954 = vmul.f32 %v123, %v2923
  %v2955 = vmul.f32 %v124, %v2923
  %v2956 = vadd.f32 %v2887, %v2924
  %v2957 = vadd.f32 %v2888, %v2925
  %v2958 = vadd.f32 %v2889, %v2926
  %v2959 = vadd.f32 %v2890, %v2927
  %v2960 = vadd.f32 %v2891, %v2928
  %v2961 = vadd.f32 %v2892, %v2929
  %v2962 = vadd.f32 %v2893, %v2930
  %v2963 = vadd.f32 %v2894, %v2931
  %v2964 = vadd.f32 %v2895, %v2932
  %v2965 = vadd.f32 %v2896, %v2933
  %v2966 = vadd.f32 %v2897, %v2934
  %v2967 = vadd.f32 %v2898, %v2935
  %v2968 = vadd.f32 %v2899, %v2936
  %v2969 = vadd.f32 %v2900, %v2937
  %v2970 = vadd.f32 %v2901, %v2938
  %v2971 = vadd.f32 %v2902, %v2939
  %v2972 = vadd.f32 %v2903, %v2940
  %v2973 = vadd.f32 %v2904, %v2941
  %v2974 = vadd.f32 %v2905, %v2942
  %v2975 = vadd.f32 %v2906, %v2943
  %v2976 = vadd.f32 %v2907, %v2944
  %v2977 = vadd.f32 %v2908, %v2945
  %v2978 = vadd.f32 %v2909, %v2946
  %v2979 = vadd.f32 %v2910, %v2947
  %v2980 = vadd.f32 %v2911, %v2948
  %v2981 = vadd.f32 %v2912, %v2949
  %v2982 = vadd.f32 %v2913, %v2950
  %v2983 = vadd.f32 %v2914, %v2951
  %v2984 = vadd.f32 %v2915, %v2952
  %v2985 = vadd.f32 %v2916, %v2953
  %v2986 = vadd.f32 %v2917, %v2954
  %v2987 = vadd.f32 %v2918, %v2955
  %v2988 = vld [vmem:[%s1 + $0x16] sm:$0x1]
  %v2989 = vlaneseq
  %v2990 = vshrl.u32 %v2989, 7
  %v2991 = vsub.s32 0, %v2990
  %v2992 = vrot.slane %v2988, %v2991
  %v2993 = vmul.f32 %v67, %v2992
  %v2994 = vmul.f32 %v68, %v2992
  %v2995 = vmul.f32 %v69, %v2992
  %v2996 = vmul.f32 %v70, %v2992
  %v2997 = vmul.f32 %v73, %v2992
  %v2998 = vmul.f32 %v74, %v2992
  %v2999 = vmul.f32 %v75, %v2992
  %v3000 = vmul.f32 %v76, %v2992
  %v3001 = vmul.f32 %v79, %v2992
  %v3002 = vmul.f32 %v80, %v2992
  %v3003 = vmul.f32 %v81, %v2992
  %v3004 = vmul.f32 %v82, %v2992
  %v3005 = vmul.f32 %v85, %v2992
  %v3006 = vmul.f32 %v86, %v2992
  %v3007 = vmul.f32 %v87, %v2992
  %v3008 = vmul.f32 %v88, %v2992
  %v3009 = vmul.f32 %v103, %v2992
  %v3010 = vmul.f32 %v104, %v2992
  %v3011 = vmul.f32 %v105, %v2992
  %v3012 = vmul.f32 %v106, %v2992
  %v3013 = vmul.f32 %v109, %v2992
  %v3014 = vmul.f32 %v110, %v2992
  %v3015 = vmul.f32 %v111, %v2992
  %v3016 = vmul.f32 %v112, %v2992
  %v3017 = vmul.f32 %v115, %v2992
  %v3018 = vmul.f32 %v116, %v2992
  %v3019 = vmul.f32 %v117, %v2992
  %v3020 = vmul.f32 %v118, %v2992
  %v3021 = vmul.f32 %v121, %v2992
  %v3022 = vmul.f32 %v122, %v2992
  %v3023 = vmul.f32 %v123, %v2992
  %v3024 = vmul.f32 %v124, %v2992
  %v3057 = vrot.slane %v2993, 1
  %v3058 = vrot.slane %v2994, 1
  %v3059 = vrot.slane %v2995, 1
  %v3060 = vrot.slane %v2996, 1
  %v3061 = vrot.slane %v2997, 1
  %v3062 = vrot.slane %v2998, 1
  %v3063 = vrot.slane %v2999, 1
  %v3064 = vrot.slane %v3000, 1
  %v3065 = vrot.slane %v3001, 1
  %v3066 = vrot.slane %v3002, 1
  %v3067 = vrot.slane %v3003, 1
  %v3068 = vrot.slane %v3004, 1
  %v3069 = vrot.slane %v3005, 1
  %v3070 = vrot.slane %v3006, 1
  %v3071 = vrot.slane %v3007, 1
  %v3072 = vrot.slane %v3008, 1
  %v3073 = vrot.slane %v3009, 1
  %v3074 = vrot.slane %v3010, 1
  %v3075 = vrot.slane %v3011, 1
  %v3076 = vrot.slane %v3012, 1
  %v3077 = vrot.slane %v3013, 1
  %v3078 = vrot.slane %v3014, 1
  %v3079 = vrot.slane %v3015, 1
  %v3080 = vrot.slane %v3016, 1
  %v3081 = vrot.slane %v3017, 1
  %v3082 = vrot.slane %v3018, 1
  %v3083 = vrot.slane %v3019, 1
  %v3084 = vrot.slane %v3020, 1
  %v3085 = vrot.slane %v3021, 1
  %v3086 = vrot.slane %v3022, 1
  %v3087 = vrot.slane %v3023, 1
  %v3088 = vrot.slane %v3024, 1
  %v3121 = vadd.f32 %v2956, %v3057
  %v3122 = vadd.f32 %v2957, %v3058
  %v3123 = vadd.f32 %v2958, %v3059
  %v3124 = vadd.f32 %v2959, %v3060
  %v3125 = vadd.f32 %v2960, %v3061
  %v3126 = vadd.f32 %v2961, %v3062
  %v3127 = vadd.f32 %v2962, %v3063
  %v3128 = vadd.f32 %v2963, %v3064
  %v3129 = vadd.f32 %v2964, %v3065
  %v3130 = vadd.f32 %v2965, %v3066
  %v3131 = vadd.f32 %v2966, %v3067
  %v3132 = vadd.f32 %v2967, %v3068
  %v3133 = vadd.f32 %v2968, %v3069
  %v3134 = vadd.f32 %v2969, %v3070
  %v3135 = vadd.f32 %v2970, %v3071
  %v3136 = vadd.f32 %v2971, %v3072
  %v3137 = vadd.f32 %v2972, %v3073
  %v3138 = vadd.f32 %v2973, %v3074
  %v3139 = vadd.f32 %v2974, %v3075
  %v3140 = vadd.f32 %v2975, %v3076
  %v3141 = vadd.f32 %v2976, %v3077
  %v3142 = vadd.f32 %v2977, %v3078
  %v3143 = vadd.f32 %v2978, %v3079
  %v3144 = vadd.f32 %v2979, %v3080
  %v3145 = vadd.f32 %v2980, %v3081
  %v3146 = vadd.f32 %v2981, %v3082
  %v3147 = vadd.f32 %v2982, %v3083
  %v3148 = vadd.f32 %v2983, %v3084
  %v3149 = vadd.f32 %v2984, %v3085
  %v3150 = vadd.f32 %v2985, %v3086
  %v3151 = vadd.f32 %v2986, %v3087
  %v3152 = vadd.f32 %v2987, %v3088
  %v3153 = vld [vmem:[%s1 + $0x17] sm:$0x1]
  %v3154 = vlaneseq
  %v3155 = vshrl.u32 %v3154, 7
  %v3156 = vsub.s32 0, %v3155
  %v3157 = vrot.slane %v3153, %v3156
  %v3158 = vmul.f32 %v67, %v3157
  %v3159 = vmul.f32 %v68, %v3157
  %v3160 = vmul.f32 %v69, %v3157
  %v3161 = vmul.f32 %v70, %v3157
  %v3162 = vmul.f32 %v73, %v3157
  %v3163 = vmul.f32 %v74, %v3157
  %v3164 = vmul.f32 %v75, %v3157
  %v3165 = vmul.f32 %v76, %v3157
  %v3166 = vmul.f32 %v79, %v3157
  %v3167 = vmul.f32 %v80, %v3157
  %v3168 = vmul.f32 %v81, %v3157
  %v3169 = vmul.f32 %v82, %v3157
  %v3170 = vmul.f32 %v85, %v3157
  %v3171 = vmul.f32 %v86, %v3157
  %v3172 = vmul.f32 %v87, %v3157
  %v3173 = vmul.f32 %v88, %v3157
  %v3174 = vmul.f32 %v103, %v3157
  %v3175 = vmul.f32 %v104, %v3157
  %v3176 = vmul.f32 %v105, %v3157
  %v3177 = vmul.f32 %v106, %v3157
  %v3178 = vmul.f32 %v109, %v3157
  %v3179 = vmul.f32 %v110, %v3157
  %v3180 = vmul.f32 %v111, %v3157
  %v3181 = vmul.f32 %v112, %v3157
  %v3182 = vmul.f32 %v115, %v3157
  %v3183 = vmul.f32 %v116, %v3157
  %v3184 = vmul.f32 %v117, %v3157
  %v3185 = vmul.f32 %v118, %v3157
  %v3186 = vmul.f32 %v121, %v3157
  %v3187 = vmul.f32 %v122, %v3157
  %v3188 = vmul.f32 %v123, %v3157
  %v3189 = vmul.f32 %v124, %v3157
  %v3222 = vrot.slane %v3158, 2
  %v3223 = vrot.slane %v3159, 2
  %v3224 = vrot.slane %v3160, 2
  %v3225 = vrot.slane %v3161, 2
  %v3226 = vrot.slane %v3162, 2
  %v3227 = vrot.slane %v3163, 2
  %v3228 = vrot.slane %v3164, 2
  %v3229 = vrot.slane %v3165, 2
  %v3230 = vrot.slane %v3166, 2
  %v3231 = vrot.slane %v3167, 2
  %v3232 = vrot.slane %v3168, 2
  %v3233 = vrot.slane %v3169, 2
  %v3234 = vrot.slane %v3170, 2
  %v3235 = vrot.slane %v3171, 2
  %v3236 = vrot.slane %v3172, 2
  %v3237 = vrot.slane %v3173, 2
  %v3238 = vrot.slane %v3174, 2
  %v3239 = vrot.slane %v3175, 2
  %v3240 = vrot.slane %v3176, 2
  %v3241 = vrot.slane %v3177, 2
  %v3242 = vrot.slane %v3178, 2
  %v3243 = vrot.slane %v3179, 2
  %v3244 = vrot.slane %v3180, 2
  %v3245 = vrot.slane %v3181, 2
  %v3246 = vrot.slane %v3182, 2
  %v3247 = vrot.slane %v3183, 2
  %v3248 = vrot.slane %v3184, 2
  %v3249 = vrot.slane %v3185, 2
  %v3250 = vrot.slane %v3186, 2
  %v3251 = vrot.slane %v3187, 2
  %v3252 = vrot.slane %v3188, 2
  %v3253 = vrot.slane %v3189, 2
  %v3286 = vadd.f32 %v3121, %v3222
  %v3287 = vadd.f32 %v3122, %v3223
  %v3288 = vadd.f32 %v3123, %v3224
  %v3289 = vadd.f32 %v3124, %v3225
  %v3290 = vadd.f32 %v3125, %v3226
  %v3291 = vadd.f32 %v3126, %v3227
  %v3292 = vadd.f32 %v3127, %v3228
  %v3293 = vadd.f32 %v3128, %v3229
  %v3294 = vadd.f32 %v3129, %v3230
  %v3295 = vadd.f32 %v3130, %v3231
  %v3296 = vadd.f32 %v3131, %v3232
  %v3297 = vadd.f32 %v3132, %v3233
  %v3298 = vadd.f32 %v3133, %v3234
  %v3299 = vadd.f32 %v3134, %v3235
  %v3300 = vadd.f32 %v3135, %v3236
  %v3301 = vadd.f32 %v3136, %v3237
  %v3302 = vadd.f32 %v3137, %v3238
  %v3303 = vadd.f32 %v3138, %v3239
  %v3304 = vadd.f32 %v3139, %v3240
  %v3305 = vadd.f32 %v3140, %v3241
  %v3306 = vadd.f32 %v3141, %v3242
  %v3307 = vadd.f32 %v3142, %v3243
  %v3308 = vadd.f32 %v3143, %v3244
  %v3309 = vadd.f32 %v3144, %v3245
  %v3310 = vadd.f32 %v3145, %v3246
  %v3311 = vadd.f32 %v3146, %v3247
  %v3312 = vadd.f32 %v3147, %v3248
  %v3313 = vadd.f32 %v3148, %v3249
  %v3314 = vadd.f32 %v3149, %v3250
  %v3315 = vadd.f32 %v3150, %v3251
  %v3316 = vadd.f32 %v3151, %v3252
  %v3317 = vadd.f32 %v3152, %v3253
  %v3318 = vld [vmem:[%s1 + $0x18] sm:$0x1]
  %v3319 = vlaneseq
  %v3320 = vshrl.u32 %v3319, 7
  %v3321 = vsub.s32 0, %v3320
  %v3322 = vrot.slane %v3318, %v3321
  %v3323 = vmul.f32 %v68, %v3322
  %v3324 = vmul.f32 %v69, %v3322
  %v3325 = vmul.f32 %v70, %v3322
  %v3326 = vmul.f32 %v71, %v3322
  %v3327 = vmul.f32 %v74, %v3322
  %v3328 = vmul.f32 %v75, %v3322
  %v3329 = vmul.f32 %v76, %v3322
  %v3330 = vmul.f32 %v77, %v3322
  %v3331 = vmul.f32 %v80, %v3322
  %v3332 = vmul.f32 %v81, %v3322
  %v3333 = vmul.f32 %v82, %v3322
  %v3334 = vmul.f32 %v83, %v3322
  %v3335 = vmul.f32 %v86, %v3322
  %v3336 = vmul.f32 %v87, %v3322
  %v3337 = vmul.f32 %v88, %v3322
  %v3338 = vmul.f32 %v89, %v3322
  %v3339 = vmul.f32 %v104, %v3322
  %v3340 = vmul.f32 %v105, %v3322
  %v3341 = vmul.f32 %v106, %v3322
  %v3342 = vmul.f32 %v107, %v3322
  %v3343 = vmul.f32 %v110, %v3322
  %v3344 = vmul.f32 %v111, %v3322
  %v3345 = vmul.f32 %v112, %v3322
  %v3346 = vmul.f32 %v113, %v3322
  %v3347 = vmul.f32 %v116, %v3322
  %v3348 = vmul.f32 %v117, %v3322
  %v3349 = vmul.f32 %v118, %v3322
  %v3350 = vmul.f32 %v119, %v3322
  %v3351 = vmul.f32 %v122, %v3322
  %v3352 = vmul.f32 %v123, %v3322
  %v3353 = vmul.f32 %v124, %v3322
  %v3354 = vmul.f32 %v125, %v3322
  %v3355 = vadd.f32 %v3286, %v3323
  %v3356 = vadd.f32 %v3287, %v3324
  %v3357 = vadd.f32 %v3288, %v3325
  %v3358 = vadd.f32 %v3289, %v3326
  %v3359 = vadd.f32 %v3290, %v3327
  %v3360 = vadd.f32 %v3291, %v3328
  %v3361 = vadd.f32 %v3292, %v3329
  %v3362 = vadd.f32 %v3293, %v3330
  %v3363 = vadd.f32 %v3294, %v3331
  %v3364 = vadd.f32 %v3295, %v3332
  %v3365 = vadd.f32 %v3296, %v3333
  %v3366 = vadd.f32 %v3297, %v3334
  %v3367 = vadd.f32 %v3298, %v3335
  %v3368 = vadd.f32 %v3299, %v3336
  %v3369 = vadd.f32 %v3300, %v3337
  %v3370 = vadd.f32 %v3301, %v3338
  %v3371 = vadd.f32 %v3302, %v3339
  %v3372 = vadd.f32 %v3303, %v3340
  %v3373 = vadd.f32 %v3304, %v3341
  %v3374 = vadd.f32 %v3305, %v3342
  %v3375 = vadd.f32 %v3306, %v3343
  %v3376 = vadd.f32 %v3307, %v3344
  %v3377 = vadd.f32 %v3308, %v3345
  %v3378 = vadd.f32 %v3309, %v3346
  %v3379 = vadd.f32 %v3310, %v3347
  %v3380 = vadd.f32 %v3311, %v3348
  %v3381 = vadd.f32 %v3312, %v3349
  %v3382 = vadd.f32 %v3313, %v3350
  %v3383 = vadd.f32 %v3314, %v3351
  %v3384 = vadd.f32 %v3315, %v3352
  %v3385 = vadd.f32 %v3316, %v3353
  %v3386 = vadd.f32 %v3317, %v3354
  %v3387 = vld [vmem:[%s1 + $0x19] sm:$0x1]
  %v3388 = vlaneseq
  %v3389 = vshrl.u32 %v3388, 7
  %v3390 = vsub.s32 0, %v3389
  %v3391 = vrot.slane %v3387, %v3390
  %v3392 = vmul.f32 %v68, %v3391
  %v3393 = vmul.f32 %v69, %v3391
  %v3394 = vmul.f32 %v70, %v3391
  %v3395 = vmul.f32 %v71, %v3391
  %v3396 = vmul.f32 %v74, %v3391
  %v3397 = vmul.f32 %v75, %v3391
  %v3398 = vmul.f32 %v76, %v3391
  %v3399 = vmul.f32 %v77, %v3391
  %v3400 = vmul.f32 %v80, %v3391
  %v3401 = vmul.f32 %v81, %v3391
  %v3402 = vmul.f32 %v82, %v3391
  %v3403 = vmul.f32 %v83, %v3391
  %v3404 = vmul.f32 %v86, %v3391
  %v3405 = vmul.f32 %v87, %v3391
  %v3406 = vmul.f32 %v88, %v3391
  %v3407 = vmul.f32 %v89, %v3391
  %v3408 = vmul.f32 %v104, %v3391
  %v3409 = vmul.f32 %v105, %v3391
  %v3410 = vmul.f32 %v106, %v3391
  %v3411 = vmul.f32 %v107, %v3391
  %v3412 = vmul.f32 %v110, %v3391
  %v3413 = vmul.f32 %v111, %v3391
  %v3414 = vmul.f32 %v112, %v3391
  %v3415 = vmul.f32 %v113, %v3391
  %v3416 = vmul.f32 %v116, %v3391
  %v3417 = vmul.f32 %v117, %v3391
  %v3418 = vmul.f32 %v118, %v3391
  %v3419 = vmul.f32 %v119, %v3391
  %v3420 = vmul.f32 %v122, %v3391
  %v3421 = vmul.f32 %v123, %v3391
  %v3422 = vmul.f32 %v124, %v3391
  %v3423 = vmul.f32 %v125, %v3391
  %v3456 = vrot.slane %v3392, 1
  %v3457 = vrot.slane %v3393, 1
  %v3458 = vrot.slane %v3394, 1
  %v3459 = vrot.slane %v3395, 1
  %v3460 = vrot.slane %v3396, 1
  %v3461 = vrot.slane %v3397, 1
  %v3462 = vrot.slane %v3398, 1
  %v3463 = vrot.slane %v3399, 1
  %v3464 = vrot.slane %v3400, 1
  %v3465 = vrot.slane %v3401, 1
  %v3466 = vrot.slane %v3402, 1
  %v3467 = vrot.slane %v3403, 1
  %v3468 = vrot.slane %v3404, 1
  %v3469 = vrot.slane %v3405, 1
  %v3470 = vrot.slane %v3406, 1
  %v3471 = vrot.slane %v3407, 1
  %v3472 = vrot.slane %v3408, 1
  %v3473 = vrot.slane %v3409, 1
  %v3474 = vrot.slane %v3410, 1
  %v3475 = vrot.slane %v3411, 1
  %v3476 = vrot.slane %v3412, 1
  %v3477 = vrot.slane %v3413, 1
  %v3478 = vrot.slane %v3414, 1
  %v3479 = vrot.slane %v3415, 1
  %v3480 = vrot.slane %v3416, 1
  %v3481 = vrot.slane %v3417, 1
  %v3482 = vrot.slane %v3418, 1
  %v3483 = vrot.slane %v3419, 1
  %v3484 = vrot.slane %v3420, 1
  %v3485 = vrot.slane %v3421, 1
  %v3486 = vrot.slane %v3422, 1
  %v3487 = vrot.slane %v3423, 1
  %v3520 = vadd.f32 %v3355, %v3456
  %v3521 = vadd.f32 %v3356, %v3457
  %v3522 = vadd.f32 %v3357, %v3458
  %v3523 = vadd.f32 %v3358, %v3459
  %v3524 = vadd.f32 %v3359, %v3460
  %v3525 = vadd.f32 %v3360, %v3461
  %v3526 = vadd.f32 %v3361, %v3462
  %v3527 = vadd.f32 %v3362, %v3463
  %v3528 = vadd.f32 %v3363, %v3464
  %v3529 = vadd.f32 %v3364, %v3465
  %v3530 = vadd.f32 %v3365, %v3466
  %v3531 = vadd.f32 %v3366, %v3467
  %v3532 = vadd.f32 %v3367, %v3468
  %v3533 = vadd.f32 %v3368, %v3469
  %v3534 = vadd.f32 %v3369, %v3470
  %v3535 = vadd.f32 %v3370, %v3471
  %v3536 = vadd.f32 %v3371, %v3472
  %v3537 = vadd.f32 %v3372, %v3473
  %v3538 = vadd.f32 %v3373, %v3474
  %v3539 = vadd.f32 %v3374, %v3475
  %v3540 = vadd.f32 %v3375, %v3476
  %v3541 = vadd.f32 %v3376, %v3477
  %v3542 = vadd.f32 %v3377, %v3478
  %v3543 = vadd.f32 %v3378, %v3479
  %v3544 = vadd.f32 %v3379, %v3480
  %v3545 = vadd.f32 %v3380, %v3481
  %v3546 = vadd.f32 %v3381, %v3482
  %v3547 = vadd.f32 %v3382, %v3483
  %v3548 = vadd.f32 %v3383, %v3484
  %v3549 = vadd.f32 %v3384, %v3485
  %v3550 = vadd.f32 %v3385, %v3486
  %v3551 = vadd.f32 %v3386, %v3487
  %v3552 = vld [vmem:[%s1 + $0x1a] sm:$0x1]
  %v3553 = vlaneseq
  %v3554 = vshrl.u32 %v3553, 7
  %v3555 = vsub.s32 0, %v3554
  %v3556 = vrot.slane %v3552, %v3555
  %v3557 = vmul.f32 %v68, %v3556
  %v3558 = vmul.f32 %v69, %v3556
  %v3559 = vmul.f32 %v70, %v3556
  %v3560 = vmul.f32 %v71, %v3556
  %v3561 = vmul.f32 %v74, %v3556
  %v3562 = vmul.f32 %v75, %v3556
  %v3563 = vmul.f32 %v76, %v3556
  %v3564 = vmul.f32 %v77, %v3556
  %v3565 = vmul.f32 %v80, %v3556
  %v3566 = vmul.f32 %v81, %v3556
  %v3567 = vmul.f32 %v82, %v3556
  %v3568 = vmul.f32 %v83, %v3556
  %v3569 = vmul.f32 %v86, %v3556
  %v3570 = vmul.f32 %v87, %v3556
  %v3571 = vmul.f32 %v88, %v3556
  %v3572 = vmul.f32 %v89, %v3556
  %v3573 = vmul.f32 %v104, %v3556
  %v3574 = vmul.f32 %v105, %v3556
  %v3575 = vmul.f32 %v106, %v3556
  %v3576 = vmul.f32 %v107, %v3556
  %v3577 = vmul.f32 %v110, %v3556
  %v3578 = vmul.f32 %v111, %v3556
  %v3579 = vmul.f32 %v112, %v3556
  %v3580 = vmul.f32 %v113, %v3556
  %v3581 = vmul.f32 %v116, %v3556
  %v3582 = vmul.f32 %v117, %v3556
  %v3583 = vmul.f32 %v118, %v3556
  %v3584 = vmul.f32 %v119, %v3556
  %v3585 = vmul.f32 %v122, %v3556
  %v3586 = vmul.f32 %v123, %v3556
  %v3587 = vmul.f32 %v124, %v3556
  %v3588 = vmul.f32 %v125, %v3556
  %v3621 = vrot.slane %v3557, 2
  %v3622 = vrot.slane %v3558, 2
  %v3623 = vrot.slane %v3559, 2
  %v3624 = vrot.slane %v3560, 2
  %v3625 = vrot.slane %v3561, 2
  %v3626 = vrot.slane %v3562, 2
  %v3627 = vrot.slane %v3563, 2
  %v3628 = vrot.slane %v3564, 2
  %v3629 = vrot.slane %v3565, 2
  %v3630 = vrot.slane %v3566, 2
  %v3631 = vrot.slane %v3567, 2
  %v3632 = vrot.slane %v3568, 2
  %v3633 = vrot.slane %v3569, 2
  %v3634 = vrot.slane %v3570, 2
  %v3635 = vrot.slane %v3571, 2
  %v3636 = vrot.slane %v3572, 2
  %v3637 = vrot.slane %v3573, 2
  %v3638 = vrot.slane %v3574, 2
  %v3639 = vrot.slane %v3575, 2
  %v3640 = vrot.slane %v3576, 2
  %v3641 = vrot.slane %v3577, 2
  %v3642 = vrot.slane %v3578, 2
  %v3643 = vrot.slane %v3579, 2
  %v3644 = vrot.slane %v3580, 2
  %v3645 = vrot.slane %v3581, 2
  %v3646 = vrot.slane %v3582, 2
  %v3647 = vrot.slane %v3583, 2
  %v3648 = vrot.slane %v3584, 2
  %v3649 = vrot.slane %v3585, 2
  %v3650 = vrot.slane %v3586, 2
  %v3651 = vrot.slane %v3587, 2
  %v3652 = vrot.slane %v3588, 2
  %v3685 = vadd.f32 %v3520, %v3621
  %v3686 = vadd.f32 %v3521, %v3622
  %v3687 = vadd.f32 %v3522, %v3623
  %v3688 = vadd.f32 %v3523, %v3624
  %v3689 = vadd.f32 %v3524, %v3625
  %v3690 = vadd.f32 %v3525, %v3626
  %v3691 = vadd.f32 %v3526, %v3627
  %v3692 = vadd.f32 %v3527, %v3628
  %v3693 = vadd.f32 %v3528, %v3629
  %v3694 = vadd.f32 %v3529, %v3630
  %v3695 = vadd.f32 %v3530, %v3631
  %v3696 = vadd.f32 %v3531, %v3632
  %v3697 = vadd.f32 %v3532, %v3633
  %v3698 = vadd.f32 %v3533, %v3634
  %v3699 = vadd.f32 %v3534, %v3635
  %v3700 = vadd.f32 %v3535, %v3636
  %v3701 = vadd.f32 %v3536, %v3637
  %v3702 = vadd.f32 %v3537, %v3638
  %v3703 = vadd.f32 %v3538, %v3639
  %v3704 = vadd.f32 %v3539, %v3640
  %v3705 = vadd.f32 %v3540, %v3641
  %v3706 = vadd.f32 %v3541, %v3642
  %v3707 = vadd.f32 %v3542, %v3643
  %v3708 = vadd.f32 %v3543, %v3644
  %v3709 = vadd.f32 %v3544, %v3645
  %v3710 = vadd.f32 %v3545, %v3646
  %v3711 = vadd.f32 %v3546, %v3647
  %v3712 = vadd.f32 %v3547, %v3648
  %v3713 = vadd.f32 %v3548, %v3649
  %v3714 = vadd.f32 %v3549, %v3650
  %v3715 = vadd.f32 %v3550, %v3651
  %v3716 = vadd.f32 %v3551, %v3652
  %v3717 = vld [vmem:[%s2] sm:$0x1]
  %v3719 = vlaneseq
  %v3720 = vshrl.u32 %v3719, 7
  %v3721 = vsub.s32 0, %v3720
  %v3722 = vrot.slane %v3717, %v3721
  %v3724 = vadd.f32 %v3685, %v3722
  %v3725 = vadd.f32 %v3686, %v3722
  %v3726 = vadd.f32 %v3687, %v3722
  %v3727 = vadd.f32 %v3688, %v3722
  %v3728 = vadd.f32 %v3689, %v3722
  %v3729 = vadd.f32 %v3690, %v3722
  %v3730 = vadd.f32 %v3691, %v3722
  %v3731 = vadd.f32 %v3692, %v3722
  %v3732 = vadd.f32 %v3693, %v3722
  %v3733 = vadd.f32 %v3694, %v3722
  %v3734 = vadd.f32 %v3695, %v3722
  %v3735 = vadd.f32 %v3696, %v3722
  %v3736 = vadd.f32 %v3697, %v3722
  %v3737 = vadd.f32 %v3698, %v3722
  %v3738 = vadd.f32 %v3699, %v3722
  %v3739 = vadd.f32 %v3700, %v3722
  %v3740 = vadd.f32 %v3701, %v3722
  %v3741 = vadd.f32 %v3702, %v3722
  %v3742 = vadd.f32 %v3703, %v3722
  %v3743 = vadd.f32 %v3704, %v3722
  %v3744 = vadd.f32 %v3705, %v3722
  %v3745 = vadd.f32 %v3706, %v3722
  %v3746 = vadd.f32 %v3707, %v3722
  %v3747 = vadd.f32 %v3708, %v3722
  %v3748 = vadd.f32 %v3709, %v3722
  %v3749 = vadd.f32 %v3710, %v3722
  %v3750 = vadd.f32 %v3711, %v3722
  %v3751 = vadd.f32 %v3712, %v3722
  %v3752 = vadd.f32 %v3713, %v3722
  %v3753 = vadd.f32 %v3714, %v3722
  %v3754 = vadd.f32 %v3715, %v3722
  %v3755 = vadd.f32 %v3716, %v3722
  %v3788 = vrot.slane %v61, 1
  %v3789 = vrot.slane %v62, 1
  %v3790 = vrot.slane %v63, 1
  %v3791 = vrot.slane %v64, 1
  %v3792 = vrot.slane %v67, 1
  %v3793 = vrot.slane %v68, 1
  %v3794 = vrot.slane %v69, 1
  %v3795 = vrot.slane %v70, 1
  %v3796 = vrot.slane %v73, 1
  %v3797 = vrot.slane %v74, 1
  %v3798 = vrot.slane %v75, 1
  %v3799 = vrot.slane %v76, 1
  %v3800 = vrot.slane %v79, 1
  %v3801 = vrot.slane %v80, 1
  %v3802 = vrot.slane %v81, 1
  %v3803 = vrot.slane %v82, 1
  %v3804 = vrot.slane %v97, 1
  %v3805 = vrot.slane %v98, 1
  %v3806 = vrot.slane %v99, 1
  %v3807 = vrot.slane %v100, 1
  %v3808 = vrot.slane %v103, 1
  %v3809 = vrot.slane %v104, 1
  %v3810 = vrot.slane %v105, 1
  %v3811 = vrot.slane %v106, 1
  %v3812 = vrot.slane %v109, 1
  %v3813 = vrot.slane %v110, 1
  %v3814 = vrot.slane %v111, 1
  %v3815 = vrot.slane %v112, 1
  %v3816 = vrot.slane %v115, 1
  %v3817 = vrot.slane %v116, 1
  %v3818 = vrot.slane %v117, 1
  %v3819 = vrot.slane %v118, 1
  %v3852 = vadd.f32 %v3724, %v3788
  %v3853 = vadd.f32 %v3725, %v3789
  %v3854 = vadd.f32 %v3726, %v3790
  %v3855 = vadd.f32 %v3727, %v3791
  %v3856 = vadd.f32 %v3728, %v3792
  %v3857 = vadd.f32 %v3729, %v3793
  %v3858 = vadd.f32 %v3730, %v3794
  %v3859 = vadd.f32 %v3731, %v3795
  %v3860 = vadd.f32 %v3732, %v3796
  %v3861 = vadd.f32 %v3733, %v3797
  %v3862 = vadd.f32 %v3734, %v3798
  %v3863 = vadd.f32 %v3735, %v3799
  %v3864 = vadd.f32 %v3736, %v3800
  %v3865 = vadd.f32 %v3737, %v3801
  %v3866 = vadd.f32 %v3738, %v3802
  %v3867 = vadd.f32 %v3739, %v3803
  %v3868 = vadd.f32 %v3740, %v3804
  %v3869 = vadd.f32 %v3741, %v3805
  %v3870 = vadd.f32 %v3742, %v3806
  %v3871 = vadd.f32 %v3743, %v3807
  %v3872 = vadd.f32 %v3744, %v3808
  %v3873 = vadd.f32 %v3745, %v3809
  %v3874 = vadd.f32 %v3746, %v3810
  %v3875 = vadd.f32 %v3747, %v3811
  %v3876 = vadd.f32 %v3748, %v3812
  %v3877 = vadd.f32 %v3749, %v3813
  %v3878 = vadd.f32 %v3750, %v3814
  %v3879 = vadd.f32 %v3751, %v3815
  %v3880 = vadd.f32 %v3752, %v3816
  %v3881 = vadd.f32 %v3753, %v3817
  %v3882 = vadd.f32 %v3754, %v3818
  %v3883 = vadd.f32 %v3755, %v3819
  %v3884 = vld [vmem:[%s6] sm:$0x1]
  %v3885 = vld [vmem:[%s7] sm:$0x1]
  %v3918 = vcombine.low %v3852, %v3853
  %v3919 = vcombine.low %v3854, %v3855
  %v3920 = vcombine.low %v3856, %v3857
  %v3921 = vcombine.low %v3858, %v3859
  %v3922 = vcombine.low %v3860, %v3861
  %v3923 = vcombine.low %v3862, %v3863
  %v3924 = vcombine.low %v3864, %v3865
  %v3925 = vcombine.low %v3866, %v3867
  %v3926 = vcombine.low %v3868, %v3869
  %v3927 = vcombine.low %v3870, %v3871
  %v3928 = vcombine.low %v3872, %v3873
  %v3929 = vcombine.low %v3874, %v3875
  %v3930 = vcombine.low %v3876, %v3877
  %v3931 = vcombine.low %v3878, %v3879
  %v3932 = vcombine.low %v3880, %v3881
  %v3933 = vcombine.low %v3882, %v3883
  %vm3950 = vcmask 523264
  %v3951 = vsel %vm3950, %v3918, 0.0
  %3952 = vadd.xlane.f32.xlu0 %v3951
  %v3953 = vpop.xlane.xlu0 %3952
  %v3954 = vsel %vm3950, %v3919, 0.0
  %3955 = vadd.xlane.f32.xlu0 %v3954
  %v3956 = vpop.xlane.xlu0 %3955
  %v3957 = vsel %vm3950, %v3920, 0.0
  %3958 = vadd.xlane.f32.xlu0 %v3957
  %v3959 = vpop.xlane.xlu0 %3958
  %v3960 = vsel %vm3950, %v3921, 0.0
  %3961 = vadd.xlane.f32.xlu0 %v3960
  %v3962 = vpop.xlane.xlu0 %3961
  %v3963 = vsel %vm3950, %v3922, 0.0
  %3964 = vadd.xlane.f32.xlu0 %v3963
  %v3965 = vpop.xlane.xlu0 %3964
  %v3966 = vsel %vm3950, %v3923, 0.0
  %3967 = vadd.xlane.f32.xlu0 %v3966
  %v3968 = vpop.xlane.xlu0 %3967
  %v3969 = vsel %vm3950, %v3924, 0.0
  %3970 = vadd.xlane.f32.xlu0 %v3969
  %v3971 = vpop.xlane.xlu0 %3970
  %v3972 = vsel %vm3950, %v3925, 0.0
  %3973 = vadd.xlane.f32.xlu0 %v3972
  %v3974 = vpop.xlane.xlu0 %3973
  %v3975 = vsel %vm3950, %v3926, 0.0
  %3976 = vadd.xlane.f32.xlu0 %v3975
  %v3977 = vpop.xlane.xlu0 %3976
  %v3978 = vsel %vm3950, %v3927, 0.0
  %3979 = vadd.xlane.f32.xlu0 %v3978
  %v3980 = vpop.xlane.xlu0 %3979
  %v3981 = vsel %vm3950, %v3928, 0.0
  %3982 = vadd.xlane.f32.xlu0 %v3981
  %v3983 = vpop.xlane.xlu0 %3982
  %v3984 = vsel %vm3950, %v3929, 0.0
  %3985 = vadd.xlane.f32.xlu0 %v3984
  %v3986 = vpop.xlane.xlu0 %3985
  %v3987 = vsel %vm3950, %v3930, 0.0
  %3988 = vadd.xlane.f32.xlu0 %v3987
  %v3989 = vpop.xlane.xlu0 %3988
  %v3990 = vsel %vm3950, %v3931, 0.0
  %3991 = vadd.xlane.f32.xlu0 %v3990
  %v3992 = vpop.xlane.xlu0 %3991
  %v3993 = vsel %vm3950, %v3932, 0.0
  %3994 = vadd.xlane.f32.xlu0 %v3993
  %v3995 = vpop.xlane.xlu0 %3994
  %v3996 = vsel %vm3950, %v3933, 0.0
  %3997 = vadd.xlane.f32.xlu0 %v3996
  %v3998 = vpop.xlane.xlu0 %3997
  %v3999 = vrcp.pop 64.0
  %v4000 = vmul.f32 %v3953, %v3999
  %v4001 = vmul.f32 %v3956, %v3999
  %v4002 = vmul.f32 %v3959, %v3999
  %v4003 = vmul.f32 %v3962, %v3999
  %v4004 = vmul.f32 %v3965, %v3999
  %v4005 = vmul.f32 %v3968, %v3999
  %v4006 = vmul.f32 %v3971, %v3999
  %v4007 = vmul.f32 %v3974, %v3999
  %v4008 = vmul.f32 %v3977, %v3999
  %v4009 = vmul.f32 %v3980, %v3999
  %v4010 = vmul.f32 %v3983, %v3999
  %v4011 = vmul.f32 %v3986, %v3999
  %v4012 = vmul.f32 %v3989, %v3999
  %v4013 = vmul.f32 %v3992, %v3999
  %v4014 = vmul.f32 %v3995, %v3999
  %v4015 = vmul.f32 %v3998, %v3999
  %v4033 = vunpack.c.l.s4 839922192
  %v4034 = vunpack.c.0.s8 %v4033
  %v4035 = vlaneseq
  %v4036 = vshrl.u32 %v4035, 7
  %v4037 = vsub.s32 %v4034, %v4036
  %v4038 = vrot.slane %v4000, %v4037
  %v4040 = vunpack.c.l.s4 1985246804
  %v4041 = vunpack.c.0.s8 %v4040
  %v4042 = vlaneseq
  %v4043 = vshrl.u32 %v4042, 7
  %v4044 = vsub.s32 %v4041, %v4043
  %v4045 = vrot.slane %v4000, %v4044
  %v4047 = vunpack.c.l.s4 839922192
  %v4048 = vunpack.c.0.s8 %v4047
  %v4049 = vlaneseq
  %v4050 = vshrl.u32 %v4049, 7
  %v4051 = vsub.s32 %v4048, %v4050
  %v4052 = vrot.slane %v4001, %v4051
  %v4054 = vunpack.c.l.s4 1985246804
  %v4055 = vunpack.c.0.s8 %v4054
  %v4056 = vlaneseq
  %v4057 = vshrl.u32 %v4056, 7
  %v4058 = vsub.s32 %v4055, %v4057
  %v4059 = vrot.slane %v4001, %v4058
  %v4061 = vunpack.c.l.s4 839922192
  %v4062 = vunpack.c.0.s8 %v4061
  %v4063 = vlaneseq
  %v4064 = vshrl.u32 %v4063, 7
  %v4065 = vsub.s32 %v4062, %v4064
  %v4066 = vrot.slane %v4002, %v4065
  %v4068 = vunpack.c.l.s4 1985246804
  %v4069 = vunpack.c.0.s8 %v4068
  %v4070 = vlaneseq
  %v4071 = vshrl.u32 %v4070, 7
  %v4072 = vsub.s32 %v4069, %v4071
  %v4073 = vrot.slane %v4002, %v4072
  %v4075 = vunpack.c.l.s4 839922192
  %v4076 = vunpack.c.0.s8 %v4075
  %v4077 = vlaneseq
  %v4078 = vshrl.u32 %v4077, 7
  %v4079 = vsub.s32 %v4076, %v4078
  %v4080 = vrot.slane %v4003, %v4079
  %v4082 = vunpack.c.l.s4 1985246804
  %v4083 = vunpack.c.0.s8 %v4082
  %v4084 = vlaneseq
  %v4085 = vshrl.u32 %v4084, 7
  %v4086 = vsub.s32 %v4083, %v4085
  %v4087 = vrot.slane %v4003, %v4086
  %v4089 = vunpack.c.l.s4 839922192
  %v4090 = vunpack.c.0.s8 %v4089
  %v4091 = vlaneseq
  %v4092 = vshrl.u32 %v4091, 7
  %v4093 = vsub.s32 %v4090, %v4092
  %v4094 = vrot.slane %v4004, %v4093
  %v4096 = vunpack.c.l.s4 1985246804
  %v4097 = vunpack.c.0.s8 %v4096
  %v4098 = vlaneseq
  %v4099 = vshrl.u32 %v4098, 7
  %v4100 = vsub.s32 %v4097, %v4099
  %v4101 = vrot.slane %v4004, %v4100
  %v4103 = vunpack.c.l.s4 839922192
  %v4104 = vunpack.c.0.s8 %v4103
  %v4105 = vlaneseq
  %v4106 = vshrl.u32 %v4105, 7
  %v4107 = vsub.s32 %v4104, %v4106
  %v4108 = vrot.slane %v4005, %v4107
  %v4110 = vunpack.c.l.s4 1985246804
  %v4111 = vunpack.c.0.s8 %v4110
  %v4112 = vlaneseq
  %v4113 = vshrl.u32 %v4112, 7
  %v4114 = vsub.s32 %v4111, %v4113
  %v4115 = vrot.slane %v4005, %v4114
  %v4117 = vunpack.c.l.s4 839922192
  %v4118 = vunpack.c.0.s8 %v4117
  %v4119 = vlaneseq
  %v4120 = vshrl.u32 %v4119, 7
  %v4121 = vsub.s32 %v4118, %v4120
  %v4122 = vrot.slane %v4006, %v4121
  %v4124 = vunpack.c.l.s4 1985246804
  %v4125 = vunpack.c.0.s8 %v4124
  %v4126 = vlaneseq
  %v4127 = vshrl.u32 %v4126, 7
  %v4128 = vsub.s32 %v4125, %v4127
  %v4129 = vrot.slane %v4006, %v4128
  %v4131 = vunpack.c.l.s4 839922192
  %v4132 = vunpack.c.0.s8 %v4131
  %v4133 = vlaneseq
  %v4134 = vshrl.u32 %v4133, 7
  %v4135 = vsub.s32 %v4132, %v4134
  %v4136 = vrot.slane %v4007, %v4135
  %v4138 = vunpack.c.l.s4 1985246804
  %v4139 = vunpack.c.0.s8 %v4138
  %v4140 = vlaneseq
  %v4141 = vshrl.u32 %v4140, 7
  %v4142 = vsub.s32 %v4139, %v4141
  %v4143 = vrot.slane %v4007, %v4142
  %v4145 = vunpack.c.l.s4 839922192
  %v4146 = vunpack.c.0.s8 %v4145
  %v4147 = vlaneseq
  %v4148 = vshrl.u32 %v4147, 7
  %v4149 = vsub.s32 %v4146, %v4148
  %v4150 = vrot.slane %v4008, %v4149
  %v4152 = vunpack.c.l.s4 1985246804
  %v4153 = vunpack.c.0.s8 %v4152
  %v4154 = vlaneseq
  %v4155 = vshrl.u32 %v4154, 7
  %v4156 = vsub.s32 %v4153, %v4155
  %v4157 = vrot.slane %v4008, %v4156
  %v4159 = vunpack.c.l.s4 839922192
  %v4160 = vunpack.c.0.s8 %v4159
  %v4161 = vlaneseq
  %v4162 = vshrl.u32 %v4161, 7
  %v4163 = vsub.s32 %v4160, %v4162
  %v4164 = vrot.slane %v4009, %v4163
  %v4166 = vunpack.c.l.s4 1985246804
  %v4167 = vunpack.c.0.s8 %v4166
  %v4168 = vlaneseq
  %v4169 = vshrl.u32 %v4168, 7
  %v4170 = vsub.s32 %v4167, %v4169
  %v4171 = vrot.slane %v4009, %v4170
  %v4173 = vunpack.c.l.s4 839922192
  %v4174 = vunpack.c.0.s8 %v4173
  %v4175 = vlaneseq
  %v4176 = vshrl.u32 %v4175, 7
  %v4177 = vsub.s32 %v4174, %v4176
  %v4178 = vrot.slane %v4010, %v4177
  %v4180 = vunpack.c.l.s4 1985246804
  %v4181 = vunpack.c.0.s8 %v4180
  %v4182 = vlaneseq
  %v4183 = vshrl.u32 %v4182, 7
  %v4184 = vsub.s32 %v4181, %v4183
  %v4185 = vrot.slane %v4010, %v4184
  %v4187 = vunpack.c.l.s4 839922192
  %v4188 = vunpack.c.0.s8 %v4187
  %v4189 = vlaneseq
  %v4190 = vshrl.u32 %v4189, 7
  %v4191 = vsub.s32 %v4188, %v4190
  %v4192 = vrot.slane %v4011, %v4191
  %v4194 = vunpack.c.l.s4 1985246804
  %v4195 = vunpack.c.0.s8 %v4194
  %v4196 = vlaneseq
  %v4197 = vshrl.u32 %v4196, 7
  %v4198 = vsub.s32 %v4195, %v4197
  %v4199 = vrot.slane %v4011, %v4198
  %v4201 = vunpack.c.l.s4 839922192
  %v4202 = vunpack.c.0.s8 %v4201
  %v4203 = vlaneseq
  %v4204 = vshrl.u32 %v4203, 7
  %v4205 = vsub.s32 %v4202, %v4204
  %v4206 = vrot.slane %v4012, %v4205
  %v4208 = vunpack.c.l.s4 1985246804
  %v4209 = vunpack.c.0.s8 %v4208
  %v4210 = vlaneseq
  %v4211 = vshrl.u32 %v4210, 7
  %v4212 = vsub.s32 %v4209, %v4211
  %v4213 = vrot.slane %v4012, %v4212
  %v4215 = vunpack.c.l.s4 839922192
  %v4216 = vunpack.c.0.s8 %v4215
  %v4217 = vlaneseq
  %v4218 = vshrl.u32 %v4217, 7
  %v4219 = vsub.s32 %v4216, %v4218
  %v4220 = vrot.slane %v4013, %v4219
  %v4222 = vunpack.c.l.s4 1985246804
  %v4223 = vunpack.c.0.s8 %v4222
  %v4224 = vlaneseq
  %v4225 = vshrl.u32 %v4224, 7
  %v4226 = vsub.s32 %v4223, %v4225
  %v4227 = vrot.slane %v4013, %v4226
  %v4229 = vunpack.c.l.s4 839922192
  %v4230 = vunpack.c.0.s8 %v4229
  %v4231 = vlaneseq
  %v4232 = vshrl.u32 %v4231, 7
  %v4233 = vsub.s32 %v4230, %v4232
  %v4234 = vrot.slane %v4014, %v4233
  %v4236 = vunpack.c.l.s4 1985246804
  %v4237 = vunpack.c.0.s8 %v4236
  %v4238 = vlaneseq
  %v4239 = vshrl.u32 %v4238, 7
  %v4240 = vsub.s32 %v4237, %v4239
  %v4241 = vrot.slane %v4014, %v4240
  %v4243 = vunpack.c.l.s4 839922192
  %v4244 = vunpack.c.0.s8 %v4243
  %v4245 = vlaneseq
  %v4246 = vshrl.u32 %v4245, 7
  %v4247 = vsub.s32 %v4244, %v4246
  %v4248 = vrot.slane %v4015, %v4247
  %v4250 = vunpack.c.l.s4 1985246804
  %v4251 = vunpack.c.0.s8 %v4250
  %v4252 = vlaneseq
  %v4253 = vshrl.u32 %v4252, 7
  %v4254 = vsub.s32 %v4251, %v4253
  %v4255 = vrot.slane %v4015, %v4254
  %v4288 = vsub.f32 %v3852, %v4038
  %v4289 = vsub.f32 %v3853, %v4045
  %v4290 = vsub.f32 %v3854, %v4052
  %v4291 = vsub.f32 %v3855, %v4059
  %v4292 = vsub.f32 %v3856, %v4066
  %v4293 = vsub.f32 %v3857, %v4073
  %v4294 = vsub.f32 %v3858, %v4080
  %v4295 = vsub.f32 %v3859, %v4087
  %v4296 = vsub.f32 %v3860, %v4094
  %v4297 = vsub.f32 %v3861, %v4101
  %v4298 = vsub.f32 %v3862, %v4108
  %v4299 = vsub.f32 %v3863, %v4115
  %v4300 = vsub.f32 %v3864, %v4122
  %v4301 = vsub.f32 %v3865, %v4129
  %v4302 = vsub.f32 %v3866, %v4136
  %v4303 = vsub.f32 %v3867, %v4143
  %v4304 = vsub.f32 %v3868, %v4150
  %v4305 = vsub.f32 %v3869, %v4157
  %v4306 = vsub.f32 %v3870, %v4164
  %v4307 = vsub.f32 %v3871, %v4171
  %v4308 = vsub.f32 %v3872, %v4178
  %v4309 = vsub.f32 %v3873, %v4185
  %v4310 = vsub.f32 %v3874, %v4192
  %v4311 = vsub.f32 %v3875, %v4199
  %v4312 = vsub.f32 %v3876, %v4206
  %v4313 = vsub.f32 %v3877, %v4213
  %v4314 = vsub.f32 %v3878, %v4220
  %v4315 = vsub.f32 %v3879, %v4227
  %v4316 = vsub.f32 %v3880, %v4234
  %v4317 = vsub.f32 %v3881, %v4241
  %v4318 = vsub.f32 %v3882, %v4248
  %v4319 = vsub.f32 %v3883, %v4255
  %v4320 = vmul.f32 %v4288, %v4288
  %v4321 = vmul.f32 %v4289, %v4289
  %v4322 = vmul.f32 %v4290, %v4290
  %v4323 = vmul.f32 %v4291, %v4291
  %v4324 = vmul.f32 %v4292, %v4292
  %v4325 = vmul.f32 %v4293, %v4293
  %v4326 = vmul.f32 %v4294, %v4294
  %v4327 = vmul.f32 %v4295, %v4295
  %v4328 = vmul.f32 %v4296, %v4296
  %v4329 = vmul.f32 %v4297, %v4297
  %v4330 = vmul.f32 %v4298, %v4298
  %v4331 = vmul.f32 %v4299, %v4299
  %v4332 = vmul.f32 %v4300, %v4300
  %v4333 = vmul.f32 %v4301, %v4301
  %v4334 = vmul.f32 %v4302, %v4302
  %v4335 = vmul.f32 %v4303, %v4303
  %v4336 = vmul.f32 %v4304, %v4304
  %v4337 = vmul.f32 %v4305, %v4305
  %v4338 = vmul.f32 %v4306, %v4306
  %v4339 = vmul.f32 %v4307, %v4307
  %v4340 = vmul.f32 %v4308, %v4308
  %v4341 = vmul.f32 %v4309, %v4309
  %v4342 = vmul.f32 %v4310, %v4310
  %v4343 = vmul.f32 %v4311, %v4311
  %v4344 = vmul.f32 %v4312, %v4312
  %v4345 = vmul.f32 %v4313, %v4313
  %v4346 = vmul.f32 %v4314, %v4314
  %v4347 = vmul.f32 %v4315, %v4315
  %v4348 = vmul.f32 %v4316, %v4316
  %v4349 = vmul.f32 %v4317, %v4317
  %v4350 = vmul.f32 %v4318, %v4318
  %v4351 = vmul.f32 %v4319, %v4319
  %v4384 = vcombine.low %v4320, %v4321
  %v4385 = vcombine.low %v4322, %v4323
  %v4386 = vcombine.low %v4324, %v4325
  %v4387 = vcombine.low %v4326, %v4327
  %v4388 = vcombine.low %v4328, %v4329
  %v4389 = vcombine.low %v4330, %v4331
  %v4390 = vcombine.low %v4332, %v4333
  %v4391 = vcombine.low %v4334, %v4335
  %v4392 = vcombine.low %v4336, %v4337
  %v4393 = vcombine.low %v4338, %v4339
  %v4394 = vcombine.low %v4340, %v4341
  %v4395 = vcombine.low %v4342, %v4343
  %v4396 = vcombine.low %v4344, %v4345
  %v4397 = vcombine.low %v4346, %v4347
  %v4398 = vcombine.low %v4348, %v4349
  %v4399 = vcombine.low %v4350, %v4351
  %v4416 = vsel %vm3950, %v4384, 0.0
  %4417 = vadd.xlane.f32.xlu0 %v4416
  %v4418 = vpop.xlane.xlu0 %4417
  %v4419 = vsel %vm3950, %v4385, 0.0
  %4420 = vadd.xlane.f32.xlu0 %v4419
  %v4421 = vpop.xlane.xlu0 %4420
  %v4422 = vsel %vm3950, %v4386, 0.0
  %4423 = vadd.xlane.f32.xlu0 %v4422
  %v4424 = vpop.xlane.xlu0 %4423
  %v4425 = vsel %vm3950, %v4387, 0.0
  %4426 = vadd.xlane.f32.xlu0 %v4425
  %v4427 = vpop.xlane.xlu0 %4426
  %v4428 = vsel %vm3950, %v4388, 0.0
  %4429 = vadd.xlane.f32.xlu0 %v4428
  %v4430 = vpop.xlane.xlu0 %4429
  %v4431 = vsel %vm3950, %v4389, 0.0
  %4432 = vadd.xlane.f32.xlu0 %v4431
  %v4433 = vpop.xlane.xlu0 %4432
  %v4434 = vsel %vm3950, %v4390, 0.0
  %4435 = vadd.xlane.f32.xlu0 %v4434
  %v4436 = vpop.xlane.xlu0 %4435
  %v4437 = vsel %vm3950, %v4391, 0.0
  %4438 = vadd.xlane.f32.xlu0 %v4437
  %v4439 = vpop.xlane.xlu0 %4438
  %v4440 = vsel %vm3950, %v4392, 0.0
  %4441 = vadd.xlane.f32.xlu0 %v4440
  %v4442 = vpop.xlane.xlu0 %4441
  %v4443 = vsel %vm3950, %v4393, 0.0
  %4444 = vadd.xlane.f32.xlu0 %v4443
  %v4445 = vpop.xlane.xlu0 %4444
  %v4446 = vsel %vm3950, %v4394, 0.0
  %4447 = vadd.xlane.f32.xlu0 %v4446
  %v4448 = vpop.xlane.xlu0 %4447
  %v4449 = vsel %vm3950, %v4395, 0.0
  %4450 = vadd.xlane.f32.xlu0 %v4449
  %v4451 = vpop.xlane.xlu0 %4450
  %v4452 = vsel %vm3950, %v4396, 0.0
  %4453 = vadd.xlane.f32.xlu0 %v4452
  %v4454 = vpop.xlane.xlu0 %4453
  %v4455 = vsel %vm3950, %v4397, 0.0
  %4456 = vadd.xlane.f32.xlu0 %v4455
  %v4457 = vpop.xlane.xlu0 %4456
  %v4458 = vsel %vm3950, %v4398, 0.0
  %4459 = vadd.xlane.f32.xlu0 %v4458
  %v4460 = vpop.xlane.xlu0 %4459
  %v4461 = vsel %vm3950, %v4399, 0.0
  %4462 = vadd.xlane.f32.xlu0 %v4461
  %v4463 = vpop.xlane.xlu0 %4462
  %v4464 = vmul.f32 %v4418, %v3999
  %v4465 = vmul.f32 %v4421, %v3999
  %v4466 = vmul.f32 %v4424, %v3999
  %v4467 = vmul.f32 %v4427, %v3999
  %v4468 = vmul.f32 %v4430, %v3999
  %v4469 = vmul.f32 %v4433, %v3999
  %v4470 = vmul.f32 %v4436, %v3999
  %v4471 = vmul.f32 %v4439, %v3999
  %v4472 = vmul.f32 %v4442, %v3999
  %v4473 = vmul.f32 %v4445, %v3999
  %v4474 = vmul.f32 %v4448, %v3999
  %v4475 = vmul.f32 %v4451, %v3999
  %v4476 = vmul.f32 %v4454, %v3999
  %v4477 = vmul.f32 %v4457, %v3999
  %v4478 = vmul.f32 %v4460, %v3999
  %v4479 = vmul.f32 %v4463, %v3999
  %v4480 = vadd.f32 %v4464, 1e-06
  %v4481 = vadd.f32 %v4465, 1e-06
  %v4482 = vadd.f32 %v4466, 1e-06
  %v4483 = vadd.f32 %v4467, 1e-06
  %v4484 = vadd.f32 %v4468, 1e-06
  %v4485 = vadd.f32 %v4469, 1e-06
  %v4486 = vadd.f32 %v4470, 1e-06
  %v4487 = vadd.f32 %v4471, 1e-06
  %v4488 = vadd.f32 %v4472, 1e-06
  %v4489 = vadd.f32 %v4473, 1e-06
  %v4490 = vadd.f32 %v4474, 1e-06
  %v4491 = vadd.f32 %v4475, 1e-06
  %v4492 = vadd.f32 %v4476, 1e-06
  %v4493 = vadd.f32 %v4477, 1e-06
  %v4494 = vadd.f32 %v4478, 1e-06
  %v4495 = vadd.f32 %v4479, 1e-06
  %v4496 = vrsqrt.pop %v4480
  %v4497 = vrsqrt.pop %v4481
  %v4498 = vrsqrt.pop %v4482
  %v4499 = vrsqrt.pop %v4483
  %v4500 = vrsqrt.pop %v4484
  %v4501 = vrsqrt.pop %v4485
  %v4502 = vrsqrt.pop %v4486
  %v4503 = vrsqrt.pop %v4487
  %v4504 = vrsqrt.pop %v4488
  %v4505 = vrsqrt.pop %v4489
  %v4506 = vrsqrt.pop %v4490
  %v4507 = vrsqrt.pop %v4491
  %v4508 = vrsqrt.pop %v4492
  %v4509 = vrsqrt.pop %v4493
  %v4510 = vrsqrt.pop %v4494
  %v4511 = vrsqrt.pop %v4495
  %v4529 = vunpack.c.l.s4 839922192
  %v4530 = vunpack.c.0.s8 %v4529
  %v4531 = vlaneseq
  %v4532 = vshrl.u32 %v4531, 7
  %v4533 = vsub.s32 %v4530, %v4532
  %v4534 = vrot.slane %v4496, %v4533
  %v4536 = vunpack.c.l.s4 1985246804
  %v4537 = vunpack.c.0.s8 %v4536
  %v4538 = vlaneseq
  %v4539 = vshrl.u32 %v4538, 7
  %v4540 = vsub.s32 %v4537, %v4539
  %v4541 = vrot.slane %v4496, %v4540
  %v4543 = vunpack.c.l.s4 839922192
  %v4544 = vunpack.c.0.s8 %v4543
  %v4545 = vlaneseq
  %v4546 = vshrl.u32 %v4545, 7
  %v4547 = vsub.s32 %v4544, %v4546
  %v4548 = vrot.slane %v4497, %v4547
  %v4550 = vunpack.c.l.s4 1985246804
  %v4551 = vunpack.c.0.s8 %v4550
  %v4552 = vlaneseq
  %v4553 = vshrl.u32 %v4552, 7
  %v4554 = vsub.s32 %v4551, %v4553
  %v4555 = vrot.slane %v4497, %v4554
  %v4557 = vunpack.c.l.s4 839922192
  %v4558 = vunpack.c.0.s8 %v4557
  %v4559 = vlaneseq
  %v4560 = vshrl.u32 %v4559, 7
  %v4561 = vsub.s32 %v4558, %v4560
  %v4562 = vrot.slane %v4498, %v4561
  %v4564 = vunpack.c.l.s4 1985246804
  %v4565 = vunpack.c.0.s8 %v4564
  %v4566 = vlaneseq
  %v4567 = vshrl.u32 %v4566, 7
  %v4568 = vsub.s32 %v4565, %v4567
  %v4569 = vrot.slane %v4498, %v4568
  %v4571 = vunpack.c.l.s4 839922192
  %v4572 = vunpack.c.0.s8 %v4571
  %v4573 = vlaneseq
  %v4574 = vshrl.u32 %v4573, 7
  %v4575 = vsub.s32 %v4572, %v4574
  %v4576 = vrot.slane %v4499, %v4575
  %v4578 = vunpack.c.l.s4 1985246804
  %v4579 = vunpack.c.0.s8 %v4578
  %v4580 = vlaneseq
  %v4581 = vshrl.u32 %v4580, 7
  %v4582 = vsub.s32 %v4579, %v4581
  %v4583 = vrot.slane %v4499, %v4582
  %v4585 = vunpack.c.l.s4 839922192
  %v4586 = vunpack.c.0.s8 %v4585
  %v4587 = vlaneseq
  %v4588 = vshrl.u32 %v4587, 7
  %v4589 = vsub.s32 %v4586, %v4588
  %v4590 = vrot.slane %v4500, %v4589
  %v4592 = vunpack.c.l.s4 1985246804
  %v4593 = vunpack.c.0.s8 %v4592
  %v4594 = vlaneseq
  %v4595 = vshrl.u32 %v4594, 7
  %v4596 = vsub.s32 %v4593, %v4595
  %v4597 = vrot.slane %v4500, %v4596
  %v4599 = vunpack.c.l.s4 839922192
  %v4600 = vunpack.c.0.s8 %v4599
  %v4601 = vlaneseq
  %v4602 = vshrl.u32 %v4601, 7
  %v4603 = vsub.s32 %v4600, %v4602
  %v4604 = vrot.slane %v4501, %v4603
  %v4606 = vunpack.c.l.s4 1985246804
  %v4607 = vunpack.c.0.s8 %v4606
  %v4608 = vlaneseq
  %v4609 = vshrl.u32 %v4608, 7
  %v4610 = vsub.s32 %v4607, %v4609
  %v4611 = vrot.slane %v4501, %v4610
  %v4613 = vunpack.c.l.s4 839922192
  %v4614 = vunpack.c.0.s8 %v4613
  %v4615 = vlaneseq
  %v4616 = vshrl.u32 %v4615, 7
  %v4617 = vsub.s32 %v4614, %v4616
  %v4618 = vrot.slane %v4502, %v4617
  %v4620 = vunpack.c.l.s4 1985246804
  %v4621 = vunpack.c.0.s8 %v4620
  %v4622 = vlaneseq
  %v4623 = vshrl.u32 %v4622, 7
  %v4624 = vsub.s32 %v4621, %v4623
  %v4625 = vrot.slane %v4502, %v4624
  %v4627 = vunpack.c.l.s4 839922192
  %v4628 = vunpack.c.0.s8 %v4627
  %v4629 = vlaneseq
  %v4630 = vshrl.u32 %v4629, 7
  %v4631 = vsub.s32 %v4628, %v4630
  %v4632 = vrot.slane %v4503, %v4631
  %v4634 = vunpack.c.l.s4 1985246804
  %v4635 = vunpack.c.0.s8 %v4634
  %v4636 = vlaneseq
  %v4637 = vshrl.u32 %v4636, 7
  %v4638 = vsub.s32 %v4635, %v4637
  %v4639 = vrot.slane %v4503, %v4638
  %v4641 = vunpack.c.l.s4 839922192
  %v4642 = vunpack.c.0.s8 %v4641
  %v4643 = vlaneseq
  %v4644 = vshrl.u32 %v4643, 7
  %v4645 = vsub.s32 %v4642, %v4644
  %v4646 = vrot.slane %v4504, %v4645
  %v4648 = vunpack.c.l.s4 1985246804
  %v4649 = vunpack.c.0.s8 %v4648
  %v4650 = vlaneseq
  %v4651 = vshrl.u32 %v4650, 7
  %v4652 = vsub.s32 %v4649, %v4651
  %v4653 = vrot.slane %v4504, %v4652
  %v4655 = vunpack.c.l.s4 839922192
  %v4656 = vunpack.c.0.s8 %v4655
  %v4657 = vlaneseq
  %v4658 = vshrl.u32 %v4657, 7
  %v4659 = vsub.s32 %v4656, %v4658
  %v4660 = vrot.slane %v4505, %v4659
  %v4662 = vunpack.c.l.s4 1985246804
  %v4663 = vunpack.c.0.s8 %v4662
  %v4664 = vlaneseq
  %v4665 = vshrl.u32 %v4664, 7
  %v4666 = vsub.s32 %v4663, %v4665
  %v4667 = vrot.slane %v4505, %v4666
  %v4669 = vunpack.c.l.s4 839922192
  %v4670 = vunpack.c.0.s8 %v4669
  %v4671 = vlaneseq
  %v4672 = vshrl.u32 %v4671, 7
  %v4673 = vsub.s32 %v4670, %v4672
  %v4674 = vrot.slane %v4506, %v4673
  %v4676 = vunpack.c.l.s4 1985246804
  %v4677 = vunpack.c.0.s8 %v4676
  %v4678 = vlaneseq
  %v4679 = vshrl.u32 %v4678, 7
  %v4680 = vsub.s32 %v4677, %v4679
  %v4681 = vrot.slane %v4506, %v4680
  %v4683 = vunpack.c.l.s4 839922192
  %v4684 = vunpack.c.0.s8 %v4683
  %v4685 = vlaneseq
  %v4686 = vshrl.u32 %v4685, 7
  %v4687 = vsub.s32 %v4684, %v4686
  %v4688 = vrot.slane %v4507, %v4687
  %v4690 = vunpack.c.l.s4 1985246804
  %v4691 = vunpack.c.0.s8 %v4690
  %v4692 = vlaneseq
  %v4693 = vshrl.u32 %v4692, 7
  %v4694 = vsub.s32 %v4691, %v4693
  %v4695 = vrot.slane %v4507, %v4694
  %v4697 = vunpack.c.l.s4 839922192
  %v4698 = vunpack.c.0.s8 %v4697
  %v4699 = vlaneseq
  %v4700 = vshrl.u32 %v4699, 7
  %v4701 = vsub.s32 %v4698, %v4700
  %v4702 = vrot.slane %v4508, %v4701
  %v4704 = vunpack.c.l.s4 1985246804
  %v4705 = vunpack.c.0.s8 %v4704
  %v4706 = vlaneseq
  %v4707 = vshrl.u32 %v4706, 7
  %v4708 = vsub.s32 %v4705, %v4707
  %v4709 = vrot.slane %v4508, %v4708
  %v4711 = vunpack.c.l.s4 839922192
  %v4712 = vunpack.c.0.s8 %v4711
  %v4713 = vlaneseq
  %v4714 = vshrl.u32 %v4713, 7
  %v4715 = vsub.s32 %v4712, %v4714
  %v4716 = vrot.slane %v4509, %v4715
  %v4718 = vunpack.c.l.s4 1985246804
  %v4719 = vunpack.c.0.s8 %v4718
  %v4720 = vlaneseq
  %v4721 = vshrl.u32 %v4720, 7
  %v4722 = vsub.s32 %v4719, %v4721
  %v4723 = vrot.slane %v4509, %v4722
  %v4725 = vunpack.c.l.s4 839922192
  %v4726 = vunpack.c.0.s8 %v4725
  %v4727 = vlaneseq
  %v4728 = vshrl.u32 %v4727, 7
  %v4729 = vsub.s32 %v4726, %v4728
  %v4730 = vrot.slane %v4510, %v4729
  %v4732 = vunpack.c.l.s4 1985246804
  %v4733 = vunpack.c.0.s8 %v4732
  %v4734 = vlaneseq
  %v4735 = vshrl.u32 %v4734, 7
  %v4736 = vsub.s32 %v4733, %v4735
  %v4737 = vrot.slane %v4510, %v4736
  %v4739 = vunpack.c.l.s4 839922192
  %v4740 = vunpack.c.0.s8 %v4739
  %v4741 = vlaneseq
  %v4742 = vshrl.u32 %v4741, 7
  %v4743 = vsub.s32 %v4740, %v4742
  %v4744 = vrot.slane %v4511, %v4743
  %v4746 = vunpack.c.l.s4 1985246804
  %v4747 = vunpack.c.0.s8 %v4746
  %v4748 = vlaneseq
  %v4749 = vshrl.u32 %v4748, 7
  %v4750 = vsub.s32 %v4747, %v4749
  %v4751 = vrot.slane %v4511, %v4750
  %v4784 = vmul.f32 %v4288, %v4534
  %v4785 = vmul.f32 %v4289, %v4541
  %v4786 = vmul.f32 %v4290, %v4548
  %v4787 = vmul.f32 %v4291, %v4555
  %v4788 = vmul.f32 %v4292, %v4562
  %v4789 = vmul.f32 %v4293, %v4569
  %v4790 = vmul.f32 %v4294, %v4576
  %v4791 = vmul.f32 %v4295, %v4583
  %v4792 = vmul.f32 %v4296, %v4590
  %v4793 = vmul.f32 %v4297, %v4597
  %v4794 = vmul.f32 %v4298, %v4604
  %v4795 = vmul.f32 %v4299, %v4611
  %v4796 = vmul.f32 %v4300, %v4618
  %v4797 = vmul.f32 %v4301, %v4625
  %v4798 = vmul.f32 %v4302, %v4632
  %v4799 = vmul.f32 %v4303, %v4639
  %v4800 = vmul.f32 %v4304, %v4646
  %v4801 = vmul.f32 %v4305, %v4653
  %v4802 = vmul.f32 %v4306, %v4660
  %v4803 = vmul.f32 %v4307, %v4667
  %v4804 = vmul.f32 %v4308, %v4674
  %v4805 = vmul.f32 %v4309, %v4681
  %v4806 = vmul.f32 %v4310, %v4688
  %v4807 = vmul.f32 %v4311, %v4695
  %v4808 = vmul.f32 %v4312, %v4702
  %v4809 = vmul.f32 %v4313, %v4709
  %v4810 = vmul.f32 %v4314, %v4716
  %v4811 = vmul.f32 %v4315, %v4723
  %v4812 = vmul.f32 %v4316, %v4730
  %v4813 = vmul.f32 %v4317, %v4737
  %v4814 = vmul.f32 %v4318, %v4744
  %v4815 = vmul.f32 %v4319, %v4751
  %v4817 = vlaneseq
  %v4818 = vshrl.u32 %v4817, 7
  %v4819 = vsub.s32 0, %v4818
  %v4820 = vrot.slane %v3884, %v4819
  %v4822 = vcombine.high %v4820, %v4820
  %v4824 = vmul.f32 %v4784, %v4820
  %v4825 = vmul.f32 %v4785, %v4822
  %v4826 = vmul.f32 %v4786, %v4820
  %v4827 = vmul.f32 %v4787, %v4822
  %v4828 = vmul.f32 %v4788, %v4820
  %v4829 = vmul.f32 %v4789, %v4822
  %v4830 = vmul.f32 %v4790, %v4820
  %v4831 = vmul.f32 %v4791, %v4822
  %v4832 = vmul.f32 %v4792, %v4820
  %v4833 = vmul.f32 %v4793, %v4822
  %v4834 = vmul.f32 %v4794, %v4820
  %v4835 = vmul.f32 %v4795, %v4822
  %v4836 = vmul.f32 %v4796, %v4820
  %v4837 = vmul.f32 %v4797, %v4822
  %v4838 = vmul.f32 %v4798, %v4820
  %v4839 = vmul.f32 %v4799, %v4822
  %v4840 = vmul.f32 %v4800, %v4820
  %v4841 = vmul.f32 %v4801, %v4822
  %v4842 = vmul.f32 %v4802, %v4820
  %v4843 = vmul.f32 %v4803, %v4822
  %v4844 = vmul.f32 %v4804, %v4820
  %v4845 = vmul.f32 %v4805, %v4822
  %v4846 = vmul.f32 %v4806, %v4820
  %v4847 = vmul.f32 %v4807, %v4822
  %v4848 = vmul.f32 %v4808, %v4820
  %v4849 = vmul.f32 %v4809, %v4822
  %v4850 = vmul.f32 %v4810, %v4820
  %v4851 = vmul.f32 %v4811, %v4822
  %v4852 = vmul.f32 %v4812, %v4820
  %v4853 = vmul.f32 %v4813, %v4822
  %v4854 = vmul.f32 %v4814, %v4820
  %v4855 = vmul.f32 %v4815, %v4822
  %v4857 = vlaneseq
  %v4858 = vshrl.u32 %v4857, 7
  %v4859 = vsub.s32 0, %v4858
  %v4860 = vrot.slane %v3885, %v4859
  %v4862 = vcombine.high %v4860, %v4860
  %v4864 = vadd.f32 %v4824, %v4860
  %v4865 = vadd.f32 %v4825, %v4862
  %v4866 = vadd.f32 %v4826, %v4860
  %v4867 = vadd.f32 %v4827, %v4862
  %v4868 = vadd.f32 %v4828, %v4860
  %v4869 = vadd.f32 %v4829, %v4862
  %v4870 = vadd.f32 %v4830, %v4860
  %v4871 = vadd.f32 %v4831, %v4862
  %v4872 = vadd.f32 %v4832, %v4860
  %v4873 = vadd.f32 %v4833, %v4862
  %v4874 = vadd.f32 %v4834, %v4860
  %v4875 = vadd.f32 %v4835, %v4862
  %v4876 = vadd.f32 %v4836, %v4860
  %v4877 = vadd.f32 %v4837, %v4862
  %v4878 = vadd.f32 %v4838, %v4860
  %v4879 = vadd.f32 %v4839, %v4862
  %v4880 = vadd.f32 %v4840, %v4860
  %v4881 = vadd.f32 %v4841, %v4862
  %v4882 = vadd.f32 %v4842, %v4860
  %v4883 = vadd.f32 %v4843, %v4862
  %v4884 = vadd.f32 %v4844, %v4860
  %v4885 = vadd.f32 %v4845, %v4862
  %v4886 = vadd.f32 %v4846, %v4860
  %v4887 = vadd.f32 %v4847, %v4862
  %v4888 = vadd.f32 %v4848, %v4860
  %v4889 = vadd.f32 %v4849, %v4862
  %v4890 = vadd.f32 %v4850, %v4860
  %v4891 = vadd.f32 %v4851, %v4862
  %v4892 = vadd.f32 %v4852, %v4860
  %v4893 = vadd.f32 %v4853, %v4862
  %v4894 = vadd.f32 %v4854, %v4860
  %v4895 = vadd.f32 %v4855, %v4862
  %v4928 = vcombine.low %v4864, %v4865
  %v4929 = vcombine.low %v4866, %v4867
  %v4930 = vcombine.low %v4868, %v4869
  %v4931 = vcombine.low %v4870, %v4871
  %v4932 = vcombine.low %v4872, %v4873
  %v4933 = vcombine.low %v4874, %v4875
  %v4934 = vcombine.low %v4876, %v4877
  %v4935 = vcombine.low %v4878, %v4879
  %v4936 = vcombine.low %v4880, %v4881
  %v4937 = vcombine.low %v4882, %v4883
  %v4938 = vcombine.low %v4884, %v4885
  %v4939 = vcombine.low %v4886, %v4887
  %v4940 = vcombine.low %v4888, %v4889
  %v4941 = vcombine.low %v4890, %v4891
  %v4942 = vcombine.low %v4892, %v4893
  %v4943 = vcombine.low %v4894, %v4895
  %v4960 = vpack.c.bf16 %v4929, %v4928
  %v4961 = vpack.c.bf16 %v4931, %v4930
  %v4962 = vpack.c.bf16 %v4933, %v4932
  %v4963 = vpack.c.bf16 %v4935, %v4934
  %v4964 = vpack.c.bf16 %v4937, %v4936
  %v4965 = vpack.c.bf16 %v4939, %v4938
  %v4966 = vpack.c.bf16 %v4941, %v4940
  %v4967 = vpack.c.bf16 %v4943, %v4942
  %v4968 = vld [vmem:[%s3] sm:$0xff]
  %v4969 = vld [vmem:[%s3 + $0x8] sm:$0xff]
  %v4970 = vld [vmem:[%s3 + $0x10] sm:$0xff]
  %v4971 = vld [vmem:[%s3 + $0x18] sm:$0xff]
  %v4972 = vld [vmem:[%s3 + $0x20] sm:$0xff]
  %v4973 = vld [vmem:[%s3 + $0x28] sm:$0xff]
  %v4974 = vld [vmem:[%s3 + $0x30] sm:$0xff]
  %v4975 = vld [vmem:[%s3 + $0x38] sm:$0xff]
  %v4976 = vld [vmem:[%s3 + $0x40] sm:$0xff]
  %v4977 = vld [vmem:[%s3 + $0x48] sm:$0xff]
  %v4978 = vld [vmem:[%s3 + $0x50] sm:$0xff]
  %v4979 = vld [vmem:[%s3 + $0x58] sm:$0xff]
  %v4980 = vld [vmem:[%s3 + $0x60] sm:$0xff]
  %v4981 = vld [vmem:[%s3 + $0x68] sm:$0xff]
  %v4982 = vld [vmem:[%s3 + $0x70] sm:$0xff]
  %v4983 = vld [vmem:[%s3 + $0x78] sm:$0xff]
  %v4984 = vpack.c.bf16 %v4970, %v4968
  %v4985 = vpack.c.bf16 %v4971, %v4969
  %v4986 = vpack.c.bf16 %v4974, %v4972
  %v4987 = vpack.c.bf16 %v4975, %v4973
  %v4988 = vpack.c.bf16 %v4978, %v4976
  %v4989 = vpack.c.bf16 %v4979, %v4977
  %v4990 = vpack.c.bf16 %v4982, %v4980
  %v4991 = vpack.c.bf16 %v4983, %v4981
  %v4993 = vsel %vm3950, %v4960, 0
  %v4996 = vsel %vm3950, %v4961, 0
  %v4999 = vsel %vm3950, %v4962, 0
  %v5002 = vsel %vm3950, %v4963, 0
  %v5005 = vsel %vm3950, %v4964, 0
  %v5008 = vsel %vm3950, %v4965, 0
  %v5011 = vsel %vm3950, %v4966, 0
  %v5014 = vsel %vm3950, %v4967, 0
  %5016 = vmatprep.subr.bf16.mxu0 %v4985
  %5017 = vmatpush1.bf16.msra.mxu0 %v4984
  %5018 = vmatprep.subr.bf16.mxu0 %v4987
  %5019 = vmatpush1.bf16.msra.mxu0 %v4986
  %5020 = vmatprep.subr.bf16.mxu0 %v4989
  %5021 = vmatpush1.bf16.msra.mxu0 %v4988
  %5022 = vmatprep.subr.bf16.mxu0 %v4991
  %5023 = vmatpush1.bf16.msra.mxu0 %v4990
  %5024 = vmatprep.subr.bf16.mxu0 0
  %5025 = vmatpush1.bf16.msra.mxu0 0
  %5026 = vmatprep.subr.bf16.mxu0 0
  %5027 = vmatpush1.bf16.msra.mxu0 0
  %5028 = vmatprep.subr.bf16.mxu0 0
  %5029 = vmatpush1.bf16.msra.mxu0 0
  %5030 = vmatprep.subr.bf16.mxu0 0
  %5031 = vmatpush1.bf16.msra.mxu0 0
  %5032 = vmatprep.subr.bf16.mxu0 0
  %5033 = vmatpush1.bf16.msra.mxu0 0
  %5034 = vmatprep.subr.bf16.mxu0 0
  %5035 = vmatpush1.bf16.msra.mxu0 0
  %5036 = vmatprep.subr.bf16.mxu0 0
  %5037 = vmatpush1.bf16.msra.mxu0 0
  %5038 = vmatprep.subr.bf16.mxu0 0
  %5039 = vmatpush1.bf16.msra.mxu0 0
  %5040 = vmatprep.subr.bf16.mxu0 0
  %5041 = vmatpush1.bf16.msra.mxu0 0
  %5042 = vmatprep.subr.bf16.mxu0 0
  %5043 = vmatpush1.bf16.msra.mxu0 0
  %5044 = vmatprep.subr.bf16.mxu0 0
  %5045 = vmatpush1.bf16.msra.mxu0 0
  %5046 = vmatprep.subr.bf16.mxu0 0
  %5047 = vmatpush1.bf16.msra.mxu0 0
  %5048 = vmatprep.mubr.bf16.mxu0 0
  %5049 = vmatmul.mubr.bf16.gmra.mrb[0].mxu0 %v4993
  %v5050 = vpop.f32.mrb[0].mxu0
  %v5051 = vadd.f32 0.0, %v5050
  %v5052 = vpop.f32.mrb[0].mxu0
  %v5053 = vadd.f32 0.0, %v5052
  %v5054 = vpop.f32.mrb[0].mxu0
  %v5055 = vadd.f32 0.0, %v5054
  %v5056 = vpop.f32.mrb[0].mxu0
  %v5057 = vadd.f32 0.0, %v5056
  %5058 = vmatprep.mubr.bf16.mxu0 0
  %5059 = vmatmul.mubr.bf16.gmra.mrb[0].mxu0 %v4996
  %v5060 = vpop.f32.mrb[0].mxu0
  %v5061 = vadd.f32 0.0, %v5060
  %v5062 = vpop.f32.mrb[0].mxu0
  %v5063 = vadd.f32 0.0, %v5062
  %v5064 = vpop.f32.mrb[0].mxu0
  %v5065 = vadd.f32 0.0, %v5064
  %v5066 = vpop.f32.mrb[0].mxu0
  %v5067 = vadd.f32 0.0, %v5066
  %5068 = vmatprep.mubr.bf16.mxu0 0
  %5069 = vmatmul.mubr.bf16.gmra.mrb[0].mxu0 %v4999
  %v5070 = vpop.f32.mrb[0].mxu0
  %v5071 = vadd.f32 0.0, %v5070
  %v5072 = vpop.f32.mrb[0].mxu0
  %v5073 = vadd.f32 0.0, %v5072
  %v5074 = vpop.f32.mrb[0].mxu0
  %v5075 = vadd.f32 0.0, %v5074
  %v5076 = vpop.f32.mrb[0].mxu0
  %v5077 = vadd.f32 0.0, %v5076
  %5078 = vmatprep.mubr.bf16.mxu0 0
  %5079 = vmatmul.mubr.bf16.gmra.mrb[0].mxu0 %v5002
  %v5080 = vpop.f32.mrb[0].mxu0
  %v5081 = vadd.f32 0.0, %v5080
  %v5082 = vpop.f32.mrb[0].mxu0
  %v5083 = vadd.f32 0.0, %v5082
  %v5084 = vpop.f32.mrb[0].mxu0
  %v5085 = vadd.f32 0.0, %v5084
  %v5086 = vpop.f32.mrb[0].mxu0
  %v5087 = vadd.f32 0.0, %v5086
  %5088 = vmatprep.mubr.bf16.mxu0 0
  %5089 = vmatmul.mubr.bf16.gmra.mrb[0].mxu0 %v5005
  %v5090 = vpop.f32.mrb[0].mxu0
  %v5091 = vadd.f32 0.0, %v5090
  %v5092 = vpop.f32.mrb[0].mxu0
  %v5093 = vadd.f32 0.0, %v5092
  %v5094 = vpop.f32.mrb[0].mxu0
  %v5095 = vadd.f32 0.0, %v5094
  %v5096 = vpop.f32.mrb[0].mxu0
  %v5097 = vadd.f32 0.0, %v5096
  %5098 = vmatprep.mubr.bf16.mxu0 0
  %5099 = vmatmul.mubr.bf16.gmra.mrb[0].mxu0 %v5008
  %v5100 = vpop.f32.mrb[0].mxu0
  %v5101 = vadd.f32 0.0, %v5100
  %v5102 = vpop.f32.mrb[0].mxu0
  %v5103 = vadd.f32 0.0, %v5102
  %v5104 = vpop.f32.mrb[0].mxu0
  %v5105 = vadd.f32 0.0, %v5104
  %v5106 = vpop.f32.mrb[0].mxu0
  %v5107 = vadd.f32 0.0, %v5106
  %5108 = vmatprep.mubr.bf16.mxu0 0
  %5109 = vmatmul.mubr.bf16.gmra.mrb[0].mxu0 %v5011
  %v5110 = vpop.f32.mrb[0].mxu0
  %v5111 = vadd.f32 0.0, %v5110
  %v5112 = vpop.f32.mrb[0].mxu0
  %v5113 = vadd.f32 0.0, %v5112
  %v5114 = vpop.f32.mrb[0].mxu0
  %v5115 = vadd.f32 0.0, %v5114
  %v5116 = vpop.f32.mrb[0].mxu0
  %v5117 = vadd.f32 0.0, %v5116
  %5118 = vmatprep.mubr.bf16.mxu0 0
  %5119 = vmatmul.mubr.bf16.gmra.mrb[0].mxu0 %v5014
  %v5120 = vpop.f32.mrb[0].mxu0
  %v5121 = vadd.f32 0.0, %v5120
  %v5122 = vpop.f32.mrb[0].mxu0
  %v5123 = vadd.f32 0.0, %v5122
  %v5124 = vpop.f32.mrb[0].mxu0
  %v5125 = vadd.f32 0.0, %v5124
  %v5126 = vpop.f32.mrb[0].mxu0
  %v5127 = vadd.f32 0.0, %v5126
  %5128 = vdwg.mxu0
  %v5129 = vpack.c.bf16 %v5055, %v5051
  %v5130 = vpack.c.bf16 %v5057, %v5053
  %v5131 = vpack.c.bf16 %v5065, %v5061
  %v5132 = vpack.c.bf16 %v5067, %v5063
  %v5133 = vpack.c.bf16 %v5075, %v5071
  %v5134 = vpack.c.bf16 %v5077, %v5073
  %v5135 = vpack.c.bf16 %v5085, %v5081
  %v5136 = vpack.c.bf16 %v5087, %v5083
  %v5137 = vpack.c.bf16 %v5095, %v5091
  %v5138 = vpack.c.bf16 %v5097, %v5093
  %v5139 = vpack.c.bf16 %v5105, %v5101
  %v5140 = vpack.c.bf16 %v5107, %v5103
  %v5141 = vpack.c.bf16 %v5115, %v5111
  %v5142 = vpack.c.bf16 %v5117, %v5113
  %v5143 = vpack.c.bf16 %v5125, %v5121
  %v5144 = vpack.c.bf16 %v5127, %v5123
  %5149 = vrot.lane.b32.xlu0 %v5129, 64
  %v5150 = vpop.permute.xlu0 %5149
  %5151 = vrot.lane.b32.xlu0 %v5131, 64
  %v5152 = vpop.permute.xlu0 %5151
  %5153 = vrot.lane.b32.xlu0 %v5133, 64
  %v5154 = vpop.permute.xlu0 %5153
  %5155 = vrot.lane.b32.xlu0 %v5135, 64
  %v5156 = vpop.permute.xlu0 %5155
  %vm5157 = vcmask 64512
  %v5159 = vsel %vm5157, %v5129, 0
  %v5162 = vsel %vm5157, %v5131, 0
  %v5165 = vsel %vm5157, %v5133, 0
  %v5168 = vsel %vm5157, %v5135, 0
  %v5171 = vsel %vm5157, %v5150, 0
  %v5174 = vsel %vm5157, %v5152, 0
  %v5177 = vsel %vm5157, %v5154, 0
  %v5180 = vsel %vm5157, %v5156, 0
  %5182 = vmatprep.subr.bf16.mxu0 0
  %5183 = vmatpush1.bf16.xpose.msra.mxu0 %v5171
  %5184 = vmatprep.subr.bf16.mxu0 0
  %5185 = vmatpush1.bf16.xpose.msra.mxu0 %v5174
  %5186 = vmatprep.subr.bf16.mxu0 0
  %5187 = vmatpush1.bf16.xpose.msra.mxu0 %v5177
  %5188 = vmatprep.subr.bf16.mxu0 0
  %5189 = vmatpush1.bf16.xpose.msra.mxu0 %v5180
  %5190 = vmatprep.subr.bf16.mxu0 0
  %5191 = vmatpush1.bf16.xpose.msra.mxu0 0
  %5192 = vmatprep.subr.bf16.mxu0 0
  %5193 = vmatpush1.bf16.xpose.msra.mxu0 0
  %5194 = vmatprep.subr.bf16.mxu0 0
  %5195 = vmatpush1.bf16.xpose.msra.mxu0 0
  %5196 = vmatprep.subr.bf16.mxu0 0
  %5197 = vmatpush1.bf16.xpose.msra.mxu0 0
  %5198 = vmatprep.subr.bf16.mxu0 0
  %5199 = vmatpush1.bf16.xpose.msra.mxu0 0
  %5200 = vmatprep.subr.bf16.mxu0 0
  %5201 = vmatpush1.bf16.xpose.msra.mxu0 0
  %5202 = vmatprep.subr.bf16.mxu0 0
  %5203 = vmatpush1.bf16.xpose.msra.mxu0 0
  %5204 = vmatprep.subr.bf16.mxu0 0
  %5205 = vmatpush1.bf16.xpose.msra.mxu0 0
  %5206 = vmatprep.subr.bf16.mxu0 0
  %5207 = vmatpush1.bf16.xpose.msra.mxu0 0
  %5208 = vmatprep.subr.bf16.mxu0 0
  %5209 = vmatpush1.bf16.xpose.msra.mxu0 0
  %5210 = vmatprep.subr.bf16.mxu0 0
  %5211 = vmatpush1.bf16.xpose.msra.mxu0 0
  %5212 = vmatprep.subr.bf16.mxu0 0
  %5213 = vmatpush1.bf16.xpose.msra.mxu0 0
  %5214 = vmatprep.mubr.bf16.mxu0 0
  %5215 = vmatmul.mubr.bf16.gmra.mrb[0].mxu0 %v5159
  %v5216 = vpop.f32.mrb[0].mxu0
  %v5217 = vadd.f32 0.0, %v5216
  %v5218 = vpop.f32.mrb[0].mxu0
  %v5219 = vpop.f32.mrb[0].mxu0
  %v5220 = vadd.f32 0.0, %v5219
  %v5221 = vpop.f32.mrb[0].mxu0
  %5222 = vmatprep.mubr.bf16.mxu0 0
  %5223 = vmatmul.mubr.bf16.gmra.mrb[0].mxu0 %v5162
  %v5224 = vpop.f32.mrb[0].mxu0
  %v5225 = vadd.f32 0.0, %v5224
  %v5226 = vpop.f32.mrb[0].mxu0
  %v5227 = vpop.f32.mrb[0].mxu0
  %v5228 = vadd.f32 0.0, %v5227
  %v5229 = vpop.f32.mrb[0].mxu0
  %5230 = vmatprep.mubr.bf16.mxu0 0
  %5231 = vmatmul.mubr.bf16.gmra.mrb[0].mxu0 %v5165
  %v5232 = vpop.f32.mrb[0].mxu0
  %v5233 = vadd.f32 0.0, %v5232
  %v5234 = vpop.f32.mrb[0].mxu0
  %v5235 = vpop.f32.mrb[0].mxu0
  %v5236 = vadd.f32 0.0, %v5235
  %v5237 = vpop.f32.mrb[0].mxu0
  %5238 = vmatprep.mubr.bf16.mxu0 0
  %5239 = vmatmul.mubr.bf16.gmra.mrb[0].mxu0 %v5168
  %v5240 = vpop.f32.mrb[0].mxu0
  %v5241 = vadd.f32 0.0, %v5240
  %v5242 = vpop.f32.mrb[0].mxu0
  %v5243 = vpop.f32.mrb[0].mxu0
  %v5244 = vadd.f32 0.0, %v5243
  %v5245 = vpop.f32.mrb[0].mxu0
  %5246 = vdwg.mxu0
  %5251 = vrot.lane.b32.xlu0 %v5137, 64
  %v5252 = vpop.permute.xlu0 %5251
  %5253 = vrot.lane.b32.xlu0 %v5139, 64
  %v5254 = vpop.permute.xlu0 %5253
  %5255 = vrot.lane.b32.xlu0 %v5141, 64
  %v5256 = vpop.permute.xlu0 %5255
  %5257 = vrot.lane.b32.xlu0 %v5143, 64
  %v5258 = vpop.permute.xlu0 %5257
  %v5260 = vsel %vm5157, %v5137, 0
  %v5263 = vsel %vm5157, %v5139, 0
  %v5266 = vsel %vm5157, %v5141, 0
  %v5269 = vsel %vm5157, %v5143, 0
  %v5272 = vsel %vm5157, %v5252, 0
  %v5275 = vsel %vm5157, %v5254, 0
  %v5278 = vsel %vm5157, %v5256, 0
  %v5281 = vsel %vm5157, %v5258, 0
  %5283 = vmatprep.subr.bf16.mxu0 0
  %5284 = vmatpush1.bf16.xpose.msra.mxu0 %v5272
  %5285 = vmatprep.subr.bf16.mxu0 0
  %5286 = vmatpush1.bf16.xpose.msra.mxu0 %v5275
  %5287 = vmatprep.subr.bf16.mxu0 0
  %5288 = vmatpush1.bf16.xpose.msra.mxu0 %v5278
  %5289 = vmatprep.subr.bf16.mxu0 0
  %5290 = vmatpush1.bf16.xpose.msra.mxu0 %v5281
  %5291 = vmatprep.subr.bf16.mxu0 0
  %5292 = vmatpush1.bf16.xpose.msra.mxu0 0
  %5293 = vmatprep.subr.bf16.mxu0 0
  %5294 = vmatpush1.bf16.xpose.msra.mxu0 0
  %5295 = vmatprep.subr.bf16.mxu0 0
  %5296 = vmatpush1.bf16.xpose.msra.mxu0 0
  %5297 = vmatprep.subr.bf16.mxu0 0
  %5298 = vmatpush1.bf16.xpose.msra.mxu0 0
  %5299 = vmatprep.subr.bf16.mxu0 0
  %5300 = vmatpush1.bf16.xpose.msra.mxu0 0
  %5301 = vmatprep.subr.bf16.mxu0 0
  %5302 = vmatpush1.bf16.xpose.msra.mxu0 0
  %5303 = vmatprep.subr.bf16.mxu0 0
  %5304 = vmatpush1.bf16.xpose.msra.mxu0 0
  %5305 = vmatprep.subr.bf16.mxu0 0
  %5306 = vmatpush1.bf16.xpose.msra.mxu0 0
  %5307 = vmatprep.subr.bf16.mxu0 0
  %5308 = vmatpush1.bf16.xpose.msra.mxu0 0
  %5309 = vmatprep.subr.bf16.mxu0 0
  %5310 = vmatpush1.bf16.xpose.msra.mxu0 0
  %5311 = vmatprep.subr.bf16.mxu0 0
  %5312 = vmatpush1.bf16.xpose.msra.mxu0 0
  %5313 = vmatprep.subr.bf16.mxu0 0
  %5314 = vmatpush1.bf16.xpose.msra.mxu0 0
  %5315 = vmatprep.mubr.bf16.mxu0 0
  %5316 = vmatmul.mubr.bf16.gmra.mrb[0].mxu0 %v5260
  %v5317 = vpop.f32.mrb[0].mxu0
  %v5318 = vadd.f32 0.0, %v5317
  %v5319 = vpop.f32.mrb[0].mxu0
  %v5320 = vpop.f32.mrb[0].mxu0
  %v5321 = vadd.f32 0.0, %v5320
  %v5322 = vpop.f32.mrb[0].mxu0
  %5323 = vmatprep.mubr.bf16.mxu0 0
  %5324 = vmatmul.mubr.bf16.gmra.mrb[0].mxu0 %v5263
  %v5325 = vpop.f32.mrb[0].mxu0
  %v5326 = vadd.f32 0.0, %v5325
  %v5327 = vpop.f32.mrb[0].mxu0
  %v5328 = vpop.f32.mrb[0].mxu0
  %v5329 = vadd.f32 0.0, %v5328
  %v5330 = vpop.f32.mrb[0].mxu0
  %5331 = vmatprep.mubr.bf16.mxu0 0
  %5332 = vmatmul.mubr.bf16.gmra.mrb[0].mxu0 %v5266
  %v5333 = vpop.f32.mrb[0].mxu0
  %v5334 = vadd.f32 0.0, %v5333
  %v5335 = vpop.f32.mrb[0].mxu0
  %v5336 = vpop.f32.mrb[0].mxu0
  %v5337 = vadd.f32 0.0, %v5336
  %v5338 = vpop.f32.mrb[0].mxu0
  %5339 = vmatprep.mubr.bf16.mxu0 0
  %5340 = vmatmul.mubr.bf16.gmra.mrb[0].mxu0 %v5269
  %v5341 = vpop.f32.mrb[0].mxu0
  %v5342 = vadd.f32 0.0, %v5341
  %v5343 = vpop.f32.mrb[0].mxu0
  %v5344 = vpop.f32.mrb[0].mxu0
  %v5345 = vadd.f32 0.0, %v5344
  %v5346 = vpop.f32.mrb[0].mxu0
  %5347 = vdwg.mxu0
  %v5348 = vmul.f32 %v5217, 0.35355338
  %v5349 = vmul.f32 %v5220, 0.35355338
  %v5350 = vmul.f32 %v5225, 0.35355338
  %v5351 = vmul.f32 %v5228, 0.35355338
  %v5352 = vmul.f32 %v5233, 0.35355338
  %v5353 = vmul.f32 %v5236, 0.35355338
  %v5354 = vmul.f32 %v5241, 0.35355338
  %v5355 = vmul.f32 %v5244, 0.35355338
  %v5356 = vmul.f32 %v5318, 0.35355338
  %v5357 = vmul.f32 %v5321, 0.35355338
  %v5358 = vmul.f32 %v5326, 0.35355338
  %v5359 = vmul.f32 %v5329, 0.35355338
  %v5360 = vmul.f32 %v5334, 0.35355338
  %v5361 = vmul.f32 %v5337, 0.35355338
  %v5362 = vmul.f32 %v5342, 0.35355338
  %v5363 = vmul.f32 %v5345, 0.35355338
  %v5364 = vsel %vm3950, %v5348, -inf
  %5365 = vmax.xlane.f32.xlu0 %v5364
  %v5366 = vpop.xlane.xlu0 %5365
  %v5367 = vsel %vm3950, %v5349, -inf
  %5368 = vmax.xlane.f32.xlu0 %v5367
  %v5369 = vpop.xlane.xlu0 %5368
  %v5370 = vsel %vm3950, %v5350, -inf
  %5371 = vmax.xlane.f32.xlu0 %v5370
  %v5372 = vpop.xlane.xlu0 %5371
  %v5373 = vsel %vm3950, %v5351, -inf
  %5374 = vmax.xlane.f32.xlu0 %v5373
  %v5375 = vpop.xlane.xlu0 %5374
  %v5376 = vsel %vm3950, %v5352, -inf
  %5377 = vmax.xlane.f32.xlu0 %v5376
  %v5378 = vpop.xlane.xlu0 %5377
  %v5379 = vsel %vm3950, %v5353, -inf
  %5380 = vmax.xlane.f32.xlu0 %v5379
  %v5381 = vpop.xlane.xlu0 %5380
  %v5382 = vsel %vm3950, %v5354, -inf
  %5383 = vmax.xlane.f32.xlu0 %v5382
  %v5384 = vpop.xlane.xlu0 %5383
  %v5385 = vsel %vm3950, %v5355, -inf
  %5386 = vmax.xlane.f32.xlu0 %v5385
  %v5387 = vpop.xlane.xlu0 %5386
  %v5388 = vsel %vm3950, %v5356, -inf
  %5389 = vmax.xlane.f32.xlu0 %v5388
  %v5390 = vpop.xlane.xlu0 %5389
  %v5391 = vsel %vm3950, %v5357, -inf
  %5392 = vmax.xlane.f32.xlu0 %v5391
  %v5393 = vpop.xlane.xlu0 %5392
  %v5394 = vsel %vm3950, %v5358, -inf
  %5395 = vmax.xlane.f32.xlu0 %v5394
  %v5396 = vpop.xlane.xlu0 %5395
  %v5397 = vsel %vm3950, %v5359, -inf
  %5398 = vmax.xlane.f32.xlu0 %v5397
  %v5399 = vpop.xlane.xlu0 %5398
  %v5400 = vsel %vm3950, %v5360, -inf
  %5401 = vmax.xlane.f32.xlu0 %v5400
  %v5402 = vpop.xlane.xlu0 %5401
  %v5403 = vsel %vm3950, %v5361, -inf
  %5404 = vmax.xlane.f32.xlu0 %v5403
  %v5405 = vpop.xlane.xlu0 %5404
  %v5406 = vsel %vm3950, %v5362, -inf
  %5407 = vmax.xlane.f32.xlu0 %v5406
  %v5408 = vpop.xlane.xlu0 %5407
  %v5409 = vsel %vm3950, %v5363, -inf
  %5410 = vmax.xlane.f32.xlu0 %v5409
  %v5411 = vpop.xlane.xlu0 %5410
  %v5412 = vsub.f32 %v5348, %v5366
  %v5413 = vsub.f32 %v5349, %v5369
  %v5414 = vsub.f32 %v5350, %v5372
  %v5415 = vsub.f32 %v5351, %v5375
  %v5416 = vsub.f32 %v5352, %v5378
  %v5417 = vsub.f32 %v5353, %v5381
  %v5418 = vsub.f32 %v5354, %v5384
  %v5419 = vsub.f32 %v5355, %v5387
  %v5420 = vsub.f32 %v5356, %v5390
  %v5421 = vsub.f32 %v5357, %v5393
  %v5422 = vsub.f32 %v5358, %v5396
  %v5423 = vsub.f32 %v5359, %v5399
  %v5424 = vsub.f32 %v5360, %v5402
  %v5425 = vsub.f32 %v5361, %v5405
  %v5426 = vsub.f32 %v5362, %v5408
  %v5427 = vsub.f32 %v5363, %v5411
  %v5428 = vmul.f32 %v5412, 1.442695
  %v5429 = vpow.pop %v5428
  %v5430 = vmul.f32 %v5413, 1.442695
  %v5431 = vpow.pop %v5430
  %v5432 = vmul.f32 %v5414, 1.442695
  %v5433 = vpow.pop %v5432
  %v5434 = vmul.f32 %v5415, 1.442695
  %v5435 = vpow.pop %v5434
  %v5436 = vmul.f32 %v5416, 1.442695
  %v5437 = vpow.pop %v5436
  %v5438 = vmul.f32 %v5417, 1.442695
  %v5439 = vpow.pop %v5438
  %v5440 = vmul.f32 %v5418, 1.442695
  %v5441 = vpow.pop %v5440
  %v5442 = vmul.f32 %v5419, 1.442695
  %v5443 = vpow.pop %v5442
  %v5444 = vmul.f32 %v5420, 1.442695
  %v5445 = vpow.pop %v5444
  %v5446 = vmul.f32 %v5421, 1.442695
  %v5447 = vpow.pop %v5446
  %v5448 = vmul.f32 %v5422, 1.442695
  %v5449 = vpow.pop %v5448
  %v5450 = vmul.f32 %v5423, 1.442695
  %v5451 = vpow.pop %v5450
  %v5452 = vmul.f32 %v5424, 1.442695
  %v5453 = vpow.pop %v5452
  %v5454 = vmul.f32 %v5425, 1.442695
  %v5455 = vpow.pop %v5454
  %v5456 = vmul.f32 %v5426, 1.442695
  %v5457 = vpow.pop %v5456
  %v5458 = vmul.f32 %v5427, 1.442695
  %v5459 = vpow.pop %v5458
  %v5460 = vsel %vm3950, %v5429, 0.0
  %5461 = vadd.xlane.f32.xlu0 %v5460
  %v5462 = vpop.xlane.xlu0 %5461
  %v5463 = vsel %vm3950, %v5431, 0.0
  %5464 = vadd.xlane.f32.xlu0 %v5463
  %v5465 = vpop.xlane.xlu0 %5464
  %v5466 = vsel %vm3950, %v5433, 0.0
  %5467 = vadd.xlane.f32.xlu0 %v5466
  %v5468 = vpop.xlane.xlu0 %5467
  %v5469 = vsel %vm3950, %v5435, 0.0
  %5470 = vadd.xlane.f32.xlu0 %v5469
  %v5471 = vpop.xlane.xlu0 %5470
  %v5472 = vsel %vm3950, %v5437, 0.0
  %5473 = vadd.xlane.f32.xlu0 %v5472
  %v5474 = vpop.xlane.xlu0 %5473
  %v5475 = vsel %vm3950, %v5439, 0.0
  %5476 = vadd.xlane.f32.xlu0 %v5475
  %v5477 = vpop.xlane.xlu0 %5476
  %v5478 = vsel %vm3950, %v5441, 0.0
  %5479 = vadd.xlane.f32.xlu0 %v5478
  %v5480 = vpop.xlane.xlu0 %5479
  %v5481 = vsel %vm3950, %v5443, 0.0
  %5482 = vadd.xlane.f32.xlu0 %v5481
  %v5483 = vpop.xlane.xlu0 %5482
  %v5484 = vsel %vm3950, %v5445, 0.0
  %5485 = vadd.xlane.f32.xlu0 %v5484
  %v5486 = vpop.xlane.xlu0 %5485
  %v5487 = vsel %vm3950, %v5447, 0.0
  %5488 = vadd.xlane.f32.xlu0 %v5487
  %v5489 = vpop.xlane.xlu0 %5488
  %v5490 = vsel %vm3950, %v5449, 0.0
  %5491 = vadd.xlane.f32.xlu0 %v5490
  %v5492 = vpop.xlane.xlu0 %5491
  %v5493 = vsel %vm3950, %v5451, 0.0
  %5494 = vadd.xlane.f32.xlu0 %v5493
  %v5495 = vpop.xlane.xlu0 %5494
  %v5496 = vsel %vm3950, %v5453, 0.0
  %5497 = vadd.xlane.f32.xlu0 %v5496
  %v5498 = vpop.xlane.xlu0 %5497
  %v5499 = vsel %vm3950, %v5455, 0.0
  %5500 = vadd.xlane.f32.xlu0 %v5499
  %v5501 = vpop.xlane.xlu0 %5500
  %v5502 = vsel %vm3950, %v5457, 0.0
  %5503 = vadd.xlane.f32.xlu0 %v5502
  %v5504 = vpop.xlane.xlu0 %5503
  %v5505 = vsel %vm3950, %v5459, 0.0
  %5506 = vadd.xlane.f32.xlu0 %v5505
  %v5507 = vpop.xlane.xlu0 %5506
  %v5508 = vrcp.pop %v5462
  %v5509 = vrcp.pop %v5465
  %v5510 = vrcp.pop %v5468
  %v5511 = vrcp.pop %v5471
  %v5512 = vrcp.pop %v5474
  %v5513 = vrcp.pop %v5477
  %v5514 = vrcp.pop %v5480
  %v5515 = vrcp.pop %v5483
  %v5516 = vrcp.pop %v5486
  %v5517 = vrcp.pop %v5489
  %v5518 = vrcp.pop %v5492
  %v5519 = vrcp.pop %v5495
  %v5520 = vrcp.pop %v5498
  %v5521 = vrcp.pop %v5501
  %v5522 = vrcp.pop %v5504
  %v5523 = vrcp.pop %v5507
  %v5524 = vmul.f32 %v5429, %v5508
  %v5525 = vmul.f32 %v5431, %v5509
  %v5526 = vmul.f32 %v5433, %v5510
  %v5527 = vmul.f32 %v5435, %v5511
  %v5528 = vmul.f32 %v5437, %v5512
  %v5529 = vmul.f32 %v5439, %v5513
  %v5530 = vmul.f32 %v5441, %v5514
  %v5531 = vmul.f32 %v5443, %v5515
  %v5532 = vmul.f32 %v5445, %v5516
  %v5533 = vmul.f32 %v5447, %v5517
  %v5534 = vmul.f32 %v5449, %v5518
  %v5535 = vmul.f32 %v5451, %v5519
  %v5536 = vmul.f32 %v5453, %v5520
  %v5537 = vmul.f32 %v5455, %v5521
  %v5538 = vmul.f32 %v5457, %v5522
  %v5539 = vmul.f32 %v5459, %v5523
  %v5540 = vpack.c.bf16 %v5525, %v5524
  %v5541 = vpack.c.bf16 %v5527, %v5526
  %v5542 = vpack.c.bf16 %v5529, %v5528
  %v5543 = vpack.c.bf16 %v5531, %v5530
  %v5544 = vpack.c.bf16 %v5533, %v5532
  %v5545 = vpack.c.bf16 %v5535, %v5534
  %v5546 = vpack.c.bf16 %v5537, %v5536
  %v5547 = vpack.c.bf16 %v5539, %v5538
  %v5549 = vsel %vm3950, %v5540, 0
  %v5552 = vsel %vm3950, %v5541, 0
  %v5555 = vsel %vm3950, %v5542, 0
  %v5558 = vsel %vm3950, %v5543, 0
  %5560 = vmatprep.subr.bf16.mxu0 0
  %5561 = vmatpush1.bf16.msra.mxu0 %v5130
  %5562 = vmatprep.subr.bf16.mxu0 0
  %5563 = vmatpush1.bf16.msra.mxu0 %v5132
  %5564 = vmatprep.subr.bf16.mxu0 0
  %5565 = vmatpush1.bf16.msra.mxu0 %v5134
  %5566 = vmatprep.subr.bf16.mxu0 0
  %5567 = vmatpush1.bf16.msra.mxu0 %v5136
  %5568 = vmatprep.subr.bf16.mxu0 0
  %5569 = vmatpush1.bf16.msra.mxu0 0
  %5570 = vmatprep.subr.bf16.mxu0 0
  %5571 = vmatpush1.bf16.msra.mxu0 0
  %5572 = vmatprep.subr.bf16.mxu0 0
  %5573 = vmatpush1.bf16.msra.mxu0 0
  %5574 = vmatprep.subr.bf16.mxu0 0
  %5575 = vmatpush1.bf16.msra.mxu0 0
  %5576 = vmatprep.subr.bf16.mxu0 0
  %5577 = vmatpush1.bf16.msra.mxu0 0
  %5578 = vmatprep.subr.bf16.mxu0 0
  %5579 = vmatpush1.bf16.msra.mxu0 0
  %5580 = vmatprep.subr.bf16.mxu0 0
  %5581 = vmatpush1.bf16.msra.mxu0 0
  %5582 = vmatprep.subr.bf16.mxu0 0
  %5583 = vmatpush1.bf16.msra.mxu0 0
  %5584 = vmatprep.subr.bf16.mxu0 0
  %5585 = vmatpush1.bf16.msra.mxu0 0
  %5586 = vmatprep.subr.bf16.mxu0 0
  %5587 = vmatpush1.bf16.msra.mxu0 0
  %5588 = vmatprep.subr.bf16.mxu0 0
  %5589 = vmatpush1.bf16.msra.mxu0 0
  %5590 = vmatprep.subr.bf16.mxu0 0
  %5591 = vmatpush1.bf16.msra.mxu0 0
  %5592 = vmatprep.mubr.bf16.mxu0 0
  %5593 = vmatmul.mubr.bf16.gmra.mrb[0].mxu0 %v5549
  %v5594 = vpop.f32.mrb[0].mxu0
  %v5595 = vadd.f32 0.0, %v5594
  %v5596 = vpop.f32.mrb[0].mxu0
  %v5597 = vpop.f32.mrb[0].mxu0
  %v5598 = vadd.f32 0.0, %v5597
  %v5599 = vpop.f32.mrb[0].mxu0
  %5600 = vmatprep.mubr.bf16.mxu0 0
  %5601 = vmatmul.mubr.bf16.gmra.mrb[0].mxu0 %v5552
  %v5602 = vpop.f32.mrb[0].mxu0
  %v5603 = vadd.f32 0.0, %v5602
  %v5604 = vpop.f32.mrb[0].mxu0
  %v5605 = vpop.f32.mrb[0].mxu0
  %v5606 = vadd.f32 0.0, %v5605
  %v5607 = vpop.f32.mrb[0].mxu0
  %5608 = vmatprep.mubr.bf16.mxu0 0
  %5609 = vmatmul.mubr.bf16.gmra.mrb[0].mxu0 %v5555
  %v5610 = vpop.f32.mrb[0].mxu0
  %v5611 = vadd.f32 0.0, %v5610
  %v5612 = vpop.f32.mrb[0].mxu0
  %v5613 = vpop.f32.mrb[0].mxu0
  %v5614 = vadd.f32 0.0, %v5613
  %v5615 = vpop.f32.mrb[0].mxu0
  %5616 = vmatprep.mubr.bf16.mxu0 0
  %5617 = vmatmul.mubr.bf16.gmra.mrb[0].mxu0 %v5558
  %v5618 = vpop.f32.mrb[0].mxu0
  %v5619 = vadd.f32 0.0, %v5618
  %v5620 = vpop.f32.mrb[0].mxu0
  %v5621 = vpop.f32.mrb[0].mxu0
  %v5622 = vadd.f32 0.0, %v5621
  %v5623 = vpop.f32.mrb[0].mxu0
  %5624 = vdwg.mxu0
  %v5626 = vsel %vm3950, %v5544, 0
  %v5629 = vsel %vm3950, %v5545, 0
  %v5632 = vsel %vm3950, %v5546, 0
  %v5635 = vsel %vm3950, %v5547, 0
  %5637 = vmatprep.subr.bf16.mxu0 0
  %5638 = vmatpush1.bf16.msra.mxu0 %v5138
  %5639 = vmatprep.subr.bf16.mxu0 0
  %5640 = vmatpush1.bf16.msra.mxu0 %v5140
  %5641 = vmatprep.subr.bf16.mxu0 0
  %5642 = vmatpush1.bf16.msra.mxu0 %v5142
  %5643 = vmatprep.subr.bf16.mxu0 0
  %5644 = vmatpush1.bf16.msra.mxu0 %v5144
  %5645 = vmatprep.subr.bf16.mxu0 0
  %5646 = vmatpush1.bf16.msra.mxu0 0
  %5647 = vmatprep.subr.bf16.mxu0 0
  %5648 = vmatpush1.bf16.msra.mxu0 0
  %5649 = vmatprep.subr.bf16.mxu0 0
  %5650 = vmatpush1.bf16.msra.mxu0 0
  %5651 = vmatprep.subr.bf16.mxu0 0
  %5652 = vmatpush1.bf16.msra.mxu0 0
  %5653 = vmatprep.subr.bf16.mxu0 0
  %5654 = vmatpush1.bf16.msra.mxu0 0
  %5655 = vmatprep.subr.bf16.mxu0 0
  %5656 = vmatpush1.bf16.msra.mxu0 0
  %5657 = vmatprep.subr.bf16.mxu0 0
  %5658 = vmatpush1.bf16.msra.mxu0 0
  %5659 = vmatprep.subr.bf16.mxu0 0
  %5660 = vmatpush1.bf16.msra.mxu0 0
  %5661 = vmatprep.subr.bf16.mxu0 0
  %5662 = vmatpush1.bf16.msra.mxu0 0
  %5663 = vmatprep.subr.bf16.mxu0 0
  %5664 = vmatpush1.bf16.msra.mxu0 0
  %5665 = vmatprep.subr.bf16.mxu0 0
  %5666 = vmatpush1.bf16.msra.mxu0 0
  %5667 = vmatprep.subr.bf16.mxu0 0
  %5668 = vmatpush1.bf16.msra.mxu0 0
  %5669 = vmatprep.mubr.bf16.mxu0 0
  %5670 = vmatmul.mubr.bf16.gmra.mrb[0].mxu0 %v5626
  %v5671 = vpop.f32.mrb[0].mxu0
  %v5672 = vadd.f32 0.0, %v5671
  %v5673 = vpop.f32.mrb[0].mxu0
  %v5674 = vpop.f32.mrb[0].mxu0
  %v5675 = vadd.f32 0.0, %v5674
  %v5676 = vpop.f32.mrb[0].mxu0
  %5677 = vmatprep.mubr.bf16.mxu0 0
  %5678 = vmatmul.mubr.bf16.gmra.mrb[0].mxu0 %v5629
  %v5679 = vpop.f32.mrb[0].mxu0
  %v5680 = vadd.f32 0.0, %v5679
  %v5681 = vpop.f32.mrb[0].mxu0
  %v5682 = vpop.f32.mrb[0].mxu0
  %v5683 = vadd.f32 0.0, %v5682
  %v5684 = vpop.f32.mrb[0].mxu0
  %5685 = vmatprep.mubr.bf16.mxu0 0
  %5686 = vmatmul.mubr.bf16.gmra.mrb[0].mxu0 %v5632
  %v5687 = vpop.f32.mrb[0].mxu0
  %v5688 = vadd.f32 0.0, %v5687
  %v5689 = vpop.f32.mrb[0].mxu0
  %v5690 = vpop.f32.mrb[0].mxu0
  %v5691 = vadd.f32 0.0, %v5690
  %v5692 = vpop.f32.mrb[0].mxu0
  %5693 = vmatprep.mubr.bf16.mxu0 0
  %5694 = vmatmul.mubr.bf16.gmra.mrb[0].mxu0 %v5635
  %v5695 = vpop.f32.mrb[0].mxu0
  %v5696 = vadd.f32 0.0, %v5695
  %v5697 = vpop.f32.mrb[0].mxu0
  %v5698 = vpop.f32.mrb[0].mxu0
  %v5699 = vadd.f32 0.0, %v5698
  %v5700 = vpop.f32.mrb[0].mxu0
  %5701 = vdwg.mxu0
  %5702 = vst.msk [vmem:[#allocation2] sm:$0xff] %vm5157, %v5595
  %5703 = vst.msk [vmem:[#allocation2 + $0x8] sm:$0xff] %vm5157, %v5598
  %5704 = vst.msk [vmem:[#allocation2 + $0x10] sm:$0xff] %vm5157, %v5603
  %5705 = vst.msk [vmem:[#allocation2 + $0x18] sm:$0xff] %vm5157, %v5606
  %5706 = vst.msk [vmem:[#allocation2 + $0x20] sm:$0xff] %vm5157, %v5611
  %5707 = vst.msk [vmem:[#allocation2 + $0x28] sm:$0xff] %vm5157, %v5614
  %5708 = vst.msk [vmem:[#allocation2 + $0x30] sm:$0xff] %vm5157, %v5619
  %5709 = vst.msk [vmem:[#allocation2 + $0x38] sm:$0xff] %vm5157, %v5622
  %5710 = vst.msk [vmem:[#allocation2 + $0x40] sm:$0xff] %vm5157, %v5672
  %5711 = vst.msk [vmem:[#allocation2 + $0x48] sm:$0xff] %vm5157, %v5675
  %5712 = vst.msk [vmem:[#allocation2 + $0x50] sm:$0xff] %vm5157, %v5680
  %5713 = vst.msk [vmem:[#allocation2 + $0x58] sm:$0xff] %vm5157, %v5683
  %5714 = vst.msk [vmem:[#allocation2 + $0x60] sm:$0xff] %vm5157, %v5688
  %5715 = vst.msk [vmem:[#allocation2 + $0x68] sm:$0xff] %vm5157, %v5691
  %5716 = vst.msk [vmem:[#allocation2 + $0x70] sm:$0xff] %vm5157, %v5696
  %5717 = vst.msk [vmem:[#allocation2 + $0x78] sm:$0xff] %vm5157, %v5699
  %5718 = vrot.lane.b32.xlu0 %v5129, 120
  %v5719 = vpop.permute.xlu0 %5718
  %5720 = vrot.lane.b32.xlu0 %v5131, 120
  %v5721 = vpop.permute.xlu0 %5720
  %5722 = vrot.lane.b32.xlu0 %v5133, 120
  %v5723 = vpop.permute.xlu0 %5722
  %5724 = vrot.lane.b32.xlu0 %v5135, 120
  %v5725 = vpop.permute.xlu0 %5724
  %5726 = vrot.lane.b32.xlu0 %v5129, 56
  %v5727 = vpop.permute.xlu0 %5726
  %5728 = vrot.lane.b32.xlu0 %v5131, 56
  %v5729 = vpop.permute.xlu0 %5728
  %5730 = vrot.lane.b32.xlu0 %v5133, 56
  %v5731 = vpop.permute.xlu0 %5730
  %5732 = vrot.lane.b32.xlu0 %v5135, 56
  %v5733 = vpop.permute.xlu0 %5732
  %v5735 = vsel %vm5157, %v5719, 0
  %v5738 = vsel %vm5157, %v5721, 0
  %v5741 = vsel %vm5157, %v5723, 0
  %v5744 = vsel %vm5157, %v5725, 0
  %v5747 = vsel %vm5157, %v5727, 0
  %v5750 = vsel %vm5157, %v5729, 0
  %v5753 = vsel %vm5157, %v5731, 0
  %v5756 = vsel %vm5157, %v5733, 0
  %5758 = vmatprep.subr.bf16.mxu0 0
  %5759 = vmatpush1.bf16.xpose.msra.mxu0 %v5747
  %5760 = vmatprep.subr.bf16.mxu0 0
  %5761 = vmatpush1.bf16.xpose.msra.mxu0 %v5750
  %5762 = vmatprep.subr.bf16.mxu0 0
  %5763 = vmatpush1.bf16.xpose.msra.mxu0 %v5753
  %5764 = vmatprep.subr.bf16.mxu0 0
  %5765 = vmatpush1.bf16.xpose.msra.mxu0 %v5756
  %5766 = vmatprep.subr.bf16.mxu0 0
  %5767 = vmatpush1.bf16.xpose.msra.mxu0 0
  %5768 = vmatprep.subr.bf16.mxu0 0
  %5769 = vmatpush1.bf16.xpose.msra.mxu0 0
  %5770 = vmatprep.subr.bf16.mxu0 0
  %5771 = vmatpush1.bf16.xpose.msra.mxu0 0
  %5772 = vmatprep.subr.bf16.mxu0 0
  %5773 = vmatpush1.bf16.xpose.msra.mxu0 0
  %5774 = vmatprep.subr.bf16.mxu0 0
  %5775 = vmatpush1.bf16.xpose.msra.mxu0 0
  %5776 = vmatprep.subr.bf16.mxu0 0
  %5777 = vmatpush1.bf16.xpose.msra.mxu0 0
  %5778 = vmatprep.subr.bf16.mxu0 0
  %5779 = vmatpush1.bf16.xpose.msra.mxu0 0
  %5780 = vmatprep.subr.bf16.mxu0 0
  %5781 = vmatpush1.bf16.xpose.msra.mxu0 0
  %5782 = vmatprep.subr.bf16.mxu0 0
  %5783 = vmatpush1.bf16.xpose.msra.mxu0 0
  %5784 = vmatprep.subr.bf16.mxu0 0
  %5785 = vmatpush1.bf16.xpose.msra.mxu0 0
  %5786 = vmatprep.subr.bf16.mxu0 0
  %5787 = vmatpush1.bf16.xpose.msra.mxu0 0
  %5788 = vmatprep.subr.bf16.mxu0 0
  %5789 = vmatpush1.bf16.xpose.msra.mxu0 0
  %5790 = vmatprep.mubr.bf16.mxu0 0
  %5791 = vmatmul.mubr.bf16.gmra.mrb[0].mxu0 %v5735
  %v5792 = vpop.f32.mrb[0].mxu0
  %v5793 = vadd.f32 0.0, %v5792
  %v5794 = vpop.f32.mrb[0].mxu0
  %v5795 = vpop.f32.mrb[0].mxu0
  %v5796 = vadd.f32 0.0, %v5795
  %v5797 = vpop.f32.mrb[0].mxu0
  %5798 = vmatprep.mubr.bf16.mxu0 0
  %5799 = vmatmul.mubr.bf16.gmra.mrb[0].mxu0 %v5738
  %v5800 = vpop.f32.mrb[0].mxu0
  %v5801 = vadd.f32 0.0, %v5800
  %v5802 = vpop.f32.mrb[0].mxu0
  %v5803 = vpop.f32.mrb[0].mxu0
  %v5804 = vadd.f32 0.0, %v5803
  %v5805 = vpop.f32.mrb[0].mxu0
  %5806 = vmatprep.mubr.bf16.mxu0 0
  %5807 = vmatmul.mubr.bf16.gmra.mrb[0].mxu0 %v5741
  %v5808 = vpop.f32.mrb[0].mxu0
  %v5809 = vadd.f32 0.0, %v5808
  %v5810 = vpop.f32.mrb[0].mxu0
  %v5811 = vpop.f32.mrb[0].mxu0
  %v5812 = vadd.f32 0.0, %v5811
  %v5813 = vpop.f32.mrb[0].mxu0
  %5814 = vmatprep.mubr.bf16.mxu0 0
  %5815 = vmatmul.mubr.bf16.gmra.mrb[0].mxu0 %v5744
  %v5816 = vpop.f32.mrb[0].mxu0
  %v5817 = vadd.f32 0.0, %v5816
  %v5818 = vpop.f32.mrb[0].mxu0
  %v5819 = vpop.f32.mrb[0].mxu0
  %v5820 = vadd.f32 0.0, %v5819
  %v5821 = vpop.f32.mrb[0].mxu0
  %5822 = vdwg.mxu0
  %5823 = vrot.lane.b32.xlu0 %v5137, 120
  %v5824 = vpop.permute.xlu0 %5823
  %5825 = vrot.lane.b32.xlu0 %v5139, 120
  %v5826 = vpop.permute.xlu0 %5825
  %5827 = vrot.lane.b32.xlu0 %v5141, 120
  %v5828 = vpop.permute.xlu0 %5827
  %5829 = vrot.lane.b32.xlu0 %v5143, 120
  %v5830 = vpop.permute.xlu0 %5829
  %5831 = vrot.lane.b32.xlu0 %v5137, 56
  %v5832 = vpop.permute.xlu0 %5831
  %5833 = vrot.lane.b32.xlu0 %v5139, 56
  %v5834 = vpop.permute.xlu0 %5833
  %5835 = vrot.lane.b32.xlu0 %v5141, 56
  %v5836 = vpop.permute.xlu0 %5835
  %5837 = vrot.lane.b32.xlu0 %v5143, 56
  %v5838 = vpop.permute.xlu0 %5837
  %v5840 = vsel %vm5157, %v5824, 0
  %v5843 = vsel %vm5157, %v5826, 0
  %v5846 = vsel %vm5157, %v5828, 0
  %v5849 = vsel %vm5157, %v5830, 0
  %v5852 = vsel %vm5157, %v5832, 0
  %v5855 = vsel %vm5157, %v5834, 0
  %v5858 = vsel %vm5157, %v5836, 0
  %v5861 = vsel %vm5157, %v5838, 0
  %5863 = vmatprep.subr.bf16.mxu0 0
  %5864 = vmatpush1.bf16.xpose.msra.mxu0 %v5852
  %5865 = vmatprep.subr.bf16.mxu0 0
  %5866 = vmatpush1.bf16.xpose.msra.mxu0 %v5855
  %5867 = vmatprep.subr.bf16.mxu0 0
  %5868 = vmatpush1.bf16.xpose.msra.mxu0 %v5858
  %5869 = vmatprep.subr.bf16.mxu0 0
  %5870 = vmatpush1.bf16.xpose.msra.mxu0 %v5861
  %5871 = vmatprep.subr.bf16.mxu0 0
  %5872 = vmatpush1.bf16.xpose.msra.mxu0 0
  %5873 = vmatprep.subr.bf16.mxu0 0
  %5874 = vmatpush1.bf16.xpose.msra.mxu0 0
  %5875 = vmatprep.subr.bf16.mxu0 0
  %5876 = vmatpush1.bf16.xpose.msra.mxu0 0
  %5877 = vmatprep.subr.bf16.mxu0 0
  %5878 = vmatpush1.bf16.xpose.msra.mxu0 0
  %5879 = vmatprep.subr.bf16.mxu0 0
  %5880 = vmatpush1.bf16.xpose.msra.mxu0 0
  %5881 = vmatprep.subr.bf16.mxu0 0
  %5882 = vmatpush1.bf16.xpose.msra.mxu0 0
  %5883 = vmatprep.subr.bf16.mxu0 0
  %5884 = vmatpush1.bf16.xpose.msra.mxu0 0
  %5885 = vmatprep.subr.bf16.mxu0 0
  %5886 = vmatpush1.bf16.xpose.msra.mxu0 0
  %5887 = vmatprep.subr.bf16.mxu0 0
  %5888 = vmatpush1.bf16.xpose.msra.mxu0 0
  %5889 = vmatprep.subr.bf16.mxu0 0
  %5890 = vmatpush1.bf16.xpose.msra.mxu0 0
  %5891 = vmatprep.subr.bf16.mxu0 0
  %5892 = vmatpush1.bf16.xpose.msra.mxu0 0
  %5893 = vmatprep.subr.bf16.mxu0 0
  %5894 = vmatpush1.bf16.xpose.msra.mxu0 0
  %5895 = vmatprep.mubr.bf16.mxu0 0
  %5896 = vmatmul.mubr.bf16.gmra.mrb[0].mxu0 %v5840
  %v5897 = vpop.f32.mrb[0].mxu0
  %v5898 = vadd.f32 0.0, %v5897
  %v5899 = vpop.f32.mrb[0].mxu0
  %v5900 = vpop.f32.mrb[0].mxu0
  %v5901 = vadd.f32 0.0, %v5900
  %v5902 = vpop.f32.mrb[0].mxu0
  %5903 = vmatprep.mubr.bf16.mxu0 0
  %5904 = vmatmul.mubr.bf16.gmra.mrb[0].mxu0 %v5843
  %v5905 = vpop.f32.mrb[0].mxu0
  %v5906 = vadd.f32 0.0, %v5905
  %v5907 = vpop.f32.mrb[0].mxu0
  %v5908 = vpop.f32.mrb[0].mxu0
  %v5909 = vadd.f32 0.0, %v5908
  %v5910 = vpop.f32.mrb[0].mxu0
  %5911 = vmatprep.mubr.bf16.mxu0 0
  %5912 = vmatmul.mubr.bf16.gmra.mrb[0].mxu0 %v5846
  %v5913 = vpop.f32.mrb[0].mxu0
  %v5914 = vadd.f32 0.0, %v5913
  %v5915 = vpop.f32.mrb[0].mxu0
  %v5916 = vpop.f32.mrb[0].mxu0
  %v5917 = vadd.f32 0.0, %v5916
  %v5918 = vpop.f32.mrb[0].mxu0
  %5919 = vmatprep.mubr.bf16.mxu0 0
  %5920 = vmatmul.mubr.bf16.gmra.mrb[0].mxu0 %v5849
  %v5921 = vpop.f32.mrb[0].mxu0
  %v5922 = vadd.f32 0.0, %v5921
  %v5923 = vpop.f32.mrb[0].mxu0
  %v5924 = vpop.f32.mrb[0].mxu0
  %v5925 = vadd.f32 0.0, %v5924
  %v5926 = vpop.f32.mrb[0].mxu0
  %5927 = vdwg.mxu0
  %v5928 = vmul.f32 %v5793, 0.35355338
  %v5929 = vmul.f32 %v5796, 0.35355338
  %v5930 = vmul.f32 %v5801, 0.35355338
  %v5931 = vmul.f32 %v5804, 0.35355338
  %v5932 = vmul.f32 %v5809, 0.35355338
  %v5933 = vmul.f32 %v5812, 0.35355338
  %v5934 = vmul.f32 %v5817, 0.35355338
  %v5935 = vmul.f32 %v5820, 0.35355338
  %v5936 = vmul.f32 %v5898, 0.35355338
  %v5937 = vmul.f32 %v5901, 0.35355338
  %v5938 = vmul.f32 %v5906, 0.35355338
  %v5939 = vmul.f32 %v5909, 0.35355338
  %v5940 = vmul.f32 %v5914, 0.35355338
  %v5941 = vmul.f32 %v5917, 0.35355338
  %v5942 = vmul.f32 %v5922, 0.35355338
  %v5943 = vmul.f32 %v5925, 0.35355338
  %v5944 = vsel %vm3950, %v5928, -inf
  %5945 = vmax.xlane.f32.xlu0 %v5944
  %v5946 = vpop.xlane.xlu0 %5945
  %v5947 = vsel %vm3950, %v5929, -inf
  %5948 = vmax.xlane.f32.xlu0 %v5947
  %v5949 = vpop.xlane.xlu0 %5948
  %v5950 = vsel %vm3950, %v5930, -inf
  %5951 = vmax.xlane.f32.xlu0 %v5950
  %v5952 = vpop.xlane.xlu0 %5951
  %v5953 = vsel %vm3950, %v5931, -inf
  %5954 = vmax.xlane.f32.xlu0 %v5953
  %v5955 = vpop.xlane.xlu0 %5954
  %v5956 = vsel %vm3950, %v5932, -inf
  %5957 = vmax.xlane.f32.xlu0 %v5956
  %v5958 = vpop.xlane.xlu0 %5957
  %v5959 = vsel %vm3950, %v5933, -inf
  %5960 = vmax.xlane.f32.xlu0 %v5959
  %v5961 = vpop.xlane.xlu0 %5960
  %v5962 = vsel %vm3950, %v5934, -inf
  %5963 = vmax.xlane.f32.xlu0 %v5962
  %v5964 = vpop.xlane.xlu0 %5963
  %v5965 = vsel %vm3950, %v5935, -inf
  %5966 = vmax.xlane.f32.xlu0 %v5965
  %v5967 = vpop.xlane.xlu0 %5966
  %v5968 = vsel %vm3950, %v5936, -inf
  %5969 = vmax.xlane.f32.xlu0 %v5968
  %v5970 = vpop.xlane.xlu0 %5969
  %v5971 = vsel %vm3950, %v5937, -inf
  %5972 = vmax.xlane.f32.xlu0 %v5971
  %v5973 = vpop.xlane.xlu0 %5972
  %v5974 = vsel %vm3950, %v5938, -inf
  %5975 = vmax.xlane.f32.xlu0 %v5974
  %v5976 = vpop.xlane.xlu0 %5975
  %v5977 = vsel %vm3950, %v5939, -inf
  %5978 = vmax.xlane.f32.xlu0 %v5977
  %v5979 = vpop.xlane.xlu0 %5978
  %v5980 = vsel %vm3950, %v5940, -inf
  %5981 = vmax.xlane.f32.xlu0 %v5980
  %v5982 = vpop.xlane.xlu0 %5981
  %v5983 = vsel %vm3950, %v5941, -inf
  %5984 = vmax.xlane.f32.xlu0 %v5983
  %v5985 = vpop.xlane.xlu0 %5984
  %v5986 = vsel %vm3950, %v5942, -inf
  %5987 = vmax.xlane.f32.xlu0 %v5986
  %v5988 = vpop.xlane.xlu0 %5987
  %v5989 = vsel %vm3950, %v5943, -inf
  %5990 = vmax.xlane.f32.xlu0 %v5989
  %v5991 = vpop.xlane.xlu0 %5990
  %v5992 = vsub.f32 %v5928, %v5946
  %v5993 = vsub.f32 %v5929, %v5949
  %v5994 = vsub.f32 %v5930, %v5952
  %v5995 = vsub.f32 %v5931, %v5955
  %v5996 = vsub.f32 %v5932, %v5958
  %v5997 = vsub.f32 %v5933, %v5961
  %v5998 = vsub.f32 %v5934, %v5964
  %v5999 = vsub.f32 %v5935, %v5967
  %v6000 = vsub.f32 %v5936, %v5970
  %v6001 = vsub.f32 %v5937, %v5973
  %v6002 = vsub.f32 %v5938, %v5976
  %v6003 = vsub.f32 %v5939, %v5979
  %v6004 = vsub.f32 %v5940, %v5982
  %v6005 = vsub.f32 %v5941, %v5985
  %v6006 = vsub.f32 %v5942, %v5988
  %v6007 = vsub.f32 %v5943, %v5991
  %v6008 = vmul.f32 %v5992, 1.442695
  %v6009 = vpow.pop %v6008
  %v6010 = vmul.f32 %v5993, 1.442695
  %v6011 = vpow.pop %v6010
  %v6012 = vmul.f32 %v5994, 1.442695
  %v6013 = vpow.pop %v6012
  %v6014 = vmul.f32 %v5995, 1.442695
  %v6015 = vpow.pop %v6014
  %v6016 = vmul.f32 %v5996, 1.442695
  %v6017 = vpow.pop %v6016
  %v6018 = vmul.f32 %v5997, 1.442695
  %v6019 = vpow.pop %v6018
  %v6020 = vmul.f32 %v5998, 1.442695
  %v6021 = vpow.pop %v6020
  %v6022 = vmul.f32 %v5999, 1.442695
  %v6023 = vpow.pop %v6022
  %v6024 = vmul.f32 %v6000, 1.442695
  %v6025 = vpow.pop %v6024
  %v6026 = vmul.f32 %v6001, 1.442695
  %v6027 = vpow.pop %v6026
  %v6028 = vmul.f32 %v6002, 1.442695
  %v6029 = vpow.pop %v6028
  %v6030 = vmul.f32 %v6003, 1.442695
  %v6031 = vpow.pop %v6030
  %v6032 = vmul.f32 %v6004, 1.442695
  %v6033 = vpow.pop %v6032
  %v6034 = vmul.f32 %v6005, 1.442695
  %v6035 = vpow.pop %v6034
  %v6036 = vmul.f32 %v6006, 1.442695
  %v6037 = vpow.pop %v6036
  %v6038 = vmul.f32 %v6007, 1.442695
  %v6039 = vpow.pop %v6038
  %v6040 = vsel %vm3950, %v6009, 0.0
  %6041 = vadd.xlane.f32.xlu0 %v6040
  %v6042 = vpop.xlane.xlu0 %6041
  %v6043 = vsel %vm3950, %v6011, 0.0
  %6044 = vadd.xlane.f32.xlu0 %v6043
  %v6045 = vpop.xlane.xlu0 %6044
  %v6046 = vsel %vm3950, %v6013, 0.0
  %6047 = vadd.xlane.f32.xlu0 %v6046
  %v6048 = vpop.xlane.xlu0 %6047
  %v6049 = vsel %vm3950, %v6015, 0.0
  %6050 = vadd.xlane.f32.xlu0 %v6049
  %v6051 = vpop.xlane.xlu0 %6050
  %v6052 = vsel %vm3950, %v6017, 0.0
  %6053 = vadd.xlane.f32.xlu0 %v6052
  %v6054 = vpop.xlane.xlu0 %6053
  %v6055 = vsel %vm3950, %v6019, 0.0
  %6056 = vadd.xlane.f32.xlu0 %v6055
  %v6057 = vpop.xlane.xlu0 %6056
  %v6058 = vsel %vm3950, %v6021, 0.0
  %6059 = vadd.xlane.f32.xlu0 %v6058
  %v6060 = vpop.xlane.xlu0 %6059
  %v6061 = vsel %vm3950, %v6023, 0.0
  %6062 = vadd.xlane.f32.xlu0 %v6061
  %v6063 = vpop.xlane.xlu0 %6062
  %v6064 = vsel %vm3950, %v6025, 0.0
  %6065 = vadd.xlane.f32.xlu0 %v6064
  %v6066 = vpop.xlane.xlu0 %6065
  %v6067 = vsel %vm3950, %v6027, 0.0
  %6068 = vadd.xlane.f32.xlu0 %v6067
  %v6069 = vpop.xlane.xlu0 %6068
  %v6070 = vsel %vm3950, %v6029, 0.0
  %6071 = vadd.xlane.f32.xlu0 %v6070
  %v6072 = vpop.xlane.xlu0 %6071
  %v6073 = vsel %vm3950, %v6031, 0.0
  %6074 = vadd.xlane.f32.xlu0 %v6073
  %v6075 = vpop.xlane.xlu0 %6074
  %v6076 = vsel %vm3950, %v6033, 0.0
  %6077 = vadd.xlane.f32.xlu0 %v6076
  %v6078 = vpop.xlane.xlu0 %6077
  %v6079 = vsel %vm3950, %v6035, 0.0
  %6080 = vadd.xlane.f32.xlu0 %v6079
  %v6081 = vpop.xlane.xlu0 %6080
  %v6082 = vsel %vm3950, %v6037, 0.0
  %6083 = vadd.xlane.f32.xlu0 %v6082
  %v6084 = vpop.xlane.xlu0 %6083
  %v6085 = vsel %vm3950, %v6039, 0.0
  %6086 = vadd.xlane.f32.xlu0 %v6085
  %v6087 = vpop.xlane.xlu0 %6086
  %v6088 = vrcp.pop %v6042
  %v6089 = vrcp.pop %v6045
  %v6090 = vrcp.pop %v6048
  %v6091 = vrcp.pop %v6051
  %v6092 = vrcp.pop %v6054
  %v6093 = vrcp.pop %v6057
  %v6094 = vrcp.pop %v6060
  %v6095 = vrcp.pop %v6063
  %v6096 = vrcp.pop %v6066
  %v6097 = vrcp.pop %v6069
  %v6098 = vrcp.pop %v6072
  %v6099 = vrcp.pop %v6075
  %v6100 = vrcp.pop %v6078
  %v6101 = vrcp.pop %v6081
  %v6102 = vrcp.pop %v6084
  %v6103 = vrcp.pop %v6087
  %v6104 = vmul.f32 %v6009, %v6088
  %v6105 = vmul.f32 %v6011, %v6089
  %v6106 = vmul.f32 %v6013, %v6090
  %v6107 = vmul.f32 %v6015, %v6091
  %v6108 = vmul.f32 %v6017, %v6092
  %v6109 = vmul.f32 %v6019, %v6093
  %v6110 = vmul.f32 %v6021, %v6094
  %v6111 = vmul.f32 %v6023, %v6095
  %v6112 = vmul.f32 %v6025, %v6096
  %v6113 = vmul.f32 %v6027, %v6097
  %v6114 = vmul.f32 %v6029, %v6098
  %v6115 = vmul.f32 %v6031, %v6099
  %v6116 = vmul.f32 %v6033, %v6100
  %v6117 = vmul.f32 %v6035, %v6101
  %v6118 = vmul.f32 %v6037, %v6102
  %v6119 = vmul.f32 %v6039, %v6103
  %v6120 = vpack.c.bf16 %v6105, %v6104
  %v6121 = vpack.c.bf16 %v6107, %v6106
  %v6122 = vpack.c.bf16 %v6109, %v6108
  %v6123 = vpack.c.bf16 %v6111, %v6110
  %v6124 = vpack.c.bf16 %v6113, %v6112
  %v6125 = vpack.c.bf16 %v6115, %v6114
  %v6126 = vpack.c.bf16 %v6117, %v6116
  %v6127 = vpack.c.bf16 %v6119, %v6118
  %6132 = vrot.lane.b32.xlu0 %v5130, 120
  %v6133 = vpop.permute.xlu0 %6132
  %6134 = vrot.lane.b32.xlu0 %v5132, 120
  %v6135 = vpop.permute.xlu0 %6134
  %6136 = vrot.lane.b32.xlu0 %v5134, 120
  %v6137 = vpop.permute.xlu0 %6136
  %6138 = vrot.lane.b32.xlu0 %v5136, 120
  %v6139 = vpop.permute.xlu0 %6138
  %v6145 = vsel %vm3950, %v6120, 0
  %v6148 = vsel %vm3950, %v6121, 0
  %v6151 = vsel %vm3950, %v6122, 0
  %v6154 = vsel %vm3950, %v6123, 0
  %6156 = vmatprep.subr.bf16.mxu0 0
  %6157 = vmatpush1.bf16.msra.mxu0 %v6133
  %6158 = vmatprep.subr.bf16.mxu0 0
  %6159 = vmatpush1.bf16.msra.mxu0 %v6135
  %6160 = vmatprep.subr.bf16.mxu0 0
  %6161 = vmatpush1.bf16.msra.mxu0 %v6137
  %6162 = vmatprep.subr.bf16.mxu0 0
  %6163 = vmatpush1.bf16.msra.mxu0 %v6139
  %6164 = vmatprep.subr.bf16.mxu0 0
  %6165 = vmatpush1.bf16.msra.mxu0 0
  %6166 = vmatprep.subr.bf16.mxu0 0
  %6167 = vmatpush1.bf16.msra.mxu0 0
  %6168 = vmatprep.subr.bf16.mxu0 0
  %6169 = vmatpush1.bf16.msra.mxu0 0
  %6170 = vmatprep.subr.bf16.mxu0 0
  %6171 = vmatpush1.bf16.msra.mxu0 0
  %6172 = vmatprep.subr.bf16.mxu0 0
  %6173 = vmatpush1.bf16.msra.mxu0 0
  %6174 = vmatprep.subr.bf16.mxu0 0
  %6175 = vmatpush1.bf16.msra.mxu0 0
  %6176 = vmatprep.subr.bf16.mxu0 0
  %6177 = vmatpush1.bf16.msra.mxu0 0
  %6178 = vmatprep.subr.bf16.mxu0 0
  %6179 = vmatpush1.bf16.msra.mxu0 0
  %6180 = vmatprep.subr.bf16.mxu0 0
  %6181 = vmatpush1.bf16.msra.mxu0 0
  %6182 = vmatprep.subr.bf16.mxu0 0
  %6183 = vmatpush1.bf16.msra.mxu0 0
  %6184 = vmatprep.subr.bf16.mxu0 0
  %6185 = vmatpush1.bf16.msra.mxu0 0
  %6186 = vmatprep.subr.bf16.mxu0 0
  %6187 = vmatpush1.bf16.msra.mxu0 0
  %6188 = vmatprep.mubr.bf16.mxu0 0
  %6189 = vmatmul.mubr.bf16.gmra.mrb[0].mxu0 %v6145
  %v6190 = vpop.f32.mrb[0].mxu0
  %v6191 = vadd.f32 0.0, %v6190
  %v6192 = vpop.f32.mrb[0].mxu0
  %v6193 = vpop.f32.mrb[0].mxu0
  %v6194 = vadd.f32 0.0, %v6193
  %v6195 = vpop.f32.mrb[0].mxu0
  %6196 = vmatprep.mubr.bf16.mxu0 0
  %6197 = vmatmul.mubr.bf16.gmra.mrb[0].mxu0 %v6148
  %v6198 = vpop.f32.mrb[0].mxu0
  %v6199 = vadd.f32 0.0, %v6198
  %v6200 = vpop.f32.mrb[0].mxu0
  %v6201 = vpop.f32.mrb[0].mxu0
  %v6202 = vadd.f32 0.0, %v6201
  %v6203 = vpop.f32.mrb[0].mxu0
  %6204 = vmatprep.mubr.bf16.mxu0 0
  %6205 = vmatmul.mubr.bf16.gmra.mrb[0].mxu0 %v6151
  %v6206 = vpop.f32.mrb[0].mxu0
  %v6207 = vadd.f32 0.0, %v6206
  %v6208 = vpop.f32.mrb[0].mxu0
  %v6209 = vpop.f32.mrb[0].mxu0
  %v6210 = vadd.f32 0.0, %v6209
  %v6211 = vpop.f32.mrb[0].mxu0
  %6212 = vmatprep.mubr.bf16.mxu0 0
  %6213 = vmatmul.mubr.bf16.gmra.mrb[0].mxu0 %v6154
  %v6214 = vpop.f32.mrb[0].mxu0
  %v6215 = vadd.f32 0.0, %v6214
  %v6216 = vpop.f32.mrb[0].mxu0
  %v6217 = vpop.f32.mrb[0].mxu0
  %v6218 = vadd.f32 0.0, %v6217
  %v6219 = vpop.f32.mrb[0].mxu0
  %6220 = vdwg.mxu0
  %6225 = vrot.lane.b32.xlu0 %v5138, 120
  %v6226 = vpop.permute.xlu0 %6225
  %6227 = vrot.lane.b32.xlu0 %v5140, 120
  %v6228 = vpop.permute.xlu0 %6227
  %6229 = vrot.lane.b32.xlu0 %v5142, 120
  %v6230 = vpop.permute.xlu0 %6229
  %6231 = vrot.lane.b32.xlu0 %v5144, 120
  %v6232 = vpop.permute.xlu0 %6231
  %v6238 = vsel %vm3950, %v6124, 0
  %v6241 = vsel %vm3950, %v6125, 0
  %v6244 = vsel %vm3950, %v6126, 0
  %v6247 = vsel %vm3950, %v6127, 0
  %6249 = vmatprep.subr.bf16.mxu0 0
  %6250 = vmatpush1.bf16.msra.mxu0 %v6226
  %6251 = vmatprep.subr.bf16.mxu0 0
  %6252 = vmatpush1.bf16.msra.mxu0 %v6228
  %6253 = vmatprep.subr.bf16.mxu0 0
  %6254 = vmatpush1.bf16.msra.mxu0 %v6230
  %6255 = vmatprep.subr.bf16.mxu0 0
  %6256 = vmatpush1.bf16.msra.mxu0 %v6232
  %6257 = vmatprep.subr.bf16.mxu0 0
  %6258 = vmatpush1.bf16.msra.mxu0 0
  %6259 = vmatprep.subr.bf16.mxu0 0
  %6260 = vmatpush1.bf16.msra.mxu0 0
  %6261 = vmatprep.subr.bf16.mxu0 0
  %6262 = vmatpush1.bf16.msra.mxu0 0
  %6263 = vmatprep.subr.bf16.mxu0 0
  %6264 = vmatpush1.bf16.msra.mxu0 0
  %6265 = vmatprep.subr.bf16.mxu0 0
  %6266 = vmatpush1.bf16.msra.mxu0 0
  %6267 = vmatprep.subr.bf16.mxu0 0
  %6268 = vmatpush1.bf16.msra.mxu0 0
  %6269 = vmatprep.subr.bf16.mxu0 0
  %6270 = vmatpush1.bf16.msra.mxu0 0
  %6271 = vmatprep.subr.bf16.mxu0 0
  %6272 = vmatpush1.bf16.msra.mxu0 0
  %6273 = vmatprep.subr.bf16.mxu0 0
  %6274 = vmatpush1.bf16.msra.mxu0 0
  %6275 = vmatprep.subr.bf16.mxu0 0
  %6276 = vmatpush1.bf16.msra.mxu0 0
  %6277 = vmatprep.subr.bf16.mxu0 0
  %6278 = vmatpush1.bf16.msra.mxu0 0
  %6279 = vmatprep.subr.bf16.mxu0 0
  %6280 = vmatpush1.bf16.msra.mxu0 0
  %6281 = vmatprep.mubr.bf16.mxu0 0
  %6282 = vmatmul.mubr.bf16.gmra.mrb[0].mxu0 %v6238
  %v6283 = vpop.f32.mrb[0].mxu0
  %v6284 = vadd.f32 0.0, %v6283
  %v6285 = vpop.f32.mrb[0].mxu0
  %v6286 = vpop.f32.mrb[0].mxu0
  %v6287 = vadd.f32 0.0, %v6286
  %v6288 = vpop.f32.mrb[0].mxu0
  %6289 = vmatprep.mubr.bf16.mxu0 0
  %6290 = vmatmul.mubr.bf16.gmra.mrb[0].mxu0 %v6241
  %v6291 = vpop.f32.mrb[0].mxu0
  %v6292 = vadd.f32 0.0, %v6291
  %v6293 = vpop.f32.mrb[0].mxu0
  %v6294 = vpop.f32.mrb[0].mxu0
  %v6295 = vadd.f32 0.0, %v6294
  %v6296 = vpop.f32.mrb[0].mxu0
  %6297 = vmatprep.mubr.bf16.mxu0 0
  %6298 = vmatmul.mubr.bf16.gmra.mrb[0].mxu0 %v6244
  %v6299 = vpop.f32.mrb[0].mxu0
  %v6300 = vadd.f32 0.0, %v6299
  %v6301 = vpop.f32.mrb[0].mxu0
  %v6302 = vpop.f32.mrb[0].mxu0
  %v6303 = vadd.f32 0.0, %v6302
  %v6304 = vpop.f32.mrb[0].mxu0
  %6305 = vmatprep.mubr.bf16.mxu0 0
  %6306 = vmatmul.mubr.bf16.gmra.mrb[0].mxu0 %v6247
  %v6307 = vpop.f32.mrb[0].mxu0
  %v6308 = vadd.f32 0.0, %v6307
  %v6309 = vpop.f32.mrb[0].mxu0
  %v6310 = vpop.f32.mrb[0].mxu0
  %v6311 = vadd.f32 0.0, %v6310
  %v6312 = vpop.f32.mrb[0].mxu0
  %6313 = vdwg.mxu0
  %6330 = vrot.lane.b32.xlu0 %v6191, 8
  %v6331 = vpop.permute.xlu0 %6330
  %6332 = vrot.lane.b32.xlu0 %v6194, 8
  %v6333 = vpop.permute.xlu0 %6332
  %6334 = vrot.lane.b32.xlu0 %v6199, 8
  %v6335 = vpop.permute.xlu0 %6334
  %6336 = vrot.lane.b32.xlu0 %v6202, 8
  %v6337 = vpop.permute.xlu0 %6336
  %6338 = vrot.lane.b32.xlu0 %v6207, 8
  %v6339 = vpop.permute.xlu0 %6338
  %6340 = vrot.lane.b32.xlu0 %v6210, 8
  %v6341 = vpop.permute.xlu0 %6340
  %6342 = vrot.lane.b32.xlu0 %v6215, 8
  %v6343 = vpop.permute.xlu0 %6342
  %6344 = vrot.lane.b32.xlu0 %v6218, 8
  %v6345 = vpop.permute.xlu0 %6344
  %6346 = vrot.lane.b32.xlu0 %v6284, 8
  %v6347 = vpop.permute.xlu0 %6346
  %6348 = vrot.lane.b32.xlu0 %v6287, 8
  %v6349 = vpop.permute.xlu0 %6348
  %6350 = vrot.lane.b32.xlu0 %v6292, 8
  %v6351 = vpop.permute.xlu0 %6350
  %6352 = vrot.lane.b32.xlu0 %v6295, 8
  %v6353 = vpop.permute.xlu0 %6352
  %6354 = vrot.lane.b32.xlu0 %v6300, 8
  %v6355 = vpop.permute.xlu0 %6354
  %6356 = vrot.lane.b32.xlu0 %v6303, 8
  %v6357 = vpop.permute.xlu0 %6356
  %6358 = vrot.lane.b32.xlu0 %v6308, 8
  %v6359 = vpop.permute.xlu0 %6358
  %6360 = vrot.lane.b32.xlu0 %v6311, 8
  %v6361 = vpop.permute.xlu0 %6360
  %vm6378 = vcmask 130112
  %6379 = vst.msk [vmem:[#allocation2] sm:$0xff] %vm6378, %v6331
  %6380 = vst.msk [vmem:[#allocation2 + $0x8] sm:$0xff] %vm6378, %v6333
  %6381 = vst.msk [vmem:[#allocation2 + $0x10] sm:$0xff] %vm6378, %v6335
  %6382 = vst.msk [vmem:[#allocation2 + $0x18] sm:$0xff] %vm6378, %v6337
  %6383 = vst.msk [vmem:[#allocation2 + $0x20] sm:$0xff] %vm6378, %v6339
  %6384 = vst.msk [vmem:[#allocation2 + $0x28] sm:$0xff] %vm6378, %v6341
  %6385 = vst.msk [vmem:[#allocation2 + $0x30] sm:$0xff] %vm6378, %v6343
  %6386 = vst.msk [vmem:[#allocation2 + $0x38] sm:$0xff] %vm6378, %v6345
  %6387 = vst.msk [vmem:[#allocation2 + $0x40] sm:$0xff] %vm6378, %v6347
  %6388 = vst.msk [vmem:[#allocation2 + $0x48] sm:$0xff] %vm6378, %v6349
  %6389 = vst.msk [vmem:[#allocation2 + $0x50] sm:$0xff] %vm6378, %v6351
  %6390 = vst.msk [vmem:[#allocation2 + $0x58] sm:$0xff] %vm6378, %v6353
  %6391 = vst.msk [vmem:[#allocation2 + $0x60] sm:$0xff] %vm6378, %v6355
  %6392 = vst.msk [vmem:[#allocation2 + $0x68] sm:$0xff] %vm6378, %v6357
  %6393 = vst.msk [vmem:[#allocation2 + $0x70] sm:$0xff] %vm6378, %v6359
  %6394 = vst.msk [vmem:[#allocation2 + $0x78] sm:$0xff] %vm6378, %v6361
  %6395 = vrot.lane.b32.xlu0 %v5129, 112
  %v6396 = vpop.permute.xlu0 %6395
  %6397 = vrot.lane.b32.xlu0 %v5131, 112
  %v6398 = vpop.permute.xlu0 %6397
  %6399 = vrot.lane.b32.xlu0 %v5133, 112
  %v6400 = vpop.permute.xlu0 %6399
  %6401 = vrot.lane.b32.xlu0 %v5135, 112
  %v6402 = vpop.permute.xlu0 %6401
  %6403 = vrot.lane.b32.xlu0 %v5129, 48
  %v6404 = vpop.permute.xlu0 %6403
  %6405 = vrot.lane.b32.xlu0 %v5131, 48
  %v6406 = vpop.permute.xlu0 %6405
  %6407 = vrot.lane.b32.xlu0 %v5133, 48
  %v6408 = vpop.permute.xlu0 %6407
  %6409 = vrot.lane.b32.xlu0 %v5135, 48
  %v6410 = vpop.permute.xlu0 %6409
  %v6412 = vsel %vm5157, %v6396, 0
  %v6415 = vsel %vm5157, %v6398, 0
  %v6418 = vsel %vm5157, %v6400, 0
  %v6421 = vsel %vm5157, %v6402, 0
  %v6424 = vsel %vm5157, %v6404, 0
  %v6427 = vsel %vm5157, %v6406, 0
  %v6430 = vsel %vm5157, %v6408, 0
  %v6433 = vsel %vm5157, %v6410, 0
  %6435 = vmatprep.subr.bf16.mxu0 0
  %6436 = vmatpush1.bf16.xpose.msra.mxu0 %v6424
  %6437 = vmatprep.subr.bf16.mxu0 0
  %6438 = vmatpush1.bf16.xpose.msra.mxu0 %v6427
  %6439 = vmatprep.subr.bf16.mxu0 0
  %6440 = vmatpush1.bf16.xpose.msra.mxu0 %v6430
  %6441 = vmatprep.subr.bf16.mxu0 0
  %6442 = vmatpush1.bf16.xpose.msra.mxu0 %v6433
  %6443 = vmatprep.subr.bf16.mxu0 0
  %6444 = vmatpush1.bf16.xpose.msra.mxu0 0
  %6445 = vmatprep.subr.bf16.mxu0 0
  %6446 = vmatpush1.bf16.xpose.msra.mxu0 0
  %6447 = vmatprep.subr.bf16.mxu0 0
  %6448 = vmatpush1.bf16.xpose.msra.mxu0 0
  %6449 = vmatprep.subr.bf16.mxu0 0
  %6450 = vmatpush1.bf16.xpose.msra.mxu0 0
  %6451 = vmatprep.subr.bf16.mxu0 0
  %6452 = vmatpush1.bf16.xpose.msra.mxu0 0
  %6453 = vmatprep.subr.bf16.mxu0 0
  %6454 = vmatpush1.bf16.xpose.msra.mxu0 0
  %6455 = vmatprep.subr.bf16.mxu0 0
  %6456 = vmatpush1.bf16.xpose.msra.mxu0 0
  %6457 = vmatprep.subr.bf16.mxu0 0
  %6458 = vmatpush1.bf16.xpose.msra.mxu0 0
  %6459 = vmatprep.subr.bf16.mxu0 0
  %6460 = vmatpush1.bf16.xpose.msra.mxu0 0
  %6461 = vmatprep.subr.bf16.mxu0 0
  %6462 = vmatpush1.bf16.xpose.msra.mxu0 0
  %6463 = vmatprep.subr.bf16.mxu0 0
  %6464 = vmatpush1.bf16.xpose.msra.mxu0 0
  %6465 = vmatprep.subr.bf16.mxu0 0
  %6466 = vmatpush1.bf16.xpose.msra.mxu0 0
  %6467 = vmatprep.mubr.bf16.mxu0 0
  %6468 = vmatmul.mubr.bf16.gmra.mrb[0].mxu0 %v6412
  %v6469 = vpop.f32.mrb[0].mxu0
  %v6470 = vadd.f32 0.0, %v6469
  %v6471 = vpop.f32.mrb[0].mxu0
  %v6472 = vpop.f32.mrb[0].mxu0
  %v6473 = vadd.f32 0.0, %v6472
  %v6474 = vpop.f32.mrb[0].mxu0
  %6475 = vmatprep.mubr.bf16.mxu0 0
  %6476 = vmatmul.mubr.bf16.gmra.mrb[0].mxu0 %v6415
  %v6477 = vpop.f32.mrb[0].mxu0
  %v6478 = vadd.f32 0.0, %v6477
  %v6479 = vpop.f32.mrb[0].mxu0
  %v6480 = vpop.f32.mrb[0].mxu0
  %v6481 = vadd.f32 0.0, %v6480
  %v6482 = vpop.f32.mrb[0].mxu0
  %6483 = vmatprep.mubr.bf16.mxu0 0
  %6484 = vmatmul.mubr.bf16.gmra.mrb[0].mxu0 %v6418
  %v6485 = vpop.f32.mrb[0].mxu0
  %v6486 = vadd.f32 0.0, %v6485
  %v6487 = vpop.f32.mrb[0].mxu0
  %v6488 = vpop.f32.mrb[0].mxu0
  %v6489 = vadd.f32 0.0, %v6488
  %v6490 = vpop.f32.mrb[0].mxu0
  %6491 = vmatprep.mubr.bf16.mxu0 0
  %6492 = vmatmul.mubr.bf16.gmra.mrb[0].mxu0 %v6421
  %v6493 = vpop.f32.mrb[0].mxu0
  %v6494 = vadd.f32 0.0, %v6493
  %v6495 = vpop.f32.mrb[0].mxu0
  %v6496 = vpop.f32.mrb[0].mxu0
  %v6497 = vadd.f32 0.0, %v6496
  %v6498 = vpop.f32.mrb[0].mxu0
  %6499 = vdwg.mxu0
  %6500 = vrot.lane.b32.xlu0 %v5137, 112
  %v6501 = vpop.permute.xlu0 %6500
  %6502 = vrot.lane.b32.xlu0 %v5139, 112
  %v6503 = vpop.permute.xlu0 %6502
  %6504 = vrot.lane.b32.xlu0 %v5141, 112
  %v6505 = vpop.permute.xlu0 %6504
  %6506 = vrot.lane.b32.xlu0 %v5143, 112
  %v6507 = vpop.permute.xlu0 %6506
  %6508 = vrot.lane.b32.xlu0 %v5137, 48
  %v6509 = vpop.permute.xlu0 %6508
  %6510 = vrot.lane.b32.xlu0 %v5139, 48
  %v6511 = vpop.permute.xlu0 %6510
  %6512 = vrot.lane.b32.xlu0 %v5141, 48
  %v6513 = vpop.permute.xlu0 %6512
  %6514 = vrot.lane.b32.xlu0 %v5143, 48
  %v6515 = vpop.permute.xlu0 %6514
  %v6517 = vsel %vm5157, %v6501, 0
  %v6520 = vsel %vm5157, %v6503, 0
  %v6523 = vsel %vm5157, %v6505, 0
  %v6526 = vsel %vm5157, %v6507, 0
  %v6529 = vsel %vm5157, %v6509, 0
  %v6532 = vsel %vm5157, %v6511, 0
  %v6535 = vsel %vm5157, %v6513, 0
  %v6538 = vsel %vm5157, %v6515, 0
  %6540 = vmatprep.subr.bf16.mxu0 0
  %6541 = vmatpush1.bf16.xpose.msra.mxu0 %v6529
  %6542 = vmatprep.subr.bf16.mxu0 0
  %6543 = vmatpush1.bf16.xpose.msra.mxu0 %v6532
  %6544 = vmatprep.subr.bf16.mxu0 0
  %6545 = vmatpush1.bf16.xpose.msra.mxu0 %v6535
  %6546 = vmatprep.subr.bf16.mxu0 0
  %6547 = vmatpush1.bf16.xpose.msra.mxu0 %v6538
  %6548 = vmatprep.subr.bf16.mxu0 0
  %6549 = vmatpush1.bf16.xpose.msra.mxu0 0
  %6550 = vmatprep.subr.bf16.mxu0 0
  %6551 = vmatpush1.bf16.xpose.msra.mxu0 0
  %6552 = vmatprep.subr.bf16.mxu0 0
  %6553 = vmatpush1.bf16.xpose.msra.mxu0 0
  %6554 = vmatprep.subr.bf16.mxu0 0
  %6555 = vmatpush1.bf16.xpose.msra.mxu0 0
  %6556 = vmatprep.subr.bf16.mxu0 0
  %6557 = vmatpush1.bf16.xpose.msra.mxu0 0
  %6558 = vmatprep.subr.bf16.mxu0 0
  %6559 = vmatpush1.bf16.xpose.msra.mxu0 0
  %6560 = vmatprep.subr.bf16.mxu0 0
  %6561 = vmatpush1.bf16.xpose.msra.mxu0 0
  %6562 = vmatprep.subr.bf16.mxu0 0
  %6563 = vmatpush1.bf16.xpose.msra.mxu0 0
  %6564 = vmatprep.subr.bf16.mxu0 0
  %6565 = vmatpush1.bf16.xpose.msra.mxu0 0
  %6566 = vmatprep.subr.bf16.mxu0 0
  %6567 = vmatpush1.bf16.xpose.msra.mxu0 0
  %6568 = vmatprep.subr.bf16.mxu0 0
  %6569 = vmatpush1.bf16.xpose.msra.mxu0 0
  %6570 = vmatprep.subr.bf16.mxu0 0
  %6571 = vmatpush1.bf16.xpose.msra.mxu0 0
  %6572 = vmatprep.mubr.bf16.mxu0 0
  %6573 = vmatmul.mubr.bf16.gmra.mrb[0].mxu0 %v6517
  %v6574 = vpop.f32.mrb[0].mxu0
  %v6575 = vadd.f32 0.0, %v6574
  %v6576 = vpop.f32.mrb[0].mxu0
  %v6577 = vpop.f32.mrb[0].mxu0
  %v6578 = vadd.f32 0.0, %v6577
  %v6579 = vpop.f32.mrb[0].mxu0
  %6580 = vmatprep.mubr.bf16.mxu0 0
  %6581 = vmatmul.mubr.bf16.gmra.mrb[0].mxu0 %v6520
  %v6582 = vpop.f32.mrb[0].mxu0
  %v6583 = vadd.f32 0.0, %v6582
  %v6584 = vpop.f32.mrb[0].mxu0
  %v6585 = vpop.f32.mrb[0].mxu0
  %v6586 = vadd.f32 0.0, %v6585
  %v6587 = vpop.f32.mrb[0].mxu0
  %6588 = vmatprep.mubr.bf16.mxu0 0
  %6589 = vmatmul.mubr.bf16.gmra.mrb[0].mxu0 %v6523
  %v6590 = vpop.f32.mrb[0].mxu0
  %v6591 = vadd.f32 0.0, %v6590
  %v6592 = vpop.f32.mrb[0].mxu0
  %v6593 = vpop.f32.mrb[0].mxu0
  %v6594 = vadd.f32 0.0, %v6593
  %v6595 = vpop.f32.mrb[0].mxu0
  %6596 = vmatprep.mubr.bf16.mxu0 0
  %6597 = vmatmul.mubr.bf16.gmra.mrb[0].mxu0 %v6526
  %v6598 = vpop.f32.mrb[0].mxu0
  %v6599 = vadd.f32 0.0, %v6598
  %v6600 = vpop.f32.mrb[0].mxu0
  %v6601 = vpop.f32.mrb[0].mxu0
  %v6602 = vadd.f32 0.0, %v6601
  %v6603 = vpop.f32.mrb[0].mxu0
  %6604 = vdwg.mxu0
  %v6605 = vmul.f32 %v6470, 0.35355338
  %v6606 = vmul.f32 %v6473, 0.35355338
  %v6607 = vmul.f32 %v6478, 0.35355338
  %v6608 = vmul.f32 %v6481, 0.35355338
  %v6609 = vmul.f32 %v6486, 0.35355338
  %v6610 = vmul.f32 %v6489, 0.35355338
  %v6611 = vmul.f32 %v6494, 0.35355338
  %v6612 = vmul.f32 %v6497, 0.35355338
  %v6613 = vmul.f32 %v6575, 0.35355338
  %v6614 = vmul.f32 %v6578, 0.35355338
  %v6615 = vmul.f32 %v6583, 0.35355338
  %v6616 = vmul.f32 %v6586, 0.35355338
  %v6617 = vmul.f32 %v6591, 0.35355338
  %v6618 = vmul.f32 %v6594, 0.35355338
  %v6619 = vmul.f32 %v6599, 0.35355338
  %v6620 = vmul.f32 %v6602, 0.35355338
  %v6621 = vsel %vm3950, %v6605, -inf
  %6622 = vmax.xlane.f32.xlu0 %v6621
  %v6623 = vpop.xlane.xlu0 %6622
  %v6624 = vsel %vm3950, %v6606, -inf
  %6625 = vmax.xlane.f32.xlu0 %v6624
  %v6626 = vpop.xlane.xlu0 %6625
  %v6627 = vsel %vm3950, %v6607, -inf
  %6628 = vmax.xlane.f32.xlu0 %v6627
  %v6629 = vpop.xlane.xlu0 %6628
  %v6630 = vsel %vm3950, %v6608, -inf
  %6631 = vmax.xlane.f32.xlu0 %v6630
  %v6632 = vpop.xlane.xlu0 %6631
  %v6633 = vsel %vm3950, %v6609, -inf
  %6634 = vmax.xlane.f32.xlu0 %v6633
  %v6635 = vpop.xlane.xlu0 %6634
  %v6636 = vsel %vm3950, %v6610, -inf
  %6637 = vmax.xlane.f32.xlu0 %v6636
  %v6638 = vpop.xlane.xlu0 %6637
  %v6639 = vsel %vm3950, %v6611, -inf
  %6640 = vmax.xlane.f32.xlu0 %v6639
  %v6641 = vpop.xlane.xlu0 %6640
  %v6642 = vsel %vm3950, %v6612, -inf
  %6643 = vmax.xlane.f32.xlu0 %v6642
  %v6644 = vpop.xlane.xlu0 %6643
  %v6645 = vsel %vm3950, %v6613, -inf
  %6646 = vmax.xlane.f32.xlu0 %v6645
  %v6647 = vpop.xlane.xlu0 %6646
  %v6648 = vsel %vm3950, %v6614, -inf
  %6649 = vmax.xlane.f32.xlu0 %v6648
  %v6650 = vpop.xlane.xlu0 %6649
  %v6651 = vsel %vm3950, %v6615, -inf
  %6652 = vmax.xlane.f32.xlu0 %v6651
  %v6653 = vpop.xlane.xlu0 %6652
  %v6654 = vsel %vm3950, %v6616, -inf
  %6655 = vmax.xlane.f32.xlu0 %v6654
  %v6656 = vpop.xlane.xlu0 %6655
  %v6657 = vsel %vm3950, %v6617, -inf
  %6658 = vmax.xlane.f32.xlu0 %v6657
  %v6659 = vpop.xlane.xlu0 %6658
  %v6660 = vsel %vm3950, %v6618, -inf
  %6661 = vmax.xlane.f32.xlu0 %v6660
  %v6662 = vpop.xlane.xlu0 %6661
  %v6663 = vsel %vm3950, %v6619, -inf
  %6664 = vmax.xlane.f32.xlu0 %v6663
  %v6665 = vpop.xlane.xlu0 %6664
  %v6666 = vsel %vm3950, %v6620, -inf
  %6667 = vmax.xlane.f32.xlu0 %v6666
  %v6668 = vpop.xlane.xlu0 %6667
  %v6669 = vsub.f32 %v6605, %v6623
  %v6670 = vsub.f32 %v6606, %v6626
  %v6671 = vsub.f32 %v6607, %v6629
  %v6672 = vsub.f32 %v6608, %v6632
  %v6673 = vsub.f32 %v6609, %v6635
  %v6674 = vsub.f32 %v6610, %v6638
  %v6675 = vsub.f32 %v6611, %v6641
  %v6676 = vsub.f32 %v6612, %v6644
  %v6677 = vsub.f32 %v6613, %v6647
  %v6678 = vsub.f32 %v6614, %v6650
  %v6679 = vsub.f32 %v6615, %v6653
  %v6680 = vsub.f32 %v6616, %v6656
  %v6681 = vsub.f32 %v6617, %v6659
  %v6682 = vsub.f32 %v6618, %v6662
  %v6683 = vsub.f32 %v6619, %v6665
  %v6684 = vsub.f32 %v6620, %v6668
  %v6685 = vmul.f32 %v6669, 1.442695
  %v6686 = vpow.pop %v6685
  %v6687 = vmul.f32 %v6670, 1.442695
  %v6688 = vpow.pop %v6687
  %v6689 = vmul.f32 %v6671, 1.442695
  %v6690 = vpow.pop %v6689
  %v6691 = vmul.f32 %v6672, 1.442695
  %v6692 = vpow.pop %v6691
  %v6693 = vmul.f32 %v6673, 1.442695
  %v6694 = vpow.pop %v6693
  %v6695 = vmul.f32 %v6674, 1.442695
  %v6696 = vpow.pop %v6695
  %v6697 = vmul.f32 %v6675, 1.442695
  %v6698 = vpow.pop %v6697
  %v6699 = vmul.f32 %v6676, 1.442695
  %v6700 = vpow.pop %v6699
  %v6701 = vmul.f32 %v6677, 1.442695
  %v6702 = vpow.pop %v6701
  %v6703 = vmul.f32 %v6678, 1.442695
  %v6704 = vpow.pop %v6703
  %v6705 = vmul.f32 %v6679, 1.442695
  %v6706 = vpow.pop %v6705
  %v6707 = vmul.f32 %v6680, 1.442695
  %v6708 = vpow.pop %v6707
  %v6709 = vmul.f32 %v6681, 1.442695
  %v6710 = vpow.pop %v6709
  %v6711 = vmul.f32 %v6682, 1.442695
  %v6712 = vpow.pop %v6711
  %v6713 = vmul.f32 %v6683, 1.442695
  %v6714 = vpow.pop %v6713
  %v6715 = vmul.f32 %v6684, 1.442695
  %v6716 = vpow.pop %v6715
  %v6717 = vsel %vm3950, %v6686, 0.0
  %6718 = vadd.xlane.f32.xlu0 %v6717
  %v6719 = vpop.xlane.xlu0 %6718
  %v6720 = vsel %vm3950, %v6688, 0.0
  %6721 = vadd.xlane.f32.xlu0 %v6720
  %v6722 = vpop.xlane.xlu0 %6721
  %v6723 = vsel %vm3950, %v6690, 0.0
  %6724 = vadd.xlane.f32.xlu0 %v6723
  %v6725 = vpop.xlane.xlu0 %6724
  %v6726 = vsel %vm3950, %v6692, 0.0
  %6727 = vadd.xlane.f32.xlu0 %v6726
  %v6728 = vpop.xlane.xlu0 %6727
  %v6729 = vsel %vm3950, %v6694, 0.0
  %6730 = vadd.xlane.f32.xlu0 %v6729
  %v6731 = vpop.xlane.xlu0 %6730
  %v6732 = vsel %vm3950, %v6696, 0.0
  %6733 = vadd.xlane.f32.xlu0 %v6732
  %v6734 = vpop.xlane.xlu0 %6733
  %v6735 = vsel %vm3950, %v6698, 0.0
  %6736 = vadd.xlane.f32.xlu0 %v6735
  %v6737 = vpop.xlane.xlu0 %6736
  %v6738 = vsel %vm3950, %v6700, 0.0
  %6739 = vadd.xlane.f32.xlu0 %v6738
  %v6740 = vpop.xlane.xlu0 %6739
  %v6741 = vsel %vm3950, %v6702, 0.0
  %6742 = vadd.xlane.f32.xlu0 %v6741
  %v6743 = vpop.xlane.xlu0 %6742
  %v6744 = vsel %vm3950, %v6704, 0.0
  %6745 = vadd.xlane.f32.xlu0 %v6744
  %v6746 = vpop.xlane.xlu0 %6745
  %v6747 = vsel %vm3950, %v6706, 0.0
  %6748 = vadd.xlane.f32.xlu0 %v6747
  %v6749 = vpop.xlane.xlu0 %6748
  %v6750 = vsel %vm3950, %v6708, 0.0
  %6751 = vadd.xlane.f32.xlu0 %v6750
  %v6752 = vpop.xlane.xlu0 %6751
  %v6753 = vsel %vm3950, %v6710, 0.0
  %6754 = vadd.xlane.f32.xlu0 %v6753
  %v6755 = vpop.xlane.xlu0 %6754
  %v6756 = vsel %vm3950, %v6712, 0.0
  %6757 = vadd.xlane.f32.xlu0 %v6756
  %v6758 = vpop.xlane.xlu0 %6757
  %v6759 = vsel %vm3950, %v6714, 0.0
  %6760 = vadd.xlane.f32.xlu0 %v6759
  %v6761 = vpop.xlane.xlu0 %6760
  %v6762 = vsel %vm3950, %v6716, 0.0
  %6763 = vadd.xlane.f32.xlu0 %v6762
  %v6764 = vpop.xlane.xlu0 %6763
  %v6765 = vrcp.pop %v6719
  %v6766 = vrcp.pop %v6722
  %v6767 = vrcp.pop %v6725
  %v6768 = vrcp.pop %v6728
  %v6769 = vrcp.pop %v6731
  %v6770 = vrcp.pop %v6734
  %v6771 = vrcp.pop %v6737
  %v6772 = vrcp.pop %v6740
  %v6773 = vrcp.pop %v6743
  %v6774 = vrcp.pop %v6746
  %v6775 = vrcp.pop %v6749
  %v6776 = vrcp.pop %v6752
  %v6777 = vrcp.pop %v6755
  %v6778 = vrcp.pop %v6758
  %v6779 = vrcp.pop %v6761
  %v6780 = vrcp.pop %v6764
  %v6781 = vmul.f32 %v6686, %v6765
  %v6782 = vmul.f32 %v6688, %v6766
  %v6783 = vmul.f32 %v6690, %v6767
  %v6784 = vmul.f32 %v6692, %v6768
  %v6785 = vmul.f32 %v6694, %v6769
  %v6786 = vmul.f32 %v6696, %v6770
  %v6787 = vmul.f32 %v6698, %v6771
  %v6788 = vmul.f32 %v6700, %v6772
  %v6789 = vmul.f32 %v6702, %v6773
  %v6790 = vmul.f32 %v6704, %v6774
  %v6791 = vmul.f32 %v6706, %v6775
  %v6792 = vmul.f32 %v6708, %v6776
  %v6793 = vmul.f32 %v6710, %v6777
  %v6794 = vmul.f32 %v6712, %v6778
  %v6795 = vmul.f32 %v6714, %v6779
  %v6796 = vmul.f32 %v6716, %v6780
  %v6797 = vpack.c.bf16 %v6782, %v6781
  %v6798 = vpack.c.bf16 %v6784, %v6783
  %v6799 = vpack.c.bf16 %v6786, %v6785
  %v6800 = vpack.c.bf16 %v6788, %v6787
  %v6801 = vpack.c.bf16 %v6790, %v6789
  %v6802 = vpack.c.bf16 %v6792, %v6791
  %v6803 = vpack.c.bf16 %v6794, %v6793
  %v6804 = vpack.c.bf16 %v6796, %v6795
  %6805 = vrot.lane.b32.xlu0 %v5130, 112
  %v6806 = vpop.permute.xlu0 %6805
  %6807 = vrot.lane.b32.xlu0 %v5132, 112
  %v6808 = vpop.permute.xlu0 %6807
  %6809 = vrot.lane.b32.xlu0 %v5134, 112
  %v6810 = vpop.permute.xlu0 %6809
  %6811 = vrot.lane.b32.xlu0 %v5136, 112
  %v6812 = vpop.permute.xlu0 %6811
  %v6818 = vsel %vm3950, %v6797, 0
  %v6821 = vsel %vm3950, %v6798, 0
  %v6824 = vsel %vm3950, %v6799, 0
  %v6827 = vsel %vm3950, %v6800, 0
  %6829 = vmatprep.subr.bf16.mxu0 0
  %6830 = vmatpush1.bf16.msra.mxu0 %v6806
  %6831 = vmatprep.subr.bf16.mxu0 0
  %6832 = vmatpush1.bf16.msra.mxu0 %v6808
  %6833 = vmatprep.subr.bf16.mxu0 0
  %6834 = vmatpush1.bf16.msra.mxu0 %v6810
  %6835 = vmatprep.subr.bf16.mxu0 0
  %6836 = vmatpush1.bf16.msra.mxu0 %v6812
  %6837 = vmatprep.subr.bf16.mxu0 0
  %6838 = vmatpush1.bf16.msra.mxu0 0
  %6839 = vmatprep.subr.bf16.mxu0 0
  %6840 = vmatpush1.bf16.msra.mxu0 0
  %6841 = vmatprep.subr.bf16.mxu0 0
  %6842 = vmatpush1.bf16.msra.mxu0 0
  %6843 = vmatprep.subr.bf16.mxu0 0
  %6844 = vmatpush1.bf16.msra.mxu0 0
  %6845 = vmatprep.subr.bf16.mxu0 0
  %6846 = vmatpush1.bf16.msra.mxu0 0
  %6847 = vmatprep.subr.bf16.mxu0 0
  %6848 = vmatpush1.bf16.msra.mxu0 0
  %6849 = vmatprep.subr.bf16.mxu0 0
  %6850 = vmatpush1.bf16.msra.mxu0 0
  %6851 = vmatprep.subr.bf16.mxu0 0
  %6852 = vmatpush1.bf16.msra.mxu0 0
  %6853 = vmatprep.subr.bf16.mxu0 0
  %6854 = vmatpush1.bf16.msra.mxu0 0
  %6855 = vmatprep.subr.bf16.mxu0 0
  %6856 = vmatpush1.bf16.msra.mxu0 0
  %6857 = vmatprep.subr.bf16.mxu0 0
  %6858 = vmatpush1.bf16.msra.mxu0 0
  %6859 = vmatprep.subr.bf16.mxu0 0
  %6860 = vmatpush1.bf16.msra.mxu0 0
  %6861 = vmatprep.mubr.bf16.mxu0 0
  %6862 = vmatmul.mubr.bf16.gmra.mrb[0].mxu0 %v6818
  %v6863 = vpop.f32.mrb[0].mxu0
  %v6864 = vadd.f32 0.0, %v6863
  %v6865 = vpop.f32.mrb[0].mxu0
  %v6866 = vpop.f32.mrb[0].mxu0
  %v6867 = vadd.f32 0.0, %v6866
  %v6868 = vpop.f32.mrb[0].mxu0
  %6869 = vmatprep.mubr.bf16.mxu0 0
  %6870 = vmatmul.mubr.bf16.gmra.mrb[0].mxu0 %v6821
  %v6871 = vpop.f32.mrb[0].mxu0
  %v6872 = vadd.f32 0.0, %v6871
  %v6873 = vpop.f32.mrb[0].mxu0
  %v6874 = vpop.f32.mrb[0].mxu0
  %v6875 = vadd.f32 0.0, %v6874
  %v6876 = vpop.f32.mrb[0].mxu0
  %6877 = vmatprep.mubr.bf16.mxu0 0
  %6878 = vmatmul.mubr.bf16.gmra.mrb[0].mxu0 %v6824
  %v6879 = vpop.f32.mrb[0].mxu0
  %v6880 = vadd.f32 0.0, %v6879
  %v6881 = vpop.f32.mrb[0].mxu0
  %v6882 = vpop.f32.mrb[0].mxu0
  %v6883 = vadd.f32 0.0, %v6882
  %v6884 = vpop.f32.mrb[0].mxu0
  %6885 = vmatprep.mubr.bf16.mxu0 0
  %6886 = vmatmul.mubr.bf16.gmra.mrb[0].mxu0 %v6827
  %v6887 = vpop.f32.mrb[0].mxu0
  %v6888 = vadd.f32 0.0, %v6887
  %v6889 = vpop.f32.mrb[0].mxu0
  %v6890 = vpop.f32.mrb[0].mxu0
  %v6891 = vadd.f32 0.0, %v6890
  %v6892 = vpop.f32.mrb[0].mxu0
  %6893 = vdwg.mxu0
  %6894 = vrot.lane.b32.xlu0 %v5138, 112
  %v6895 = vpop.permute.xlu0 %6894
  %6896 = vrot.lane.b32.xlu0 %v5140, 112
  %v6897 = vpop.permute.xlu0 %6896
  %6898 = vrot.lane.b32.xlu0 %v5142, 112
  %v6899 = vpop.permute.xlu0 %6898
  %6900 = vrot.lane.b32.xlu0 %v5144, 112
  %v6901 = vpop.permute.xlu0 %6900
  %v6907 = vsel %vm3950, %v6801, 0
  %v6910 = vsel %vm3950, %v6802, 0
  %v6913 = vsel %vm3950, %v6803, 0
  %v6916 = vsel %vm3950, %v6804, 0
  %6918 = vmatprep.subr.bf16.mxu0 0
  %6919 = vmatpush1.bf16.msra.mxu0 %v6895
  %6920 = vmatprep.subr.bf16.mxu0 0
  %6921 = vmatpush1.bf16.msra.mxu0 %v6897
  %6922 = vmatprep.subr.bf16.mxu0 0
  %6923 = vmatpush1.bf16.msra.mxu0 %v6899
  %6924 = vmatprep.subr.bf16.mxu0 0
  %6925 = vmatpush1.bf16.msra.mxu0 %v6901
  %6926 = vmatprep.subr.bf16.mxu0 0
  %6927 = vmatpush1.bf16.msra.mxu0 0
  %6928 = vmatprep.subr.bf16.mxu0 0
  %6929 = vmatpush1.bf16.msra.mxu0 0
  %6930 = vmatprep.subr.bf16.mxu0 0
  %6931 = vmatpush1.bf16.msra.mxu0 0
  %6932 = vmatprep.subr.bf16.mxu0 0
  %6933 = vmatpush1.bf16.msra.mxu0 0
  %6934 = vmatprep.subr.bf16.mxu0 0
  %6935 = vmatpush1.bf16.msra.mxu0 0
  %6936 = vmatprep.subr.bf16.mxu0 0
  %6937 = vmatpush1.bf16.msra.mxu0 0
  %6938 = vmatprep.subr.bf16.mxu0 0
  %6939 = vmatpush1.bf16.msra.mxu0 0
  %6940 = vmatprep.subr.bf16.mxu0 0
  %6941 = vmatpush1.bf16.msra.mxu0 0
  %6942 = vmatprep.subr.bf16.mxu0 0
  %6943 = vmatpush1.bf16.msra.mxu0 0
  %6944 = vmatprep.subr.bf16.mxu0 0
  %6945 = vmatpush1.bf16.msra.mxu0 0
  %6946 = vmatprep.subr.bf16.mxu0 0
  %6947 = vmatpush1.bf16.msra.mxu0 0
  %6948 = vmatprep.subr.bf16.mxu0 0
  %6949 = vmatpush1.bf16.msra.mxu0 0
  %6950 = vmatprep.mubr.bf16.mxu0 0
  %6951 = vmatmul.mubr.bf16.gmra.mrb[0].mxu0 %v6907
  %v6952 = vpop.f32.mrb[0].mxu0
  %v6953 = vadd.f32 0.0, %v6952
  %v6954 = vpop.f32.mrb[0].mxu0
  %v6955 = vpop.f32.mrb[0].mxu0
  %v6956 = vadd.f32 0.0, %v6955
  %v6957 = vpop.f32.mrb[0].mxu0
  %6958 = vmatprep.mubr.bf16.mxu0 0
  %6959 = vmatmul.mubr.bf16.gmra.mrb[0].mxu0 %v6910
  %v6960 = vpop.f32.mrb[0].mxu0
  %v6961 = vadd.f32 0.0, %v6960
  %v6962 = vpop.f32.mrb[0].mxu0
  %v6963 = vpop.f32.mrb[0].mxu0
  %v6964 = vadd.f32 0.0, %v6963
  %v6965 = vpop.f32.mrb[0].mxu0
  %6966 = vmatprep.mubr.bf16.mxu0 0
  %6967 = vmatmul.mubr.bf16.gmra.mrb[0].mxu0 %v6913
  %v6968 = vpop.f32.mrb[0].mxu0
  %v6969 = vadd.f32 0.0, %v6968
  %v6970 = vpop.f32.mrb[0].mxu0
  %v6971 = vpop.f32.mrb[0].mxu0
  %v6972 = vadd.f32 0.0, %v6971
  %v6973 = vpop.f32.mrb[0].mxu0
  %6974 = vmatprep.mubr.bf16.mxu0 0
  %6975 = vmatmul.mubr.bf16.gmra.mrb[0].mxu0 %v6916
  %v6976 = vpop.f32.mrb[0].mxu0
  %v6977 = vadd.f32 0.0, %v6976
  %v6978 = vpop.f32.mrb[0].mxu0
  %v6979 = vpop.f32.mrb[0].mxu0
  %v6980 = vadd.f32 0.0, %v6979
  %v6981 = vpop.f32.mrb[0].mxu0
  %6982 = vdwg.mxu0
  %6999 = vrot.lane.b32.xlu0 %v6864, 16
  %v7000 = vpop.permute.xlu0 %6999
  %7001 = vrot.lane.b32.xlu0 %v6867, 16
  %v7002 = vpop.permute.xlu0 %7001
  %7003 = vrot.lane.b32.xlu0 %v6872, 16
  %v7004 = vpop.permute.xlu0 %7003
  %7005 = vrot.lane.b32.xlu0 %v6875, 16
  %v7006 = vpop.permute.xlu0 %7005
  %7007 = vrot.lane.b32.xlu0 %v6880, 16
  %v7008 = vpop.permute.xlu0 %7007
  %7009 = vrot.lane.b32.xlu0 %v6883, 16
  %v7010 = vpop.permute.xlu0 %7009
  %7011 = vrot.lane.b32.xlu0 %v6888, 16
  %v7012 = vpop.permute.xlu0 %7011
  %7013 = vrot.lane.b32.xlu0 %v6891, 16
  %v7014 = vpop.permute.xlu0 %7013
  %7015 = vrot.lane.b32.xlu0 %v6953, 16
  %v7016 = vpop.permute.xlu0 %7015
  %7017 = vrot.lane.b32.xlu0 %v6956, 16
  %v7018 = vpop.permute.xlu0 %7017
  %7019 = vrot.lane.b32.xlu0 %v6961, 16
  %v7020 = vpop.permute.xlu0 %7019
  %7021 = vrot.lane.b32.xlu0 %v6964, 16
  %v7022 = vpop.permute.xlu0 %7021
  %7023 = vrot.lane.b32.xlu0 %v6969, 16
  %v7024 = vpop.permute.xlu0 %7023
  %7025 = vrot.lane.b32.xlu0 %v6972, 16
  %v7026 = vpop.permute.xlu0 %7025
  %7027 = vrot.lane.b32.xlu0 %v6977, 16
  %v7028 = vpop.permute.xlu0 %7027
  %7029 = vrot.lane.b32.xlu0 %v6980, 16
  %v7030 = vpop.permute.xlu0 %7029
  %vm7047 = vcmask 195712
  %7048 = vst.msk [vmem:[#allocation2] sm:$0xff] %vm7047, %v7000
  %7049 = vst.msk [vmem:[#allocation2 + $0x8] sm:$0xff] %vm7047, %v7002
  %7050 = vst.msk [vmem:[#allocation2 + $0x10] sm:$0xff] %vm7047, %v7004
  %7051 = vst.msk [vmem:[#allocation2 + $0x18] sm:$0xff] %vm7047, %v7006
  %7052 = vst.msk [vmem:[#allocation2 + $0x20] sm:$0xff] %vm7047, %v7008
  %7053 = vst.msk [vmem:[#allocation2 + $0x28] sm:$0xff] %vm7047, %v7010
  %7054 = vst.msk [vmem:[#allocation2 + $0x30] sm:$0xff] %vm7047, %v7012
  %7055 = vst.msk [vmem:[#allocation2 + $0x38] sm:$0xff] %vm7047, %v7014
  %7056 = vst.msk [vmem:[#allocation2 + $0x40] sm:$0xff] %vm7047, %v7016
  %7057 = vst.msk [vmem:[#allocation2 + $0x48] sm:$0xff] %vm7047, %v7018
  %7058 = vst.msk [vmem:[#allocation2 + $0x50] sm:$0xff] %vm7047, %v7020
  %7059 = vst.msk [vmem:[#allocation2 + $0x58] sm:$0xff] %vm7047, %v7022
  %7060 = vst.msk [vmem:[#allocation2 + $0x60] sm:$0xff] %vm7047, %v7024
  %7061 = vst.msk [vmem:[#allocation2 + $0x68] sm:$0xff] %vm7047, %v7026
  %7062 = vst.msk [vmem:[#allocation2 + $0x70] sm:$0xff] %vm7047, %v7028
  %7063 = vst.msk [vmem:[#allocation2 + $0x78] sm:$0xff] %vm7047, %v7030
  %7064 = vrot.lane.b32.xlu0 %v5129, 104
  %v7065 = vpop.permute.xlu0 %7064
  %7066 = vrot.lane.b32.xlu0 %v5131, 104
  %v7067 = vpop.permute.xlu0 %7066
  %7068 = vrot.lane.b32.xlu0 %v5133, 104
  %v7069 = vpop.permute.xlu0 %7068
  %7070 = vrot.lane.b32.xlu0 %v5135, 104
  %v7071 = vpop.permute.xlu0 %7070
  %7072 = vrot.lane.b32.xlu0 %v5129, 40
  %v7073 = vpop.permute.xlu0 %7072
  %7074 = vrot.lane.b32.xlu0 %v5131, 40
  %v7075 = vpop.permute.xlu0 %7074
  %7076 = vrot.lane.b32.xlu0 %v5133, 40
  %v7077 = vpop.permute.xlu0 %7076
  %7078 = vrot.lane.b32.xlu0 %v5135, 40
  %v7079 = vpop.permute.xlu0 %7078
  %v7081 = vsel %vm5157, %v7065, 0
  %v7084 = vsel %vm5157, %v7067, 0
  %v7087 = vsel %vm5157, %v7069, 0
  %v7090 = vsel %vm5157, %v7071, 0
  %v7093 = vsel %vm5157, %v7073, 0
  %v7096 = vsel %vm5157, %v7075, 0
  %v7099 = vsel %vm5157, %v7077, 0
  %v7102 = vsel %vm5157, %v7079, 0
  %7104 = vmatprep.subr.bf16.mxu0 0
  %7105 = vmatpush1.bf16.xpose.msra.mxu0 %v7093
  %7106 = vmatprep.subr.bf16.mxu0 0
  %7107 = vmatpush1.bf16.xpose.msra.mxu0 %v7096
  %7108 = vmatprep.subr.bf16.mxu0 0
  %7109 = vmatpush1.bf16.xpose.msra.mxu0 %v7099
  %7110 = vmatprep.subr.bf16.mxu0 0
  %7111 = vmatpush1.bf16.xpose.msra.mxu0 %v7102
  %7112 = vmatprep.subr.bf16.mxu0 0
  %7113 = vmatpush1.bf16.xpose.msra.mxu0 0
  %7114 = vmatprep.subr.bf16.mxu0 0
  %7115 = vmatpush1.bf16.xpose.msra.mxu0 0
  %7116 = vmatprep.subr.bf16.mxu0 0
  %7117 = vmatpush1.bf16.xpose.msra.mxu0 0
  %7118 = vmatprep.subr.bf16.mxu0 0
  %7119 = vmatpush1.bf16.xpose.msra.mxu0 0
  %7120 = vmatprep.subr.bf16.mxu0 0
  %7121 = vmatpush1.bf16.xpose.msra.mxu0 0
  %7122 = vmatprep.subr.bf16.mxu0 0
  %7123 = vmatpush1.bf16.xpose.msra.mxu0 0
  %7124 = vmatprep.subr.bf16.mxu0 0
  %7125 = vmatpush1.bf16.xpose.msra.mxu0 0
  %7126 = vmatprep.subr.bf16.mxu0 0
  %7127 = vmatpush1.bf16.xpose.msra.mxu0 0
  %7128 = vmatprep.subr.bf16.mxu0 0
  %7129 = vmatpush1.bf16.xpose.msra.mxu0 0
  %7130 = vmatprep.subr.bf16.mxu0 0
  %7131 = vmatpush1.bf16.xpose.msra.mxu0 0
  %7132 = vmatprep.subr.bf16.mxu0 0
  %7133 = vmatpush1.bf16.xpose.msra.mxu0 0
  %7134 = vmatprep.subr.bf16.mxu0 0
  %7135 = vmatpush1.bf16.xpose.msra.mxu0 0
  %7136 = vmatprep.mubr.bf16.mxu0 0
  %7137 = vmatmul.mubr.bf16.gmra.mrb[0].mxu0 %v7081
  %v7138 = vpop.f32.mrb[0].mxu0
  %v7139 = vadd.f32 0.0, %v7138
  %v7140 = vpop.f32.mrb[0].mxu0
  %v7141 = vpop.f32.mrb[0].mxu0
  %v7142 = vadd.f32 0.0, %v7141
  %v7143 = vpop.f32.mrb[0].mxu0
  %7144 = vmatprep.mubr.bf16.mxu0 0
  %7145 = vmatmul.mubr.bf16.gmra.mrb[0].mxu0 %v7084
  %v7146 = vpop.f32.mrb[0].mxu0
  %v7147 = vadd.f32 0.0, %v7146
  %v7148 = vpop.f32.mrb[0].mxu0
  %v7149 = vpop.f32.mrb[0].mxu0
  %v7150 = vadd.f32 0.0, %v7149
  %v7151 = vpop.f32.mrb[0].mxu0
  %7152 = vmatprep.mubr.bf16.mxu0 0
  %7153 = vmatmul.mubr.bf16.gmra.mrb[0].mxu0 %v7087
  %v7154 = vpop.f32.mrb[0].mxu0
  %v7155 = vadd.f32 0.0, %v7154
  %v7156 = vpop.f32.mrb[0].mxu0
  %v7157 = vpop.f32.mrb[0].mxu0
  %v7158 = vadd.f32 0.0, %v7157
  %v7159 = vpop.f32.mrb[0].mxu0
  %7160 = vmatprep.mubr.bf16.mxu0 0
  %7161 = vmatmul.mubr.bf16.gmra.mrb[0].mxu0 %v7090
  %v7162 = vpop.f32.mrb[0].mxu0
  %v7163 = vadd.f32 0.0, %v7162
  %v7164 = vpop.f32.mrb[0].mxu0
  %v7165 = vpop.f32.mrb[0].mxu0
  %v7166 = vadd.f32 0.0, %v7165
  %v7167 = vpop.f32.mrb[0].mxu0
  %7168 = vdwg.mxu0
  %7169 = vrot.lane.b32.xlu0 %v5137, 104
  %v7170 = vpop.permute.xlu0 %7169
  %7171 = vrot.lane.b32.xlu0 %v5139, 104
  %v7172 = vpop.permute.xlu0 %7171
  %7173 = vrot.lane.b32.xlu0 %v5141, 104
  %v7174 = vpop.permute.xlu0 %7173
  %7175 = vrot.lane.b32.xlu0 %v5143, 104
  %v7176 = vpop.permute.xlu0 %7175
  %7177 = vrot.lane.b32.xlu0 %v5137, 40
  %v7178 = vpop.permute.xlu0 %7177
  %7179 = vrot.lane.b32.xlu0 %v5139, 40
  %v7180 = vpop.permute.xlu0 %7179
  %7181 = vrot.lane.b32.xlu0 %v5141, 40
  %v7182 = vpop.permute.xlu0 %7181
  %7183 = vrot.lane.b32.xlu0 %v5143, 40
  %v7184 = vpop.permute.xlu0 %7183
  %v7186 = vsel %vm5157, %v7170, 0
  %v7189 = vsel %vm5157, %v7172, 0
  %v7192 = vsel %vm5157, %v7174, 0
  %v7195 = vsel %vm5157, %v7176, 0
  %v7198 = vsel %vm5157, %v7178, 0
  %v7201 = vsel %vm5157, %v7180, 0
  %v7204 = vsel %vm5157, %v7182, 0
  %v7207 = vsel %vm5157, %v7184, 0
  %7209 = vmatprep.subr.bf16.mxu0 0
  %7210 = vmatpush1.bf16.xpose.msra.mxu0 %v7198
  %7211 = vmatprep.subr.bf16.mxu0 0
  %7212 = vmatpush1.bf16.xpose.msra.mxu0 %v7201
  %7213 = vmatprep.subr.bf16.mxu0 0
  %7214 = vmatpush1.bf16.xpose.msra.mxu0 %v7204
  %7215 = vmatprep.subr.bf16.mxu0 0
  %7216 = vmatpush1.bf16.xpose.msra.mxu0 %v7207
  %7217 = vmatprep.subr.bf16.mxu0 0
  %7218 = vmatpush1.bf16.xpose.msra.mxu0 0
  %7219 = vmatprep.subr.bf16.mxu0 0
  %7220 = vmatpush1.bf16.xpose.msra.mxu0 0
  %7221 = vmatprep.subr.bf16.mxu0 0
  %7222 = vmatpush1.bf16.xpose.msra.mxu0 0
  %7223 = vmatprep.subr.bf16.mxu0 0
  %7224 = vmatpush1.bf16.xpose.msra.mxu0 0
  %7225 = vmatprep.subr.bf16.mxu0 0
  %7226 = vmatpush1.bf16.xpose.msra.mxu0 0
  %7227 = vmatprep.subr.bf16.mxu0 0
  %7228 = vmatpush1.bf16.xpose.msra.mxu0 0
  %7229 = vmatprep.subr.bf16.mxu0 0
  %7230 = vmatpush1.bf16.xpose.msra.mxu0 0
  %7231 = vmatprep.subr.bf16.mxu0 0
  %7232 = vmatpush1.bf16.xpose.msra.mxu0 0
  %7233 = vmatprep.subr.bf16.mxu0 0
  %7234 = vmatpush1.bf16.xpose.msra.mxu0 0
  %7235 = vmatprep.subr.bf16.mxu0 0
  %7236 = vmatpush1.bf16.xpose.msra.mxu0 0
  %7237 = vmatprep.subr.bf16.mxu0 0
  %7238 = vmatpush1.bf16.xpose.msra.mxu0 0
  %7239 = vmatprep.subr.bf16.mxu0 0
  %7240 = vmatpush1.bf16.xpose.msra.mxu0 0
  %7241 = vmatprep.mubr.bf16.mxu0 0
  %7242 = vmatmul.mubr.bf16.gmra.mrb[0].mxu0 %v7186
  %v7243 = vpop.f32.mrb[0].mxu0
  %v7244 = vadd.f32 0.0, %v7243
  %v7245 = vpop.f32.mrb[0].mxu0
  %v7246 = vpop.f32.mrb[0].mxu0
  %v7247 = vadd.f32 0.0, %v7246
  %v7248 = vpop.f32.mrb[0].mxu0
  %7249 = vmatprep.mubr.bf16.mxu0 0
  %7250 = vmatmul.mubr.bf16.gmra.mrb[0].mxu0 %v7189
  %v7251 = vpop.f32.mrb[0].mxu0
  %v7252 = vadd.f32 0.0, %v7251
  %v7253 = vpop.f32.mrb[0].mxu0
  %v7254 = vpop.f32.mrb[0].mxu0
  %v7255 = vadd.f32 0.0, %v7254
  %v7256 = vpop.f32.mrb[0].mxu0
  %7257 = vmatprep.mubr.bf16.mxu0 0
  %7258 = vmatmul.mubr.bf16.gmra.mrb[0].mxu0 %v7192
  %v7259 = vpop.f32.mrb[0].mxu0
  %v7260 = vadd.f32 0.0, %v7259
  %v7261 = vpop.f32.mrb[0].mxu0
  %v7262 = vpop.f32.mrb[0].mxu0
  %v7263 = vadd.f32 0.0, %v7262
  %v7264 = vpop.f32.mrb[0].mxu0
  %7265 = vmatprep.mubr.bf16.mxu0 0
  %7266 = vmatmul.mubr.bf16.gmra.mrb[0].mxu0 %v7195
  %v7267 = vpop.f32.mrb[0].mxu0
  %v7268 = vadd.f32 0.0, %v7267
  %v7269 = vpop.f32.mrb[0].mxu0
  %v7270 = vpop.f32.mrb[0].mxu0
  %v7271 = vadd.f32 0.0, %v7270
  %v7272 = vpop.f32.mrb[0].mxu0
  %7273 = vdwg.mxu0
  %v7274 = vmul.f32 %v7139, 0.35355338
  %v7275 = vmul.f32 %v7142, 0.35355338
  %v7276 = vmul.f32 %v7147, 0.35355338
  %v7277 = vmul.f32 %v7150, 0.35355338
  %v7278 = vmul.f32 %v7155, 0.35355338
  %v7279 = vmul.f32 %v7158, 0.35355338
  %v7280 = vmul.f32 %v7163, 0.35355338
  %v7281 = vmul.f32 %v7166, 0.35355338
  %v7282 = vmul.f32 %v7244, 0.35355338
  %v7283 = vmul.f32 %v7247, 0.35355338
  %v7284 = vmul.f32 %v7252, 0.35355338
  %v7285 = vmul.f32 %v7255, 0.35355338
  %v7286 = vmul.f32 %v7260, 0.35355338
  %v7287 = vmul.f32 %v7263, 0.35355338
  %v7288 = vmul.f32 %v7268, 0.35355338
  %v7289 = vmul.f32 %v7271, 0.35355338
  %v7290 = vsel %vm3950, %v7274, -inf
  %7291 = vmax.xlane.f32.xlu0 %v7290
  %v7292 = vpop.xlane.xlu0 %7291
  %v7293 = vsel %vm3950, %v7275, -inf
  %7294 = vmax.xlane.f32.xlu0 %v7293
  %v7295 = vpop.xlane.xlu0 %7294
  %v7296 = vsel %vm3950, %v7276, -inf
  %7297 = vmax.xlane.f32.xlu0 %v7296
  %v7298 = vpop.xlane.xlu0 %7297
  %v7299 = vsel %vm3950, %v7277, -inf
  %7300 = vmax.xlane.f32.xlu0 %v7299
  %v7301 = vpop.xlane.xlu0 %7300
  %v7302 = vsel %vm3950, %v7278, -inf
  %7303 = vmax.xlane.f32.xlu0 %v7302
  %v7304 = vpop.xlane.xlu0 %7303
  %v7305 = vsel %vm3950, %v7279, -inf
  %7306 = vmax.xlane.f32.xlu0 %v7305
  %v7307 = vpop.xlane.xlu0 %7306
  %v7308 = vsel %vm3950, %v7280, -inf
  %7309 = vmax.xlane.f32.xlu0 %v7308
  %v7310 = vpop.xlane.xlu0 %7309
  %v7311 = vsel %vm3950, %v7281, -inf
  %7312 = vmax.xlane.f32.xlu0 %v7311
  %v7313 = vpop.xlane.xlu0 %7312
  %v7314 = vsel %vm3950, %v7282, -inf
  %7315 = vmax.xlane.f32.xlu0 %v7314
  %v7316 = vpop.xlane.xlu0 %7315
  %v7317 = vsel %vm3950, %v7283, -inf
  %7318 = vmax.xlane.f32.xlu0 %v7317
  %v7319 = vpop.xlane.xlu0 %7318
  %v7320 = vsel %vm3950, %v7284, -inf
  %7321 = vmax.xlane.f32.xlu0 %v7320
  %v7322 = vpop.xlane.xlu0 %7321
  %v7323 = vsel %vm3950, %v7285, -inf
  %7324 = vmax.xlane.f32.xlu0 %v7323
  %v7325 = vpop.xlane.xlu0 %7324
  %v7326 = vsel %vm3950, %v7286, -inf
  %7327 = vmax.xlane.f32.xlu0 %v7326
  %v7328 = vpop.xlane.xlu0 %7327
  %v7329 = vsel %vm3950, %v7287, -inf
  %7330 = vmax.xlane.f32.xlu0 %v7329
  %v7331 = vpop.xlane.xlu0 %7330
  %v7332 = vsel %vm3950, %v7288, -inf
  %7333 = vmax.xlane.f32.xlu0 %v7332
  %v7334 = vpop.xlane.xlu0 %7333
  %v7335 = vsel %vm3950, %v7289, -inf
  %7336 = vmax.xlane.f32.xlu0 %v7335
  %v7337 = vpop.xlane.xlu0 %7336
  %v7338 = vsub.f32 %v7274, %v7292
  %v7339 = vsub.f32 %v7275, %v7295
  %v7340 = vsub.f32 %v7276, %v7298
  %v7341 = vsub.f32 %v7277, %v7301
  %v7342 = vsub.f32 %v7278, %v7304
  %v7343 = vsub.f32 %v7279, %v7307
  %v7344 = vsub.f32 %v7280, %v7310
  %v7345 = vsub.f32 %v7281, %v7313
  %v7346 = vsub.f32 %v7282, %v7316
  %v7347 = vsub.f32 %v7283, %v7319
  %v7348 = vsub.f32 %v7284, %v7322
  %v7349 = vsub.f32 %v7285, %v7325
  %v7350 = vsub.f32 %v7286, %v7328
  %v7351 = vsub.f32 %v7287, %v7331
  %v7352 = vsub.f32 %v7288, %v7334
  %v7353 = vsub.f32 %v7289, %v7337
  %v7354 = vmul.f32 %v7338, 1.442695
  %v7355 = vpow.pop %v7354
  %v7356 = vmul.f32 %v7339, 1.442695
  %v7357 = vpow.pop %v7356
  %v7358 = vmul.f32 %v7340, 1.442695
  %v7359 = vpow.pop %v7358
  %v7360 = vmul.f32 %v7341, 1.442695
  %v7361 = vpow.pop %v7360
  %v7362 = vmul.f32 %v7342, 1.442695
  %v7363 = vpow.pop %v7362
  %v7364 = vmul.f32 %v7343, 1.442695
  %v7365 = vpow.pop %v7364
  %v7366 = vmul.f32 %v7344, 1.442695
  %v7367 = vpow.pop %v7366
  %v7368 = vmul.f32 %v7345, 1.442695
  %v7369 = vpow.pop %v7368
  %v7370 = vmul.f32 %v7346, 1.442695
  %v7371 = vpow.pop %v7370
  %v7372 = vmul.f32 %v7347, 1.442695
  %v7373 = vpow.pop %v7372
  %v7374 = vmul.f32 %v7348, 1.442695
  %v7375 = vpow.pop %v7374
  %v7376 = vmul.f32 %v7349, 1.442695
  %v7377 = vpow.pop %v7376
  %v7378 = vmul.f32 %v7350, 1.442695
  %v7379 = vpow.pop %v7378
  %v7380 = vmul.f32 %v7351, 1.442695
  %v7381 = vpow.pop %v7380
  %v7382 = vmul.f32 %v7352, 1.442695
  %v7383 = vpow.pop %v7382
  %v7384 = vmul.f32 %v7353, 1.442695
  %v7385 = vpow.pop %v7384
  %v7386 = vsel %vm3950, %v7355, 0.0
  %7387 = vadd.xlane.f32.xlu0 %v7386
  %v7388 = vpop.xlane.xlu0 %7387
  %v7389 = vsel %vm3950, %v7357, 0.0
  %7390 = vadd.xlane.f32.xlu0 %v7389
  %v7391 = vpop.xlane.xlu0 %7390
  %v7392 = vsel %vm3950, %v7359, 0.0
  %7393 = vadd.xlane.f32.xlu0 %v7392
  %v7394 = vpop.xlane.xlu0 %7393
  %v7395 = vsel %vm3950, %v7361, 0.0
  %7396 = vadd.xlane.f32.xlu0 %v7395
  %v7397 = vpop.xlane.xlu0 %7396
  %v7398 = vsel %vm3950, %v7363, 0.0
  %7399 = vadd.xlane.f32.xlu0 %v7398
  %v7400 = vpop.xlane.xlu0 %7399
  %v7401 = vsel %vm3950, %v7365, 0.0
  %7402 = vadd.xlane.f32.xlu0 %v7401
  %v7403 = vpop.xlane.xlu0 %7402
  %v7404 = vsel %vm3950, %v7367, 0.0
  %7405 = vadd.xlane.f32.xlu0 %v7404
  %v7406 = vpop.xlane.xlu0 %7405
  %v7407 = vsel %vm3950, %v7369, 0.0
  %7408 = vadd.xlane.f32.xlu0 %v7407
  %v7409 = vpop.xlane.xlu0 %7408
  %v7410 = vsel %vm3950, %v7371, 0.0
  %7411 = vadd.xlane.f32.xlu0 %v7410
  %v7412 = vpop.xlane.xlu0 %7411
  %v7413 = vsel %vm3950, %v7373, 0.0
  %7414 = vadd.xlane.f32.xlu0 %v7413
  %v7415 = vpop.xlane.xlu0 %7414
  %v7416 = vsel %vm3950, %v7375, 0.0
  %7417 = vadd.xlane.f32.xlu0 %v7416
  %v7418 = vpop.xlane.xlu0 %7417
  %v7419 = vsel %vm3950, %v7377, 0.0
  %7420 = vadd.xlane.f32.xlu0 %v7419
  %v7421 = vpop.xlane.xlu0 %7420
  %v7422 = vsel %vm3950, %v7379, 0.0
  %7423 = vadd.xlane.f32.xlu0 %v7422
  %v7424 = vpop.xlane.xlu0 %7423
  %v7425 = vsel %vm3950, %v7381, 0.0
  %7426 = vadd.xlane.f32.xlu0 %v7425
  %v7427 = vpop.xlane.xlu0 %7426
  %v7428 = vsel %vm3950, %v7383, 0.0
  %7429 = vadd.xlane.f32.xlu0 %v7428
  %v7430 = vpop.xlane.xlu0 %7429
  %v7431 = vsel %vm3950, %v7385, 0.0
  %7432 = vadd.xlane.f32.xlu0 %v7431
  %v7433 = vpop.xlane.xlu0 %7432
  %v7434 = vrcp.pop %v7388
  %v7435 = vrcp.pop %v7391
  %v7436 = vrcp.pop %v7394
  %v7437 = vrcp.pop %v7397
  %v7438 = vrcp.pop %v7400
  %v7439 = vrcp.pop %v7403
  %v7440 = vrcp.pop %v7406
  %v7441 = vrcp.pop %v7409
  %v7442 = vrcp.pop %v7412
  %v7443 = vrcp.pop %v7415
  %v7444 = vrcp.pop %v7418
  %v7445 = vrcp.pop %v7421
  %v7446 = vrcp.pop %v7424
  %v7447 = vrcp.pop %v7427
  %v7448 = vrcp.pop %v7430
  %v7449 = vrcp.pop %v7433
  %v7450 = vmul.f32 %v7355, %v7434
  %v7451 = vmul.f32 %v7357, %v7435
  %v7452 = vmul.f32 %v7359, %v7436
  %v7453 = vmul.f32 %v7361, %v7437
  %v7454 = vmul.f32 %v7363, %v7438
  %v7455 = vmul.f32 %v7365, %v7439
  %v7456 = vmul.f32 %v7367, %v7440
  %v7457 = vmul.f32 %v7369, %v7441
  %v7458 = vmul.f32 %v7371, %v7442
  %v7459 = vmul.f32 %v7373, %v7443
  %v7460 = vmul.f32 %v7375, %v7444
  %v7461 = vmul.f32 %v7377, %v7445
  %v7462 = vmul.f32 %v7379, %v7446
  %v7463 = vmul.f32 %v7381, %v7447
  %v7464 = vmul.f32 %v7383, %v7448
  %v7465 = vmul.f32 %v7385, %v7449
  %v7466 = vpack.c.bf16 %v7451, %v7450
  %v7467 = vpack.c.bf16 %v7453, %v7452
  %v7468 = vpack.c.bf16 %v7455, %v7454
  %v7469 = vpack.c.bf16 %v7457, %v7456
  %v7470 = vpack.c.bf16 %v7459, %v7458
  %v7471 = vpack.c.bf16 %v7461, %v7460
  %v7472 = vpack.c.bf16 %v7463, %v7462
  %v7473 = vpack.c.bf16 %v7465, %v7464
  %7474 = vrot.lane.b32.xlu0 %v5130, 104
  %v7475 = vpop.permute.xlu0 %7474
  %7476 = vrot.lane.b32.xlu0 %v5132, 104
  %v7477 = vpop.permute.xlu0 %7476
  %7478 = vrot.lane.b32.xlu0 %v5134, 104
  %v7479 = vpop.permute.xlu0 %7478
  %7480 = vrot.lane.b32.xlu0 %v5136, 104
  %v7481 = vpop.permute.xlu0 %7480
  %v7487 = vsel %vm3950, %v7466, 0
  %v7490 = vsel %vm3950, %v7467, 0
  %v7493 = vsel %vm3950, %v7468, 0
  %v7496 = vsel %vm3950, %v7469, 0
  %7498 = vmatprep.subr.bf16.mxu0 0
  %7499 = vmatpush1.bf16.msra.mxu0 %v7475
  %7500 = vmatprep.subr.bf16.mxu0 0
  %7501 = vmatpush1.bf16.msra.mxu0 %v7477
  %7502 = vmatprep.subr.bf16.mxu0 0
  %7503 = vmatpush1.bf16.msra.mxu0 %v7479
  %7504 = vmatprep.subr.bf16.mxu0 0
  %7505 = vmatpush1.bf16.msra.mxu0 %v7481
  %7506 = vmatprep.subr.bf16.mxu0 0
  %7507 = vmatpush1.bf16.msra.mxu0 0
  %7508 = vmatprep.subr.bf16.mxu0 0
  %7509 = vmatpush1.bf16.msra.mxu0 0
  %7510 = vmatprep.subr.bf16.mxu0 0
  %7511 = vmatpush1.bf16.msra.mxu0 0
  %7512 = vmatprep.subr.bf16.mxu0 0
  %7513 = vmatpush1.bf16.msra.mxu0 0
  %7514 = vmatprep.subr.bf16.mxu0 0
  %7515 = vmatpush1.bf16.msra.mxu0 0
  %7516 = vmatprep.subr.bf16.mxu0 0
  %7517 = vmatpush1.bf16.msra.mxu0 0
  %7518 = vmatprep.subr.bf16.mxu0 0
  %7519 = vmatpush1.bf16.msra.mxu0 0
  %7520 = vmatprep.subr.bf16.mxu0 0
  %7521 = vmatpush1.bf16.msra.mxu0 0
  %7522 = vmatprep.subr.bf16.mxu0 0
  %7523 = vmatpush1.bf16.msra.mxu0 0
  %7524 = vmatprep.subr.bf16.mxu0 0
  %7525 = vmatpush1.bf16.msra.mxu0 0
  %7526 = vmatprep.subr.bf16.mxu0 0
  %7527 = vmatpush1.bf16.msra.mxu0 0
  %7528 = vmatprep.subr.bf16.mxu0 0
  %7529 = vmatpush1.bf16.msra.mxu0 0
  %7530 = vmatprep.mubr.bf16.mxu0 0
  %7531 = vmatmul.mubr.bf16.gmra.mrb[0].mxu0 %v7487
  %v7532 = vpop.f32.mrb[0].mxu0
  %v7533 = vadd.f32 0.0, %v7532
  %v7534 = vpop.f32.mrb[0].mxu0
  %v7535 = vpop.f32.mrb[0].mxu0
  %v7536 = vadd.f32 0.0, %v7535
  %v7537 = vpop.f32.mrb[0].mxu0
  %7538 = vmatprep.mubr.bf16.mxu0 0
  %7539 = vmatmul.mubr.bf16.gmra.mrb[0].mxu0 %v7490
  %v7540 = vpop.f32.mrb[0].mxu0
  %v7541 = vadd.f32 0.0, %v7540
  %v7542 = vpop.f32.mrb[0].mxu0
  %v7543 = vpop.f32.mrb[0].mxu0
  %v7544 = vadd.f32 0.0, %v7543
  %v7545 = vpop.f32.mrb[0].mxu0
  %7546 = vmatprep.mubr.bf16.mxu0 0
  %7547 = vmatmul.mubr.bf16.gmra.mrb[0].mxu0 %v7493
  %v7548 = vpop.f32.mrb[0].mxu0
  %v7549 = vadd.f32 0.0, %v7548
  %v7550 = vpop.f32.mrb[0].mxu0
  %v7551 = vpop.f32.mrb[0].mxu0
  %v7552 = vadd.f32 0.0, %v7551
  %v7553 = vpop.f32.mrb[0].mxu0
  %7554 = vmatprep.mubr.bf16.mxu0 0
  %7555 = vmatmul.mubr.bf16.gmra.mrb[0].mxu0 %v7496
  %v7556 = vpop.f32.mrb[0].mxu0
  %v7557 = vadd.f32 0.0, %v7556
  %v7558 = vpop.f32.mrb[0].mxu0
  %v7559 = vpop.f32.mrb[0].mxu0
  %v7560 = vadd.f32 0.0, %v7559
  %v7561 = vpop.f32.mrb[0].mxu0
  %7562 = vdwg.mxu0
  %7563 = vrot.lane.b32.xlu0 %v5138, 104
  %v7564 = vpop.permute.xlu0 %7563
  %7565 = vrot.lane.b32.xlu0 %v5140, 104
  %v7566 = vpop.permute.xlu0 %7565
  %7567 = vrot.lane.b32.xlu0 %v5142, 104
  %v7568 = vpop.permute.xlu0 %7567
  %7569 = vrot.lane.b32.xlu0 %v5144, 104
  %v7570 = vpop.permute.xlu0 %7569
  %v7576 = vsel %vm3950, %v7470, 0
  %v7579 = vsel %vm3950, %v7471, 0
  %v7582 = vsel %vm3950, %v7472, 0
  %v7585 = vsel %vm3950, %v7473, 0
  %7587 = vmatprep.subr.bf16.mxu0 0
  %7588 = vmatpush1.bf16.msra.mxu0 %v7564
  %7589 = vmatprep.subr.bf16.mxu0 0
  %7590 = vmatpush1.bf16.msra.mxu0 %v7566
  %7591 = vmatprep.subr.bf16.mxu0 0
  %7592 = vmatpush1.bf16.msra.mxu0 %v7568
  %7593 = vmatprep.subr.bf16.mxu0 0
  %7594 = vmatpush1.bf16.msra.mxu0 %v7570
  %7595 = vmatprep.subr.bf16.mxu0 0
  %7596 = vmatpush1.bf16.msra.mxu0 0
  %7597 = vmatprep.subr.bf16.mxu0 0
  %7598 = vmatpush1.bf16.msra.mxu0 0
  %7599 = vmatprep.subr.bf16.mxu0 0
  %7600 = vmatpush1.bf16.msra.mxu0 0
  %7601 = vmatprep.subr.bf16.mxu0 0
  %7602 = vmatpush1.bf16.msra.mxu0 0
  %7603 = vmatprep.subr.bf16.mxu0 0
  %7604 = vmatpush1.bf16.msra.mxu0 0
  %7605 = vmatprep.subr.bf16.mxu0 0
  %7606 = vmatpush1.bf16.msra.mxu0 0
  %7607 = vmatprep.subr.bf16.mxu0 0
  %7608 = vmatpush1.bf16.msra.mxu0 0
  %7609 = vmatprep.subr.bf16.mxu0 0
  %7610 = vmatpush1.bf16.msra.mxu0 0
  %7611 = vmatprep.subr.bf16.mxu0 0
  %7612 = vmatpush1.bf16.msra.mxu0 0
  %7613 = vmatprep.subr.bf16.mxu0 0
  %7614 = vmatpush1.bf16.msra.mxu0 0
  %7615 = vmatprep.subr.bf16.mxu0 0
  %7616 = vmatpush1.bf16.msra.mxu0 0
  %7617 = vmatprep.subr.bf16.mxu0 0
  %7618 = vmatpush1.bf16.msra.mxu0 0
  %7619 = vmatprep.mubr.bf16.mxu0 0
  %7620 = vmatmul.mubr.bf16.gmra.mrb[0].mxu0 %v7576
  %v7621 = vpop.f32.mrb[0].mxu0
  %v7622 = vadd.f32 0.0, %v7621
  %v7623 = vpop.f32.mrb[0].mxu0
  %v7624 = vpop.f32.mrb[0].mxu0
  %v7625 = vadd.f32 0.0, %v7624
  %v7626 = vpop.f32.mrb[0].mxu0
  %7627 = vmatprep.mubr.bf16.mxu0 0
  %7628 = vmatmul.mubr.bf16.gmra.mrb[0].mxu0 %v7579
  %v7629 = vpop.f32.mrb[0].mxu0
  %v7630 = vadd.f32 0.0, %v7629
  %v7631 = vpop.f32.mrb[0].mxu0
  %v7632 = vpop.f32.mrb[0].mxu0
  %v7633 = vadd.f32 0.0, %v7632
  %v7634 = vpop.f32.mrb[0].mxu0
  %7635 = vmatprep.mubr.bf16.mxu0 0
  %7636 = vmatmul.mubr.bf16.gmra.mrb[0].mxu0 %v7582
  %v7637 = vpop.f32.mrb[0].mxu0
  %v7638 = vadd.f32 0.0, %v7637
  %v7639 = vpop.f32.mrb[0].mxu0
  %v7640 = vpop.f32.mrb[0].mxu0
  %v7641 = vadd.f32 0.0, %v7640
  %v7642 = vpop.f32.mrb[0].mxu0
  %7643 = vmatprep.mubr.bf16.mxu0 0
  %7644 = vmatmul.mubr.bf16.gmra.mrb[0].mxu0 %v7585
  %v7645 = vpop.f32.mrb[0].mxu0
  %v7646 = vadd.f32 0.0, %v7645
  %v7647 = vpop.f32.mrb[0].mxu0
  %v7648 = vpop.f32.mrb[0].mxu0
  %v7649 = vadd.f32 0.0, %v7648
  %v7650 = vpop.f32.mrb[0].mxu0
  %7651 = vdwg.mxu0
  %7668 = vrot.lane.b32.xlu0 %v7533, 24
  %v7669 = vpop.permute.xlu0 %7668
  %7670 = vrot.lane.b32.xlu0 %v7536, 24
  %v7671 = vpop.permute.xlu0 %7670
  %7672 = vrot.lane.b32.xlu0 %v7541, 24
  %v7673 = vpop.permute.xlu0 %7672
  %7674 = vrot.lane.b32.xlu0 %v7544, 24
  %v7675 = vpop.permute.xlu0 %7674
  %7676 = vrot.lane.b32.xlu0 %v7549, 24
  %v7677 = vpop.permute.xlu0 %7676
  %7678 = vrot.lane.b32.xlu0 %v7552, 24
  %v7679 = vpop.permute.xlu0 %7678
  %7680 = vrot.lane.b32.xlu0 %v7557, 24
  %v7681 = vpop.permute.xlu0 %7680
  %7682 = vrot.lane.b32.xlu0 %v7560, 24
  %v7683 = vpop.permute.xlu0 %7682
  %7684 = vrot.lane.b32.xlu0 %v7622, 24
  %v7685 = vpop.permute.xlu0 %7684
  %7686 = vrot.lane.b32.xlu0 %v7625, 24
  %v7687 = vpop.permute.xlu0 %7686
  %7688 = vrot.lane.b32.xlu0 %v7630, 24
  %v7689 = vpop.permute.xlu0 %7688
  %7690 = vrot.lane.b32.xlu0 %v7633, 24
  %v7691 = vpop.permute.xlu0 %7690
  %7692 = vrot.lane.b32.xlu0 %v7638, 24
  %v7693 = vpop.permute.xlu0 %7692
  %7694 = vrot.lane.b32.xlu0 %v7641, 24
  %v7695 = vpop.permute.xlu0 %7694
  %7696 = vrot.lane.b32.xlu0 %v7646, 24
  %v7697 = vpop.permute.xlu0 %7696
  %7698 = vrot.lane.b32.xlu0 %v7649, 24
  %v7699 = vpop.permute.xlu0 %7698
  %vm7716 = vcmask 261312
  %7717 = vst.msk [vmem:[#allocation2] sm:$0xff] %vm7716, %v7669
  %7718 = vst.msk [vmem:[#allocation2 + $0x8] sm:$0xff] %vm7716, %v7671
  %7719 = vst.msk [vmem:[#allocation2 + $0x10] sm:$0xff] %vm7716, %v7673
  %7720 = vst.msk [vmem:[#allocation2 + $0x18] sm:$0xff] %vm7716, %v7675
  %7721 = vst.msk [vmem:[#allocation2 + $0x20] sm:$0xff] %vm7716, %v7677
  %7722 = vst.msk [vmem:[#allocation2 + $0x28] sm:$0xff] %vm7716, %v7679
  %7723 = vst.msk [vmem:[#allocation2 + $0x30] sm:$0xff] %vm7716, %v7681
  %7724 = vst.msk [vmem:[#allocation2 + $0x38] sm:$0xff] %vm7716, %v7683
  %7725 = vst.msk [vmem:[#allocation2 + $0x40] sm:$0xff] %vm7716, %v7685
  %7726 = vst.msk [vmem:[#allocation2 + $0x48] sm:$0xff] %vm7716, %v7687
  %7727 = vst.msk [vmem:[#allocation2 + $0x50] sm:$0xff] %vm7716, %v7689
  %7728 = vst.msk [vmem:[#allocation2 + $0x58] sm:$0xff] %vm7716, %v7691
  %7729 = vst.msk [vmem:[#allocation2 + $0x60] sm:$0xff] %vm7716, %v7693
  %7730 = vst.msk [vmem:[#allocation2 + $0x68] sm:$0xff] %vm7716, %v7695
  %7731 = vst.msk [vmem:[#allocation2 + $0x70] sm:$0xff] %vm7716, %v7697
  %7732 = vst.msk [vmem:[#allocation2 + $0x78] sm:$0xff] %vm7716, %v7699
  %7733 = vrot.lane.b32.xlu0 %v5129, 96
  %v7734 = vpop.permute.xlu0 %7733
  %7735 = vrot.lane.b32.xlu0 %v5131, 96
  %v7736 = vpop.permute.xlu0 %7735
  %7737 = vrot.lane.b32.xlu0 %v5133, 96
  %v7738 = vpop.permute.xlu0 %7737
  %7739 = vrot.lane.b32.xlu0 %v5135, 96
  %v7740 = vpop.permute.xlu0 %7739
  %7741 = vrot.lane.b32.xlu0 %v5129, 32
  %v7742 = vpop.permute.xlu0 %7741
  %7743 = vrot.lane.b32.xlu0 %v5131, 32
  %v7744 = vpop.permute.xlu0 %7743
  %7745 = vrot.lane.b32.xlu0 %v5133, 32
  %v7746 = vpop.permute.xlu0 %7745
  %7747 = vrot.lane.b32.xlu0 %v5135, 32
  %v7748 = vpop.permute.xlu0 %7747
  %v7750 = vsel %vm5157, %v7734, 0
  %v7753 = vsel %vm5157, %v7736, 0
  %v7756 = vsel %vm5157, %v7738, 0
  %v7759 = vsel %vm5157, %v7740, 0
  %v7762 = vsel %vm5157, %v7742, 0
  %v7765 = vsel %vm5157, %v7744, 0
  %v7768 = vsel %vm5157, %v7746, 0
  %v7771 = vsel %vm5157, %v7748, 0
  %7773 = vmatprep.subr.bf16.mxu0 0
  %7774 = vmatpush1.bf16.xpose.msra.mxu0 %v7762
  %7775 = vmatprep.subr.bf16.mxu0 0
  %7776 = vmatpush1.bf16.xpose.msra.mxu0 %v7765
  %7777 = vmatprep.subr.bf16.mxu0 0
  %7778 = vmatpush1.bf16.xpose.msra.mxu0 %v7768
  %7779 = vmatprep.subr.bf16.mxu0 0
  %7780 = vmatpush1.bf16.xpose.msra.mxu0 %v7771
  %7781 = vmatprep.subr.bf16.mxu0 0
  %7782 = vmatpush1.bf16.xpose.msra.mxu0 0
  %7783 = vmatprep.subr.bf16.mxu0 0
  %7784 = vmatpush1.bf16.xpose.msra.mxu0 0
  %7785 = vmatprep.subr.bf16.mxu0 0
  %7786 = vmatpush1.bf16.xpose.msra.mxu0 0
  %7787 = vmatprep.subr.bf16.mxu0 0
  %7788 = vmatpush1.bf16.xpose.msra.mxu0 0
  %7789 = vmatprep.subr.bf16.mxu0 0
  %7790 = vmatpush1.bf16.xpose.msra.mxu0 0
  %7791 = vmatprep.subr.bf16.mxu0 0
  %7792 = vmatpush1.bf16.xpose.msra.mxu0 0
  %7793 = vmatprep.subr.bf16.mxu0 0
  %7794 = vmatpush1.bf16.xpose.msra.mxu0 0
  %7795 = vmatprep.subr.bf16.mxu0 0
  %7796 = vmatpush1.bf16.xpose.msra.mxu0 0
  %7797 = vmatprep.subr.bf16.mxu0 0
  %7798 = vmatpush1.bf16.xpose.msra.mxu0 0
  %7799 = vmatprep.subr.bf16.mxu0 0
  %7800 = vmatpush1.bf16.xpose.msra.mxu0 0
  %7801 = vmatprep.subr.bf16.mxu0 0
  %7802 = vmatpush1.bf16.xpose.msra.mxu0 0
  %7803 = vmatprep.subr.bf16.mxu0 0
  %7804 = vmatpush1.bf16.xpose.msra.mxu0 0
  %7805 = vmatprep.mubr.bf16.mxu0 0
  %7806 = vmatmul.mubr.bf16.gmra.mrb[0].mxu0 %v7750
  %v7807 = vpop.f32.mrb[0].mxu0
  %v7808 = vadd.f32 0.0, %v7807
  %v7809 = vpop.f32.mrb[0].mxu0
  %v7810 = vpop.f32.mrb[0].mxu0
  %v7811 = vadd.f32 0.0, %v7810
  %v7812 = vpop.f32.mrb[0].mxu0
  %7813 = vmatprep.mubr.bf16.mxu0 0
  %7814 = vmatmul.mubr.bf16.gmra.mrb[0].mxu0 %v7753
  %v7815 = vpop.f32.mrb[0].mxu0
  %v7816 = vadd.f32 0.0, %v7815
  %v7817 = vpop.f32.mrb[0].mxu0
  %v7818 = vpop.f32.mrb[0].mxu0
  %v7819 = vadd.f32 0.0, %v7818
  %v7820 = vpop.f32.mrb[0].mxu0
  %7821 = vmatprep.mubr.bf16.mxu0 0
  %7822 = vmatmul.mubr.bf16.gmra.mrb[0].mxu0 %v7756
  %v7823 = vpop.f32.mrb[0].mxu0
  %v7824 = vadd.f32 0.0, %v7823
  %v7825 = vpop.f32.mrb[0].mxu0
  %v7826 = vpop.f32.mrb[0].mxu0
  %v7827 = vadd.f32 0.0, %v7826
  %v7828 = vpop.f32.mrb[0].mxu0
  %7829 = vmatprep.mubr.bf16.mxu0 0
  %7830 = vmatmul.mubr.bf16.gmra.mrb[0].mxu0 %v7759
  %v7831 = vpop.f32.mrb[0].mxu0
  %v7832 = vadd.f32 0.0, %v7831
  %v7833 = vpop.f32.mrb[0].mxu0
  %v7834 = vpop.f32.mrb[0].mxu0
  %v7835 = vadd.f32 0.0, %v7834
  %v7836 = vpop.f32.mrb[0].mxu0
  %7837 = vdwg.mxu0
  %7838 = vrot.lane.b32.xlu0 %v5137, 96
  %v7839 = vpop.permute.xlu0 %7838
  %7840 = vrot.lane.b32.xlu0 %v5139, 96
  %v7841 = vpop.permute.xlu0 %7840
  %7842 = vrot.lane.b32.xlu0 %v5141, 96
  %v7843 = vpop.permute.xlu0 %7842
  %7844 = vrot.lane.b32.xlu0 %v5143, 96
  %v7845 = vpop.permute.xlu0 %7844
  %7846 = vrot.lane.b32.xlu0 %v5137, 32
  %v7847 = vpop.permute.xlu0 %7846
  %7848 = vrot.lane.b32.xlu0 %v5139, 32
  %v7849 = vpop.permute.xlu0 %7848
  %7850 = vrot.lane.b32.xlu0 %v5141, 32
  %v7851 = vpop.permute.xlu0 %7850
  %7852 = vrot.lane.b32.xlu0 %v5143, 32
  %v7853 = vpop.permute.xlu0 %7852
  %v7855 = vsel %vm5157, %v7839, 0
  %v7858 = vsel %vm5157, %v7841, 0
  %v7861 = vsel %vm5157, %v7843, 0
  %v7864 = vsel %vm5157, %v7845, 0
  %v7867 = vsel %vm5157, %v7847, 0
  %v7870 = vsel %vm5157, %v7849, 0
  %v7873 = vsel %vm5157, %v7851, 0
  %v7876 = vsel %vm5157, %v7853, 0
  %7878 = vmatprep.subr.bf16.mxu0 0
  %7879 = vmatpush1.bf16.xpose.msra.mxu0 %v7867
  %7880 = vmatprep.subr.bf16.mxu0 0
  %7881 = vmatpush1.bf16.xpose.msra.mxu0 %v7870
  %7882 = vmatprep.subr.bf16.mxu0 0
  %7883 = vmatpush1.bf16.xpose.msra.mxu0 %v7873
  %7884 = vmatprep.subr.bf16.mxu0 0
  %7885 = vmatpush1.bf16.xpose.msra.mxu0 %v7876
  %7886 = vmatprep.subr.bf16.mxu0 0
  %7887 = vmatpush1.bf16.xpose.msra.mxu0 0
  %7888 = vmatprep.subr.bf16.mxu0 0
  %7889 = vmatpush1.bf16.xpose.msra.mxu0 0
  %7890 = vmatprep.subr.bf16.mxu0 0
  %7891 = vmatpush1.bf16.xpose.msra.mxu0 0
  %7892 = vmatprep.subr.bf16.mxu0 0
  %7893 = vmatpush1.bf16.xpose.msra.mxu0 0
  %7894 = vmatprep.subr.bf16.mxu0 0
  %7895 = vmatpush1.bf16.xpose.msra.mxu0 0
  %7896 = vmatprep.subr.bf16.mxu0 0
  %7897 = vmatpush1.bf16.xpose.msra.mxu0 0
  %7898 = vmatprep.subr.bf16.mxu0 0
  %7899 = vmatpush1.bf16.xpose.msra.mxu0 0
  %7900 = vmatprep.subr.bf16.mxu0 0
  %7901 = vmatpush1.bf16.xpose.msra.mxu0 0
  %7902 = vmatprep.subr.bf16.mxu0 0
  %7903 = vmatpush1.bf16.xpose.msra.mxu0 0
  %7904 = vmatprep.subr.bf16.mxu0 0
  %7905 = vmatpush1.bf16.xpose.msra.mxu0 0
  %7906 = vmatprep.subr.bf16.mxu0 0
  %7907 = vmatpush1.bf16.xpose.msra.mxu0 0
  %7908 = vmatprep.subr.bf16.mxu0 0
  %7909 = vmatpush1.bf16.xpose.msra.mxu0 0
  %7910 = vmatprep.mubr.bf16.mxu0 0
  %7911 = vmatmul.mubr.bf16.gmra.mrb[0].mxu0 %v7855
  %v7912 = vpop.f32.mrb[0].mxu0
  %v7913 = vadd.f32 0.0, %v7912
  %v7914 = vpop.f32.mrb[0].mxu0
  %v7915 = vpop.f32.mrb[0].mxu0
  %v7916 = vadd.f32 0.0, %v7915
  %v7917 = vpop.f32.mrb[0].mxu0
  %7918 = vmatprep.mubr.bf16.mxu0 0
  %7919 = vmatmul.mubr.bf16.gmra.mrb[0].mxu0 %v7858
  %v7920 = vpop.f32.mrb[0].mxu0
  %v7921 = vadd.f32 0.0, %v7920
  %v7922 = vpop.f32.mrb[0].mxu0
  %v7923 = vpop.f32.mrb[0].mxu0
  %v7924 = vadd.f32 0.0, %v7923
  %v7925 = vpop.f32.mrb[0].mxu0
  %7926 = vmatprep.mubr.bf16.mxu0 0
  %7927 = vmatmul.mubr.bf16.gmra.mrb[0].mxu0 %v7861
  %v7928 = vpop.f32.mrb[0].mxu0
  %v7929 = vadd.f32 0.0, %v7928
  %v7930 = vpop.f32.mrb[0].mxu0
  %v7931 = vpop.f32.mrb[0].mxu0
  %v7932 = vadd.f32 0.0, %v7931
  %v7933 = vpop.f32.mrb[0].mxu0
  %7934 = vmatprep.mubr.bf16.mxu0 0
  %7935 = vmatmul.mubr.bf16.gmra.mrb[0].mxu0 %v7864
  %v7936 = vpop.f32.mrb[0].mxu0
  %v7937 = vadd.f32 0.0, %v7936
  %v7938 = vpop.f32.mrb[0].mxu0
  %v7939 = vpop.f32.mrb[0].mxu0
  %v7940 = vadd.f32 0.0, %v7939
  %v7941 = vpop.f32.mrb[0].mxu0
  %7942 = vdwg.mxu0
  %v7943 = vmul.f32 %v7808, 0.35355338
  %v7944 = vmul.f32 %v7811, 0.35355338
  %v7945 = vmul.f32 %v7816, 0.35355338
  %v7946 = vmul.f32 %v7819, 0.35355338
  %v7947 = vmul.f32 %v7824, 0.35355338
  %v7948 = vmul.f32 %v7827, 0.35355338
  %v7949 = vmul.f32 %v7832, 0.35355338
  %v7950 = vmul.f32 %v7835, 0.35355338
  %v7951 = vmul.f32 %v7913, 0.35355338
  %v7952 = vmul.f32 %v7916, 0.35355338
  %v7953 = vmul.f32 %v7921, 0.35355338
  %v7954 = vmul.f32 %v7924, 0.35355338
  %v7955 = vmul.f32 %v7929, 0.35355338
  %v7956 = vmul.f32 %v7932, 0.35355338
  %v7957 = vmul.f32 %v7937, 0.35355338
  %v7958 = vmul.f32 %v7940, 0.35355338
  %v7959 = vsel %vm3950, %v7943, -inf
  %7960 = vmax.xlane.f32.xlu0 %v7959
  %v7961 = vpop.xlane.xlu0 %7960
  %v7962 = vsel %vm3950, %v7944, -inf
  %7963 = vmax.xlane.f32.xlu0 %v7962
  %v7964 = vpop.xlane.xlu0 %7963
  %v7965 = vsel %vm3950, %v7945, -inf
  %7966 = vmax.xlane.f32.xlu0 %v7965
  %v7967 = vpop.xlane.xlu0 %7966
  %v7968 = vsel %vm3950, %v7946, -inf
  %7969 = vmax.xlane.f32.xlu0 %v7968
  %v7970 = vpop.xlane.xlu0 %7969
  %v7971 = vsel %vm3950, %v7947, -inf
  %7972 = vmax.xlane.f32.xlu0 %v7971
  %v7973 = vpop.xlane.xlu0 %7972
  %v7974 = vsel %vm3950, %v7948, -inf
  %7975 = vmax.xlane.f32.xlu0 %v7974
  %v7976 = vpop.xlane.xlu0 %7975
  %v7977 = vsel %vm3950, %v7949, -inf
  %7978 = vmax.xlane.f32.xlu0 %v7977
  %v7979 = vpop.xlane.xlu0 %7978
  %v7980 = vsel %vm3950, %v7950, -inf
  %7981 = vmax.xlane.f32.xlu0 %v7980
  %v7982 = vpop.xlane.xlu0 %7981
  %v7983 = vsel %vm3950, %v7951, -inf
  %7984 = vmax.xlane.f32.xlu0 %v7983
  %v7985 = vpop.xlane.xlu0 %7984
  %v7986 = vsel %vm3950, %v7952, -inf
  %7987 = vmax.xlane.f32.xlu0 %v7986
  %v7988 = vpop.xlane.xlu0 %7987
  %v7989 = vsel %vm3950, %v7953, -inf
  %7990 = vmax.xlane.f32.xlu0 %v7989
  %v7991 = vpop.xlane.xlu0 %7990
  %v7992 = vsel %vm3950, %v7954, -inf
  %7993 = vmax.xlane.f32.xlu0 %v7992
  %v7994 = vpop.xlane.xlu0 %7993
  %v7995 = vsel %vm3950, %v7955, -inf
  %7996 = vmax.xlane.f32.xlu0 %v7995
  %v7997 = vpop.xlane.xlu0 %7996
  %v7998 = vsel %vm3950, %v7956, -inf
  %7999 = vmax.xlane.f32.xlu0 %v7998
  %v8000 = vpop.xlane.xlu0 %7999
  %v8001 = vsel %vm3950, %v7957, -inf
  %8002 = vmax.xlane.f32.xlu0 %v8001
  %v8003 = vpop.xlane.xlu0 %8002
  %v8004 = vsel %vm3950, %v7958, -inf
  %8005 = vmax.xlane.f32.xlu0 %v8004
  %v8006 = vpop.xlane.xlu0 %8005
  %v8007 = vsub.f32 %v7943, %v7961
  %v8008 = vsub.f32 %v7944, %v7964
  %v8009 = vsub.f32 %v7945, %v7967
  %v8010 = vsub.f32 %v7946, %v7970
  %v8011 = vsub.f32 %v7947, %v7973
  %v8012 = vsub.f32 %v7948, %v7976
  %v8013 = vsub.f32 %v7949, %v7979
  %v8014 = vsub.f32 %v7950, %v7982
  %v8015 = vsub.f32 %v7951, %v7985
  %v8016 = vsub.f32 %v7952, %v7988
  %v8017 = vsub.f32 %v7953, %v7991
  %v8018 = vsub.f32 %v7954, %v7994
  %v8019 = vsub.f32 %v7955, %v7997
  %v8020 = vsub.f32 %v7956, %v8000
  %v8021 = vsub.f32 %v7957, %v8003
  %v8022 = vsub.f32 %v7958, %v8006
  %v8023 = vmul.f32 %v8007, 1.442695
  %v8024 = vpow.pop %v8023
  %v8025 = vmul.f32 %v8008, 1.442695
  %v8026 = vpow.pop %v8025
  %v8027 = vmul.f32 %v8009, 1.442695
  %v8028 = vpow.pop %v8027
  %v8029 = vmul.f32 %v8010, 1.442695
  %v8030 = vpow.pop %v8029
  %v8031 = vmul.f32 %v8011, 1.442695
  %v8032 = vpow.pop %v8031
  %v8033 = vmul.f32 %v8012, 1.442695
  %v8034 = vpow.pop %v8033
  %v8035 = vmul.f32 %v8013, 1.442695
  %v8036 = vpow.pop %v8035
  %v8037 = vmul.f32 %v8014, 1.442695
  %v8038 = vpow.pop %v8037
  %v8039 = vmul.f32 %v8015, 1.442695
  %v8040 = vpow.pop %v8039
  %v8041 = vmul.f32 %v8016, 1.442695
  %v8042 = vpow.pop %v8041
  %v8043 = vmul.f32 %v8017, 1.442695
  %v8044 = vpow.pop %v8043
  %v8045 = vmul.f32 %v8018, 1.442695
  %v8046 = vpow.pop %v8045
  %v8047 = vmul.f32 %v8019, 1.442695
  %v8048 = vpow.pop %v8047
  %v8049 = vmul.f32 %v8020, 1.442695
  %v8050 = vpow.pop %v8049
  %v8051 = vmul.f32 %v8021, 1.442695
  %v8052 = vpow.pop %v8051
  %v8053 = vmul.f32 %v8022, 1.442695
  %v8054 = vpow.pop %v8053
  %v8055 = vsel %vm3950, %v8024, 0.0
  %8056 = vadd.xlane.f32.xlu0 %v8055
  %v8057 = vpop.xlane.xlu0 %8056
  %v8058 = vsel %vm3950, %v8026, 0.0
  %8059 = vadd.xlane.f32.xlu0 %v8058
  %v8060 = vpop.xlane.xlu0 %8059
  %v8061 = vsel %vm3950, %v8028, 0.0
  %8062 = vadd.xlane.f32.xlu0 %v8061
  %v8063 = vpop.xlane.xlu0 %8062
  %v8064 = vsel %vm3950, %v8030, 0.0
  %8065 = vadd.xlane.f32.xlu0 %v8064
  %v8066 = vpop.xlane.xlu0 %8065
  %v8067 = vsel %vm3950, %v8032, 0.0
  %8068 = vadd.xlane.f32.xlu0 %v8067
  %v8069 = vpop.xlane.xlu0 %8068
  %v8070 = vsel %vm3950, %v8034, 0.0
  %8071 = vadd.xlane.f32.xlu0 %v8070
  %v8072 = vpop.xlane.xlu0 %8071
  %v8073 = vsel %vm3950, %v8036, 0.0
  %8074 = vadd.xlane.f32.xlu0 %v8073
  %v8075 = vpop.xlane.xlu0 %8074
  %v8076 = vsel %vm3950, %v8038, 0.0
  %8077 = vadd.xlane.f32.xlu0 %v8076
  %v8078 = vpop.xlane.xlu0 %8077
  %v8079 = vsel %vm3950, %v8040, 0.0
  %8080 = vadd.xlane.f32.xlu0 %v8079
  %v8081 = vpop.xlane.xlu0 %8080
  %v8082 = vsel %vm3950, %v8042, 0.0
  %8083 = vadd.xlane.f32.xlu0 %v8082
  %v8084 = vpop.xlane.xlu0 %8083
  %v8085 = vsel %vm3950, %v8044, 0.0
  %8086 = vadd.xlane.f32.xlu0 %v8085
  %v8087 = vpop.xlane.xlu0 %8086
  %v8088 = vsel %vm3950, %v8046, 0.0
  %8089 = vadd.xlane.f32.xlu0 %v8088
  %v8090 = vpop.xlane.xlu0 %8089
  %v8091 = vsel %vm3950, %v8048, 0.0
  %8092 = vadd.xlane.f32.xlu0 %v8091
  %v8093 = vpop.xlane.xlu0 %8092
  %v8094 = vsel %vm3950, %v8050, 0.0
  %8095 = vadd.xlane.f32.xlu0 %v8094
  %v8096 = vpop.xlane.xlu0 %8095
  %v8097 = vsel %vm3950, %v8052, 0.0
  %8098 = vadd.xlane.f32.xlu0 %v8097
  %v8099 = vpop.xlane.xlu0 %8098
  %v8100 = vsel %vm3950, %v8054, 0.0
  %8101 = vadd.xlane.f32.xlu0 %v8100
  %v8102 = vpop.xlane.xlu0 %8101
  %v8103 = vrcp.pop %v8057
  %v8104 = vrcp.pop %v8060
  %v8105 = vrcp.pop %v8063
  %v8106 = vrcp.pop %v8066
  %v8107 = vrcp.pop %v8069
  %v8108 = vrcp.pop %v8072
  %v8109 = vrcp.pop %v8075
  %v8110 = vrcp.pop %v8078
  %v8111 = vrcp.pop %v8081
  %v8112 = vrcp.pop %v8084
  %v8113 = vrcp.pop %v8087
  %v8114 = vrcp.pop %v8090
  %v8115 = vrcp.pop %v8093
  %v8116 = vrcp.pop %v8096
  %v8117 = vrcp.pop %v8099
  %v8118 = vrcp.pop %v8102
  %v8119 = vmul.f32 %v8024, %v8103
  %v8120 = vmul.f32 %v8026, %v8104
  %v8121 = vmul.f32 %v8028, %v8105
  %v8122 = vmul.f32 %v8030, %v8106
  %v8123 = vmul.f32 %v8032, %v8107
  %v8124 = vmul.f32 %v8034, %v8108
  %v8125 = vmul.f32 %v8036, %v8109
  %v8126 = vmul.f32 %v8038, %v8110
  %v8127 = vmul.f32 %v8040, %v8111
  %v8128 = vmul.f32 %v8042, %v8112
  %v8129 = vmul.f32 %v8044, %v8113
  %v8130 = vmul.f32 %v8046, %v8114
  %v8131 = vmul.f32 %v8048, %v8115
  %v8132 = vmul.f32 %v8050, %v8116
  %v8133 = vmul.f32 %v8052, %v8117
  %v8134 = vmul.f32 %v8054, %v8118
  %v8135 = vpack.c.bf16 %v8120, %v8119
  %v8136 = vpack.c.bf16 %v8122, %v8121
  %v8137 = vpack.c.bf16 %v8124, %v8123
  %v8138 = vpack.c.bf16 %v8126, %v8125
  %v8139 = vpack.c.bf16 %v8128, %v8127
  %v8140 = vpack.c.bf16 %v8130, %v8129
  %v8141 = vpack.c.bf16 %v8132, %v8131
  %v8142 = vpack.c.bf16 %v8134, %v8133
  %8143 = vrot.lane.b32.xlu0 %v5130, 96
  %v8144 = vpop.permute.xlu0 %8143
  %8145 = vrot.lane.b32.xlu0 %v5132, 96
  %v8146 = vpop.permute.xlu0 %8145
  %8147 = vrot.lane.b32.xlu0 %v5134, 96
  %v8148 = vpop.permute.xlu0 %8147
  %8149 = vrot.lane.b32.xlu0 %v5136, 96
  %v8150 = vpop.permute.xlu0 %8149
  %v8156 = vsel %vm3950, %v8135, 0
  %v8159 = vsel %vm3950, %v8136, 0
  %v8162 = vsel %vm3950, %v8137, 0
  %v8165 = vsel %vm3950, %v8138, 0
  %8167 = vmatprep.subr.bf16.mxu0 0
  %8168 = vmatpush1.bf16.msra.mxu0 %v8144
  %8169 = vmatprep.subr.bf16.mxu0 0
  %8170 = vmatpush1.bf16.msra.mxu0 %v8146
  %8171 = vmatprep.subr.bf16.mxu0 0
  %8172 = vmatpush1.bf16.msra.mxu0 %v8148
  %8173 = vmatprep.subr.bf16.mxu0 0
  %8174 = vmatpush1.bf16.msra.mxu0 %v8150
  %8175 = vmatprep.subr.bf16.mxu0 0
  %8176 = vmatpush1.bf16.msra.mxu0 0
  %8177 = vmatprep.subr.bf16.mxu0 0
  %8178 = vmatpush1.bf16.msra.mxu0 0
  %8179 = vmatprep.subr.bf16.mxu0 0
  %8180 = vmatpush1.bf16.msra.mxu0 0
  %8181 = vmatprep.subr.bf16.mxu0 0
  %8182 = vmatpush1.bf16.msra.mxu0 0
  %8183 = vmatprep.subr.bf16.mxu0 0
  %8184 = vmatpush1.bf16.msra.mxu0 0
  %8185 = vmatprep.subr.bf16.mxu0 0
  %8186 = vmatpush1.bf16.msra.mxu0 0
  %8187 = vmatprep.subr.bf16.mxu0 0
  %8188 = vmatpush1.bf16.msra.mxu0 0
  %8189 = vmatprep.subr.bf16.mxu0 0
  %8190 = vmatpush1.bf16.msra.mxu0 0
  %8191 = vmatprep.subr.bf16.mxu0 0
  %8192 = vmatpush1.bf16.msra.mxu0 0
  %8193 = vmatprep.subr.bf16.mxu0 0
  %8194 = vmatpush1.bf16.msra.mxu0 0
  %8195 = vmatprep.subr.bf16.mxu0 0
  %8196 = vmatpush1.bf16.msra.mxu0 0
  %8197 = vmatprep.subr.bf16.mxu0 0
  %8198 = vmatpush1.bf16.msra.mxu0 0
  %8199 = vmatprep.mubr.bf16.mxu0 0
  %8200 = vmatmul.mubr.bf16.gmra.mrb[0].mxu0 %v8156
  %v8201 = vpop.f32.mrb[0].mxu0
  %v8202 = vadd.f32 0.0, %v8201
  %v8203 = vpop.f32.mrb[0].mxu0
  %v8204 = vpop.f32.mrb[0].mxu0
  %v8205 = vadd.f32 0.0, %v8204
  %v8206 = vpop.f32.mrb[0].mxu0
  %8207 = vmatprep.mubr.bf16.mxu0 0
  %8208 = vmatmul.mubr.bf16.gmra.mrb[0].mxu0 %v8159
  %v8209 = vpop.f32.mrb[0].mxu0
  %v8210 = vadd.f32 0.0, %v8209
  %v8211 = vpop.f32.mrb[0].mxu0
  %v8212 = vpop.f32.mrb[0].mxu0
  %v8213 = vadd.f32 0.0, %v8212
  %v8214 = vpop.f32.mrb[0].mxu0
  %8215 = vmatprep.mubr.bf16.mxu0 0
  %8216 = vmatmul.mubr.bf16.gmra.mrb[0].mxu0 %v8162
  %v8217 = vpop.f32.mrb[0].mxu0
  %v8218 = vadd.f32 0.0, %v8217
  %v8219 = vpop.f32.mrb[0].mxu0
  %v8220 = vpop.f32.mrb[0].mxu0
  %v8221 = vadd.f32 0.0, %v8220
  %v8222 = vpop.f32.mrb[0].mxu0
  %8223 = vmatprep.mubr.bf16.mxu0 0
  %8224 = vmatmul.mubr.bf16.gmra.mrb[0].mxu0 %v8165
  %v8225 = vpop.f32.mrb[0].mxu0
  %v8226 = vadd.f32 0.0, %v8225
  %v8227 = vpop.f32.mrb[0].mxu0
  %v8228 = vpop.f32.mrb[0].mxu0
  %v8229 = vadd.f32 0.0, %v8228
  %v8230 = vpop.f32.mrb[0].mxu0
  %8231 = vdwg.mxu0
  %8232 = vrot.lane.b32.xlu0 %v5138, 96
  %v8233 = vpop.permute.xlu0 %8232
  %8234 = vrot.lane.b32.xlu0 %v5140, 96
  %v8235 = vpop.permute.xlu0 %8234
  %8236 = vrot.lane.b32.xlu0 %v5142, 96
  %v8237 = vpop.permute.xlu0 %8236
  %8238 = vrot.lane.b32.xlu0 %v5144, 96
  %v8239 = vpop.permute.xlu0 %8238
  %v8245 = vsel %vm3950, %v8139, 0
  %v8248 = vsel %vm3950, %v8140, 0
  %v8251 = vsel %vm3950, %v8141, 0
  %v8254 = vsel %vm3950, %v8142, 0
  %8256 = vmatprep.subr.bf16.mxu0 0
  %8257 = vmatpush1.bf16.msra.mxu0 %v8233
  %8258 = vmatprep.subr.bf16.mxu0 0
  %8259 = vmatpush1.bf16.msra.mxu0 %v8235
  %8260 = vmatprep.subr.bf16.mxu0 0
  %8261 = vmatpush1.bf16.msra.mxu0 %v8237
  %8262 = vmatprep.subr.bf16.mxu0 0
  %8263 = vmatpush1.bf16.msra.mxu0 %v8239
  %8264 = vmatprep.subr.bf16.mxu0 0
  %8265 = vmatpush1.bf16.msra.mxu0 0
  %8266 = vmatprep.subr.bf16.mxu0 0
  %8267 = vmatpush1.bf16.msra.mxu0 0
  %8268 = vmatprep.subr.bf16.mxu0 0
  %8269 = vmatpush1.bf16.msra.mxu0 0
  %8270 = vmatprep.subr.bf16.mxu0 0
  %8271 = vmatpush1.bf16.msra.mxu0 0
  %8272 = vmatprep.subr.bf16.mxu0 0
  %8273 = vmatpush1.bf16.msra.mxu0 0
  %8274 = vmatprep.subr.bf16.mxu0 0
  %8275 = vmatpush1.bf16.msra.mxu0 0
  %8276 = vmatprep.subr.bf16.mxu0 0
  %8277 = vmatpush1.bf16.msra.mxu0 0
  %8278 = vmatprep.subr.bf16.mxu0 0
  %8279 = vmatpush1.bf16.msra.mxu0 0
  %8280 = vmatprep.subr.bf16.mxu0 0
  %8281 = vmatpush1.bf16.msra.mxu0 0
  %8282 = vmatprep.subr.bf16.mxu0 0
  %8283 = vmatpush1.bf16.msra.mxu0 0
  %8284 = vmatprep.subr.bf16.mxu0 0
  %8285 = vmatpush1.bf16.msra.mxu0 0
  %8286 = vmatprep.subr.bf16.mxu0 0
  %8287 = vmatpush1.bf16.msra.mxu0 0
  %8288 = vmatprep.mubr.bf16.mxu0 0
  %8289 = vmatmul.mubr.bf16.gmra.mrb[0].mxu0 %v8245
  %v8290 = vpop.f32.mrb[0].mxu0
  %v8291 = vadd.f32 0.0, %v8290
  %v8292 = vpop.f32.mrb[0].mxu0
  %v8293 = vpop.f32.mrb[0].mxu0
  %v8294 = vadd.f32 0.0, %v8293
  %v8295 = vpop.f32.mrb[0].mxu0
  %8296 = vmatprep.mubr.bf16.mxu0 0
  %8297 = vmatmul.mubr.bf16.gmra.mrb[0].mxu0 %v8248
  %v8298 = vpop.f32.mrb[0].mxu0
  %v8299 = vadd.f32 0.0, %v8298
  %v8300 = vpop.f32.mrb[0].mxu0
  %v8301 = vpop.f32.mrb[0].mxu0
  %v8302 = vadd.f32 0.0, %v8301
  %v8303 = vpop.f32.mrb[0].mxu0
  %8304 = vmatprep.mubr.bf16.mxu0 0
  %8305 = vmatmul.mubr.bf16.gmra.mrb[0].mxu0 %v8251
  %v8306 = vpop.f32.mrb[0].mxu0
  %v8307 = vadd.f32 0.0, %v8306
  %v8308 = vpop.f32.mrb[0].mxu0
  %v8309 = vpop.f32.mrb[0].mxu0
  %v8310 = vadd.f32 0.0, %v8309
  %v8311 = vpop.f32.mrb[0].mxu0
  %8312 = vmatprep.mubr.bf16.mxu0 0
  %8313 = vmatmul.mubr.bf16.gmra.mrb[0].mxu0 %v8254
  %v8314 = vpop.f32.mrb[0].mxu0
  %v8315 = vadd.f32 0.0, %v8314
  %v8316 = vpop.f32.mrb[0].mxu0
  %v8317 = vpop.f32.mrb[0].mxu0
  %v8318 = vadd.f32 0.0, %v8317
  %v8319 = vpop.f32.mrb[0].mxu0
  %8320 = vdwg.mxu0
  %8337 = vrot.lane.b32.xlu0 %v8202, 32
  %v8338 = vpop.permute.xlu0 %8337
  %8339 = vrot.lane.b32.xlu0 %v8205, 32
  %v8340 = vpop.permute.xlu0 %8339
  %8341 = vrot.lane.b32.xlu0 %v8210, 32
  %v8342 = vpop.permute.xlu0 %8341
  %8343 = vrot.lane.b32.xlu0 %v8213, 32
  %v8344 = vpop.permute.xlu0 %8343
  %8345 = vrot.lane.b32.xlu0 %v8218, 32
  %v8346 = vpop.permute.xlu0 %8345
  %8347 = vrot.lane.b32.xlu0 %v8221, 32
  %v8348 = vpop.permute.xlu0 %8347
  %8349 = vrot.lane.b32.xlu0 %v8226, 32
  %v8350 = vpop.permute.xlu0 %8349
  %8351 = vrot.lane.b32.xlu0 %v8229, 32
  %v8352 = vpop.permute.xlu0 %8351
  %8353 = vrot.lane.b32.xlu0 %v8291, 32
  %v8354 = vpop.permute.xlu0 %8353
  %8355 = vrot.lane.b32.xlu0 %v8294, 32
  %v8356 = vpop.permute.xlu0 %8355
  %8357 = vrot.lane.b32.xlu0 %v8299, 32
  %v8358 = vpop.permute.xlu0 %8357
  %8359 = vrot.lane.b32.xlu0 %v8302, 32
  %v8360 = vpop.permute.xlu0 %8359
  %8361 = vrot.lane.b32.xlu0 %v8307, 32
  %v8362 = vpop.permute.xlu0 %8361
  %8363 = vrot.lane.b32.xlu0 %v8310, 32
  %v8364 = vpop.permute.xlu0 %8363
  %8365 = vrot.lane.b32.xlu0 %v8315, 32
  %v8366 = vpop.permute.xlu0 %8365
  %8367 = vrot.lane.b32.xlu0 %v8318, 32
  %v8368 = vpop.permute.xlu0 %8367
  %vm8385 = vcmask 326912
  %8386 = vst.msk [vmem:[#allocation2] sm:$0xff] %vm8385, %v8338
  %8387 = vst.msk [vmem:[#allocation2 + $0x8] sm:$0xff] %vm8385, %v8340
  %8388 = vst.msk [vmem:[#allocation2 + $0x10] sm:$0xff] %vm8385, %v8342
  %8389 = vst.msk [vmem:[#allocation2 + $0x18] sm:$0xff] %vm8385, %v8344
  %8390 = vst.msk [vmem:[#allocation2 + $0x20] sm:$0xff] %vm8385, %v8346
  %8391 = vst.msk [vmem:[#allocation2 + $0x28] sm:$0xff] %vm8385, %v8348
  %8392 = vst.msk [vmem:[#allocation2 + $0x30] sm:$0xff] %vm8385, %v8350
  %8393 = vst.msk [vmem:[#allocation2 + $0x38] sm:$0xff] %vm8385, %v8352
  %8394 = vst.msk [vmem:[#allocation2 + $0x40] sm:$0xff] %vm8385, %v8354
  %8395 = vst.msk [vmem:[#allocation2 + $0x48] sm:$0xff] %vm8385, %v8356
  %8396 = vst.msk [vmem:[#allocation2 + $0x50] sm:$0xff] %vm8385, %v8358
  %8397 = vst.msk [vmem:[#allocation2 + $0x58] sm:$0xff] %vm8385, %v8360
  %8398 = vst.msk [vmem:[#allocation2 + $0x60] sm:$0xff] %vm8385, %v8362
  %8399 = vst.msk [vmem:[#allocation2 + $0x68] sm:$0xff] %vm8385, %v8364
  %8400 = vst.msk [vmem:[#allocation2 + $0x70] sm:$0xff] %vm8385, %v8366
  %8401 = vst.msk [vmem:[#allocation2 + $0x78] sm:$0xff] %vm8385, %v8368
  %8402 = vrot.lane.b32.xlu0 %v5129, 88
  %v8403 = vpop.permute.xlu0 %8402
  %8404 = vrot.lane.b32.xlu0 %v5131, 88
  %v8405 = vpop.permute.xlu0 %8404
  %8406 = vrot.lane.b32.xlu0 %v5133, 88
  %v8407 = vpop.permute.xlu0 %8406
  %8408 = vrot.lane.b32.xlu0 %v5135, 88
  %v8409 = vpop.permute.xlu0 %8408
  %8410 = vrot.lane.b32.xlu0 %v5129, 24
  %v8411 = vpop.permute.xlu0 %8410
  %8412 = vrot.lane.b32.xlu0 %v5131, 24
  %v8413 = vpop.permute.xlu0 %8412
  %8414 = vrot.lane.b32.xlu0 %v5133, 24
  %v8415 = vpop.permute.xlu0 %8414
  %8416 = vrot.lane.b32.xlu0 %v5135, 24
  %v8417 = vpop.permute.xlu0 %8416
  %v8419 = vsel %vm5157, %v8403, 0
  %v8422 = vsel %vm5157, %v8405, 0
  %v8425 = vsel %vm5157, %v8407, 0
  %v8428 = vsel %vm5157, %v8409, 0
  %v8431 = vsel %vm5157, %v8411, 0
  %v8434 = vsel %vm5157, %v8413, 0
  %v8437 = vsel %vm5157, %v8415, 0
  %v8440 = vsel %vm5157, %v8417, 0
  %8442 = vmatprep.subr.bf16.mxu0 0
  %8443 = vmatpush1.bf16.xpose.msra.mxu0 %v8431
  %8444 = vmatprep.subr.bf16.mxu0 0
  %8445 = vmatpush1.bf16.xpose.msra.mxu0 %v8434
  %8446 = vmatprep.subr.bf16.mxu0 0
  %8447 = vmatpush1.bf16.xpose.msra.mxu0 %v8437
  %8448 = vmatprep.subr.bf16.mxu0 0
  %8449 = vmatpush1.bf16.xpose.msra.mxu0 %v8440
  %8450 = vmatprep.subr.bf16.mxu0 0
  %8451 = vmatpush1.bf16.xpose.msra.mxu0 0
  %8452 = vmatprep.subr.bf16.mxu0 0
  %8453 = vmatpush1.bf16.xpose.msra.mxu0 0
  %8454 = vmatprep.subr.bf16.mxu0 0
  %8455 = vmatpush1.bf16.xpose.msra.mxu0 0
  %8456 = vmatprep.subr.bf16.mxu0 0
  %8457 = vmatpush1.bf16.xpose.msra.mxu0 0
  %8458 = vmatprep.subr.bf16.mxu0 0
  %8459 = vmatpush1.bf16.xpose.msra.mxu0 0
  %8460 = vmatprep.subr.bf16.mxu0 0
  %8461 = vmatpush1.bf16.xpose.msra.mxu0 0
  %8462 = vmatprep.subr.bf16.mxu0 0
  %8463 = vmatpush1.bf16.xpose.msra.mxu0 0
  %8464 = vmatprep.subr.bf16.mxu0 0
  %8465 = vmatpush1.bf16.xpose.msra.mxu0 0
  %8466 = vmatprep.subr.bf16.mxu0 0
  %8467 = vmatpush1.bf16.xpose.msra.mxu0 0
  %8468 = vmatprep.subr.bf16.mxu0 0
  %8469 = vmatpush1.bf16.xpose.msra.mxu0 0
  %8470 = vmatprep.subr.bf16.mxu0 0
  %8471 = vmatpush1.bf16.xpose.msra.mxu0 0
  %8472 = vmatprep.subr.bf16.mxu0 0
  %8473 = vmatpush1.bf16.xpose.msra.mxu0 0
  %8474 = vmatprep.mubr.bf16.mxu0 0
  %8475 = vmatmul.mubr.bf16.gmra.mrb[0].mxu0 %v8419
  %v8476 = vpop.f32.mrb[0].mxu0
  %v8477 = vadd.f32 0.0, %v8476
  %v8478 = vpop.f32.mrb[0].mxu0
  %v8479 = vpop.f32.mrb[0].mxu0
  %v8480 = vadd.f32 0.0, %v8479
  %v8481 = vpop.f32.mrb[0].mxu0
  %8482 = vmatprep.mubr.bf16.mxu0 0
  %8483 = vmatmul.mubr.bf16.gmra.mrb[0].mxu0 %v8422
  %v8484 = vpop.f32.mrb[0].mxu0
  %v8485 = vadd.f32 0.0, %v8484
  %v8486 = vpop.f32.mrb[0].mxu0
  %v8487 = vpop.f32.mrb[0].mxu0
  %v8488 = vadd.f32 0.0, %v8487
  %v8489 = vpop.f32.mrb[0].mxu0
  %8490 = vmatprep.mubr.bf16.mxu0 0
  %8491 = vmatmul.mubr.bf16.gmra.mrb[0].mxu0 %v8425
  %v8492 = vpop.f32.mrb[0].mxu0
  %v8493 = vadd.f32 0.0, %v8492
  %v8494 = vpop.f32.mrb[0].mxu0
  %v8495 = vpop.f32.mrb[0].mxu0
  %v8496 = vadd.f32 0.0, %v8495
  %v8497 = vpop.f32.mrb[0].mxu0
  %8498 = vmatprep.mubr.bf16.mxu0 0
  %8499 = vmatmul.mubr.bf16.gmra.mrb[0].mxu0 %v8428
  %v8500 = vpop.f32.mrb[0].mxu0
  %v8501 = vadd.f32 0.0, %v8500
  %v8502 = vpop.f32.mrb[0].mxu0
  %v8503 = vpop.f32.mrb[0].mxu0
  %v8504 = vadd.f32 0.0, %v8503
  %v8505 = vpop.f32.mrb[0].mxu0
  %8506 = vdwg.mxu0
  %8507 = vrot.lane.b32.xlu0 %v5137, 88
  %v8508 = vpop.permute.xlu0 %8507
  %8509 = vrot.lane.b32.xlu0 %v5139, 88
  %v8510 = vpop.permute.xlu0 %8509
  %8511 = vrot.lane.b32.xlu0 %v5141, 88
  %v8512 = vpop.permute.xlu0 %8511
  %8513 = vrot.lane.b32.xlu0 %v5143, 88
  %v8514 = vpop.permute.xlu0 %8513
  %8515 = vrot.lane.b32.xlu0 %v5137, 24
  %v8516 = vpop.permute.xlu0 %8515
  %8517 = vrot.lane.b32.xlu0 %v5139, 24
  %v8518 = vpop.permute.xlu0 %8517
  %8519 = vrot.lane.b32.xlu0 %v5141, 24
  %v8520 = vpop.permute.xlu0 %8519
  %8521 = vrot.lane.b32.xlu0 %v5143, 24
  %v8522 = vpop.permute.xlu0 %8521
  %v8524 = vsel %vm5157, %v8508, 0
  %v8527 = vsel %vm5157, %v8510, 0
  %v8530 = vsel %vm5157, %v8512, 0
  %v8533 = vsel %vm5157, %v8514, 0
  %v8536 = vsel %vm5157, %v8516, 0
  %v8539 = vsel %vm5157, %v8518, 0
  %v8542 = vsel %vm5157, %v8520, 0
  %v8545 = vsel %vm5157, %v8522, 0
  %8547 = vmatprep.subr.bf16.mxu0 0
  %8548 = vmatpush1.bf16.xpose.msra.mxu0 %v8536
  %8549 = vmatprep.subr.bf16.mxu0 0
  %8550 = vmatpush1.bf16.xpose.msra.mxu0 %v8539
  %8551 = vmatprep.subr.bf16.mxu0 0
  %8552 = vmatpush1.bf16.xpose.msra.mxu0 %v8542
  %8553 = vmatprep.subr.bf16.mxu0 0
  %8554 = vmatpush1.bf16.xpose.msra.mxu0 %v8545
  %8555 = vmatprep.subr.bf16.mxu0 0
  %8556 = vmatpush1.bf16.xpose.msra.mxu0 0
  %8557 = vmatprep.subr.bf16.mxu0 0
  %8558 = vmatpush1.bf16.xpose.msra.mxu0 0
  %8559 = vmatprep.subr.bf16.mxu0 0
  %8560 = vmatpush1.bf16.xpose.msra.mxu0 0
  %8561 = vmatprep.subr.bf16.mxu0 0
  %8562 = vmatpush1.bf16.xpose.msra.mxu0 0
  %8563 = vmatprep.subr.bf16.mxu0 0
  %8564 = vmatpush1.bf16.xpose.msra.mxu0 0
  %8565 = vmatprep.subr.bf16.mxu0 0
  %8566 = vmatpush1.bf16.xpose.msra.mxu0 0
  %8567 = vmatprep.subr.bf16.mxu0 0
  %8568 = vmatpush1.bf16.xpose.msra.mxu0 0
  %8569 = vmatprep.subr.bf16.mxu0 0
  %8570 = vmatpush1.bf16.xpose.msra.mxu0 0
  %8571 = vmatprep.subr.bf16.mxu0 0
  %8572 = vmatpush1.bf16.xpose.msra.mxu0 0
  %8573 = vmatprep.subr.bf16.mxu0 0
  %8574 = vmatpush1.bf16.xpose.msra.mxu0 0
  %8575 = vmatprep.subr.bf16.mxu0 0
  %8576 = vmatpush1.bf16.xpose.msra.mxu0 0
  %8577 = vmatprep.subr.bf16.mxu0 0
  %8578 = vmatpush1.bf16.xpose.msra.mxu0 0
  %8579 = vmatprep.mubr.bf16.mxu0 0
  %8580 = vmatmul.mubr.bf16.gmra.mrb[0].mxu0 %v8524
  %v8581 = vpop.f32.mrb[0].mxu0
  %v8582 = vadd.f32 0.0, %v8581
  %v8583 = vpop.f32.mrb[0].mxu0
  %v8584 = vpop.f32.mrb[0].mxu0
  %v8585 = vadd.f32 0.0, %v8584
  %v8586 = vpop.f32.mrb[0].mxu0
  %8587 = vmatprep.mubr.bf16.mxu0 0
  %8588 = vmatmul.mubr.bf16.gmra.mrb[0].mxu0 %v8527
  %v8589 = vpop.f32.mrb[0].mxu0
  %v8590 = vadd.f32 0.0, %v8589
  %v8591 = vpop.f32.mrb[0].mxu0
  %v8592 = vpop.f32.mrb[0].mxu0
  %v8593 = vadd.f32 0.0, %v8592
  %v8594 = vpop.f32.mrb[0].mxu0
  %8595 = vmatprep.mubr.bf16.mxu0 0
  %8596 = vmatmul.mubr.bf16.gmra.mrb[0].mxu0 %v8530
  %v8597 = vpop.f32.mrb[0].mxu0
  %v8598 = vadd.f32 0.0, %v8597
  %v8599 = vpop.f32.mrb[0].mxu0
  %v8600 = vpop.f32.mrb[0].mxu0
  %v8601 = vadd.f32 0.0, %v8600
  %v8602 = vpop.f32.mrb[0].mxu0
  %8603 = vmatprep.mubr.bf16.mxu0 0
  %8604 = vmatmul.mubr.bf16.gmra.mrb[0].mxu0 %v8533
  %v8605 = vpop.f32.mrb[0].mxu0
  %v8606 = vadd.f32 0.0, %v8605
  %v8607 = vpop.f32.mrb[0].mxu0
  %v8608 = vpop.f32.mrb[0].mxu0
  %v8609 = vadd.f32 0.0, %v8608
  %v8610 = vpop.f32.mrb[0].mxu0
  %8611 = vdwg.mxu0
  %v8612 = vmul.f32 %v8477, 0.35355338
  %v8613 = vmul.f32 %v8480, 0.35355338
  %v8614 = vmul.f32 %v8485, 0.35355338
  %v8615 = vmul.f32 %v8488, 0.35355338
  %v8616 = vmul.f32 %v8493, 0.35355338
  %v8617 = vmul.f32 %v8496, 0.35355338
  %v8618 = vmul.f32 %v8501, 0.35355338
  %v8619 = vmul.f32 %v8504, 0.35355338
  %v8620 = vmul.f32 %v8582, 0.35355338
  %v8621 = vmul.f32 %v8585, 0.35355338
  %v8622 = vmul.f32 %v8590, 0.35355338
  %v8623 = vmul.f32 %v8593, 0.35355338
  %v8624 = vmul.f32 %v8598, 0.35355338
  %v8625 = vmul.f32 %v8601, 0.35355338
  %v8626 = vmul.f32 %v8606, 0.35355338
  %v8627 = vmul.f32 %v8609, 0.35355338
  %v8628 = vsel %vm3950, %v8612, -inf
  %8629 = vmax.xlane.f32.xlu0 %v8628
  %v8630 = vpop.xlane.xlu0 %8629
  %v8631 = vsel %vm3950, %v8613, -inf
  %8632 = vmax.xlane.f32.xlu0 %v8631
  %v8633 = vpop.xlane.xlu0 %8632
  %v8634 = vsel %vm3950, %v8614, -inf
  %8635 = vmax.xlane.f32.xlu0 %v8634
  %v8636 = vpop.xlane.xlu0 %8635
  %v8637 = vsel %vm3950, %v8615, -inf
  %8638 = vmax.xlane.f32.xlu0 %v8637
  %v8639 = vpop.xlane.xlu0 %8638
  %v8640 = vsel %vm3950, %v8616, -inf
  %8641 = vmax.xlane.f32.xlu0 %v8640
  %v8642 = vpop.xlane.xlu0 %8641
  %v8643 = vsel %vm3950, %v8617, -inf
  %8644 = vmax.xlane.f32.xlu0 %v8643
  %v8645 = vpop.xlane.xlu0 %8644
  %v8646 = vsel %vm3950, %v8618, -inf
  %8647 = vmax.xlane.f32.xlu0 %v8646
  %v8648 = vpop.xlane.xlu0 %8647
  %v8649 = vsel %vm3950, %v8619, -inf
  %8650 = vmax.xlane.f32.xlu0 %v8649
  %v8651 = vpop.xlane.xlu0 %8650
  %v8652 = vsel %vm3950, %v8620, -inf
  %8653 = vmax.xlane.f32.xlu0 %v8652
  %v8654 = vpop.xlane.xlu0 %8653
  %v8655 = vsel %vm3950, %v8621, -inf
  %8656 = vmax.xlane.f32.xlu0 %v8655
  %v8657 = vpop.xlane.xlu0 %8656
  %v8658 = vsel %vm3950, %v8622, -inf
  %8659 = vmax.xlane.f32.xlu0 %v8658
  %v8660 = vpop.xlane.xlu0 %8659
  %v8661 = vsel %vm3950, %v8623, -inf
  %8662 = vmax.xlane.f32.xlu0 %v8661
  %v8663 = vpop.xlane.xlu0 %8662
  %v8664 = vsel %vm3950, %v8624, -inf
  %8665 = vmax.xlane.f32.xlu0 %v8664
  %v8666 = vpop.xlane.xlu0 %8665
  %v8667 = vsel %vm3950, %v8625, -inf
  %8668 = vmax.xlane.f32.xlu0 %v8667
  %v8669 = vpop.xlane.xlu0 %8668
  %v8670 = vsel %vm3950, %v8626, -inf
  %8671 = vmax.xlane.f32.xlu0 %v8670
  %v8672 = vpop.xlane.xlu0 %8671
  %v8673 = vsel %vm3950, %v8627, -inf
  %8674 = vmax.xlane.f32.xlu0 %v8673
  %v8675 = vpop.xlane.xlu0 %8674
  %v8676 = vsub.f32 %v8612, %v8630
  %v8677 = vsub.f32 %v8613, %v8633
  %v8678 = vsub.f32 %v8614, %v8636
  %v8679 = vsub.f32 %v8615, %v8639
  %v8680 = vsub.f32 %v8616, %v8642
  %v8681 = vsub.f32 %v8617, %v8645
  %v8682 = vsub.f32 %v8618, %v8648
  %v8683 = vsub.f32 %v8619, %v8651
  %v8684 = vsub.f32 %v8620, %v8654
  %v8685 = vsub.f32 %v8621, %v8657
  %v8686 = vsub.f32 %v8622, %v8660
  %v8687 = vsub.f32 %v8623, %v8663
  %v8688 = vsub.f32 %v8624, %v8666
  %v8689 = vsub.f32 %v8625, %v8669
  %v8690 = vsub.f32 %v8626, %v8672
  %v8691 = vsub.f32 %v8627, %v8675
  %v8692 = vmul.f32 %v8676, 1.442695
  %v8693 = vpow.pop %v8692
  %v8694 = vmul.f32 %v8677, 1.442695
  %v8695 = vpow.pop %v8694
  %v8696 = vmul.f32 %v8678, 1.442695
  %v8697 = vpow.pop %v8696
  %v8698 = vmul.f32 %v8679, 1.442695
  %v8699 = vpow.pop %v8698
  %v8700 = vmul.f32 %v8680, 1.442695
  %v8701 = vpow.pop %v8700
  %v8702 = vmul.f32 %v8681, 1.442695
  %v8703 = vpow.pop %v8702
  %v8704 = vmul.f32 %v8682, 1.442695
  %v8705 = vpow.pop %v8704
  %v8706 = vmul.f32 %v8683, 1.442695
  %v8707 = vpow.pop %v8706
  %v8708 = vmul.f32 %v8684, 1.442695
  %v8709 = vpow.pop %v8708
  %v8710 = vmul.f32 %v8685, 1.442695
  %v8711 = vpow.pop %v8710
  %v8712 = vmul.f32 %v8686, 1.442695
  %v8713 = vpow.pop %v8712
  %v8714 = vmul.f32 %v8687, 1.442695
  %v8715 = vpow.pop %v8714
  %v8716 = vmul.f32 %v8688, 1.442695
  %v8717 = vpow.pop %v8716
  %v8718 = vmul.f32 %v8689, 1.442695
  %v8719 = vpow.pop %v8718
  %v8720 = vmul.f32 %v8690, 1.442695
  %v8721 = vpow.pop %v8720
  %v8722 = vmul.f32 %v8691, 1.442695
  %v8723 = vpow.pop %v8722
  %v8724 = vsel %vm3950, %v8693, 0.0
  %8725 = vadd.xlane.f32.xlu0 %v8724
  %v8726 = vpop.xlane.xlu0 %8725
  %v8727 = vsel %vm3950, %v8695, 0.0
  %8728 = vadd.xlane.f32.xlu0 %v8727
  %v8729 = vpop.xlane.xlu0 %8728
  %v8730 = vsel %vm3950, %v8697, 0.0
  %8731 = vadd.xlane.f32.xlu0 %v8730
  %v8732 = vpop.xlane.xlu0 %8731
  %v8733 = vsel %vm3950, %v8699, 0.0
  %8734 = vadd.xlane.f32.xlu0 %v8733
  %v8735 = vpop.xlane.xlu0 %8734
  %v8736 = vsel %vm3950, %v8701, 0.0
  %8737 = vadd.xlane.f32.xlu0 %v8736
  %v8738 = vpop.xlane.xlu0 %8737
  %v8739 = vsel %vm3950, %v8703, 0.0
  %8740 = vadd.xlane.f32.xlu0 %v8739
  %v8741 = vpop.xlane.xlu0 %8740
  %v8742 = vsel %vm3950, %v8705, 0.0
  %8743 = vadd.xlane.f32.xlu0 %v8742
  %v8744 = vpop.xlane.xlu0 %8743
  %v8745 = vsel %vm3950, %v8707, 0.0
  %8746 = vadd.xlane.f32.xlu0 %v8745
  %v8747 = vpop.xlane.xlu0 %8746
  %v8748 = vsel %vm3950, %v8709, 0.0
  %8749 = vadd.xlane.f32.xlu0 %v8748
  %v8750 = vpop.xlane.xlu0 %8749
  %v8751 = vsel %vm3950, %v8711, 0.0
  %8752 = vadd.xlane.f32.xlu0 %v8751
  %v8753 = vpop.xlane.xlu0 %8752
  %v8754 = vsel %vm3950, %v8713, 0.0
  %8755 = vadd.xlane.f32.xlu0 %v8754
  %v8756 = vpop.xlane.xlu0 %8755
  %v8757 = vsel %vm3950, %v8715, 0.0
  %8758 = vadd.xlane.f32.xlu0 %v8757
  %v8759 = vpop.xlane.xlu0 %8758
  %v8760 = vsel %vm3950, %v8717, 0.0
  %8761 = vadd.xlane.f32.xlu0 %v8760
  %v8762 = vpop.xlane.xlu0 %8761
  %v8763 = vsel %vm3950, %v8719, 0.0
  %8764 = vadd.xlane.f32.xlu0 %v8763
  %v8765 = vpop.xlane.xlu0 %8764
  %v8766 = vsel %vm3950, %v8721, 0.0
  %8767 = vadd.xlane.f32.xlu0 %v8766
  %v8768 = vpop.xlane.xlu0 %8767
  %v8769 = vsel %vm3950, %v8723, 0.0
  %8770 = vadd.xlane.f32.xlu0 %v8769
  %v8771 = vpop.xlane.xlu0 %8770
  %v8772 = vrcp.pop %v8726
  %v8773 = vrcp.pop %v8729
  %v8774 = vrcp.pop %v8732
  %v8775 = vrcp.pop %v8735
  %v8776 = vrcp.pop %v8738
  %v8777 = vrcp.pop %v8741
  %v8778 = vrcp.pop %v8744
  %v8779 = vrcp.pop %v8747
  %v8780 = vrcp.pop %v8750
  %v8781 = vrcp.pop %v8753
  %v8782 = vrcp.pop %v8756
  %v8783 = vrcp.pop %v8759
  %v8784 = vrcp.pop %v8762
  %v8785 = vrcp.pop %v8765
  %v8786 = vrcp.pop %v8768
  %v8787 = vrcp.pop %v8771
  %v8788 = vmul.f32 %v8693, %v8772
  %v8789 = vmul.f32 %v8695, %v8773
  %v8790 = vmul.f32 %v8697, %v8774
  %v8791 = vmul.f32 %v8699, %v8775
  %v8792 = vmul.f32 %v8701, %v8776
  %v8793 = vmul.f32 %v8703, %v8777
  %v8794 = vmul.f32 %v8705, %v8778
  %v8795 = vmul.f32 %v8707, %v8779
  %v8796 = vmul.f32 %v8709, %v8780
  %v8797 = vmul.f32 %v8711, %v8781
  %v8798 = vmul.f32 %v8713, %v8782
  %v8799 = vmul.f32 %v8715, %v8783
  %v8800 = vmul.f32 %v8717, %v8784
  %v8801 = vmul.f32 %v8719, %v8785
  %v8802 = vmul.f32 %v8721, %v8786
  %v8803 = vmul.f32 %v8723, %v8787
  %v8804 = vpack.c.bf16 %v8789, %v8788
  %v8805 = vpack.c.bf16 %v8791, %v8790
  %v8806 = vpack.c.bf16 %v8793, %v8792
  %v8807 = vpack.c.bf16 %v8795, %v8794
  %v8808 = vpack.c.bf16 %v8797, %v8796
  %v8809 = vpack.c.bf16 %v8799, %v8798
  %v8810 = vpack.c.bf16 %v8801, %v8800
  %v8811 = vpack.c.bf16 %v8803, %v8802
  %8812 = vrot.lane.b32.xlu0 %v5130, 88
  %v8813 = vpop.permute.xlu0 %8812
  %8814 = vrot.lane.b32.xlu0 %v5132, 88
  %v8815 = vpop.permute.xlu0 %8814
  %8816 = vrot.lane.b32.xlu0 %v5134, 88
  %v8817 = vpop.permute.xlu0 %8816
  %8818 = vrot.lane.b32.xlu0 %v5136, 88
  %v8819 = vpop.permute.xlu0 %8818
  %v8825 = vsel %vm3950, %v8804, 0
  %v8828 = vsel %vm3950, %v8805, 0
  %v8831 = vsel %vm3950, %v8806, 0
  %v8834 = vsel %vm3950, %v8807, 0
  %8836 = vmatprep.subr.bf16.mxu0 0
  %8837 = vmatpush1.bf16.msra.mxu0 %v8813
  %8838 = vmatprep.subr.bf16.mxu0 0
  %8839 = vmatpush1.bf16.msra.mxu0 %v8815
  %8840 = vmatprep.subr.bf16.mxu0 0
  %8841 = vmatpush1.bf16.msra.mxu0 %v8817
  %8842 = vmatprep.subr.bf16.mxu0 0
  %8843 = vmatpush1.bf16.msra.mxu0 %v8819
  %8844 = vmatprep.subr.bf16.mxu0 0
  %8845 = vmatpush1.bf16.msra.mxu0 0
  %8846 = vmatprep.subr.bf16.mxu0 0
  %8847 = vmatpush1.bf16.msra.mxu0 0
  %8848 = vmatprep.subr.bf16.mxu0 0
  %8849 = vmatpush1.bf16.msra.mxu0 0
  %8850 = vmatprep.subr.bf16.mxu0 0
  %8851 = vmatpush1.bf16.msra.mxu0 0
  %8852 = vmatprep.subr.bf16.mxu0 0
  %8853 = vmatpush1.bf16.msra.mxu0 0
  %8854 = vmatprep.subr.bf16.mxu0 0
  %8855 = vmatpush1.bf16.msra.mxu0 0
  %8856 = vmatprep.subr.bf16.mxu0 0
  %8857 = vmatpush1.bf16.msra.mxu0 0
  %8858 = vmatprep.subr.bf16.mxu0 0
  %8859 = vmatpush1.bf16.msra.mxu0 0
  %8860 = vmatprep.subr.bf16.mxu0 0
  %8861 = vmatpush1.bf16.msra.mxu0 0
  %8862 = vmatprep.subr.bf16.mxu0 0
  %8863 = vmatpush1.bf16.msra.mxu0 0
  %8864 = vmatprep.subr.bf16.mxu0 0
  %8865 = vmatpush1.bf16.msra.mxu0 0
  %8866 = vmatprep.subr.bf16.mxu0 0
  %8867 = vmatpush1.bf16.msra.mxu0 0
  %8868 = vmatprep.mubr.bf16.mxu0 0
  %8869 = vmatmul.mubr.bf16.gmra.mrb[0].mxu0 %v8825
  %v8870 = vpop.f32.mrb[0].mxu0
  %v8871 = vadd.f32 0.0, %v8870
  %v8872 = vpop.f32.mrb[0].mxu0
  %v8873 = vpop.f32.mrb[0].mxu0
  %v8874 = vadd.f32 0.0, %v8873
  %v8875 = vpop.f32.mrb[0].mxu0
  %8876 = vmatprep.mubr.bf16.mxu0 0
  %8877 = vmatmul.mubr.bf16.gmra.mrb[0].mxu0 %v8828
  %v8878 = vpop.f32.mrb[0].mxu0
  %v8879 = vadd.f32 0.0, %v8878
  %v8880 = vpop.f32.mrb[0].mxu0
  %v8881 = vpop.f32.mrb[0].mxu0
  %v8882 = vadd.f32 0.0, %v8881
  %v8883 = vpop.f32.mrb[0].mxu0
  %8884 = vmatprep.mubr.bf16.mxu0 0
  %8885 = vmatmul.mubr.bf16.gmra.mrb[0].mxu0 %v8831
  %v8886 = vpop.f32.mrb[0].mxu0
  %v8887 = vadd.f32 0.0, %v8886
  %v8888 = vpop.f32.mrb[0].mxu0
  %v8889 = vpop.f32.mrb[0].mxu0
  %v8890 = vadd.f32 0.0, %v8889
  %v8891 = vpop.f32.mrb[0].mxu0
  %8892 = vmatprep.mubr.bf16.mxu0 0
  %8893 = vmatmul.mubr.bf16.gmra.mrb[0].mxu0 %v8834
  %v8894 = vpop.f32.mrb[0].mxu0
  %v8895 = vadd.f32 0.0, %v8894
  %v8896 = vpop.f32.mrb[0].mxu0
  %v8897 = vpop.f32.mrb[0].mxu0
  %v8898 = vadd.f32 0.0, %v8897
  %v8899 = vpop.f32.mrb[0].mxu0
  %8900 = vdwg.mxu0
  %8901 = vrot.lane.b32.xlu0 %v5138, 88
  %v8902 = vpop.permute.xlu0 %8901
  %8903 = vrot.lane.b32.xlu0 %v5140, 88
  %v8904 = vpop.permute.xlu0 %8903
  %8905 = vrot.lane.b32.xlu0 %v5142, 88
  %v8906 = vpop.permute.xlu0 %8905
  %8907 = vrot.lane.b32.xlu0 %v5144, 88
  %v8908 = vpop.permute.xlu0 %8907
  %v8914 = vsel %vm3950, %v8808, 0
  %v8917 = vsel %vm3950, %v8809, 0
  %v8920 = vsel %vm3950, %v8810, 0
  %v8923 = vsel %vm3950, %v8811, 0
  %8925 = vmatprep.subr.bf16.mxu0 0
  %8926 = vmatpush1.bf16.msra.mxu0 %v8902
  %8927 = vmatprep.subr.bf16.mxu0 0
  %8928 = vmatpush1.bf16.msra.mxu0 %v8904
  %8929 = vmatprep.subr.bf16.mxu0 0
  %8930 = vmatpush1.bf16.msra.mxu0 %v8906
  %8931 = vmatprep.subr.bf16.mxu0 0
  %8932 = vmatpush1.bf16.msra.mxu0 %v8908
  %8933 = vmatprep.subr.bf16.mxu0 0
  %8934 = vmatpush1.bf16.msra.mxu0 0
  %8935 = vmatprep.subr.bf16.mxu0 0
  %8936 = vmatpush1.bf16.msra.mxu0 0
  %8937 = vmatprep.subr.bf16.mxu0 0
  %8938 = vmatpush1.bf16.msra.mxu0 0
  %8939 = vmatprep.subr.bf16.mxu0 0
  %8940 = vmatpush1.bf16.msra.mxu0 0
  %8941 = vmatprep.subr.bf16.mxu0 0
  %8942 = vmatpush1.bf16.msra.mxu0 0
  %8943 = vmatprep.subr.bf16.mxu0 0
  %8944 = vmatpush1.bf16.msra.mxu0 0
  %8945 = vmatprep.subr.bf16.mxu0 0
  %8946 = vmatpush1.bf16.msra.mxu0 0
  %8947 = vmatprep.subr.bf16.mxu0 0
  %8948 = vmatpush1.bf16.msra.mxu0 0
  %8949 = vmatprep.subr.bf16.mxu0 0
  %8950 = vmatpush1.bf16.msra.mxu0 0
  %8951 = vmatprep.subr.bf16.mxu0 0
  %8952 = vmatpush1.bf16.msra.mxu0 0
  %8953 = vmatprep.subr.bf16.mxu0 0
  %8954 = vmatpush1.bf16.msra.mxu0 0
  %8955 = vmatprep.subr.bf16.mxu0 0
  %8956 = vmatpush1.bf16.msra.mxu0 0
  %8957 = vmatprep.mubr.bf16.mxu0 0
  %8958 = vmatmul.mubr.bf16.gmra.mrb[0].mxu0 %v8914
  %v8959 = vpop.f32.mrb[0].mxu0
  %v8960 = vadd.f32 0.0, %v8959
  %v8961 = vpop.f32.mrb[0].mxu0
  %v8962 = vpop.f32.mrb[0].mxu0
  %v8963 = vadd.f32 0.0, %v8962
  %v8964 = vpop.f32.mrb[0].mxu0
  %8965 = vmatprep.mubr.bf16.mxu0 0
  %8966 = vmatmul.mubr.bf16.gmra.mrb[0].mxu0 %v8917
  %v8967 = vpop.f32.mrb[0].mxu0
  %v8968 = vadd.f32 0.0, %v8967
  %v8969 = vpop.f32.mrb[0].mxu0
  %v8970 = vpop.f32.mrb[0].mxu0
  %v8971 = vadd.f32 0.0, %v8970
  %v8972 = vpop.f32.mrb[0].mxu0
  %8973 = vmatprep.mubr.bf16.mxu0 0
  %8974 = vmatmul.mubr.bf16.gmra.mrb[0].mxu0 %v8920
  %v8975 = vpop.f32.mrb[0].mxu0
  %v8976 = vadd.f32 0.0, %v8975
  %v8977 = vpop.f32.mrb[0].mxu0
  %v8978 = vpop.f32.mrb[0].mxu0
  %v8979 = vadd.f32 0.0, %v8978
  %v8980 = vpop.f32.mrb[0].mxu0
  %8981 = vmatprep.mubr.bf16.mxu0 0
  %8982 = vmatmul.mubr.bf16.gmra.mrb[0].mxu0 %v8923
  %v8983 = vpop.f32.mrb[0].mxu0
  %v8984 = vadd.f32 0.0, %v8983
  %v8985 = vpop.f32.mrb[0].mxu0
  %v8986 = vpop.f32.mrb[0].mxu0
  %v8987 = vadd.f32 0.0, %v8986
  %v8988 = vpop.f32.mrb[0].mxu0
  %8989 = vdwg.mxu0
  %9006 = vrot.lane.b32.xlu0 %v8871, 40
  %v9007 = vpop.permute.xlu0 %9006
  %9008 = vrot.lane.b32.xlu0 %v8874, 40
  %v9009 = vpop.permute.xlu0 %9008
  %9010 = vrot.lane.b32.xlu0 %v8879, 40
  %v9011 = vpop.permute.xlu0 %9010
  %9012 = vrot.lane.b32.xlu0 %v8882, 40
  %v9013 = vpop.permute.xlu0 %9012
  %9014 = vrot.lane.b32.xlu0 %v8887, 40
  %v9015 = vpop.permute.xlu0 %9014
  %9016 = vrot.lane.b32.xlu0 %v8890, 40
  %v9017 = vpop.permute.xlu0 %9016
  %9018 = vrot.lane.b32.xlu0 %v8895, 40
  %v9019 = vpop.permute.xlu0 %9018
  %9020 = vrot.lane.b32.xlu0 %v8898, 40
  %v9021 = vpop.permute.xlu0 %9020
  %9022 = vrot.lane.b32.xlu0 %v8960, 40
  %v9023 = vpop.permute.xlu0 %9022
  %9024 = vrot.lane.b32.xlu0 %v8963, 40
  %v9025 = vpop.permute.xlu0 %9024
  %9026 = vrot.lane.b32.xlu0 %v8968, 40
  %v9027 = vpop.permute.xlu0 %9026
  %9028 = vrot.lane.b32.xlu0 %v8971, 40
  %v9029 = vpop.permute.xlu0 %9028
  %9030 = vrot.lane.b32.xlu0 %v8976, 40
  %v9031 = vpop.permute.xlu0 %9030
  %9032 = vrot.lane.b32.xlu0 %v8979, 40
  %v9033 = vpop.permute.xlu0 %9032
  %9034 = vrot.lane.b32.xlu0 %v8984, 40
  %v9035 = vpop.permute.xlu0 %9034
  %9036 = vrot.lane.b32.xlu0 %v8987, 40
  %v9037 = vpop.permute.xlu0 %9036
  %vm9054 = vcmask 392512
  %9055 = vst.msk [vmem:[#allocation2] sm:$0xff] %vm9054, %v9007
  %9056 = vst.msk [vmem:[#allocation2 + $0x8] sm:$0xff] %vm9054, %v9009
  %9057 = vst.msk [vmem:[#allocation2 + $0x10] sm:$0xff] %vm9054, %v9011
  %9058 = vst.msk [vmem:[#allocation2 + $0x18] sm:$0xff] %vm9054, %v9013
  %9059 = vst.msk [vmem:[#allocation2 + $0x20] sm:$0xff] %vm9054, %v9015
  %9060 = vst.msk [vmem:[#allocation2 + $0x28] sm:$0xff] %vm9054, %v9017
  %9061 = vst.msk [vmem:[#allocation2 + $0x30] sm:$0xff] %vm9054, %v9019
  %9062 = vst.msk [vmem:[#allocation2 + $0x38] sm:$0xff] %vm9054, %v9021
  %9063 = vst.msk [vmem:[#allocation2 + $0x40] sm:$0xff] %vm9054, %v9023
  %9064 = vst.msk [vmem:[#allocation2 + $0x48] sm:$0xff] %vm9054, %v9025
  %9065 = vst.msk [vmem:[#allocation2 + $0x50] sm:$0xff] %vm9054, %v9027
  %9066 = vst.msk [vmem:[#allocation2 + $0x58] sm:$0xff] %vm9054, %v9029
  %9067 = vst.msk [vmem:[#allocation2 + $0x60] sm:$0xff] %vm9054, %v9031
  %9068 = vst.msk [vmem:[#allocation2 + $0x68] sm:$0xff] %vm9054, %v9033
  %9069 = vst.msk [vmem:[#allocation2 + $0x70] sm:$0xff] %vm9054, %v9035
  %9070 = vst.msk [vmem:[#allocation2 + $0x78] sm:$0xff] %vm9054, %v9037
  %9071 = vrot.lane.b32.xlu0 %v5129, 80
  %v9072 = vpop.permute.xlu0 %9071
  %9073 = vrot.lane.b32.xlu0 %v5131, 80
  %v9074 = vpop.permute.xlu0 %9073
  %9075 = vrot.lane.b32.xlu0 %v5133, 80
  %v9076 = vpop.permute.xlu0 %9075
  %9077 = vrot.lane.b32.xlu0 %v5135, 80
  %v9078 = vpop.permute.xlu0 %9077
  %9079 = vrot.lane.b32.xlu0 %v5129, 16
  %v9080 = vpop.permute.xlu0 %9079
  %9081 = vrot.lane.b32.xlu0 %v5131, 16
  %v9082 = vpop.permute.xlu0 %9081
  %9083 = vrot.lane.b32.xlu0 %v5133, 16
  %v9084 = vpop.permute.xlu0 %9083
  %9085 = vrot.lane.b32.xlu0 %v5135, 16
  %v9086 = vpop.permute.xlu0 %9085
  %v9088 = vsel %vm5157, %v9072, 0
  %v9091 = vsel %vm5157, %v9074, 0
  %v9094 = vsel %vm5157, %v9076, 0
  %v9097 = vsel %vm5157, %v9078, 0
  %v9100 = vsel %vm5157, %v9080, 0
  %v9103 = vsel %vm5157, %v9082, 0
  %v9106 = vsel %vm5157, %v9084, 0
  %v9109 = vsel %vm5157, %v9086, 0
  %9111 = vmatprep.subr.bf16.mxu0 0
  %9112 = vmatpush1.bf16.xpose.msra.mxu0 %v9100
  %9113 = vmatprep.subr.bf16.mxu0 0
  %9114 = vmatpush1.bf16.xpose.msra.mxu0 %v9103
  %9115 = vmatprep.subr.bf16.mxu0 0
  %9116 = vmatpush1.bf16.xpose.msra.mxu0 %v9106
  %9117 = vmatprep.subr.bf16.mxu0 0
  %9118 = vmatpush1.bf16.xpose.msra.mxu0 %v9109
  %9119 = vmatprep.subr.bf16.mxu0 0
  %9120 = vmatpush1.bf16.xpose.msra.mxu0 0
  %9121 = vmatprep.subr.bf16.mxu0 0
  %9122 = vmatpush1.bf16.xpose.msra.mxu0 0
  %9123 = vmatprep.subr.bf16.mxu0 0
  %9124 = vmatpush1.bf16.xpose.msra.mxu0 0
  %9125 = vmatprep.subr.bf16.mxu0 0
  %9126 = vmatpush1.bf16.xpose.msra.mxu0 0
  %9127 = vmatprep.subr.bf16.mxu0 0
  %9128 = vmatpush1.bf16.xpose.msra.mxu0 0
  %9129 = vmatprep.subr.bf16.mxu0 0
  %9130 = vmatpush1.bf16.xpose.msra.mxu0 0
  %9131 = vmatprep.subr.bf16.mxu0 0
  %9132 = vmatpush1.bf16.xpose.msra.mxu0 0
  %9133 = vmatprep.subr.bf16.mxu0 0
  %9134 = vmatpush1.bf16.xpose.msra.mxu0 0
  %9135 = vmatprep.subr.bf16.mxu0 0
  %9136 = vmatpush1.bf16.xpose.msra.mxu0 0
  %9137 = vmatprep.subr.bf16.mxu0 0
  %9138 = vmatpush1.bf16.xpose.msra.mxu0 0
  %9139 = vmatprep.subr.bf16.mxu0 0
  %9140 = vmatpush1.bf16.xpose.msra.mxu0 0
  %9141 = vmatprep.subr.bf16.mxu0 0
  %9142 = vmatpush1.bf16.xpose.msra.mxu0 0
  %9143 = vmatprep.mubr.bf16.mxu0 0
  %9144 = vmatmul.mubr.bf16.gmra.mrb[0].mxu0 %v9088
  %v9145 = vpop.f32.mrb[0].mxu0
  %v9146 = vadd.f32 0.0, %v9145
  %v9147 = vpop.f32.mrb[0].mxu0
  %v9148 = vpop.f32.mrb[0].mxu0
  %v9149 = vadd.f32 0.0, %v9148
  %v9150 = vpop.f32.mrb[0].mxu0
  %9151 = vmatprep.mubr.bf16.mxu0 0
  %9152 = vmatmul.mubr.bf16.gmra.mrb[0].mxu0 %v9091
  %v9153 = vpop.f32.mrb[0].mxu0
  %v9154 = vadd.f32 0.0, %v9153
  %v9155 = vpop.f32.mrb[0].mxu0
  %v9156 = vpop.f32.mrb[0].mxu0
  %v9157 = vadd.f32 0.0, %v9156
  %v9158 = vpop.f32.mrb[0].mxu0
  %9159 = vmatprep.mubr.bf16.mxu0 0
  %9160 = vmatmul.mubr.bf16.gmra.mrb[0].mxu0 %v9094
  %v9161 = vpop.f32.mrb[0].mxu0
  %v9162 = vadd.f32 0.0, %v9161
  %v9163 = vpop.f32.mrb[0].mxu0
  %v9164 = vpop.f32.mrb[0].mxu0
  %v9165 = vadd.f32 0.0, %v9164
  %v9166 = vpop.f32.mrb[0].mxu0
  %9167 = vmatprep.mubr.bf16.mxu0 0
  %9168 = vmatmul.mubr.bf16.gmra.mrb[0].mxu0 %v9097
  %v9169 = vpop.f32.mrb[0].mxu0
  %v9170 = vadd.f32 0.0, %v9169
  %v9171 = vpop.f32.mrb[0].mxu0
  %v9172 = vpop.f32.mrb[0].mxu0
  %v9173 = vadd.f32 0.0, %v9172
  %v9174 = vpop.f32.mrb[0].mxu0
  %9175 = vdwg.mxu0
  %9176 = vrot.lane.b32.xlu0 %v5137, 80
  %v9177 = vpop.permute.xlu0 %9176
  %9178 = vrot.lane.b32.xlu0 %v5139, 80
  %v9179 = vpop.permute.xlu0 %9178
  %9180 = vrot.lane.b32.xlu0 %v5141, 80
  %v9181 = vpop.permute.xlu0 %9180
  %9182 = vrot.lane.b32.xlu0 %v5143, 80
  %v9183 = vpop.permute.xlu0 %9182
  %9184 = vrot.lane.b32.xlu0 %v5137, 16
  %v9185 = vpop.permute.xlu0 %9184
  %9186 = vrot.lane.b32.xlu0 %v5139, 16
  %v9187 = vpop.permute.xlu0 %9186
  %9188 = vrot.lane.b32.xlu0 %v5141, 16
  %v9189 = vpop.permute.xlu0 %9188
  %9190 = vrot.lane.b32.xlu0 %v5143, 16
  %v9191 = vpop.permute.xlu0 %9190
  %v9193 = vsel %vm5157, %v9177, 0
  %v9196 = vsel %vm5157, %v9179, 0
  %v9199 = vsel %vm5157, %v9181, 0
  %v9202 = vsel %vm5157, %v9183, 0
  %v9205 = vsel %vm5157, %v9185, 0
  %v9208 = vsel %vm5157, %v9187, 0
  %v9211 = vsel %vm5157, %v9189, 0
  %v9214 = vsel %vm5157, %v9191, 0
  %9216 = vmatprep.subr.bf16.mxu0 0
  %9217 = vmatpush1.bf16.xpose.msra.mxu0 %v9205
  %9218 = vmatprep.subr.bf16.mxu0 0
  %9219 = vmatpush1.bf16.xpose.msra.mxu0 %v9208
  %9220 = vmatprep.subr.bf16.mxu0 0
  %9221 = vmatpush1.bf16.xpose.msra.mxu0 %v9211
  %9222 = vmatprep.subr.bf16.mxu0 0
  %9223 = vmatpush1.bf16.xpose.msra.mxu0 %v9214
  %9224 = vmatprep.subr.bf16.mxu0 0
  %9225 = vmatpush1.bf16.xpose.msra.mxu0 0
  %9226 = vmatprep.subr.bf16.mxu0 0
  %9227 = vmatpush1.bf16.xpose.msra.mxu0 0
  %9228 = vmatprep.subr.bf16.mxu0 0
  %9229 = vmatpush1.bf16.xpose.msra.mxu0 0
  %9230 = vmatprep.subr.bf16.mxu0 0
  %9231 = vmatpush1.bf16.xpose.msra.mxu0 0
  %9232 = vmatprep.subr.bf16.mxu0 0
  %9233 = vmatpush1.bf16.xpose.msra.mxu0 0
  %9234 = vmatprep.subr.bf16.mxu0 0
  %9235 = vmatpush1.bf16.xpose.msra.mxu0 0
  %9236 = vmatprep.subr.bf16.mxu0 0
  %9237 = vmatpush1.bf16.xpose.msra.mxu0 0
  %9238 = vmatprep.subr.bf16.mxu0 0
  %9239 = vmatpush1.bf16.xpose.msra.mxu0 0
  %9240 = vmatprep.subr.bf16.mxu0 0
  %9241 = vmatpush1.bf16.xpose.msra.mxu0 0
  %9242 = vmatprep.subr.bf16.mxu0 0
  %9243 = vmatpush1.bf16.xpose.msra.mxu0 0
  %9244 = vmatprep.subr.bf16.mxu0 0
  %9245 = vmatpush1.bf16.xpose.msra.mxu0 0
  %9246 = vmatprep.subr.bf16.mxu0 0
  %9247 = vmatpush1.bf16.xpose.msra.mxu0 0
  %9248 = vmatprep.mubr.bf16.mxu0 0
  %9249 = vmatmul.mubr.bf16.gmra.mrb[0].mxu0 %v9193
  %v9250 = vpop.f32.mrb[0].mxu0
  %v9251 = vadd.f32 0.0, %v9250
  %v9252 = vpop.f32.mrb[0].mxu0
  %v9253 = vpop.f32.mrb[0].mxu0
  %v9254 = vadd.f32 0.0, %v9253
  %v9255 = vpop.f32.mrb[0].mxu0
  %9256 = vmatprep.mubr.bf16.mxu0 0
  %9257 = vmatmul.mubr.bf16.gmra.mrb[0].mxu0 %v9196
  %v9258 = vpop.f32.mrb[0].mxu0
  %v9259 = vadd.f32 0.0, %v9258
  %v9260 = vpop.f32.mrb[0].mxu0
  %v9261 = vpop.f32.mrb[0].mxu0
  %v9262 = vadd.f32 0.0, %v9261
  %v9263 = vpop.f32.mrb[0].mxu0
  %9264 = vmatprep.mubr.bf16.mxu0 0
  %9265 = vmatmul.mubr.bf16.gmra.mrb[0].mxu0 %v9199
  %v9266 = vpop.f32.mrb[0].mxu0
  %v9267 = vadd.f32 0.0, %v9266
  %v9268 = vpop.f32.mrb[0].mxu0
  %v9269 = vpop.f32.mrb[0].mxu0
  %v9270 = vadd.f32 0.0, %v9269
  %v9271 = vpop.f32.mrb[0].mxu0
  %9272 = vmatprep.mubr.bf16.mxu0 0
  %9273 = vmatmul.mubr.bf16.gmra.mrb[0].mxu0 %v9202
  %v9274 = vpop.f32.mrb[0].mxu0
  %v9275 = vadd.f32 0.0, %v9274
  %v9276 = vpop.f32.mrb[0].mxu0
  %v9277 = vpop.f32.mrb[0].mxu0
  %v9278 = vadd.f32 0.0, %v9277
  %v9279 = vpop.f32.mrb[0].mxu0
  %9280 = vdwg.mxu0
  %v9281 = vmul.f32 %v9146, 0.35355338
  %v9282 = vmul.f32 %v9149, 0.35355338
  %v9283 = vmul.f32 %v9154, 0.35355338
  %v9284 = vmul.f32 %v9157, 0.35355338
  %v9285 = vmul.f32 %v9162, 0.35355338
  %v9286 = vmul.f32 %v9165, 0.35355338
  %v9287 = vmul.f32 %v9170, 0.35355338
  %v9288 = vmul.f32 %v9173, 0.35355338
  %v9289 = vmul.f32 %v9251, 0.35355338
  %v9290 = vmul.f32 %v9254, 0.35355338
  %v9291 = vmul.f32 %v9259, 0.35355338
  %v9292 = vmul.f32 %v9262, 0.35355338
  %v9293 = vmul.f32 %v9267, 0.35355338
  %v9294 = vmul.f32 %v9270, 0.35355338
  %v9295 = vmul.f32 %v9275, 0.35355338
  %v9296 = vmul.f32 %v9278, 0.35355338
  %v9297 = vsel %vm3950, %v9281, -inf
  %9298 = vmax.xlane.f32.xlu0 %v9297
  %v9299 = vpop.xlane.xlu0 %9298
  %v9300 = vsel %vm3950, %v9282, -inf
  %9301 = vmax.xlane.f32.xlu0 %v9300
  %v9302 = vpop.xlane.xlu0 %9301
  %v9303 = vsel %vm3950, %v9283, -inf
  %9304 = vmax.xlane.f32.xlu0 %v9303
  %v9305 = vpop.xlane.xlu0 %9304
  %v9306 = vsel %vm3950, %v9284, -inf
  %9307 = vmax.xlane.f32.xlu0 %v9306
  %v9308 = vpop.xlane.xlu0 %9307
  %v9309 = vsel %vm3950, %v9285, -inf
  %9310 = vmax.xlane.f32.xlu0 %v9309
  %v9311 = vpop.xlane.xlu0 %9310
  %v9312 = vsel %vm3950, %v9286, -inf
  %9313 = vmax.xlane.f32.xlu0 %v9312
  %v9314 = vpop.xlane.xlu0 %9313
  %v9315 = vsel %vm3950, %v9287, -inf
  %9316 = vmax.xlane.f32.xlu0 %v9315
  %v9317 = vpop.xlane.xlu0 %9316
  %v9318 = vsel %vm3950, %v9288, -inf
  %9319 = vmax.xlane.f32.xlu0 %v9318
  %v9320 = vpop.xlane.xlu0 %9319
  %v9321 = vsel %vm3950, %v9289, -inf
  %9322 = vmax.xlane.f32.xlu0 %v9321
  %v9323 = vpop.xlane.xlu0 %9322
  %v9324 = vsel %vm3950, %v9290, -inf
  %9325 = vmax.xlane.f32.xlu0 %v9324
  %v9326 = vpop.xlane.xlu0 %9325
  %v9327 = vsel %vm3950, %v9291, -inf
  %9328 = vmax.xlane.f32.xlu0 %v9327
  %v9329 = vpop.xlane.xlu0 %9328
  %v9330 = vsel %vm3950, %v9292, -inf
  %9331 = vmax.xlane.f32.xlu0 %v9330
  %v9332 = vpop.xlane.xlu0 %9331
  %v9333 = vsel %vm3950, %v9293, -inf
  %9334 = vmax.xlane.f32.xlu0 %v9333
  %v9335 = vpop.xlane.xlu0 %9334
  %v9336 = vsel %vm3950, %v9294, -inf
  %9337 = vmax.xlane.f32.xlu0 %v9336
  %v9338 = vpop.xlane.xlu0 %9337
  %v9339 = vsel %vm3950, %v9295, -inf
  %9340 = vmax.xlane.f32.xlu0 %v9339
  %v9341 = vpop.xlane.xlu0 %9340
  %v9342 = vsel %vm3950, %v9296, -inf
  %9343 = vmax.xlane.f32.xlu0 %v9342
  %v9344 = vpop.xlane.xlu0 %9343
  %v9345 = vsub.f32 %v9281, %v9299
  %v9346 = vsub.f32 %v9282, %v9302
  %v9347 = vsub.f32 %v9283, %v9305
  %v9348 = vsub.f32 %v9284, %v9308
  %v9349 = vsub.f32 %v9285, %v9311
  %v9350 = vsub.f32 %v9286, %v9314
  %v9351 = vsub.f32 %v9287, %v9317
  %v9352 = vsub.f32 %v9288, %v9320
  %v9353 = vsub.f32 %v9289, %v9323
  %v9354 = vsub.f32 %v9290, %v9326
  %v9355 = vsub.f32 %v9291, %v9329
  %v9356 = vsub.f32 %v9292, %v9332
  %v9357 = vsub.f32 %v9293, %v9335
  %v9358 = vsub.f32 %v9294, %v9338
  %v9359 = vsub.f32 %v9295, %v9341
  %v9360 = vsub.f32 %v9296, %v9344
  %v9361 = vmul.f32 %v9345, 1.442695
  %v9362 = vpow.pop %v9361
  %v9363 = vmul.f32 %v9346, 1.442695
  %v9364 = vpow.pop %v9363
  %v9365 = vmul.f32 %v9347, 1.442695
  %v9366 = vpow.pop %v9365
  %v9367 = vmul.f32 %v9348, 1.442695
  %v9368 = vpow.pop %v9367
  %v9369 = vmul.f32 %v9349, 1.442695
  %v9370 = vpow.pop %v9369
  %v9371 = vmul.f32 %v9350, 1.442695
  %v9372 = vpow.pop %v9371
  %v9373 = vmul.f32 %v9351, 1.442695
  %v9374 = vpow.pop %v9373
  %v9375 = vmul.f32 %v9352, 1.442695
  %v9376 = vpow.pop %v9375
  %v9377 = vmul.f32 %v9353, 1.442695
  %v9378 = vpow.pop %v9377
  %v9379 = vmul.f32 %v9354, 1.442695
  %v9380 = vpow.pop %v9379
  %v9381 = vmul.f32 %v9355, 1.442695
  %v9382 = vpow.pop %v9381
  %v9383 = vmul.f32 %v9356, 1.442695
  %v9384 = vpow.pop %v9383
  %v9385 = vmul.f32 %v9357, 1.442695
  %v9386 = vpow.pop %v9385
  %v9387 = vmul.f32 %v9358, 1.442695
  %v9388 = vpow.pop %v9387
  %v9389 = vmul.f32 %v9359, 1.442695
  %v9390 = vpow.pop %v9389
  %v9391 = vmul.f32 %v9360, 1.442695
  %v9392 = vpow.pop %v9391
  %v9393 = vsel %vm3950, %v9362, 0.0
  %9394 = vadd.xlane.f32.xlu0 %v9393
  %v9395 = vpop.xlane.xlu0 %9394
  %v9396 = vsel %vm3950, %v9364, 0.0
  %9397 = vadd.xlane.f32.xlu0 %v9396
  %v9398 = vpop.xlane.xlu0 %9397
  %v9399 = vsel %vm3950, %v9366, 0.0
  %9400 = vadd.xlane.f32.xlu0 %v9399
  %v9401 = vpop.xlane.xlu0 %9400
  %v9402 = vsel %vm3950, %v9368, 0.0
  %9403 = vadd.xlane.f32.xlu0 %v9402
  %v9404 = vpop.xlane.xlu0 %9403
  %v9405 = vsel %vm3950, %v9370, 0.0
  %9406 = vadd.xlane.f32.xlu0 %v9405
  %v9407 = vpop.xlane.xlu0 %9406
  %v9408 = vsel %vm3950, %v9372, 0.0
  %9409 = vadd.xlane.f32.xlu0 %v9408
  %v9410 = vpop.xlane.xlu0 %9409
  %v9411 = vsel %vm3950, %v9374, 0.0
  %9412 = vadd.xlane.f32.xlu0 %v9411
  %v9413 = vpop.xlane.xlu0 %9412
  %v9414 = vsel %vm3950, %v9376, 0.0
  %9415 = vadd.xlane.f32.xlu0 %v9414
  %v9416 = vpop.xlane.xlu0 %9415
  %v9417 = vsel %vm3950, %v9378, 0.0
  %9418 = vadd.xlane.f32.xlu0 %v9417
  %v9419 = vpop.xlane.xlu0 %9418
  %v9420 = vsel %vm3950, %v9380, 0.0
  %9421 = vadd.xlane.f32.xlu0 %v9420
  %v9422 = vpop.xlane.xlu0 %9421
  %v9423 = vsel %vm3950, %v9382, 0.0
  %9424 = vadd.xlane.f32.xlu0 %v9423
  %v9425 = vpop.xlane.xlu0 %9424
  %v9426 = vsel %vm3950, %v9384, 0.0
  %9427 = vadd.xlane.f32.xlu0 %v9426
  %v9428 = vpop.xlane.xlu0 %9427
  %v9429 = vsel %vm3950, %v9386, 0.0
  %9430 = vadd.xlane.f32.xlu0 %v9429
  %v9431 = vpop.xlane.xlu0 %9430
  %v9432 = vsel %vm3950, %v9388, 0.0
  %9433 = vadd.xlane.f32.xlu0 %v9432
  %v9434 = vpop.xlane.xlu0 %9433
  %v9435 = vsel %vm3950, %v9390, 0.0
  %9436 = vadd.xlane.f32.xlu0 %v9435
  %v9437 = vpop.xlane.xlu0 %9436
  %v9438 = vsel %vm3950, %v9392, 0.0
  %9439 = vadd.xlane.f32.xlu0 %v9438
  %v9440 = vpop.xlane.xlu0 %9439
  %v9441 = vrcp.pop %v9395
  %v9442 = vrcp.pop %v9398
  %v9443 = vrcp.pop %v9401
  %v9444 = vrcp.pop %v9404
  %v9445 = vrcp.pop %v9407
  %v9446 = vrcp.pop %v9410
  %v9447 = vrcp.pop %v9413
  %v9448 = vrcp.pop %v9416
  %v9449 = vrcp.pop %v9419
  %v9450 = vrcp.pop %v9422
  %v9451 = vrcp.pop %v9425
  %v9452 = vrcp.pop %v9428
  %v9453 = vrcp.pop %v9431
  %v9454 = vrcp.pop %v9434
  %v9455 = vrcp.pop %v9437
  %v9456 = vrcp.pop %v9440
  %v9457 = vmul.f32 %v9362, %v9441
  %v9458 = vmul.f32 %v9364, %v9442
  %v9459 = vmul.f32 %v9366, %v9443
  %v9460 = vmul.f32 %v9368, %v9444
  %v9461 = vmul.f32 %v9370, %v9445
  %v9462 = vmul.f32 %v9372, %v9446
  %v9463 = vmul.f32 %v9374, %v9447
  %v9464 = vmul.f32 %v9376, %v9448
  %v9465 = vmul.f32 %v9378, %v9449
  %v9466 = vmul.f32 %v9380, %v9450
  %v9467 = vmul.f32 %v9382, %v9451
  %v9468 = vmul.f32 %v9384, %v9452
  %v9469 = vmul.f32 %v9386, %v9453
  %v9470 = vmul.f32 %v9388, %v9454
  %v9471 = vmul.f32 %v9390, %v9455
  %v9472 = vmul.f32 %v9392, %v9456
  %v9473 = vpack.c.bf16 %v9458, %v9457
  %v9474 = vpack.c.bf16 %v9460, %v9459
  %v9475 = vpack.c.bf16 %v9462, %v9461
  %v9476 = vpack.c.bf16 %v9464, %v9463
  %v9477 = vpack.c.bf16 %v9466, %v9465
  %v9478 = vpack.c.bf16 %v9468, %v9467
  %v9479 = vpack.c.bf16 %v9470, %v9469
  %v9480 = vpack.c.bf16 %v9472, %v9471
  %9481 = vrot.lane.b32.xlu0 %v5130, 80
  %v9482 = vpop.permute.xlu0 %9481
  %9483 = vrot.lane.b32.xlu0 %v5132, 80
  %v9484 = vpop.permute.xlu0 %9483
  %9485 = vrot.lane.b32.xlu0 %v5134, 80
  %v9486 = vpop.permute.xlu0 %9485
  %9487 = vrot.lane.b32.xlu0 %v5136, 80
  %v9488 = vpop.permute.xlu0 %9487
  %v9494 = vsel %vm3950, %v9473, 0
  %v9497 = vsel %vm3950, %v9474, 0
  %v9500 = vsel %vm3950, %v9475, 0
  %v9503 = vsel %vm3950, %v9476, 0
  %9505 = vmatprep.subr.bf16.mxu0 0
  %9506 = vmatpush1.bf16.msra.mxu0 %v9482
  %9507 = vmatprep.subr.bf16.mxu0 0
  %9508 = vmatpush1.bf16.msra.mxu0 %v9484
  %9509 = vmatprep.subr.bf16.mxu0 0
  %9510 = vmatpush1.bf16.msra.mxu0 %v9486
  %9511 = vmatprep.subr.bf16.mxu0 0
  %9512 = vmatpush1.bf16.msra.mxu0 %v9488
  %9513 = vmatprep.subr.bf16.mxu0 0
  %9514 = vmatpush1.bf16.msra.mxu0 0
  %9515 = vmatprep.subr.bf16.mxu0 0
  %9516 = vmatpush1.bf16.msra.mxu0 0
  %9517 = vmatprep.subr.bf16.mxu0 0
  %9518 = vmatpush1.bf16.msra.mxu0 0
  %9519 = vmatprep.subr.bf16.mxu0 0
  %9520 = vmatpush1.bf16.msra.mxu0 0
  %9521 = vmatprep.subr.bf16.mxu0 0
  %9522 = vmatpush1.bf16.msra.mxu0 0
  %9523 = vmatprep.subr.bf16.mxu0 0
  %9524 = vmatpush1.bf16.msra.mxu0 0
  %9525 = vmatprep.subr.bf16.mxu0 0
  %9526 = vmatpush1.bf16.msra.mxu0 0
  %9527 = vmatprep.subr.bf16.mxu0 0
  %9528 = vmatpush1.bf16.msra.mxu0 0
  %9529 = vmatprep.subr.bf16.mxu0 0
  %9530 = vmatpush1.bf16.msra.mxu0 0
  %9531 = vmatprep.subr.bf16.mxu0 0
  %9532 = vmatpush1.bf16.msra.mxu0 0
  %9533 = vmatprep.subr.bf16.mxu0 0
  %9534 = vmatpush1.bf16.msra.mxu0 0
  %9535 = vmatprep.subr.bf16.mxu0 0
  %9536 = vmatpush1.bf16.msra.mxu0 0
  %9537 = vmatprep.mubr.bf16.mxu0 0
  %9538 = vmatmul.mubr.bf16.gmra.mrb[0].mxu0 %v9494
  %v9539 = vpop.f32.mrb[0].mxu0
  %v9540 = vadd.f32 0.0, %v9539
  %v9541 = vpop.f32.mrb[0].mxu0
  %v9542 = vpop.f32.mrb[0].mxu0
  %v9543 = vadd.f32 0.0, %v9542
  %v9544 = vpop.f32.mrb[0].mxu0
  %9545 = vmatprep.mubr.bf16.mxu0 0
  %9546 = vmatmul.mubr.bf16.gmra.mrb[0].mxu0 %v9497
  %v9547 = vpop.f32.mrb[0].mxu0
  %v9548 = vadd.f32 0.0, %v9547
  %v9549 = vpop.f32.mrb[0].mxu0
  %v9550 = vpop.f32.mrb[0].mxu0
  %v9551 = vadd.f32 0.0, %v9550
  %v9552 = vpop.f32.mrb[0].mxu0
  %9553 = vmatprep.mubr.bf16.mxu0 0
  %9554 = vmatmul.mubr.bf16.gmra.mrb[0].mxu0 %v9500
  %v9555 = vpop.f32.mrb[0].mxu0
  %v9556 = vadd.f32 0.0, %v9555
  %v9557 = vpop.f32.mrb[0].mxu0
  %v9558 = vpop.f32.mrb[0].mxu0
  %v9559 = vadd.f32 0.0, %v9558
  %v9560 = vpop.f32.mrb[0].mxu0
  %9561 = vmatprep.mubr.bf16.mxu0 0
  %9562 = vmatmul.mubr.bf16.gmra.mrb[0].mxu0 %v9503
  %v9563 = vpop.f32.mrb[0].mxu0
  %v9564 = vadd.f32 0.0, %v9563
  %v9565 = vpop.f32.mrb[0].mxu0
  %v9566 = vpop.f32.mrb[0].mxu0
  %v9567 = vadd.f32 0.0, %v9566
  %v9568 = vpop.f32.mrb[0].mxu0
  %9569 = vdwg.mxu0
  %9570 = vrot.lane.b32.xlu0 %v5138, 80
  %v9571 = vpop.permute.xlu0 %9570
  %9572 = vrot.lane.b32.xlu0 %v5140, 80
  %v9573 = vpop.permute.xlu0 %9572
  %9574 = vrot.lane.b32.xlu0 %v5142, 80
  %v9575 = vpop.permute.xlu0 %9574
  %9576 = vrot.lane.b32.xlu0 %v5144, 80
  %v9577 = vpop.permute.xlu0 %9576
  %v9583 = vsel %vm3950, %v9477, 0
  %v9586 = vsel %vm3950, %v9478, 0
  %v9589 = vsel %vm3950, %v9479, 0
  %v9592 = vsel %vm3950, %v9480, 0
  %9594 = vmatprep.subr.bf16.mxu0 0
  %9595 = vmatpush1.bf16.msra.mxu0 %v9571
  %9596 = vmatprep.subr.bf16.mxu0 0
  %9597 = vmatpush1.bf16.msra.mxu0 %v9573
  %9598 = vmatprep.subr.bf16.mxu0 0
  %9599 = vmatpush1.bf16.msra.mxu0 %v9575
  %9600 = vmatprep.subr.bf16.mxu0 0
  %9601 = vmatpush1.bf16.msra.mxu0 %v9577
  %9602 = vmatprep.subr.bf16.mxu0 0
  %9603 = vmatpush1.bf16.msra.mxu0 0
  %9604 = vmatprep.subr.bf16.mxu0 0
  %9605 = vmatpush1.bf16.msra.mxu0 0
  %9606 = vmatprep.subr.bf16.mxu0 0
  %9607 = vmatpush1.bf16.msra.mxu0 0
  %9608 = vmatprep.subr.bf16.mxu0 0
  %9609 = vmatpush1.bf16.msra.mxu0 0
  %9610 = vmatprep.subr.bf16.mxu0 0
  %9611 = vmatpush1.bf16.msra.mxu0 0
  %9612 = vmatprep.subr.bf16.mxu0 0
  %9613 = vmatpush1.bf16.msra.mxu0 0
  %9614 = vmatprep.subr.bf16.mxu0 0
  %9615 = vmatpush1.bf16.msra.mxu0 0
  %9616 = vmatprep.subr.bf16.mxu0 0
  %9617 = vmatpush1.bf16.msra.mxu0 0
  %9618 = vmatprep.subr.bf16.mxu0 0
  %9619 = vmatpush1.bf16.msra.mxu0 0
  %9620 = vmatprep.subr.bf16.mxu0 0
  %9621 = vmatpush1.bf16.msra.mxu0 0
  %9622 = vmatprep.subr.bf16.mxu0 0
  %9623 = vmatpush1.bf16.msra.mxu0 0
  %9624 = vmatprep.subr.bf16.mxu0 0
  %9625 = vmatpush1.bf16.msra.mxu0 0
  %9626 = vmatprep.mubr.bf16.mxu0 0
  %9627 = vmatmul.mubr.bf16.gmra.mrb[0].mxu0 %v9583
  %v9628 = vpop.f32.mrb[0].mxu0
  %v9629 = vadd.f32 0.0, %v9628
  %v9630 = vpop.f32.mrb[0].mxu0
  %v9631 = vpop.f32.mrb[0].mxu0
  %v9632 = vadd.f32 0.0, %v9631
  %v9633 = vpop.f32.mrb[0].mxu0
  %9634 = vmatprep.mubr.bf16.mxu0 0
  %9635 = vmatmul.mubr.bf16.gmra.mrb[0].mxu0 %v9586
  %v9636 = vpop.f32.mrb[0].mxu0
  %v9637 = vadd.f32 0.0, %v9636
  %v9638 = vpop.f32.mrb[0].mxu0
  %v9639 = vpop.f32.mrb[0].mxu0
  %v9640 = vadd.f32 0.0, %v9639
  %v9641 = vpop.f32.mrb[0].mxu0
  %9642 = vmatprep.mubr.bf16.mxu0 0
  %9643 = vmatmul.mubr.bf16.gmra.mrb[0].mxu0 %v9589
  %v9644 = vpop.f32.mrb[0].mxu0
  %v9645 = vadd.f32 0.0, %v9644
  %v9646 = vpop.f32.mrb[0].mxu0
  %v9647 = vpop.f32.mrb[0].mxu0
  %v9648 = vadd.f32 0.0, %v9647
  %v9649 = vpop.f32.mrb[0].mxu0
  %9650 = vmatprep.mubr.bf16.mxu0 0
  %9651 = vmatmul.mubr.bf16.gmra.mrb[0].mxu0 %v9592
  %v9652 = vpop.f32.mrb[0].mxu0
  %v9653 = vadd.f32 0.0, %v9652
  %v9654 = vpop.f32.mrb[0].mxu0
  %v9655 = vpop.f32.mrb[0].mxu0
  %v9656 = vadd.f32 0.0, %v9655
  %v9657 = vpop.f32.mrb[0].mxu0
  %9658 = vdwg.mxu0
  %9675 = vrot.lane.b32.xlu0 %v9540, 48
  %v9676 = vpop.permute.xlu0 %9675
  %9677 = vrot.lane.b32.xlu0 %v9543, 48
  %v9678 = vpop.permute.xlu0 %9677
  %9679 = vrot.lane.b32.xlu0 %v9548, 48
  %v9680 = vpop.permute.xlu0 %9679
  %9681 = vrot.lane.b32.xlu0 %v9551, 48
  %v9682 = vpop.permute.xlu0 %9681
  %9683 = vrot.lane.b32.xlu0 %v9556, 48
  %v9684 = vpop.permute.xlu0 %9683
  %9685 = vrot.lane.b32.xlu0 %v9559, 48
  %v9686 = vpop.permute.xlu0 %9685
  %9687 = vrot.lane.b32.xlu0 %v9564, 48
  %v9688 = vpop.permute.xlu0 %9687
  %9689 = vrot.lane.b32.xlu0 %v9567, 48
  %v9690 = vpop.permute.xlu0 %9689
  %9691 = vrot.lane.b32.xlu0 %v9629, 48
  %v9692 = vpop.permute.xlu0 %9691
  %9693 = vrot.lane.b32.xlu0 %v9632, 48
  %v9694 = vpop.permute.xlu0 %9693
  %9695 = vrot.lane.b32.xlu0 %v9637, 48
  %v9696 = vpop.permute.xlu0 %9695
  %9697 = vrot.lane.b32.xlu0 %v9640, 48
  %v9698 = vpop.permute.xlu0 %9697
  %9699 = vrot.lane.b32.xlu0 %v9645, 48
  %v9700 = vpop.permute.xlu0 %9699
  %9701 = vrot.lane.b32.xlu0 %v9648, 48
  %v9702 = vpop.permute.xlu0 %9701
  %9703 = vrot.lane.b32.xlu0 %v9653, 48
  %v9704 = vpop.permute.xlu0 %9703
  %9705 = vrot.lane.b32.xlu0 %v9656, 48
  %v9706 = vpop.permute.xlu0 %9705
  %vm9723 = vcmask 458112
  %9724 = vst.msk [vmem:[#allocation2] sm:$0xff] %vm9723, %v9676
  %9725 = vst.msk [vmem:[#allocation2 + $0x8] sm:$0xff] %vm9723, %v9678
  %9726 = vst.msk [vmem:[#allocation2 + $0x10] sm:$0xff] %vm9723, %v9680
  %9727 = vst.msk [vmem:[#allocation2 + $0x18] sm:$0xff] %vm9723, %v9682
  %9728 = vst.msk [vmem:[#allocation2 + $0x20] sm:$0xff] %vm9723, %v9684
  %9729 = vst.msk [vmem:[#allocation2 + $0x28] sm:$0xff] %vm9723, %v9686
  %9730 = vst.msk [vmem:[#allocation2 + $0x30] sm:$0xff] %vm9723, %v9688
  %9731 = vst.msk [vmem:[#allocation2 + $0x38] sm:$0xff] %vm9723, %v9690
  %9732 = vst.msk [vmem:[#allocation2 + $0x40] sm:$0xff] %vm9723, %v9692
  %9733 = vst.msk [vmem:[#allocation2 + $0x48] sm:$0xff] %vm9723, %v9694
  %9734 = vst.msk [vmem:[#allocation2 + $0x50] sm:$0xff] %vm9723, %v9696
  %9735 = vst.msk [vmem:[#allocation2 + $0x58] sm:$0xff] %vm9723, %v9698
  %9736 = vst.msk [vmem:[#allocation2 + $0x60] sm:$0xff] %vm9723, %v9700
  %9737 = vst.msk [vmem:[#allocation2 + $0x68] sm:$0xff] %vm9723, %v9702
  %9738 = vst.msk [vmem:[#allocation2 + $0x70] sm:$0xff] %vm9723, %v9704
  %9739 = vst.msk [vmem:[#allocation2 + $0x78] sm:$0xff] %vm9723, %v9706
  %9740 = vrot.lane.b32.xlu0 %v5129, 72
  %v9741 = vpop.permute.xlu0 %9740
  %9742 = vrot.lane.b32.xlu0 %v5131, 72
  %v9743 = vpop.permute.xlu0 %9742
  %9744 = vrot.lane.b32.xlu0 %v5133, 72
  %v9745 = vpop.permute.xlu0 %9744
  %9746 = vrot.lane.b32.xlu0 %v5135, 72
  %v9747 = vpop.permute.xlu0 %9746
  %9748 = vrot.lane.b32.xlu0 %v5129, 8
  %v9749 = vpop.permute.xlu0 %9748
  %9750 = vrot.lane.b32.xlu0 %v5131, 8
  %v9751 = vpop.permute.xlu0 %9750
  %9752 = vrot.lane.b32.xlu0 %v5133, 8
  %v9753 = vpop.permute.xlu0 %9752
  %9754 = vrot.lane.b32.xlu0 %v5135, 8
  %v9755 = vpop.permute.xlu0 %9754
  %v9757 = vsel %vm5157, %v9741, 0
  %v9760 = vsel %vm5157, %v9743, 0
  %v9763 = vsel %vm5157, %v9745, 0
  %v9766 = vsel %vm5157, %v9747, 0
  %v9769 = vsel %vm5157, %v9749, 0
  %v9772 = vsel %vm5157, %v9751, 0
  %v9775 = vsel %vm5157, %v9753, 0
  %v9778 = vsel %vm5157, %v9755, 0
  %9780 = vmatprep.subr.bf16.mxu0 0
  %9781 = vmatpush1.bf16.xpose.msra.mxu0 %v9769
  %9782 = vmatprep.subr.bf16.mxu0 0
  %9783 = vmatpush1.bf16.xpose.msra.mxu0 %v9772
  %9784 = vmatprep.subr.bf16.mxu0 0
  %9785 = vmatpush1.bf16.xpose.msra.mxu0 %v9775
  %9786 = vmatprep.subr.bf16.mxu0 0
  %9787 = vmatpush1.bf16.xpose.msra.mxu0 %v9778
  %9788 = vmatprep.subr.bf16.mxu0 0
  %9789 = vmatpush1.bf16.xpose.msra.mxu0 0
  %9790 = vmatprep.subr.bf16.mxu0 0
  %9791 = vmatpush1.bf16.xpose.msra.mxu0 0
  %9792 = vmatprep.subr.bf16.mxu0 0
  %9793 = vmatpush1.bf16.xpose.msra.mxu0 0
  %9794 = vmatprep.subr.bf16.mxu0 0
  %9795 = vmatpush1.bf16.xpose.msra.mxu0 0
  %9796 = vmatprep.subr.bf16.mxu0 0
  %9797 = vmatpush1.bf16.xpose.msra.mxu0 0
  %9798 = vmatprep.subr.bf16.mxu0 0
  %9799 = vmatpush1.bf16.xpose.msra.mxu0 0
  %9800 = vmatprep.subr.bf16.mxu0 0
  %9801 = vmatpush1.bf16.xpose.msra.mxu0 0
  %9802 = vmatprep.subr.bf16.mxu0 0
  %9803 = vmatpush1.bf16.xpose.msra.mxu0 0
  %9804 = vmatprep.subr.bf16.mxu0 0
  %9805 = vmatpush1.bf16.xpose.msra.mxu0 0
  %9806 = vmatprep.subr.bf16.mxu0 0
  %9807 = vmatpush1.bf16.xpose.msra.mxu0 0
  %9808 = vmatprep.subr.bf16.mxu0 0
  %9809 = vmatpush1.bf16.xpose.msra.mxu0 0
  %9810 = vmatprep.subr.bf16.mxu0 0
  %9811 = vmatpush1.bf16.xpose.msra.mxu0 0
  %9812 = vmatprep.mubr.bf16.mxu0 0
  %9813 = vmatmul.mubr.bf16.gmra.mrb[0].mxu0 %v9757
  %v9814 = vpop.f32.mrb[0].mxu0
  %v9815 = vadd.f32 0.0, %v9814
  %v9816 = vpop.f32.mrb[0].mxu0
  %v9817 = vpop.f32.mrb[0].mxu0
  %v9818 = vadd.f32 0.0, %v9817
  %v9819 = vpop.f32.mrb[0].mxu0
  %9820 = vmatprep.mubr.bf16.mxu0 0
  %9821 = vmatmul.mubr.bf16.gmra.mrb[0].mxu0 %v9760
  %v9822 = vpop.f32.mrb[0].mxu0
  %v9823 = vadd.f32 0.0, %v9822
  %v9824 = vpop.f32.mrb[0].mxu0
  %v9825 = vpop.f32.mrb[0].mxu0
  %v9826 = vadd.f32 0.0, %v9825
  %v9827 = vpop.f32.mrb[0].mxu0
  %9828 = vmatprep.mubr.bf16.mxu0 0
  %9829 = vmatmul.mubr.bf16.gmra.mrb[0].mxu0 %v9763
  %v9830 = vpop.f32.mrb[0].mxu0
  %v9831 = vadd.f32 0.0, %v9830
  %v9832 = vpop.f32.mrb[0].mxu0
  %v9833 = vpop.f32.mrb[0].mxu0
  %v9834 = vadd.f32 0.0, %v9833
  %v9835 = vpop.f32.mrb[0].mxu0
  %9836 = vmatprep.mubr.bf16.mxu0 0
  %9837 = vmatmul.mubr.bf16.gmra.mrb[0].mxu0 %v9766
  %v9838 = vpop.f32.mrb[0].mxu0
  %v9839 = vadd.f32 0.0, %v9838
  %v9840 = vpop.f32.mrb[0].mxu0
  %v9841 = vpop.f32.mrb[0].mxu0
  %v9842 = vadd.f32 0.0, %v9841
  %v9843 = vpop.f32.mrb[0].mxu0
  %9844 = vdwg.mxu0
  %9845 = vrot.lane.b32.xlu0 %v5137, 72
  %v9846 = vpop.permute.xlu0 %9845
  %9847 = vrot.lane.b32.xlu0 %v5139, 72
  %v9848 = vpop.permute.xlu0 %9847
  %9849 = vrot.lane.b32.xlu0 %v5141, 72
  %v9850 = vpop.permute.xlu0 %9849
  %9851 = vrot.lane.b32.xlu0 %v5143, 72
  %v9852 = vpop.permute.xlu0 %9851
  %9853 = vrot.lane.b32.xlu0 %v5137, 8
  %v9854 = vpop.permute.xlu0 %9853
  %9855 = vrot.lane.b32.xlu0 %v5139, 8
  %v9856 = vpop.permute.xlu0 %9855
  %9857 = vrot.lane.b32.xlu0 %v5141, 8
  %v9858 = vpop.permute.xlu0 %9857
  %9859 = vrot.lane.b32.xlu0 %v5143, 8
  %v9860 = vpop.permute.xlu0 %9859
  %v9862 = vsel %vm5157, %v9846, 0
  %v9865 = vsel %vm5157, %v9848, 0
  %v9868 = vsel %vm5157, %v9850, 0
  %v9871 = vsel %vm5157, %v9852, 0
  %v9874 = vsel %vm5157, %v9854, 0
  %v9877 = vsel %vm5157, %v9856, 0
  %v9880 = vsel %vm5157, %v9858, 0
  %v9883 = vsel %vm5157, %v9860, 0
  %9885 = vmatprep.subr.bf16.mxu0 0
  %9886 = vmatpush1.bf16.xpose.msra.mxu0 %v9874
  %9887 = vmatprep.subr.bf16.mxu0 0
  %9888 = vmatpush1.bf16.xpose.msra.mxu0 %v9877
  %9889 = vmatprep.subr.bf16.mxu0 0
  %9890 = vmatpush1.bf16.xpose.msra.mxu0 %v9880
  %9891 = vmatprep.subr.bf16.mxu0 0
  %9892 = vmatpush1.bf16.xpose.msra.mxu0 %v9883
  %9893 = vmatprep.subr.bf16.mxu0 0
  %9894 = vmatpush1.bf16.xpose.msra.mxu0 0
  %9895 = vmatprep.subr.bf16.mxu0 0
  %9896 = vmatpush1.bf16.xpose.msra.mxu0 0
  %9897 = vmatprep.subr.bf16.mxu0 0
  %9898 = vmatpush1.bf16.xpose.msra.mxu0 0
  %9899 = vmatprep.subr.bf16.mxu0 0
  %9900 = vmatpush1.bf16.xpose.msra.mxu0 0
  %9901 = vmatprep.subr.bf16.mxu0 0
  %9902 = vmatpush1.bf16.xpose.msra.mxu0 0
  %9903 = vmatprep.subr.bf16.mxu0 0
  %9904 = vmatpush1.bf16.xpose.msra.mxu0 0
  %9905 = vmatprep.subr.bf16.mxu0 0
  %9906 = vmatpush1.bf16.xpose.msra.mxu0 0
  %9907 = vmatprep.subr.bf16.mxu0 0
  %9908 = vmatpush1.bf16.xpose.msra.mxu0 0
  %9909 = vmatprep.subr.bf16.mxu0 0
  %9910 = vmatpush1.bf16.xpose.msra.mxu0 0
  %9911 = vmatprep.subr.bf16.mxu0 0
  %9912 = vmatpush1.bf16.xpose.msra.mxu0 0
  %9913 = vmatprep.subr.bf16.mxu0 0
  %9914 = vmatpush1.bf16.xpose.msra.mxu0 0
  %9915 = vmatprep.subr.bf16.mxu0 0
  %9916 = vmatpush1.bf16.xpose.msra.mxu0 0
  %9917 = vmatprep.mubr.bf16.mxu0 0
  %9918 = vmatmul.mubr.bf16.gmra.mrb[0].mxu0 %v9862
  %v9919 = vpop.f32.mrb[0].mxu0
  %v9920 = vadd.f32 0.0, %v9919
  %v9921 = vpop.f32.mrb[0].mxu0
  %v9922 = vpop.f32.mrb[0].mxu0
  %v9923 = vadd.f32 0.0, %v9922
  %v9924 = vpop.f32.mrb[0].mxu0
  %9925 = vmatprep.mubr.bf16.mxu0 0
  %9926 = vmatmul.mubr.bf16.gmra.mrb[0].mxu0 %v9865
  %v9927 = vpop.f32.mrb[0].mxu0
  %v9928 = vadd.f32 0.0, %v9927
  %v9929 = vpop.f32.mrb[0].mxu0
  %v9930 = vpop.f32.mrb[0].mxu0
  %v9931 = vadd.f32 0.0, %v9930
  %v9932 = vpop.f32.mrb[0].mxu0
  %9933 = vmatprep.mubr.bf16.mxu0 0
  %9934 = vmatmul.mubr.bf16.gmra.mrb[0].mxu0 %v9868
  %v9935 = vpop.f32.mrb[0].mxu0
  %v9936 = vadd.f32 0.0, %v9935
  %v9937 = vpop.f32.mrb[0].mxu0
  %v9938 = vpop.f32.mrb[0].mxu0
  %v9939 = vadd.f32 0.0, %v9938
  %v9940 = vpop.f32.mrb[0].mxu0
  %9941 = vmatprep.mubr.bf16.mxu0 0
  %9942 = vmatmul.mubr.bf16.gmra.mrb[0].mxu0 %v9871
  %v9943 = vpop.f32.mrb[0].mxu0
  %v9944 = vadd.f32 0.0, %v9943
  %v9945 = vpop.f32.mrb[0].mxu0
  %v9946 = vpop.f32.mrb[0].mxu0
  %v9947 = vadd.f32 0.0, %v9946
  %v9948 = vpop.f32.mrb[0].mxu0
  %9949 = vdwg.mxu0
  %v9950 = vmul.f32 %v9815, 0.35355338
  %v9951 = vmul.f32 %v9818, 0.35355338
  %v9952 = vmul.f32 %v9823, 0.35355338
  %v9953 = vmul.f32 %v9826, 0.35355338
  %v9954 = vmul.f32 %v9831, 0.35355338
  %v9955 = vmul.f32 %v9834, 0.35355338
  %v9956 = vmul.f32 %v9839, 0.35355338
  %v9957 = vmul.f32 %v9842, 0.35355338
  %v9958 = vmul.f32 %v9920, 0.35355338
  %v9959 = vmul.f32 %v9923, 0.35355338
  %v9960 = vmul.f32 %v9928, 0.35355338
  %v9961 = vmul.f32 %v9931, 0.35355338
  %v9962 = vmul.f32 %v9936, 0.35355338
  %v9963 = vmul.f32 %v9939, 0.35355338
  %v9964 = vmul.f32 %v9944, 0.35355338
  %v9965 = vmul.f32 %v9947, 0.35355338
  %v9966 = vsel %vm3950, %v9950, -inf
  %9967 = vmax.xlane.f32.xlu0 %v9966
  %v9968 = vpop.xlane.xlu0 %9967
  %v9969 = vsel %vm3950, %v9951, -inf
  %9970 = vmax.xlane.f32.xlu0 %v9969
  %v9971 = vpop.xlane.xlu0 %9970
  %v9972 = vsel %vm3950, %v9952, -inf
  %9973 = vmax.xlane.f32.xlu0 %v9972
  %v9974 = vpop.xlane.xlu0 %9973
  %v9975 = vsel %vm3950, %v9953, -inf
  %9976 = vmax.xlane.f32.xlu0 %v9975
  %v9977 = vpop.xlane.xlu0 %9976
  %v9978 = vsel %vm3950, %v9954, -inf
  %9979 = vmax.xlane.f32.xlu0 %v9978
  %v9980 = vpop.xlane.xlu0 %9979
  %v9981 = vsel %vm3950, %v9955, -inf
  %9982 = vmax.xlane.f32.xlu0 %v9981
  %v9983 = vpop.xlane.xlu0 %9982
  %v9984 = vsel %vm3950, %v9956, -inf
  %9985 = vmax.xlane.f32.xlu0 %v9984
  %v9986 = vpop.xlane.xlu0 %9985
  %v9987 = vsel %vm3950, %v9957, -inf
  %9988 = vmax.xlane.f32.xlu0 %v9987
  %v9989 = vpop.xlane.xlu0 %9988
  %v9990 = vsel %vm3950, %v9958, -inf
  %9991 = vmax.xlane.f32.xlu0 %v9990
  %v9992 = vpop.xlane.xlu0 %9991
  %v9993 = vsel %vm3950, %v9959, -inf
  %9994 = vmax.xlane.f32.xlu0 %v9993
  %v9995 = vpop.xlane.xlu0 %9994
  %v9996 = vsel %vm3950, %v9960, -inf
  %9997 = vmax.xlane.f32.xlu0 %v9996
  %v9998 = vpop.xlane.xlu0 %9997
  %v9999 = vsel %vm3950, %v9961, -inf
  %10000 = vmax.xlane.f32.xlu0 %v9999
  %v10001 = vpop.xlane.xlu0 %10000
  %v10002 = vsel %vm3950, %v9962, -inf
  %10003 = vmax.xlane.f32.xlu0 %v10002
  %v10004 = vpop.xlane.xlu0 %10003
  %v10005 = vsel %vm3950, %v9963, -inf
  %10006 = vmax.xlane.f32.xlu0 %v10005
  %v10007 = vpop.xlane.xlu0 %10006
  %v10008 = vsel %vm3950, %v9964, -inf
  %10009 = vmax.xlane.f32.xlu0 %v10008
  %v10010 = vpop.xlane.xlu0 %10009
  %v10011 = vsel %vm3950, %v9965, -inf
  %10012 = vmax.xlane.f32.xlu0 %v10011
  %v10013 = vpop.xlane.xlu0 %10012
  %v10014 = vsub.f32 %v9950, %v9968
  %v10015 = vsub.f32 %v9951, %v9971
  %v10016 = vsub.f32 %v9952, %v9974
  %v10017 = vsub.f32 %v9953, %v9977
  %v10018 = vsub.f32 %v9954, %v9980
  %v10019 = vsub.f32 %v9955, %v9983
  %v10020 = vsub.f32 %v9956, %v9986
  %v10021 = vsub.f32 %v9957, %v9989
  %v10022 = vsub.f32 %v9958, %v9992
  %v10023 = vsub.f32 %v9959, %v9995
  %v10024 = vsub.f32 %v9960, %v9998
  %v10025 = vsub.f32 %v9961, %v10001
  %v10026 = vsub.f32 %v9962, %v10004
  %v10027 = vsub.f32 %v9963, %v10007
  %v10028 = vsub.f32 %v9964, %v10010
  %v10029 = vsub.f32 %v9965, %v10013
  %v10030 = vmul.f32 %v10014, 1.442695
  %v10031 = vpow.pop %v10030
  %v10032 = vmul.f32 %v10015, 1.442695
  %v10033 = vpow.pop %v10032
  %v10034 = vmul.f32 %v10016, 1.442695
  %v10035 = vpow.pop %v10034
  %v10036 = vmul.f32 %v10017, 1.442695
  %v10037 = vpow.pop %v10036
  %v10038 = vmul.f32 %v10018, 1.442695
  %v10039 = vpow.pop %v10038
  %v10040 = vmul.f32 %v10019, 1.442695
  %v10041 = vpow.pop %v10040
  %v10042 = vmul.f32 %v10020, 1.442695
  %v10043 = vpow.pop %v10042
  %v10044 = vmul.f32 %v10021, 1.442695
  %v10045 = vpow.pop %v10044
  %v10046 = vmul.f32 %v10022, 1.442695
  %v10047 = vpow.pop %v10046
  %v10048 = vmul.f32 %v10023, 1.442695
  %v10049 = vpow.pop %v10048
  %v10050 = vmul.f32 %v10024, 1.442695
  %v10051 = vpow.pop %v10050
  %v10052 = vmul.f32 %v10025, 1.442695
  %v10053 = vpow.pop %v10052
  %v10054 = vmul.f32 %v10026, 1.442695
  %v10055 = vpow.pop %v10054
  %v10056 = vmul.f32 %v10027, 1.442695
  %v10057 = vpow.pop %v10056
  %v10058 = vmul.f32 %v10028, 1.442695
  %v10059 = vpow.pop %v10058
  %v10060 = vmul.f32 %v10029, 1.442695
  %v10061 = vpow.pop %v10060
  %v10062 = vsel %vm3950, %v10031, 0.0
  %10063 = vadd.xlane.f32.xlu0 %v10062
  %v10064 = vpop.xlane.xlu0 %10063
  %v10065 = vsel %vm3950, %v10033, 0.0
  %10066 = vadd.xlane.f32.xlu0 %v10065
  %v10067 = vpop.xlane.xlu0 %10066
  %v10068 = vsel %vm3950, %v10035, 0.0
  %10069 = vadd.xlane.f32.xlu0 %v10068
  %v10070 = vpop.xlane.xlu0 %10069
  %v10071 = vsel %vm3950, %v10037, 0.0
  %10072 = vadd.xlane.f32.xlu0 %v10071
  %v10073 = vpop.xlane.xlu0 %10072
  %v10074 = vsel %vm3950, %v10039, 0.0
  %10075 = vadd.xlane.f32.xlu0 %v10074
  %v10076 = vpop.xlane.xlu0 %10075
  %v10077 = vsel %vm3950, %v10041, 0.0
  %10078 = vadd.xlane.f32.xlu0 %v10077
  %v10079 = vpop.xlane.xlu0 %10078
  %v10080 = vsel %vm3950, %v10043, 0.0
  %10081 = vadd.xlane.f32.xlu0 %v10080
  %v10082 = vpop.xlane.xlu0 %10081
  %v10083 = vsel %vm3950, %v10045, 0.0
  %10084 = vadd.xlane.f32.xlu0 %v10083
  %v10085 = vpop.xlane.xlu0 %10084
  %v10086 = vsel %vm3950, %v10047, 0.0
  %10087 = vadd.xlane.f32.xlu0 %v10086
  %v10088 = vpop.xlane.xlu0 %10087
  %v10089 = vsel %vm3950, %v10049, 0.0
  %10090 = vadd.xlane.f32.xlu0 %v10089
  %v10091 = vpop.xlane.xlu0 %10090
  %v10092 = vsel %vm3950, %v10051, 0.0
  %10093 = vadd.xlane.f32.xlu0 %v10092
  %v10094 = vpop.xlane.xlu0 %10093
  %v10095 = vsel %vm3950, %v10053, 0.0
  %10096 = vadd.xlane.f32.xlu0 %v10095
  %v10097 = vpop.xlane.xlu0 %10096
  %v10098 = vsel %vm3950, %v10055, 0.0
  %10099 = vadd.xlane.f32.xlu0 %v10098
  %v10100 = vpop.xlane.xlu0 %10099
  %v10101 = vsel %vm3950, %v10057, 0.0
  %10102 = vadd.xlane.f32.xlu0 %v10101
  %v10103 = vpop.xlane.xlu0 %10102
  %v10104 = vsel %vm3950, %v10059, 0.0
  %10105 = vadd.xlane.f32.xlu0 %v10104
  %v10106 = vpop.xlane.xlu0 %10105
  %v10107 = vsel %vm3950, %v10061, 0.0
  %10108 = vadd.xlane.f32.xlu0 %v10107
  %v10109 = vpop.xlane.xlu0 %10108
  %v10110 = vrcp.pop %v10064
  %v10111 = vrcp.pop %v10067
  %v10112 = vrcp.pop %v10070
  %v10113 = vrcp.pop %v10073
  %v10114 = vrcp.pop %v10076
  %v10115 = vrcp.pop %v10079
  %v10116 = vrcp.pop %v10082
  %v10117 = vrcp.pop %v10085
  %v10118 = vrcp.pop %v10088
  %v10119 = vrcp.pop %v10091
  %v10120 = vrcp.pop %v10094
  %v10121 = vrcp.pop %v10097
  %v10122 = vrcp.pop %v10100
  %v10123 = vrcp.pop %v10103
  %v10124 = vrcp.pop %v10106
  %v10125 = vrcp.pop %v10109
  %v10126 = vmul.f32 %v10031, %v10110
  %v10127 = vmul.f32 %v10033, %v10111
  %v10128 = vmul.f32 %v10035, %v10112
  %v10129 = vmul.f32 %v10037, %v10113
  %v10130 = vmul.f32 %v10039, %v10114
  %v10131 = vmul.f32 %v10041, %v10115
  %v10132 = vmul.f32 %v10043, %v10116
  %v10133 = vmul.f32 %v10045, %v10117
  %v10134 = vmul.f32 %v10047, %v10118
  %v10135 = vmul.f32 %v10049, %v10119
  %v10136 = vmul.f32 %v10051, %v10120
  %v10137 = vmul.f32 %v10053, %v10121
  %v10138 = vmul.f32 %v10055, %v10122
  %v10139 = vmul.f32 %v10057, %v10123
  %v10140 = vmul.f32 %v10059, %v10124
  %v10141 = vmul.f32 %v10061, %v10125
  %v10142 = vpack.c.bf16 %v10127, %v10126
  %v10143 = vpack.c.bf16 %v10129, %v10128
  %v10144 = vpack.c.bf16 %v10131, %v10130
  %v10145 = vpack.c.bf16 %v10133, %v10132
  %v10146 = vpack.c.bf16 %v10135, %v10134
  %v10147 = vpack.c.bf16 %v10137, %v10136
  %v10148 = vpack.c.bf16 %v10139, %v10138
  %v10149 = vpack.c.bf16 %v10141, %v10140
  %10150 = vrot.lane.b32.xlu0 %v5130, 72
  %v10151 = vpop.permute.xlu0 %10150
  %10152 = vrot.lane.b32.xlu0 %v5132, 72
  %v10153 = vpop.permute.xlu0 %10152
  %10154 = vrot.lane.b32.xlu0 %v5134, 72
  %v10155 = vpop.permute.xlu0 %10154
  %10156 = vrot.lane.b32.xlu0 %v5136, 72
  %v10157 = vpop.permute.xlu0 %10156
  %v10163 = vsel %vm3950, %v10142, 0
  %v10166 = vsel %vm3950, %v10143, 0
  %v10169 = vsel %vm3950, %v10144, 0
  %v10172 = vsel %vm3950, %v10145, 0
  %10174 = vmatprep.subr.bf16.mxu0 0
  %10175 = vmatpush1.bf16.msra.mxu0 %v10151
  %10176 = vmatprep.subr.bf16.mxu0 0
  %10177 = vmatpush1.bf16.msra.mxu0 %v10153
  %10178 = vmatprep.subr.bf16.mxu0 0
  %10179 = vmatpush1.bf16.msra.mxu0 %v10155
  %10180 = vmatprep.subr.bf16.mxu0 0
  %10181 = vmatpush1.bf16.msra.mxu0 %v10157
  %10182 = vmatprep.subr.bf16.mxu0 0
  %10183 = vmatpush1.bf16.msra.mxu0 0
  %10184 = vmatprep.subr.bf16.mxu0 0
  %10185 = vmatpush1.bf16.msra.mxu0 0
  %10186 = vmatprep.subr.bf16.mxu0 0
  %10187 = vmatpush1.bf16.msra.mxu0 0
  %10188 = vmatprep.subr.bf16.mxu0 0
  %10189 = vmatpush1.bf16.msra.mxu0 0
  %10190 = vmatprep.subr.bf16.mxu0 0
  %10191 = vmatpush1.bf16.msra.mxu0 0
  %10192 = vmatprep.subr.bf16.mxu0 0
  %10193 = vmatpush1.bf16.msra.mxu0 0
  %10194 = vmatprep.subr.bf16.mxu0 0
  %10195 = vmatpush1.bf16.msra.mxu0 0
  %10196 = vmatprep.subr.bf16.mxu0 0
  %10197 = vmatpush1.bf16.msra.mxu0 0
  %10198 = vmatprep.subr.bf16.mxu0 0
  %10199 = vmatpush1.bf16.msra.mxu0 0
  %10200 = vmatprep.subr.bf16.mxu0 0
  %10201 = vmatpush1.bf16.msra.mxu0 0
  %10202 = vmatprep.subr.bf16.mxu0 0
  %10203 = vmatpush1.bf16.msra.mxu0 0
  %10204 = vmatprep.subr.bf16.mxu0 0
  %10205 = vmatpush1.bf16.msra.mxu0 0
  %10206 = vmatprep.mubr.bf16.mxu0 0
  %10207 = vmatmul.mubr.bf16.gmra.mrb[0].mxu0 %v10163
  %v10208 = vpop.f32.mrb[0].mxu0
  %v10209 = vadd.f32 0.0, %v10208
  %v10210 = vpop.f32.mrb[0].mxu0
  %v10211 = vpop.f32.mrb[0].mxu0
  %v10212 = vadd.f32 0.0, %v10211
  %v10213 = vpop.f32.mrb[0].mxu0
  %10214 = vmatprep.mubr.bf16.mxu0 0
  %10215 = vmatmul.mubr.bf16.gmra.mrb[0].mxu0 %v10166
  %v10216 = vpop.f32.mrb[0].mxu0
  %v10217 = vadd.f32 0.0, %v10216
  %v10218 = vpop.f32.mrb[0].mxu0
  %v10219 = vpop.f32.mrb[0].mxu0
  %v10220 = vadd.f32 0.0, %v10219
  %v10221 = vpop.f32.mrb[0].mxu0
  %10222 = vmatprep.mubr.bf16.mxu0 0
  %10223 = vmatmul.mubr.bf16.gmra.mrb[0].mxu0 %v10169
  %v10224 = vpop.f32.mrb[0].mxu0
  %v10225 = vadd.f32 0.0, %v10224
  %v10226 = vpop.f32.mrb[0].mxu0
  %v10227 = vpop.f32.mrb[0].mxu0
  %v10228 = vadd.f32 0.0, %v10227
  %v10229 = vpop.f32.mrb[0].mxu0
  %10230 = vmatprep.mubr.bf16.mxu0 0
  %10231 = vmatmul.mubr.bf16.gmra.mrb[0].mxu0 %v10172
  %v10232 = vpop.f32.mrb[0].mxu0
  %v10233 = vadd.f32 0.0, %v10232
  %v10234 = vpop.f32.mrb[0].mxu0
  %v10235 = vpop.f32.mrb[0].mxu0
  %v10236 = vadd.f32 0.0, %v10235
  %v10237 = vpop.f32.mrb[0].mxu0
  %10238 = vdwg.mxu0
  %10239 = vrot.lane.b32.xlu0 %v5138, 72
  %v10240 = vpop.permute.xlu0 %10239
  %10241 = vrot.lane.b32.xlu0 %v5140, 72
  %v10242 = vpop.permute.xlu0 %10241
  %10243 = vrot.lane.b32.xlu0 %v5142, 72
  %v10244 = vpop.permute.xlu0 %10243
  %10245 = vrot.lane.b32.xlu0 %v5144, 72
  %v10246 = vpop.permute.xlu0 %10245
  %v10252 = vsel %vm3950, %v10146, 0
  %v10255 = vsel %vm3950, %v10147, 0
  %v10258 = vsel %vm3950, %v10148, 0
  %v10261 = vsel %vm3950, %v10149, 0
  %10263 = vmatprep.subr.bf16.mxu0 0
  %10264 = vmatpush1.bf16.msra.mxu0 %v10240
  %10265 = vmatprep.subr.bf16.mxu0 0
  %10266 = vmatpush1.bf16.msra.mxu0 %v10242
  %10267 = vmatprep.subr.bf16.mxu0 0
  %10268 = vmatpush1.bf16.msra.mxu0 %v10244
  %10269 = vmatprep.subr.bf16.mxu0 0
  %10270 = vmatpush1.bf16.msra.mxu0 %v10246
  %10271 = vmatprep.subr.bf16.mxu0 0
  %10272 = vmatpush1.bf16.msra.mxu0 0
  %10273 = vmatprep.subr.bf16.mxu0 0
  %10274 = vmatpush1.bf16.msra.mxu0 0
  %10275 = vmatprep.subr.bf16.mxu0 0
  %10276 = vmatpush1.bf16.msra.mxu0 0
  %10277 = vmatprep.subr.bf16.mxu0 0
  %10278 = vmatpush1.bf16.msra.mxu0 0
  %10279 = vmatprep.subr.bf16.mxu0 0
  %10280 = vmatpush1.bf16.msra.mxu0 0
  %10281 = vmatprep.subr.bf16.mxu0 0
  %10282 = vmatpush1.bf16.msra.mxu0 0
  %10283 = vmatprep.subr.bf16.mxu0 0
  %10284 = vmatpush1.bf16.msra.mxu0 0
  %10285 = vmatprep.subr.bf16.mxu0 0
  %10286 = vmatpush1.bf16.msra.mxu0 0
  %10287 = vmatprep.subr.bf16.mxu0 0
  %10288 = vmatpush1.bf16.msra.mxu0 0
  %10289 = vmatprep.subr.bf16.mxu0 0
  %10290 = vmatpush1.bf16.msra.mxu0 0
  %10291 = vmatprep.subr.bf16.mxu0 0
  %10292 = vmatpush1.bf16.msra.mxu0 0
  %10293 = vmatprep.subr.bf16.mxu0 0
  %10294 = vmatpush1.bf16.msra.mxu0 0
  %10295 = vmatprep.mubr.bf16.mxu0 0
  %10296 = vmatmul.mubr.bf16.gmra.mrb[0].mxu0 %v10252
  %v10297 = vpop.f32.mrb[0].mxu0
  %v10298 = vadd.f32 0.0, %v10297
  %v10299 = vpop.f32.mrb[0].mxu0
  %v10300 = vpop.f32.mrb[0].mxu0
  %v10301 = vadd.f32 0.0, %v10300
  %v10302 = vpop.f32.mrb[0].mxu0
  %10303 = vmatprep.mubr.bf16.mxu0 0
  %10304 = vmatmul.mubr.bf16.gmra.mrb[0].mxu0 %v10255
  %v10305 = vpop.f32.mrb[0].mxu0
  %v10306 = vadd.f32 0.0, %v10305
  %v10307 = vpop.f32.mrb[0].mxu0
  %v10308 = vpop.f32.mrb[0].mxu0
  %v10309 = vadd.f32 0.0, %v10308
  %v10310 = vpop.f32.mrb[0].mxu0
  %10311 = vmatprep.mubr.bf16.mxu0 0
  %10312 = vmatmul.mubr.bf16.gmra.mrb[0].mxu0 %v10258
  %v10313 = vpop.f32.mrb[0].mxu0
  %v10314 = vadd.f32 0.0, %v10313
  %v10315 = vpop.f32.mrb[0].mxu0
  %v10316 = vpop.f32.mrb[0].mxu0
  %v10317 = vadd.f32 0.0, %v10316
  %v10318 = vpop.f32.mrb[0].mxu0
  %10319 = vmatprep.mubr.bf16.mxu0 0
  %10320 = vmatmul.mubr.bf16.gmra.mrb[0].mxu0 %v10261
  %v10321 = vpop.f32.mrb[0].mxu0
  %v10322 = vadd.f32 0.0, %v10321
  %v10323 = vpop.f32.mrb[0].mxu0
  %v10324 = vpop.f32.mrb[0].mxu0
  %v10325 = vadd.f32 0.0, %v10324
  %v10326 = vpop.f32.mrb[0].mxu0
  %10327 = vdwg.mxu0
  %10344 = vrot.lane.b32.xlu0 %v10209, 56
  %v10345 = vpop.permute.xlu0 %10344
  %10346 = vrot.lane.b32.xlu0 %v10212, 56
  %v10347 = vpop.permute.xlu0 %10346
  %10348 = vrot.lane.b32.xlu0 %v10217, 56
  %v10349 = vpop.permute.xlu0 %10348
  %10350 = vrot.lane.b32.xlu0 %v10220, 56
  %v10351 = vpop.permute.xlu0 %10350
  %10352 = vrot.lane.b32.xlu0 %v10225, 56
  %v10353 = vpop.permute.xlu0 %10352
  %10354 = vrot.lane.b32.xlu0 %v10228, 56
  %v10355 = vpop.permute.xlu0 %10354
  %10356 = vrot.lane.b32.xlu0 %v10233, 56
  %v10357 = vpop.permute.xlu0 %10356
  %10358 = vrot.lane.b32.xlu0 %v10236, 56
  %v10359 = vpop.permute.xlu0 %10358
  %10360 = vrot.lane.b32.xlu0 %v10298, 56
  %v10361 = vpop.permute.xlu0 %10360
  %10362 = vrot.lane.b32.xlu0 %v10301, 56
  %v10363 = vpop.permute.xlu0 %10362
  %10364 = vrot.lane.b32.xlu0 %v10306, 56
  %v10365 = vpop.permute.xlu0 %10364
  %10366 = vrot.lane.b32.xlu0 %v10309, 56
  %v10367 = vpop.permute.xlu0 %10366
  %10368 = vrot.lane.b32.xlu0 %v10314, 56
  %v10369 = vpop.permute.xlu0 %10368
  %10370 = vrot.lane.b32.xlu0 %v10317, 56
  %v10371 = vpop.permute.xlu0 %10370
  %10372 = vrot.lane.b32.xlu0 %v10322, 56
  %v10373 = vpop.permute.xlu0 %10372
  %10374 = vrot.lane.b32.xlu0 %v10325, 56
  %v10375 = vpop.permute.xlu0 %10374
  %vm10392 = vcmask 523712
  %10393 = vst.msk [vmem:[#allocation2] sm:$0xff] %vm10392, %v10345
  %10394 = vst.msk [vmem:[#allocation2 + $0x8] sm:$0xff] %vm10392, %v10347
  %10395 = vst.msk [vmem:[#allocation2 + $0x10] sm:$0xff] %vm10392, %v10349
  %10396 = vst.msk [vmem:[#allocation2 + $0x18] sm:$0xff] %vm10392, %v10351
  %10397 = vst.msk [vmem:[#allocation2 + $0x20] sm:$0xff] %vm10392, %v10353
  %10398 = vst.msk [vmem:[#allocation2 + $0x28] sm:$0xff] %vm10392, %v10355
  %10399 = vst.msk [vmem:[#allocation2 + $0x30] sm:$0xff] %vm10392, %v10357
  %10400 = vst.msk [vmem:[#allocation2 + $0x38] sm:$0xff] %vm10392, %v10359
  %10401 = vst.msk [vmem:[#allocation2 + $0x40] sm:$0xff] %vm10392, %v10361
  %10402 = vst.msk [vmem:[#allocation2 + $0x48] sm:$0xff] %vm10392, %v10363
  %10403 = vst.msk [vmem:[#allocation2 + $0x50] sm:$0xff] %vm10392, %v10365
  %10404 = vst.msk [vmem:[#allocation2 + $0x58] sm:$0xff] %vm10392, %v10367
  %10405 = vst.msk [vmem:[#allocation2 + $0x60] sm:$0xff] %vm10392, %v10369
  %10406 = vst.msk [vmem:[#allocation2 + $0x68] sm:$0xff] %vm10392, %v10371
  %10407 = vst.msk [vmem:[#allocation2 + $0x70] sm:$0xff] %vm10392, %v10373
  %10408 = vst.msk [vmem:[#allocation2 + $0x78] sm:$0xff] %vm10392, %v10375
  %v10409 = vld [vmem:[#allocation2] sm:$0xff]
  %v10410 = vld [vmem:[#allocation2 + $0x8] sm:$0xff]
  %v10411 = vld [vmem:[#allocation2 + $0x10] sm:$0xff]
  %v10412 = vld [vmem:[#allocation2 + $0x18] sm:$0xff]
  %v10413 = vld [vmem:[#allocation2 + $0x20] sm:$0xff]
  %v10414 = vld [vmem:[#allocation2 + $0x28] sm:$0xff]
  %v10415 = vld [vmem:[#allocation2 + $0x30] sm:$0xff]
  %v10416 = vld [vmem:[#allocation2 + $0x38] sm:$0xff]
  %v10417 = vld [vmem:[#allocation2 + $0x40] sm:$0xff]
  %v10418 = vld [vmem:[#allocation2 + $0x48] sm:$0xff]
  %v10419 = vld [vmem:[#allocation2 + $0x50] sm:$0xff]
  %v10420 = vld [vmem:[#allocation2 + $0x58] sm:$0xff]
  %v10421 = vld [vmem:[#allocation2 + $0x60] sm:$0xff]
  %v10422 = vld [vmem:[#allocation2 + $0x68] sm:$0xff]
  %v10423 = vld [vmem:[#allocation2 + $0x70] sm:$0xff]
  %v10424 = vld [vmem:[#allocation2 + $0x78] sm:$0xff]
  %v10425 = vpack.c.bf16 %v10410, %v10409
  %v10426 = vpack.c.bf16 %v10412, %v10411
  %v10427 = vpack.c.bf16 %v10414, %v10413
  %v10428 = vpack.c.bf16 %v10416, %v10415
  %v10429 = vpack.c.bf16 %v10418, %v10417
  %v10430 = vpack.c.bf16 %v10420, %v10419
  %v10431 = vpack.c.bf16 %v10422, %v10421
  %v10432 = vpack.c.bf16 %v10424, %v10423
  %v10433 = vld [vmem:[%s4] sm:$0xff]
  %v10434 = vld [vmem:[%s4 + $0x8] sm:$0xff]
  %v10435 = vld [vmem:[%s4 + $0x10] sm:$0xff]
  %v10436 = vld [vmem:[%s4 + $0x18] sm:$0xff]
  %v10437 = vld [vmem:[%s4 + $0x20] sm:$0xff]
  %v10438 = vld [vmem:[%s4 + $0x28] sm:$0xff]
  %v10439 = vld [vmem:[%s4 + $0x30] sm:$0xff]
  %v10440 = vld [vmem:[%s4 + $0x38] sm:$0xff]
  %v10441 = vpack.c.bf16 %v10434, %v10433
  %v10442 = vpack.c.bf16 %v10436, %v10435
  %v10443 = vpack.c.bf16 %v10438, %v10437
  %v10444 = vpack.c.bf16 %v10440, %v10439
  %v10445 = vld [vmem:[%s5] sm:$0x1]
  %v10447 = vlaneseq
  %v10448 = vshrl.u32 %v10447, 7
  %v10449 = vsub.s32 0, %v10448
  %v10450 = vrot.slane %v10445, %v10449
  %v10453 = vsel %vm3950, %v10425, 0
  %v10456 = vsel %vm3950, %v10426, 0
  %v10459 = vsel %vm3950, %v10427, 0
  %v10462 = vsel %vm3950, %v10428, 0
  %v10465 = vsel %vm3950, %v10429, 0
  %v10468 = vsel %vm3950, %v10430, 0
  %v10471 = vsel %vm3950, %v10431, 0
  %v10474 = vsel %vm3950, %v10432, 0
  %10476 = vmatprep.subr.bf16.mxu0 0
  %10477 = vmatpush1.bf16.msra.mxu0 %v10441
  %10478 = vmatprep.subr.bf16.mxu0 0
  %10479 = vmatpush1.bf16.msra.mxu0 %v10442
  %10480 = vmatprep.subr.bf16.mxu0 0
  %10481 = vmatpush1.bf16.msra.mxu0 %v10443
  %10482 = vmatprep.subr.bf16.mxu0 0
  %10483 = vmatpush1.bf16.msra.mxu0 %v10444
  %10484 = vmatprep.subr.bf16.mxu0 0
  %10485 = vmatpush1.bf16.msra.mxu0 0
  %10486 = vmatprep.subr.bf16.mxu0 0
  %10487 = vmatpush1.bf16.msra.mxu0 0
  %10488 = vmatprep.subr.bf16.mxu0 0
  %10489 = vmatpush1.bf16.msra.mxu0 0
  %10490 = vmatprep.subr.bf16.mxu0 0
  %10491 = vmatpush1.bf16.msra.mxu0 0
  %10492 = vmatprep.subr.bf16.mxu0 0
  %10493 = vmatpush1.bf16.msra.mxu0 0
  %10494 = vmatprep.subr.bf16.mxu0 0
  %10495 = vmatpush1.bf16.msra.mxu0 0
  %10496 = vmatprep.subr.bf16.mxu0 0
  %10497 = vmatpush1.bf16.msra.mxu0 0
  %10498 = vmatprep.subr.bf16.mxu0 0
  %10499 = vmatpush1.bf16.msra.mxu0 0
  %10500 = vmatprep.subr.bf16.mxu0 0
  %10501 = vmatpush1.bf16.msra.mxu0 0
  %10502 = vmatprep.subr.bf16.mxu0 0
  %10503 = vmatpush1.bf16.msra.mxu0 0
  %10504 = vmatprep.subr.bf16.mxu0 0
  %10505 = vmatpush1.bf16.msra.mxu0 0
  %10506 = vmatprep.subr.bf16.mxu0 0
  %10507 = vmatpush1.bf16.msra.mxu0 0
  %10508 = vmatprep.mubr.bf16.mxu0 0
  %10509 = vmatmul.mubr.bf16.gmra.mrb[0].mxu0 %v10453
  %v10510 = vpop.f32.mrb[0].mxu0
  %v10511 = vadd.f32 %v10450, %v10510
  %v10512 = vpop.f32.mrb[0].mxu0
  %v10513 = vpop.f32.mrb[0].mxu0
  %v10514 = vadd.f32 %v10450, %v10513
  %v10515 = vpop.f32.mrb[0].mxu0
  %10516 = vmatprep.mubr.bf16.mxu0 0
  %10517 = vmatmul.mubr.bf16.gmra.mrb[0].mxu0 %v10456
  %v10518 = vpop.f32.mrb[0].mxu0
  %v10519 = vadd.f32 %v10450, %v10518
  %v10520 = vpop.f32.mrb[0].mxu0
  %v10521 = vpop.f32.mrb[0].mxu0
  %v10522 = vadd.f32 %v10450, %v10521
  %v10523 = vpop.f32.mrb[0].mxu0
  %10524 = vmatprep.mubr.bf16.mxu0 0
  %10525 = vmatmul.mubr.bf16.gmra.mrb[0].mxu0 %v10459
  %v10526 = vpop.f32.mrb[0].mxu0
  %v10527 = vadd.f32 %v10450, %v10526
  %v10528 = vpop.f32.mrb[0].mxu0
  %v10529 = vpop.f32.mrb[0].mxu0
  %v10530 = vadd.f32 %v10450, %v10529
  %v10531 = vpop.f32.mrb[0].mxu0
  %10532 = vmatprep.mubr.bf16.mxu0 0
  %10533 = vmatmul.mubr.bf16.gmra.mrb[0].mxu0 %v10462
  %v10534 = vpop.f32.mrb[0].mxu0
  %v10535 = vadd.f32 %v10450, %v10534
  %v10536 = vpop.f32.mrb[0].mxu0
  %v10537 = vpop.f32.mrb[0].mxu0
  %v10538 = vadd.f32 %v10450, %v10537
  %v10539 = vpop.f32.mrb[0].mxu0
  %10540 = vmatprep.mubr.bf16.mxu0 0
  %10541 = vmatmul.mubr.bf16.gmra.mrb[0].mxu0 %v10465
  %v10542 = vpop.f32.mrb[0].mxu0
  %v10543 = vadd.f32 %v10450, %v10542
  %v10544 = vpop.f32.mrb[0].mxu0
  %v10545 = vpop.f32.mrb[0].mxu0
  %v10546 = vadd.f32 %v10450, %v10545
  %v10547 = vpop.f32.mrb[0].mxu0
  %10548 = vmatprep.mubr.bf16.mxu0 0
  %10549 = vmatmul.mubr.bf16.gmra.mrb[0].mxu0 %v10468
  %v10550 = vpop.f32.mrb[0].mxu0
  %v10551 = vadd.f32 %v10450, %v10550
  %v10552 = vpop.f32.mrb[0].mxu0
  %v10553 = vpop.f32.mrb[0].mxu0
  %v10554 = vadd.f32 %v10450, %v10553
  %v10555 = vpop.f32.mrb[0].mxu0
  %10556 = vmatprep.mubr.bf16.mxu0 0
  %10557 = vmatmul.mubr.bf16.gmra.mrb[0].mxu0 %v10471
  %v10558 = vpop.f32.mrb[0].mxu0
  %v10559 = vadd.f32 %v10450, %v10558
  %v10560 = vpop.f32.mrb[0].mxu0
  %v10561 = vpop.f32.mrb[0].mxu0
  %v10562 = vadd.f32 %v10450, %v10561
  %v10563 = vpop.f32.mrb[0].mxu0
  %10564 = vmatprep.mubr.bf16.mxu0 0
  %10565 = vmatmul.mubr.bf16.gmra.mrb[0].mxu0 %v10474
  %v10566 = vpop.f32.mrb[0].mxu0
  %v10567 = vadd.f32 %v10450, %v10566
  %v10568 = vpop.f32.mrb[0].mxu0
  %v10569 = vpop.f32.mrb[0].mxu0
  %v10570 = vadd.f32 %v10450, %v10569
  %v10571 = vpop.f32.mrb[0].mxu0
  %10572 = vdwg.mxu0
  %v10573 = vld [vmem:[%s14] sm:$0x1]
  %v10575 = vlaneseq
  %v10576 = vshrl.u32 %v10575, 7
  %v10577 = vsub.s32 0, %v10576
  %v10578 = vrot.slane %v10573, %v10577
  %v10580 = vmul.f32 %v10578, %v10511
  %v10581 = vmul.f32 %v10578, %v10514
  %v10582 = vmul.f32 %v10578, %v10519
  %v10583 = vmul.f32 %v10578, %v10522
  %v10584 = vmul.f32 %v10578, %v10527
  %v10585 = vmul.f32 %v10578, %v10530
  %v10586 = vmul.f32 %v10578, %v10535
  %v10587 = vmul.f32 %v10578, %v10538
  %v10588 = vmul.f32 %v10578, %v10543
  %v10589 = vmul.f32 %v10578, %v10546
  %v10590 = vmul.f32 %v10578, %v10551
  %v10591 = vmul.f32 %v10578, %v10554
  %v10592 = vmul.f32 %v10578, %v10559
  %v10593 = vmul.f32 %v10578, %v10562
  %v10594 = vmul.f32 %v10578, %v10567
  %v10595 = vmul.f32 %v10578, %v10570
  %v10612 = vcombine.high %v10580, %v10580
  %v10613 = vcombine.high %v10581, %v10581
  %v10614 = vcombine.high %v10582, %v10582
  %v10615 = vcombine.high %v10583, %v10583
  %v10616 = vcombine.high %v10584, %v10584
  %v10617 = vcombine.high %v10585, %v10585
  %v10618 = vcombine.high %v10586, %v10586
  %v10619 = vcombine.high %v10587, %v10587
  %v10620 = vcombine.high %v10588, %v10588
  %v10621 = vcombine.high %v10589, %v10589
  %v10622 = vcombine.high %v10590, %v10590
  %v10623 = vcombine.high %v10591, %v10591
  %v10624 = vcombine.high %v10592, %v10592
  %v10625 = vcombine.high %v10593, %v10593
  %v10626 = vcombine.high %v10594, %v10594
  %v10627 = vcombine.high %v10595, %v10595
  %v10644 = vadd.f32 %v3852, %v10580
  %v10645 = vadd.f32 %v3853, %v10612
  %v10646 = vadd.f32 %v3854, %v10581
  %v10647 = vadd.f32 %v3855, %v10613
  %v10648 = vadd.f32 %v3856, %v10582
  %v10649 = vadd.f32 %v3857, %v10614
  %v10650 = vadd.f32 %v3858, %v10583
  %v10651 = vadd.f32 %v3859, %v10615
  %v10652 = vadd.f32 %v3860, %v10584
  %v10653 = vadd.f32 %v3861, %v10616
  %v10654 = vadd.f32 %v3862, %v10585
  %v10655 = vadd.f32 %v3863, %v10617
  %v10656 = vadd.f32 %v3864, %v10586
  %v10657 = vadd.f32 %v3865, %v10618
  %v10658 = vadd.f32 %v3866, %v10587
  %v10659 = vadd.f32 %v3867, %v10619
  %v10660 = vadd.f32 %v3868, %v10588
  %v10661 = vadd.f32 %v3869, %v10620
  %v10662 = vadd.f32 %v3870, %v10589
  %v10663 = vadd.f32 %v3871, %v10621
  %v10664 = vadd.f32 %v3872, %v10590
  %v10665 = vadd.f32 %v3873, %v10622
  %v10666 = vadd.f32 %v3874, %v10591
  %v10667 = vadd.f32 %v3875, %v10623
  %v10668 = vadd.f32 %v3876, %v10592
  %v10669 = vadd.f32 %v3877, %v10624
  %v10670 = vadd.f32 %v3878, %v10593
  %v10671 = vadd.f32 %v3879, %v10625
  %v10672 = vadd.f32 %v3880, %v10594
  %v10673 = vadd.f32 %v3881, %v10626
  %v10674 = vadd.f32 %v3882, %v10595
  %v10675 = vadd.f32 %v3883, %v10627
  %v10676 = vld [vmem:[%s8] sm:$0x1]
  %v10677 = vld [vmem:[%s9] sm:$0x1]
  %v10710 = vcombine.low %v10644, %v10645
  %v10711 = vcombine.low %v10646, %v10647
  %v10712 = vcombine.low %v10648, %v10649
  %v10713 = vcombine.low %v10650, %v10651
  %v10714 = vcombine.low %v10652, %v10653
  %v10715 = vcombine.low %v10654, %v10655
  %v10716 = vcombine.low %v10656, %v10657
  %v10717 = vcombine.low %v10658, %v10659
  %v10718 = vcombine.low %v10660, %v10661
  %v10719 = vcombine.low %v10662, %v10663
  %v10720 = vcombine.low %v10664, %v10665
  %v10721 = vcombine.low %v10666, %v10667
  %v10722 = vcombine.low %v10668, %v10669
  %v10723 = vcombine.low %v10670, %v10671
  %v10724 = vcombine.low %v10672, %v10673
  %v10725 = vcombine.low %v10674, %v10675
  %v10742 = vsel %vm3950, %v10710, 0.0
  %10743 = vadd.xlane.f32.xlu0 %v10742
  %v10744 = vpop.xlane.xlu0 %10743
  %v10745 = vsel %vm3950, %v10711, 0.0
  %10746 = vadd.xlane.f32.xlu0 %v10745
  %v10747 = vpop.xlane.xlu0 %10746
  %v10748 = vsel %vm3950, %v10712, 0.0
  %10749 = vadd.xlane.f32.xlu0 %v10748
  %v10750 = vpop.xlane.xlu0 %10749
  %v10751 = vsel %vm3950, %v10713, 0.0
  %10752 = vadd.xlane.f32.xlu0 %v10751
  %v10753 = vpop.xlane.xlu0 %10752
  %v10754 = vsel %vm3950, %v10714, 0.0
  %10755 = vadd.xlane.f32.xlu0 %v10754
  %v10756 = vpop.xlane.xlu0 %10755
  %v10757 = vsel %vm3950, %v10715, 0.0
  %10758 = vadd.xlane.f32.xlu0 %v10757
  %v10759 = vpop.xlane.xlu0 %10758
  %v10760 = vsel %vm3950, %v10716, 0.0
  %10761 = vadd.xlane.f32.xlu0 %v10760
  %v10762 = vpop.xlane.xlu0 %10761
  %v10763 = vsel %vm3950, %v10717, 0.0
  %10764 = vadd.xlane.f32.xlu0 %v10763
  %v10765 = vpop.xlane.xlu0 %10764
  %v10766 = vsel %vm3950, %v10718, 0.0
  %10767 = vadd.xlane.f32.xlu0 %v10766
  %v10768 = vpop.xlane.xlu0 %10767
  %v10769 = vsel %vm3950, %v10719, 0.0
  %10770 = vadd.xlane.f32.xlu0 %v10769
  %v10771 = vpop.xlane.xlu0 %10770
  %v10772 = vsel %vm3950, %v10720, 0.0
  %10773 = vadd.xlane.f32.xlu0 %v10772
  %v10774 = vpop.xlane.xlu0 %10773
  %v10775 = vsel %vm3950, %v10721, 0.0
  %10776 = vadd.xlane.f32.xlu0 %v10775
  %v10777 = vpop.xlane.xlu0 %10776
  %v10778 = vsel %vm3950, %v10722, 0.0
  %10779 = vadd.xlane.f32.xlu0 %v10778
  %v10780 = vpop.xlane.xlu0 %10779
  %v10781 = vsel %vm3950, %v10723, 0.0
  %10782 = vadd.xlane.f32.xlu0 %v10781
  %v10783 = vpop.xlane.xlu0 %10782
  %v10784 = vsel %vm3950, %v10724, 0.0
  %10785 = vadd.xlane.f32.xlu0 %v10784
  %v10786 = vpop.xlane.xlu0 %10785
  %v10787 = vsel %vm3950, %v10725, 0.0
  %10788 = vadd.xlane.f32.xlu0 %v10787
  %v10789 = vpop.xlane.xlu0 %10788
  %v10790 = vmul.f32 %v10744, %v3999
  %v10791 = vmul.f32 %v10747, %v3999
  %v10792 = vmul.f32 %v10750, %v3999
  %v10793 = vmul.f32 %v10753, %v3999
  %v10794 = vmul.f32 %v10756, %v3999
  %v10795 = vmul.f32 %v10759, %v3999
  %v10796 = vmul.f32 %v10762, %v3999
  %v10797 = vmul.f32 %v10765, %v3999
  %v10798 = vmul.f32 %v10768, %v3999
  %v10799 = vmul.f32 %v10771, %v3999
  %v10800 = vmul.f32 %v10774, %v3999
  %v10801 = vmul.f32 %v10777, %v3999
  %v10802 = vmul.f32 %v10780, %v3999
  %v10803 = vmul.f32 %v10783, %v3999
  %v10804 = vmul.f32 %v10786, %v3999
  %v10805 = vmul.f32 %v10789, %v3999
  %v10823 = vunpack.c.l.s4 839922192
  %v10824 = vunpack.c.0.s8 %v10823
  %v10825 = vlaneseq
  %v10826 = vshrl.u32 %v10825, 7
  %v10827 = vsub.s32 %v10824, %v10826
  %v10828 = vrot.slane %v10790, %v10827
  %v10830 = vunpack.c.l.s4 1985246804
  %v10831 = vunpack.c.0.s8 %v10830
  %v10832 = vlaneseq
  %v10833 = vshrl.u32 %v10832, 7
  %v10834 = vsub.s32 %v10831, %v10833
  %v10835 = vrot.slane %v10790, %v10834
  %v10837 = vunpack.c.l.s4 839922192
  %v10838 = vunpack.c.0.s8 %v10837
  %v10839 = vlaneseq
  %v10840 = vshrl.u32 %v10839, 7
  %v10841 = vsub.s32 %v10838, %v10840
  %v10842 = vrot.slane %v10791, %v10841
  %v10844 = vunpack.c.l.s4 1985246804
  %v10845 = vunpack.c.0.s8 %v10844
  %v10846 = vlaneseq
  %v10847 = vshrl.u32 %v10846, 7
  %v10848 = vsub.s32 %v10845, %v10847
  %v10849 = vrot.slane %v10791, %v10848
  %v10851 = vunpack.c.l.s4 839922192
  %v10852 = vunpack.c.0.s8 %v10851
  %v10853 = vlaneseq
  %v10854 = vshrl.u32 %v10853, 7
  %v10855 = vsub.s32 %v10852, %v10854
  %v10856 = vrot.slane %v10792, %v10855
  %v10858 = vunpack.c.l.s4 1985246804
  %v10859 = vunpack.c.0.s8 %v10858
  %v10860 = vlaneseq
  %v10861 = vshrl.u32 %v10860, 7
  %v10862 = vsub.s32 %v10859, %v10861
  %v10863 = vrot.slane %v10792, %v10862
  %v10865 = vunpack.c.l.s4 839922192
  %v10866 = vunpack.c.0.s8 %v10865
  %v10867 = vlaneseq
  %v10868 = vshrl.u32 %v10867, 7
  %v10869 = vsub.s32 %v10866, %v10868
  %v10870 = vrot.slane %v10793, %v10869
  %v10872 = vunpack.c.l.s4 1985246804
  %v10873 = vunpack.c.0.s8 %v10872
  %v10874 = vlaneseq
  %v10875 = vshrl.u32 %v10874, 7
  %v10876 = vsub.s32 %v10873, %v10875
  %v10877 = vrot.slane %v10793, %v10876
  %v10879 = vunpack.c.l.s4 839922192
  %v10880 = vunpack.c.0.s8 %v10879
  %v10881 = vlaneseq
  %v10882 = vshrl.u32 %v10881, 7
  %v10883 = vsub.s32 %v10880, %v10882
  %v10884 = vrot.slane %v10794, %v10883
  %v10886 = vunpack.c.l.s4 1985246804
  %v10887 = vunpack.c.0.s8 %v10886
  %v10888 = vlaneseq
  %v10889 = vshrl.u32 %v10888, 7
  %v10890 = vsub.s32 %v10887, %v10889
  %v10891 = vrot.slane %v10794, %v10890
  %v10893 = vunpack.c.l.s4 839922192
  %v10894 = vunpack.c.0.s8 %v10893
  %v10895 = vlaneseq
  %v10896 = vshrl.u32 %v10895, 7
  %v10897 = vsub.s32 %v10894, %v10896
  %v10898 = vrot.slane %v10795, %v10897
  %v10900 = vunpack.c.l.s4 1985246804
  %v10901 = vunpack.c.0.s8 %v10900
  %v10902 = vlaneseq
  %v10903 = vshrl.u32 %v10902, 7
  %v10904 = vsub.s32 %v10901, %v10903
  %v10905 = vrot.slane %v10795, %v10904
  %v10907 = vunpack.c.l.s4 839922192
  %v10908 = vunpack.c.0.s8 %v10907
  %v10909 = vlaneseq
  %v10910 = vshrl.u32 %v10909, 7
  %v10911 = vsub.s32 %v10908, %v10910
  %v10912 = vrot.slane %v10796, %v10911
  %v10914 = vunpack.c.l.s4 1985246804
  %v10915 = vunpack.c.0.s8 %v10914
  %v10916 = vlaneseq
  %v10917 = vshrl.u32 %v10916, 7
  %v10918 = vsub.s32 %v10915, %v10917
  %v10919 = vrot.slane %v10796, %v10918
  %v10921 = vunpack.c.l.s4 839922192
  %v10922 = vunpack.c.0.s8 %v10921
  %v10923 = vlaneseq
  %v10924 = vshrl.u32 %v10923, 7
  %v10925 = vsub.s32 %v10922, %v10924
  %v10926 = vrot.slane %v10797, %v10925
  %v10928 = vunpack.c.l.s4 1985246804
  %v10929 = vunpack.c.0.s8 %v10928
  %v10930 = vlaneseq
  %v10931 = vshrl.u32 %v10930, 7
  %v10932 = vsub.s32 %v10929, %v10931
  %v10933 = vrot.slane %v10797, %v10932
  %v10935 = vunpack.c.l.s4 839922192
  %v10936 = vunpack.c.0.s8 %v10935
  %v10937 = vlaneseq
  %v10938 = vshrl.u32 %v10937, 7
  %v10939 = vsub.s32 %v10936, %v10938
  %v10940 = vrot.slane %v10798, %v10939
  %v10942 = vunpack.c.l.s4 1985246804
  %v10943 = vunpack.c.0.s8 %v10942
  %v10944 = vlaneseq
  %v10945 = vshrl.u32 %v10944, 7
  %v10946 = vsub.s32 %v10943, %v10945
  %v10947 = vrot.slane %v10798, %v10946
  %v10949 = vunpack.c.l.s4 839922192
  %v10950 = vunpack.c.0.s8 %v10949
  %v10951 = vlaneseq
  %v10952 = vshrl.u32 %v10951, 7
  %v10953 = vsub.s32 %v10950, %v10952
  %v10954 = vrot.slane %v10799, %v10953
  %v10956 = vunpack.c.l.s4 1985246804
  %v10957 = vunpack.c.0.s8 %v10956
  %v10958 = vlaneseq
  %v10959 = vshrl.u32 %v10958, 7
  %v10960 = vsub.s32 %v10957, %v10959
  %v10961 = vrot.slane %v10799, %v10960
  %v10963 = vunpack.c.l.s4 839922192
  %v10964 = vunpack.c.0.s8 %v10963
  %v10965 = vlaneseq
  %v10966 = vshrl.u32 %v10965, 7
  %v10967 = vsub.s32 %v10964, %v10966
  %v10968 = vrot.slane %v10800, %v10967
  %v10970 = vunpack.c.l.s4 1985246804
  %v10971 = vunpack.c.0.s8 %v10970
  %v10972 = vlaneseq
  %v10973 = vshrl.u32 %v10972, 7
  %v10974 = vsub.s32 %v10971, %v10973
  %v10975 = vrot.slane %v10800, %v10974
  %v10977 = vunpack.c.l.s4 839922192
  %v10978 = vunpack.c.0.s8 %v10977
  %v10979 = vlaneseq
  %v10980 = vshrl.u32 %v10979, 7
  %v10981 = vsub.s32 %v10978, %v10980
  %v10982 = vrot.slane %v10801, %v10981
  %v10984 = vunpack.c.l.s4 1985246804
  %v10985 = vunpack.c.0.s8 %v10984
  %v10986 = vlaneseq
  %v10987 = vshrl.u32 %v10986, 7
  %v10988 = vsub.s32 %v10985, %v10987
  %v10989 = vrot.slane %v10801, %v10988
  %v10991 = vunpack.c.l.s4 839922192
  %v10992 = vunpack.c.0.s8 %v10991
  %v10993 = vlaneseq
  %v10994 = vshrl.u32 %v10993, 7
  %v10995 = vsub.s32 %v10992, %v10994
  %v10996 = vrot.slane %v10802, %v10995
  %v10998 = vunpack.c.l.s4 1985246804
  %v10999 = vunpack.c.0.s8 %v10998
  %v11000 = vlaneseq
  %v11001 = vshrl.u32 %v11000, 7
  %v11002 = vsub.s32 %v10999, %v11001
  %v11003 = vrot.slane %v10802, %v11002
  %v11005 = vunpack.c.l.s4 839922192
  %v11006 = vunpack.c.0.s8 %v11005
  %v11007 = vlaneseq
  %v11008 = vshrl.u32 %v11007, 7
  %v11009 = vsub.s32 %v11006, %v11008
  %v11010 = vrot.slane %v10803, %v11009
  %v11012 = vunpack.c.l.s4 1985246804
  %v11013 = vunpack.c.0.s8 %v11012
  %v11014 = vlaneseq
  %v11015 = vshrl.u32 %v11014, 7
  %v11016 = vsub.s32 %v11013, %v11015
  %v11017 = vrot.slane %v10803, %v11016
  %v11019 = vunpack.c.l.s4 839922192
  %v11020 = vunpack.c.0.s8 %v11019
  %v11021 = vlaneseq
  %v11022 = vshrl.u32 %v11021, 7
  %v11023 = vsub.s32 %v11020, %v11022
  %v11024 = vrot.slane %v10804, %v11023
  %v11026 = vunpack.c.l.s4 1985246804
  %v11027 = vunpack.c.0.s8 %v11026
  %v11028 = vlaneseq
  %v11029 = vshrl.u32 %v11028, 7
  %v11030 = vsub.s32 %v11027, %v11029
  %v11031 = vrot.slane %v10804, %v11030
  %v11033 = vunpack.c.l.s4 839922192
  %v11034 = vunpack.c.0.s8 %v11033
  %v11035 = vlaneseq
  %v11036 = vshrl.u32 %v11035, 7
  %v11037 = vsub.s32 %v11034, %v11036
  %v11038 = vrot.slane %v10805, %v11037
  %v11040 = vunpack.c.l.s4 1985246804
  %v11041 = vunpack.c.0.s8 %v11040
  %v11042 = vlaneseq
  %v11043 = vshrl.u32 %v11042, 7
  %v11044 = vsub.s32 %v11041, %v11043
  %v11045 = vrot.slane %v10805, %v11044
  %v11078 = vsub.f32 %v10644, %v10828
  %v11079 = vsub.f32 %v10645, %v10835
  %v11080 = vsub.f32 %v10646, %v10842
  %v11081 = vsub.f32 %v10647, %v10849
  %v11082 = vsub.f32 %v10648, %v10856
  %v11083 = vsub.f32 %v10649, %v10863
  %v11084 = vsub.f32 %v10650, %v10870
  %v11085 = vsub.f32 %v10651, %v10877
  %v11086 = vsub.f32 %v10652, %v10884
  %v11087 = vsub.f32 %v10653, %v10891
  %v11088 = vsub.f32 %v10654, %v10898
  %v11089 = vsub.f32 %v10655, %v10905
  %v11090 = vsub.f32 %v10656, %v10912
  %v11091 = vsub.f32 %v10657, %v10919
  %v11092 = vsub.f32 %v10658, %v10926
  %v11093 = vsub.f32 %v10659, %v10933
  %v11094 = vsub.f32 %v10660, %v10940
  %v11095 = vsub.f32 %v10661, %v10947
  %v11096 = vsub.f32 %v10662, %v10954
  %v11097 = vsub.f32 %v10663, %v10961
  %v11098 = vsub.f32 %v10664, %v10968
  %v11099 = vsub.f32 %v10665, %v10975
  %v11100 = vsub.f32 %v10666, %v10982
  %v11101 = vsub.f32 %v10667, %v10989
  %v11102 = vsub.f32 %v10668, %v10996
  %v11103 = vsub.f32 %v10669, %v11003
  %v11104 = vsub.f32 %v10670, %v11010
  %v11105 = vsub.f32 %v10671, %v11017
  %v11106 = vsub.f32 %v10672, %v11024
  %v11107 = vsub.f32 %v10673, %v11031
  %v11108 = vsub.f32 %v10674, %v11038
  %v11109 = vsub.f32 %v10675, %v11045
  %v11110 = vmul.f32 %v11078, %v11078
  %v11111 = vmul.f32 %v11079, %v11079
  %v11112 = vmul.f32 %v11080, %v11080
  %v11113 = vmul.f32 %v11081, %v11081
  %v11114 = vmul.f32 %v11082, %v11082
  %v11115 = vmul.f32 %v11083, %v11083
  %v11116 = vmul.f32 %v11084, %v11084
  %v11117 = vmul.f32 %v11085, %v11085
  %v11118 = vmul.f32 %v11086, %v11086
  %v11119 = vmul.f32 %v11087, %v11087
  %v11120 = vmul.f32 %v11088, %v11088
  %v11121 = vmul.f32 %v11089, %v11089
  %v11122 = vmul.f32 %v11090, %v11090
  %v11123 = vmul.f32 %v11091, %v11091
  %v11124 = vmul.f32 %v11092, %v11092
  %v11125 = vmul.f32 %v11093, %v11093
  %v11126 = vmul.f32 %v11094, %v11094
  %v11127 = vmul.f32 %v11095, %v11095
  %v11128 = vmul.f32 %v11096, %v11096
  %v11129 = vmul.f32 %v11097, %v11097
  %v11130 = vmul.f32 %v11098, %v11098
  %v11131 = vmul.f32 %v11099, %v11099
  %v11132 = vmul.f32 %v11100, %v11100
  %v11133 = vmul.f32 %v11101, %v11101
  %v11134 = vmul.f32 %v11102, %v11102
  %v11135 = vmul.f32 %v11103, %v11103
  %v11136 = vmul.f32 %v11104, %v11104
  %v11137 = vmul.f32 %v11105, %v11105
  %v11138 = vmul.f32 %v11106, %v11106
  %v11139 = vmul.f32 %v11107, %v11107
  %v11140 = vmul.f32 %v11108, %v11108
  %v11141 = vmul.f32 %v11109, %v11109
  %v11174 = vcombine.low %v11110, %v11111
  %v11175 = vcombine.low %v11112, %v11113
  %v11176 = vcombine.low %v11114, %v11115
  %v11177 = vcombine.low %v11116, %v11117
  %v11178 = vcombine.low %v11118, %v11119
  %v11179 = vcombine.low %v11120, %v11121
  %v11180 = vcombine.low %v11122, %v11123
  %v11181 = vcombine.low %v11124, %v11125
  %v11182 = vcombine.low %v11126, %v11127
  %v11183 = vcombine.low %v11128, %v11129
  %v11184 = vcombine.low %v11130, %v11131
  %v11185 = vcombine.low %v11132, %v11133
  %v11186 = vcombine.low %v11134, %v11135
  %v11187 = vcombine.low %v11136, %v11137
  %v11188 = vcombine.low %v11138, %v11139
  %v11189 = vcombine.low %v11140, %v11141
  %v11206 = vsel %vm3950, %v11174, 0.0
  %11207 = vadd.xlane.f32.xlu0 %v11206
  %v11208 = vpop.xlane.xlu0 %11207
  %v11209 = vsel %vm3950, %v11175, 0.0
  %11210 = vadd.xlane.f32.xlu0 %v11209
  %v11211 = vpop.xlane.xlu0 %11210
  %v11212 = vsel %vm3950, %v11176, 0.0
  %11213 = vadd.xlane.f32.xlu0 %v11212
  %v11214 = vpop.xlane.xlu0 %11213
  %v11215 = vsel %vm3950, %v11177, 0.0
  %11216 = vadd.xlane.f32.xlu0 %v11215
  %v11217 = vpop.xlane.xlu0 %11216
  %v11218 = vsel %vm3950, %v11178, 0.0
  %11219 = vadd.xlane.f32.xlu0 %v11218
  %v11220 = vpop.xlane.xlu0 %11219
  %v11221 = vsel %vm3950, %v11179, 0.0
  %11222 = vadd.xlane.f32.xlu0 %v11221
  %v11223 = vpop.xlane.xlu0 %11222
  %v11224 = vsel %vm3950, %v11180, 0.0
  %11225 = vadd.xlane.f32.xlu0 %v11224
  %v11226 = vpop.xlane.xlu0 %11225
  %v11227 = vsel %vm3950, %v11181, 0.0
  %11228 = vadd.xlane.f32.xlu0 %v11227
  %v11229 = vpop.xlane.xlu0 %11228
  %v11230 = vsel %vm3950, %v11182, 0.0
  %11231 = vadd.xlane.f32.xlu0 %v11230
  %v11232 = vpop.xlane.xlu0 %11231
  %v11233 = vsel %vm3950, %v11183, 0.0
  %11234 = vadd.xlane.f32.xlu0 %v11233
  %v11235 = vpop.xlane.xlu0 %11234
  %v11236 = vsel %vm3950, %v11184, 0.0
  %11237 = vadd.xlane.f32.xlu0 %v11236
  %v11238 = vpop.xlane.xlu0 %11237
  %v11239 = vsel %vm3950, %v11185, 0.0
  %11240 = vadd.xlane.f32.xlu0 %v11239
  %v11241 = vpop.xlane.xlu0 %11240
  %v11242 = vsel %vm3950, %v11186, 0.0
  %11243 = vadd.xlane.f32.xlu0 %v11242
  %v11244 = vpop.xlane.xlu0 %11243
  %v11245 = vsel %vm3950, %v11187, 0.0
  %11246 = vadd.xlane.f32.xlu0 %v11245
  %v11247 = vpop.xlane.xlu0 %11246
  %v11248 = vsel %vm3950, %v11188, 0.0
  %11249 = vadd.xlane.f32.xlu0 %v11248
  %v11250 = vpop.xlane.xlu0 %11249
  %v11251 = vsel %vm3950, %v11189, 0.0
  %11252 = vadd.xlane.f32.xlu0 %v11251
  %v11253 = vpop.xlane.xlu0 %11252
  %v11254 = vmul.f32 %v11208, %v3999
  %v11255 = vmul.f32 %v11211, %v3999
  %v11256 = vmul.f32 %v11214, %v3999
  %v11257 = vmul.f32 %v11217, %v3999
  %v11258 = vmul.f32 %v11220, %v3999
  %v11259 = vmul.f32 %v11223, %v3999
  %v11260 = vmul.f32 %v11226, %v3999
  %v11261 = vmul.f32 %v11229, %v3999
  %v11262 = vmul.f32 %v11232, %v3999
  %v11263 = vmul.f32 %v11235, %v3999
  %v11264 = vmul.f32 %v11238, %v3999
  %v11265 = vmul.f32 %v11241, %v3999
  %v11266 = vmul.f32 %v11244, %v3999
  %v11267 = vmul.f32 %v11247, %v3999
  %v11268 = vmul.f32 %v11250, %v3999
  %v11269 = vmul.f32 %v11253, %v3999
  %v11270 = vadd.f32 %v11254, 1e-06
  %v11271 = vadd.f32 %v11255, 1e-06
  %v11272 = vadd.f32 %v11256, 1e-06
  %v11273 = vadd.f32 %v11257, 1e-06
  %v11274 = vadd.f32 %v11258, 1e-06
  %v11275 = vadd.f32 %v11259, 1e-06
  %v11276 = vadd.f32 %v11260, 1e-06
  %v11277 = vadd.f32 %v11261, 1e-06
  %v11278 = vadd.f32 %v11262, 1e-06
  %v11279 = vadd.f32 %v11263, 1e-06
  %v11280 = vadd.f32 %v11264, 1e-06
  %v11281 = vadd.f32 %v11265, 1e-06
  %v11282 = vadd.f32 %v11266, 1e-06
  %v11283 = vadd.f32 %v11267, 1e-06
  %v11284 = vadd.f32 %v11268, 1e-06
  %v11285 = vadd.f32 %v11269, 1e-06
  %v11286 = vrsqrt.pop %v11270
  %v11287 = vrsqrt.pop %v11271
  %v11288 = vrsqrt.pop %v11272
  %v11289 = vrsqrt.pop %v11273
  %v11290 = vrsqrt.pop %v11274
  %v11291 = vrsqrt.pop %v11275
  %v11292 = vrsqrt.pop %v11276
  %v11293 = vrsqrt.pop %v11277
  %v11294 = vrsqrt.pop %v11278
  %v11295 = vrsqrt.pop %v11279
  %v11296 = vrsqrt.pop %v11280
  %v11297 = vrsqrt.pop %v11281
  %v11298 = vrsqrt.pop %v11282
  %v11299 = vrsqrt.pop %v11283
  %v11300 = vrsqrt.pop %v11284
  %v11301 = vrsqrt.pop %v11285
  %v11319 = vunpack.c.l.s4 839922192
  %v11320 = vunpack.c.0.s8 %v11319
  %v11321 = vlaneseq
  %v11322 = vshrl.u32 %v11321, 7
  %v11323 = vsub.s32 %v11320, %v11322
  %v11324 = vrot.slane %v11286, %v11323
  %v11326 = vunpack.c.l.s4 1985246804
  %v11327 = vunpack.c.0.s8 %v11326
  %v11328 = vlaneseq
  %v11329 = vshrl.u32 %v11328, 7
  %v11330 = vsub.s32 %v11327, %v11329
  %v11331 = vrot.slane %v11286, %v11330
  %v11333 = vunpack.c.l.s4 839922192
  %v11334 = vunpack.c.0.s8 %v11333
  %v11335 = vlaneseq
  %v11336 = vshrl.u32 %v11335, 7
  %v11337 = vsub.s32 %v11334, %v11336
  %v11338 = vrot.slane %v11287, %v11337
  %v11340 = vunpack.c.l.s4 1985246804
  %v11341 = vunpack.c.0.s8 %v11340
  %v11342 = vlaneseq
  %v11343 = vshrl.u32 %v11342, 7
  %v11344 = vsub.s32 %v11341, %v11343
  %v11345 = vrot.slane %v11287, %v11344
  %v11347 = vunpack.c.l.s4 839922192
  %v11348 = vunpack.c.0.s8 %v11347
  %v11349 = vlaneseq
  %v11350 = vshrl.u32 %v11349, 7
  %v11351 = vsub.s32 %v11348, %v11350
  %v11352 = vrot.slane %v11288, %v11351
  %v11354 = vunpack.c.l.s4 1985246804
  %v11355 = vunpack.c.0.s8 %v11354
  %v11356 = vlaneseq
  %v11357 = vshrl.u32 %v11356, 7
  %v11358 = vsub.s32 %v11355, %v11357
  %v11359 = vrot.slane %v11288, %v11358
  %v11361 = vunpack.c.l.s4 839922192
  %v11362 = vunpack.c.0.s8 %v11361
  %v11363 = vlaneseq
  %v11364 = vshrl.u32 %v11363, 7
  %v11365 = vsub.s32 %v11362, %v11364
  %v11366 = vrot.slane %v11289, %v11365
  %v11368 = vunpack.c.l.s4 1985246804
  %v11369 = vunpack.c.0.s8 %v11368
  %v11370 = vlaneseq
  %v11371 = vshrl.u32 %v11370, 7
  %v11372 = vsub.s32 %v11369, %v11371
  %v11373 = vrot.slane %v11289, %v11372
  %v11375 = vunpack.c.l.s4 839922192
  %v11376 = vunpack.c.0.s8 %v11375
  %v11377 = vlaneseq
  %v11378 = vshrl.u32 %v11377, 7
  %v11379 = vsub.s32 %v11376, %v11378
  %v11380 = vrot.slane %v11290, %v11379
  %v11382 = vunpack.c.l.s4 1985246804
  %v11383 = vunpack.c.0.s8 %v11382
  %v11384 = vlaneseq
  %v11385 = vshrl.u32 %v11384, 7
  %v11386 = vsub.s32 %v11383, %v11385
  %v11387 = vrot.slane %v11290, %v11386
  %v11389 = vunpack.c.l.s4 839922192
  %v11390 = vunpack.c.0.s8 %v11389
  %v11391 = vlaneseq
  %v11392 = vshrl.u32 %v11391, 7
  %v11393 = vsub.s32 %v11390, %v11392
  %v11394 = vrot.slane %v11291, %v11393
  %v11396 = vunpack.c.l.s4 1985246804
  %v11397 = vunpack.c.0.s8 %v11396
  %v11398 = vlaneseq
  %v11399 = vshrl.u32 %v11398, 7
  %v11400 = vsub.s32 %v11397, %v11399
  %v11401 = vrot.slane %v11291, %v11400
  %v11403 = vunpack.c.l.s4 839922192
  %v11404 = vunpack.c.0.s8 %v11403
  %v11405 = vlaneseq
  %v11406 = vshrl.u32 %v11405, 7
  %v11407 = vsub.s32 %v11404, %v11406
  %v11408 = vrot.slane %v11292, %v11407
  %v11410 = vunpack.c.l.s4 1985246804
  %v11411 = vunpack.c.0.s8 %v11410
  %v11412 = vlaneseq
  %v11413 = vshrl.u32 %v11412, 7
  %v11414 = vsub.s32 %v11411, %v11413
  %v11415 = vrot.slane %v11292, %v11414
  %v11417 = vunpack.c.l.s4 839922192
  %v11418 = vunpack.c.0.s8 %v11417
  %v11419 = vlaneseq
  %v11420 = vshrl.u32 %v11419, 7
  %v11421 = vsub.s32 %v11418, %v11420
  %v11422 = vrot.slane %v11293, %v11421
  %v11424 = vunpack.c.l.s4 1985246804
  %v11425 = vunpack.c.0.s8 %v11424
  %v11426 = vlaneseq
  %v11427 = vshrl.u32 %v11426, 7
  %v11428 = vsub.s32 %v11425, %v11427
  %v11429 = vrot.slane %v11293, %v11428
  %v11431 = vunpack.c.l.s4 839922192
  %v11432 = vunpack.c.0.s8 %v11431
  %v11433 = vlaneseq
  %v11434 = vshrl.u32 %v11433, 7
  %v11435 = vsub.s32 %v11432, %v11434
  %v11436 = vrot.slane %v11294, %v11435
  %v11438 = vunpack.c.l.s4 1985246804
  %v11439 = vunpack.c.0.s8 %v11438
  %v11440 = vlaneseq
  %v11441 = vshrl.u32 %v11440, 7
  %v11442 = vsub.s32 %v11439, %v11441
  %v11443 = vrot.slane %v11294, %v11442
  %v11445 = vunpack.c.l.s4 839922192
  %v11446 = vunpack.c.0.s8 %v11445
  %v11447 = vlaneseq
  %v11448 = vshrl.u32 %v11447, 7
  %v11449 = vsub.s32 %v11446, %v11448
  %v11450 = vrot.slane %v11295, %v11449
  %v11452 = vunpack.c.l.s4 1985246804
  %v11453 = vunpack.c.0.s8 %v11452
  %v11454 = vlaneseq
  %v11455 = vshrl.u32 %v11454, 7
  %v11456 = vsub.s32 %v11453, %v11455
  %v11457 = vrot.slane %v11295, %v11456
  %v11459 = vunpack.c.l.s4 839922192
  %v11460 = vunpack.c.0.s8 %v11459
  %v11461 = vlaneseq
  %v11462 = vshrl.u32 %v11461, 7
  %v11463 = vsub.s32 %v11460, %v11462
  %v11464 = vrot.slane %v11296, %v11463
  %v11466 = vunpack.c.l.s4 1985246804
  %v11467 = vunpack.c.0.s8 %v11466
  %v11468 = vlaneseq
  %v11469 = vshrl.u32 %v11468, 7
  %v11470 = vsub.s32 %v11467, %v11469
  %v11471 = vrot.slane %v11296, %v11470
  %v11473 = vunpack.c.l.s4 839922192
  %v11474 = vunpack.c.0.s8 %v11473
  %v11475 = vlaneseq
  %v11476 = vshrl.u32 %v11475, 7
  %v11477 = vsub.s32 %v11474, %v11476
  %v11478 = vrot.slane %v11297, %v11477
  %v11480 = vunpack.c.l.s4 1985246804
  %v11481 = vunpack.c.0.s8 %v11480
  %v11482 = vlaneseq
  %v11483 = vshrl.u32 %v11482, 7
  %v11484 = vsub.s32 %v11481, %v11483
  %v11485 = vrot.slane %v11297, %v11484
  %v11487 = vunpack.c.l.s4 839922192
  %v11488 = vunpack.c.0.s8 %v11487
  %v11489 = vlaneseq
  %v11490 = vshrl.u32 %v11489, 7
  %v11491 = vsub.s32 %v11488, %v11490
  %v11492 = vrot.slane %v11298, %v11491
  %v11494 = vunpack.c.l.s4 1985246804
  %v11495 = vunpack.c.0.s8 %v11494
  %v11496 = vlaneseq
  %v11497 = vshrl.u32 %v11496, 7
  %v11498 = vsub.s32 %v11495, %v11497
  %v11499 = vrot.slane %v11298, %v11498
  %v11501 = vunpack.c.l.s4 839922192
  %v11502 = vunpack.c.0.s8 %v11501
  %v11503 = vlaneseq
  %v11504 = vshrl.u32 %v11503, 7
  %v11505 = vsub.s32 %v11502, %v11504
  %v11506 = vrot.slane %v11299, %v11505
  %v11508 = vunpack.c.l.s4 1985246804
  %v11509 = vunpack.c.0.s8 %v11508
  %v11510 = vlaneseq
  %v11511 = vshrl.u32 %v11510, 7
  %v11512 = vsub.s32 %v11509, %v11511
  %v11513 = vrot.slane %v11299, %v11512
  %v11515 = vunpack.c.l.s4 839922192
  %v11516 = vunpack.c.0.s8 %v11515
  %v11517 = vlaneseq
  %v11518 = vshrl.u32 %v11517, 7
  %v11519 = vsub.s32 %v11516, %v11518
  %v11520 = vrot.slane %v11300, %v11519
  %v11522 = vunpack.c.l.s4 1985246804
  %v11523 = vunpack.c.0.s8 %v11522
  %v11524 = vlaneseq
  %v11525 = vshrl.u32 %v11524, 7
  %v11526 = vsub.s32 %v11523, %v11525
  %v11527 = vrot.slane %v11300, %v11526
  %v11529 = vunpack.c.l.s4 839922192
  %v11530 = vunpack.c.0.s8 %v11529
  %v11531 = vlaneseq
  %v11532 = vshrl.u32 %v11531, 7
  %v11533 = vsub.s32 %v11530, %v11532
  %v11534 = vrot.slane %v11301, %v11533
  %v11536 = vunpack.c.l.s4 1985246804
  %v11537 = vunpack.c.0.s8 %v11536
  %v11538 = vlaneseq
  %v11539 = vshrl.u32 %v11538, 7
  %v11540 = vsub.s32 %v11537, %v11539
  %v11541 = vrot.slane %v11301, %v11540
  %v11574 = vmul.f32 %v11078, %v11324
  %v11575 = vmul.f32 %v11079, %v11331
  %v11576 = vmul.f32 %v11080, %v11338
  %v11577 = vmul.f32 %v11081, %v11345
  %v11578 = vmul.f32 %v11082, %v11352
  %v11579 = vmul.f32 %v11083, %v11359
  %v11580 = vmul.f32 %v11084, %v11366
  %v11581 = vmul.f32 %v11085, %v11373
  %v11582 = vmul.f32 %v11086, %v11380
  %v11583 = vmul.f32 %v11087, %v11387
  %v11584 = vmul.f32 %v11088, %v11394
  %v11585 = vmul.f32 %v11089, %v11401
  %v11586 = vmul.f32 %v11090, %v11408
  %v11587 = vmul.f32 %v11091, %v11415
  %v11588 = vmul.f32 %v11092, %v11422
  %v11589 = vmul.f32 %v11093, %v11429
  %v11590 = vmul.f32 %v11094, %v11436
  %v11591 = vmul.f32 %v11095, %v11443
  %v11592 = vmul.f32 %v11096, %v11450
  %v11593 = vmul.f32 %v11097, %v11457
  %v11594 = vmul.f32 %v11098, %v11464
  %v11595 = vmul.f32 %v11099, %v11471
  %v11596 = vmul.f32 %v11100, %v11478
  %v11597 = vmul.f32 %v11101, %v11485
  %v11598 = vmul.f32 %v11102, %v11492
  %v11599 = vmul.f32 %v11103, %v11499
  %v11600 = vmul.f32 %v11104, %v11506
  %v11601 = vmul.f32 %v11105, %v11513
  %v11602 = vmul.f32 %v11106, %v11520
  %v11603 = vmul.f32 %v11107, %v11527
  %v11604 = vmul.f32 %v11108, %v11534
  %v11605 = vmul.f32 %v11109, %v11541
  %v11607 = vlaneseq
  %v11608 = vshrl.u32 %v11607, 7
  %v11609 = vsub.s32 0, %v11608
  %v11610 = vrot.slane %v10676, %v11609
  %v11612 = vcombine.high %v11610, %v11610
  %v11614 = vmul.f32 %v11574, %v11610
  %v11615 = vmul.f32 %v11575, %v11612
  %v11616 = vmul.f32 %v11576, %v11610
  %v11617 = vmul.f32 %v11577, %v11612
  %v11618 = vmul.f32 %v11578, %v11610
  %v11619 = vmul.f32 %v11579, %v11612
  %v11620 = vmul.f32 %v11580, %v11610
  %v11621 = vmul.f32 %v11581, %v11612
  %v11622 = vmul.f32 %v11582, %v11610
  %v11623 = vmul.f32 %v11583, %v11612
  %v11624 = vmul.f32 %v11584, %v11610
  %v11625 = vmul.f32 %v11585, %v11612
  %v11626 = vmul.f32 %v11586, %v11610
  %v11627 = vmul.f32 %v11587, %v11612
  %v11628 = vmul.f32 %v11588, %v11610
  %v11629 = vmul.f32 %v11589, %v11612
  %v11630 = vmul.f32 %v11590, %v11610
  %v11631 = vmul.f32 %v11591, %v11612
  %v11632 = vmul.f32 %v11592, %v11610
  %v11633 = vmul.f32 %v11593, %v11612
  %v11634 = vmul.f32 %v11594, %v11610
  %v11635 = vmul.f32 %v11595, %v11612
  %v11636 = vmul.f32 %v11596, %v11610
  %v11637 = vmul.f32 %v11597, %v11612
  %v11638 = vmul.f32 %v11598, %v11610
  %v11639 = vmul.f32 %v11599, %v11612
  %v11640 = vmul.f32 %v11600, %v11610
  %v11641 = vmul.f32 %v11601, %v11612
  %v11642 = vmul.f32 %v11602, %v11610
  %v11643 = vmul.f32 %v11603, %v11612
  %v11644 = vmul.f32 %v11604, %v11610
  %v11645 = vmul.f32 %v11605, %v11612
  %v11647 = vlaneseq
  %v11648 = vshrl.u32 %v11647, 7
  %v11649 = vsub.s32 0, %v11648
  %v11650 = vrot.slane %v10677, %v11649
  %v11652 = vcombine.high %v11650, %v11650
  %v11654 = vadd.f32 %v11614, %v11650
  %v11655 = vadd.f32 %v11615, %v11652
  %v11656 = vadd.f32 %v11616, %v11650
  %v11657 = vadd.f32 %v11617, %v11652
  %v11658 = vadd.f32 %v11618, %v11650
  %v11659 = vadd.f32 %v11619, %v11652
  %v11660 = vadd.f32 %v11620, %v11650
  %v11661 = vadd.f32 %v11621, %v11652
  %v11662 = vadd.f32 %v11622, %v11650
  %v11663 = vadd.f32 %v11623, %v11652
  %v11664 = vadd.f32 %v11624, %v11650
  %v11665 = vadd.f32 %v11625, %v11652
  %v11666 = vadd.f32 %v11626, %v11650
  %v11667 = vadd.f32 %v11627, %v11652
  %v11668 = vadd.f32 %v11628, %v11650
  %v11669 = vadd.f32 %v11629, %v11652
  %v11670 = vadd.f32 %v11630, %v11650
  %v11671 = vadd.f32 %v11631, %v11652
  %v11672 = vadd.f32 %v11632, %v11650
  %v11673 = vadd.f32 %v11633, %v11652
  %v11674 = vadd.f32 %v11634, %v11650
  %v11675 = vadd.f32 %v11635, %v11652
  %v11676 = vadd.f32 %v11636, %v11650
  %v11677 = vadd.f32 %v11637, %v11652
  %v11678 = vadd.f32 %v11638, %v11650
  %v11679 = vadd.f32 %v11639, %v11652
  %v11680 = vadd.f32 %v11640, %v11650
  %v11681 = vadd.f32 %v11641, %v11652
  %v11682 = vadd.f32 %v11642, %v11650
  %v11683 = vadd.f32 %v11643, %v11652
  %v11684 = vadd.f32 %v11644, %v11650
  %v11685 = vadd.f32 %v11645, %v11652
  %v11718 = vcombine.low %v11654, %v11655
  %v11719 = vcombine.low %v11656, %v11657
  %v11720 = vcombine.low %v11658, %v11659
  %v11721 = vcombine.low %v11660, %v11661
  %v11722 = vcombine.low %v11662, %v11663
  %v11723 = vcombine.low %v11664, %v11665
  %v11724 = vcombine.low %v11666, %v11667
  %v11725 = vcombine.low %v11668, %v11669
  %v11726 = vcombine.low %v11670, %v11671
  %v11727 = vcombine.low %v11672, %v11673
  %v11728 = vcombine.low %v11674, %v11675
  %v11729 = vcombine.low %v11676, %v11677
  %v11730 = vcombine.low %v11678, %v11679
  %v11731 = vcombine.low %v11680, %v11681
  %v11732 = vcombine.low %v11682, %v11683
  %v11733 = vcombine.low %v11684, %v11685
  %v11750 = vpack.c.bf16 %v11719, %v11718
  %v11751 = vpack.c.bf16 %v11721, %v11720
  %v11752 = vpack.c.bf16 %v11723, %v11722
  %v11753 = vpack.c.bf16 %v11725, %v11724
  %v11754 = vpack.c.bf16 %v11727, %v11726
  %v11755 = vpack.c.bf16 %v11729, %v11728
  %v11756 = vpack.c.bf16 %v11731, %v11730
  %v11757 = vpack.c.bf16 %v11733, %v11732
  %v11758 = vld [vmem:[%s10] sm:$0xff]
  %v11759 = vld [vmem:[%s10 + $0x8] sm:$0xff]
  %v11760 = vld [vmem:[%s10 + $0x10] sm:$0xff]
  %v11761 = vld [vmem:[%s10 + $0x18] sm:$0xff]
  %v11762 = vld [vmem:[%s10 + $0x20] sm:$0xff]
  %v11763 = vld [vmem:[%s10 + $0x28] sm:$0xff]
  %v11764 = vld [vmem:[%s10 + $0x30] sm:$0xff]
  %v11765 = vld [vmem:[%s10 + $0x38] sm:$0xff]
  %v11766 = vld [vmem:[%s10 + $0x40] sm:$0xff]
  %v11767 = vld [vmem:[%s10 + $0x48] sm:$0xff]
  %v11768 = vld [vmem:[%s10 + $0x50] sm:$0xff]
  %v11769 = vld [vmem:[%s10 + $0x58] sm:$0xff]
  %v11770 = vld [vmem:[%s10 + $0x60] sm:$0xff]
  %v11771 = vld [vmem:[%s10 + $0x68] sm:$0xff]
  %v11772 = vld [vmem:[%s10 + $0x70] sm:$0xff]
  %v11773 = vld [vmem:[%s10 + $0x78] sm:$0xff]
  %v11774 = vpack.c.bf16 %v11760, %v11758
  %v11775 = vpack.c.bf16 %v11761, %v11759
  %v11776 = vpack.c.bf16 %v11764, %v11762
  %v11777 = vpack.c.bf16 %v11765, %v11763
  %v11778 = vpack.c.bf16 %v11768, %v11766
  %v11779 = vpack.c.bf16 %v11769, %v11767
  %v11780 = vpack.c.bf16 %v11772, %v11770
  %v11781 = vpack.c.bf16 %v11773, %v11771
  %v11782 = vld [vmem:[%s11] sm:$0x3]
  %v11784 = vlaneseq
  %v11785 = vshrl.u32 %v11784, 7
  %v11786 = vsub.s32 0, %v11785
  %v11787 = vrot.slane %v11782, %v11786
  %v11788 = vlaneseq
  %v11789 = vshrl.u32 %v11788, 7
  %v11790 = vsub.s32 1, %v11789
  %v11791 = vrot.slane %v11782, %v11790
  %v11795 = vsel %vm3950, %v11750, 0
  %v11798 = vsel %vm3950, %v11751, 0
  %v11801 = vsel %vm3950, %v11752, 0
  %v11804 = vsel %vm3950, %v11753, 0
  %v11807 = vsel %vm3950, %v11754, 0
  %v11810 = vsel %vm3950, %v11755, 0
  %v11813 = vsel %vm3950, %v11756, 0
  %v11816 = vsel %vm3950, %v11757, 0
  %11818 = vmatprep.subr.bf16.mxu0 %v11775
  %11819 = vmatpush1.bf16.msra.mxu0 %v11774
  %11820 = vmatprep.subr.bf16.mxu0 %v11777
  %11821 = vmatpush1.bf16.msra.mxu0 %v11776
  %11822 = vmatprep.subr.bf16.mxu0 %v11779
  %11823 = vmatpush1.bf16.msra.mxu0 %v11778
  %11824 = vmatprep.subr.bf16.mxu0 %v11781
  %11825 = vmatpush1.bf16.msra.mxu0 %v11780
  %11826 = vmatprep.subr.bf16.mxu0 0
  %11827 = vmatpush1.bf16.msra.mxu0 0
  %11828 = vmatprep.subr.bf16.mxu0 0
  %11829 = vmatpush1.bf16.msra.mxu0 0
  %11830 = vmatprep.subr.bf16.mxu0 0
  %11831 = vmatpush1.bf16.msra.mxu0 0
  %11832 = vmatprep.subr.bf16.mxu0 0
  %11833 = vmatpush1.bf16.msra.mxu0 0
  %11834 = vmatprep.subr.bf16.mxu0 0
  %11835 = vmatpush1.bf16.msra.mxu0 0
  %11836 = vmatprep.subr.bf16.mxu0 0
  %11837 = vmatpush1.bf16.msra.mxu0 0
  %11838 = vmatprep.subr.bf16.mxu0 0
  %11839 = vmatpush1.bf16.msra.mxu0 0
  %11840 = vmatprep.subr.bf16.mxu0 0
  %11841 = vmatpush1.bf16.msra.mxu0 0
  %11842 = vmatprep.subr.bf16.mxu0 0
  %11843 = vmatpush1.bf16.msra.mxu0 0
  %11844 = vmatprep.subr.bf16.mxu0 0
  %11845 = vmatpush1.bf16.msra.mxu0 0
  %11846 = vmatprep.subr.bf16.mxu0 0
  %11847 = vmatpush1.bf16.msra.mxu0 0
  %11848 = vmatprep.subr.bf16.mxu0 0
  %11849 = vmatpush1.bf16.msra.mxu0 0
  %11850 = vmatprep.mubr.bf16.mxu0 0
  %11851 = vmatmul.mubr.bf16.gmra.mrb[0].mxu0 %v11795
  %v11852 = vpop.f32.mrb[0].mxu0
  %v11853 = vadd.f32 %v11787, %v11852
  %v11854 = vpop.f32.mrb[0].mxu0
  %v11855 = vadd.f32 %v11791, %v11854
  %v11856 = vpop.f32.mrb[0].mxu0
  %v11857 = vadd.f32 %v11787, %v11856
  %v11858 = vpop.f32.mrb[0].mxu0
  %v11859 = vadd.f32 %v11791, %v11858
  %11860 = vmatprep.mubr.bf16.mxu0 0
  %11861 = vmatmul.mubr.bf16.gmra.mrb[0].mxu0 %v11798
  %v11862 = vpop.f32.mrb[0].mxu0
  %v11863 = vadd.f32 %v11787, %v11862
  %v11864 = vpop.f32.mrb[0].mxu0
  %v11865 = vadd.f32 %v11791, %v11864
  %v11866 = vpop.f32.mrb[0].mxu0
  %v11867 = vadd.f32 %v11787, %v11866
  %v11868 = vpop.f32.mrb[0].mxu0
  %v11869 = vadd.f32 %v11791, %v11868
  %11870 = vmatprep.mubr.bf16.mxu0 0
  %11871 = vmatmul.mubr.bf16.gmra.mrb[0].mxu0 %v11801
  %v11872 = vpop.f32.mrb[0].mxu0
  %v11873 = vadd.f32 %v11787, %v11872
  %v11874 = vpop.f32.mrb[0].mxu0
  %v11875 = vadd.f32 %v11791, %v11874
  %v11876 = vpop.f32.mrb[0].mxu0
  %v11877 = vadd.f32 %v11787, %v11876
  %v11878 = vpop.f32.mrb[0].mxu0
  %v11879 = vadd.f32 %v11791, %v11878
  %11880 = vmatprep.mubr.bf16.mxu0 0
  %11881 = vmatmul.mubr.bf16.gmra.mrb[0].mxu0 %v11804
  %v11882 = vpop.f32.mrb[0].mxu0
  %v11883 = vadd.f32 %v11787, %v11882
  %v11884 = vpop.f32.mrb[0].mxu0
  %v11885 = vadd.f32 %v11791, %v11884
  %v11886 = vpop.f32.mrb[0].mxu0
  %v11887 = vadd.f32 %v11787, %v11886
  %v11888 = vpop.f32.mrb[0].mxu0
  %v11889 = vadd.f32 %v11791, %v11888
  %11890 = vmatprep.mubr.bf16.mxu0 0
  %11891 = vmatmul.mubr.bf16.gmra.mrb[0].mxu0 %v11807
  %v11892 = vpop.f32.mrb[0].mxu0
  %v11893 = vadd.f32 %v11787, %v11892
  %v11894 = vpop.f32.mrb[0].mxu0
  %v11895 = vadd.f32 %v11791, %v11894
  %v11896 = vpop.f32.mrb[0].mxu0
  %v11897 = vadd.f32 %v11787, %v11896
  %v11898 = vpop.f32.mrb[0].mxu0
  %v11899 = vadd.f32 %v11791, %v11898
  %11900 = vmatprep.mubr.bf16.mxu0 0
  %11901 = vmatmul.mubr.bf16.gmra.mrb[0].mxu0 %v11810
  %v11902 = vpop.f32.mrb[0].mxu0
  %v11903 = vadd.f32 %v11787, %v11902
  %v11904 = vpop.f32.mrb[0].mxu0
  %v11905 = vadd.f32 %v11791, %v11904
  %v11906 = vpop.f32.mrb[0].mxu0
  %v11907 = vadd.f32 %v11787, %v11906
  %v11908 = vpop.f32.mrb[0].mxu0
  %v11909 = vadd.f32 %v11791, %v11908
  %11910 = vmatprep.mubr.bf16.mxu0 0
  %11911 = vmatmul.mubr.bf16.gmra.mrb[0].mxu0 %v11813
  %v11912 = vpop.f32.mrb[0].mxu0
  %v11913 = vadd.f32 %v11787, %v11912
  %v11914 = vpop.f32.mrb[0].mxu0
  %v11915 = vadd.f32 %v11791, %v11914
  %v11916 = vpop.f32.mrb[0].mxu0
  %v11917 = vadd.f32 %v11787, %v11916
  %v11918 = vpop.f32.mrb[0].mxu0
  %v11919 = vadd.f32 %v11791, %v11918
  %11920 = vmatprep.mubr.bf16.mxu0 0
  %11921 = vmatmul.mubr.bf16.gmra.mrb[0].mxu0 %v11816
  %v11922 = vpop.f32.mrb[0].mxu0
  %v11923 = vadd.f32 %v11787, %v11922
  %v11924 = vpop.f32.mrb[0].mxu0
  %v11925 = vadd.f32 %v11791, %v11924
  %v11926 = vpop.f32.mrb[0].mxu0
  %v11927 = vadd.f32 %v11787, %v11926
  %v11928 = vpop.f32.mrb[0].mxu0
  %v11929 = vadd.f32 %v11791, %v11928
  %11930 = vdwg.mxu0
  %v11931 = vmul.f32 %v11853, 0.5
  %v11932 = vmul.f32 %v11855, 0.5
  %v11933 = vmul.f32 %v11857, 0.5
  %v11934 = vmul.f32 %v11859, 0.5
  %v11935 = vmul.f32 %v11863, 0.5
  %v11936 = vmul.f32 %v11865, 0.5
  %v11937 = vmul.f32 %v11867, 0.5
  %v11938 = vmul.f32 %v11869, 0.5
  %v11939 = vmul.f32 %v11873, 0.5
  %v11940 = vmul.f32 %v11875, 0.5
  %v11941 = vmul.f32 %v11877, 0.5
  %v11942 = vmul.f32 %v11879, 0.5
  %v11943 = vmul.f32 %v11883, 0.5
  %v11944 = vmul.f32 %v11885, 0.5
  %v11945 = vmul.f32 %v11887, 0.5
  %v11946 = vmul.f32 %v11889, 0.5
  %v11947 = vmul.f32 %v11893, 0.5
  %v11948 = vmul.f32 %v11895, 0.5
  %v11949 = vmul.f32 %v11897, 0.5
  %v11950 = vmul.f32 %v11899, 0.5
  %v11951 = vmul.f32 %v11903, 0.5
  %v11952 = vmul.f32 %v11905, 0.5
  %v11953 = vmul.f32 %v11907, 0.5
  %v11954 = vmul.f32 %v11909, 0.5
  %v11955 = vmul.f32 %v11913, 0.5
  %v11956 = vmul.f32 %v11915, 0.5
  %v11957 = vmul.f32 %v11917, 0.5
  %v11958 = vmul.f32 %v11919, 0.5
  %v11959 = vmul.f32 %v11923, 0.5
  %v11960 = vmul.f32 %v11925, 0.5
  %v11961 = vmul.f32 %v11927, 0.5
  %v11962 = vmul.f32 %v11929, 0.5
  %v11963 = vmul.f32 %v11853, 0.70710677
  %v11964 = vmul.f32 %v11855, 0.70710677
  %v11965 = vmul.f32 %v11857, 0.70710677
  %v11966 = vmul.f32 %v11859, 0.70710677
  %v11967 = vmul.f32 %v11863, 0.70710677
  %v11968 = vmul.f32 %v11865, 0.70710677
  %v11969 = vmul.f32 %v11867, 0.70710677
  %v11970 = vmul.f32 %v11869, 0.70710677
  %v11971 = vmul.f32 %v11873, 0.70710677
  %v11972 = vmul.f32 %v11875, 0.70710677
  %v11973 = vmul.f32 %v11877, 0.70710677
  %v11974 = vmul.f32 %v11879, 0.70710677
  %v11975 = vmul.f32 %v11883, 0.70710677
  %v11976 = vmul.f32 %v11885, 0.70710677
  %v11977 = vmul.f32 %v11887, 0.70710677
  %v11978 = vmul.f32 %v11889, 0.70710677
  %v11979 = vmul.f32 %v11893, 0.70710677
  %v11980 = vmul.f32 %v11895, 0.70710677
  %v11981 = vmul.f32 %v11897, 0.70710677
  %v11982 = vmul.f32 %v11899, 0.70710677
  %v11983 = vmul.f32 %v11903, 0.70710677
  %v11984 = vmul.f32 %v11905, 0.70710677
  %v11985 = vmul.f32 %v11907, 0.70710677
  %v11986 = vmul.f32 %v11909, 0.70710677
  %v11987 = vmul.f32 %v11913, 0.70710677
  %v11988 = vmul.f32 %v11915, 0.70710677
  %v11989 = vmul.f32 %v11917, 0.70710677
  %v11990 = vmul.f32 %v11919, 0.70710677
  %v11991 = vmul.f32 %v11923, 0.70710677
  %v11992 = vmul.f32 %v11925, 0.70710677
  %v11993 = vmul.f32 %v11927, 0.70710677
  %v11994 = vmul.f32 %v11929, 0.70710677
  %v11995 = verf.f32.pop %v11963
  %v11996 = verf.f32.pop %v11964
  %v11997 = verf.f32.pop %v11965
  %v11998 = verf.f32.pop %v11966
  %v11999 = verf.f32.pop %v11967
  %v12000 = verf.f32.pop %v11968
  %v12001 = verf.f32.pop %v11969
  %v12002 = verf.f32.pop %v11970
  %v12003 = verf.f32.pop %v11971
  %v12004 = verf.f32.pop %v11972
  %v12005 = verf.f32.pop %v11973
  %v12006 = verf.f32.pop %v11974
  %v12007 = verf.f32.pop %v11975
  %v12008 = verf.f32.pop %v11976
  %v12009 = verf.f32.pop %v11977
  %v12010 = verf.f32.pop %v11978
  %v12011 = verf.f32.pop %v11979
  %v12012 = verf.f32.pop %v11980
  %v12013 = verf.f32.pop %v11981
  %v12014 = verf.f32.pop %v11982
  %v12015 = verf.f32.pop %v11983
  %v12016 = verf.f32.pop %v11984
  %v12017 = verf.f32.pop %v11985
  %v12018 = verf.f32.pop %v11986
  %v12019 = verf.f32.pop %v11987
  %v12020 = verf.f32.pop %v11988
  %v12021 = verf.f32.pop %v11989
  %v12022 = verf.f32.pop %v11990
  %v12023 = verf.f32.pop %v11991
  %v12024 = verf.f32.pop %v11992
  %v12025 = verf.f32.pop %v11993
  %v12026 = verf.f32.pop %v11994
  %v12027 = vadd.f32 %v11995, 1.0
  %v12028 = vadd.f32 %v11996, 1.0
  %v12029 = vadd.f32 %v11997, 1.0
  %v12030 = vadd.f32 %v11998, 1.0
  %v12031 = vadd.f32 %v11999, 1.0
  %v12032 = vadd.f32 %v12000, 1.0
  %v12033 = vadd.f32 %v12001, 1.0
  %v12034 = vadd.f32 %v12002, 1.0
  %v12035 = vadd.f32 %v12003, 1.0
  %v12036 = vadd.f32 %v12004, 1.0
  %v12037 = vadd.f32 %v12005, 1.0
  %v12038 = vadd.f32 %v12006, 1.0
  %v12039 = vadd.f32 %v12007, 1.0
  %v12040 = vadd.f32 %v12008, 1.0
  %v12041 = vadd.f32 %v12009, 1.0
  %v12042 = vadd.f32 %v12010, 1.0
  %v12043 = vadd.f32 %v12011, 1.0
  %v12044 = vadd.f32 %v12012, 1.0
  %v12045 = vadd.f32 %v12013, 1.0
  %v12046 = vadd.f32 %v12014, 1.0
  %v12047 = vadd.f32 %v12015, 1.0
  %v12048 = vadd.f32 %v12016, 1.0
  %v12049 = vadd.f32 %v12017, 1.0
  %v12050 = vadd.f32 %v12018, 1.0
  %v12051 = vadd.f32 %v12019, 1.0
  %v12052 = vadd.f32 %v12020, 1.0
  %v12053 = vadd.f32 %v12021, 1.0
  %v12054 = vadd.f32 %v12022, 1.0
  %v12055 = vadd.f32 %v12023, 1.0
  %v12056 = vadd.f32 %v12024, 1.0
  %v12057 = vadd.f32 %v12025, 1.0
  %v12058 = vadd.f32 %v12026, 1.0
  %v12059 = vmul.f32 %v11931, %v12027
  %v12060 = vmul.f32 %v11932, %v12028
  %v12061 = vmul.f32 %v11933, %v12029
  %v12062 = vmul.f32 %v11934, %v12030
  %v12063 = vmul.f32 %v11935, %v12031
  %v12064 = vmul.f32 %v11936, %v12032
  %v12065 = vmul.f32 %v11937, %v12033
  %v12066 = vmul.f32 %v11938, %v12034
  %v12067 = vmul.f32 %v11939, %v12035
  %v12068 = vmul.f32 %v11940, %v12036
  %v12069 = vmul.f32 %v11941, %v12037
  %v12070 = vmul.f32 %v11942, %v12038
  %v12071 = vmul.f32 %v11943, %v12039
  %v12072 = vmul.f32 %v11944, %v12040
  %v12073 = vmul.f32 %v11945, %v12041
  %v12074 = vmul.f32 %v11946, %v12042
  %v12075 = vmul.f32 %v11947, %v12043
  %v12076 = vmul.f32 %v11948, %v12044
  %v12077 = vmul.f32 %v11949, %v12045
  %v12078 = vmul.f32 %v11950, %v12046
  %v12079 = vmul.f32 %v11951, %v12047
  %v12080 = vmul.f32 %v11952, %v12048
  %v12081 = vmul.f32 %v11953, %v12049
  %v12082 = vmul.f32 %v11954, %v12050
  %v12083 = vmul.f32 %v11955, %v12051
  %v12084 = vmul.f32 %v11956, %v12052
  %v12085 = vmul.f32 %v11957, %v12053
  %v12086 = vmul.f32 %v11958, %v12054
  %v12087 = vmul.f32 %v11959, %v12055
  %v12088 = vmul.f32 %v11960, %v12056
  %v12089 = vmul.f32 %v11961, %v12057
  %v12090 = vmul.f32 %v11962, %v12058
  %v12091 = vpack.c.bf16 %v12061, %v12059
  %v12092 = vpack.c.bf16 %v12062, %v12060
  %v12093 = vpack.c.bf16 %v12065, %v12063
  %v12094 = vpack.c.bf16 %v12066, %v12064
  %v12095 = vpack.c.bf16 %v12069, %v12067
  %v12096 = vpack.c.bf16 %v12070, %v12068
  %v12097 = vpack.c.bf16 %v12073, %v12071
  %v12098 = vpack.c.bf16 %v12074, %v12072
  %v12099 = vpack.c.bf16 %v12077, %v12075
  %v12100 = vpack.c.bf16 %v12078, %v12076
  %v12101 = vpack.c.bf16 %v12081, %v12079
  %v12102 = vpack.c.bf16 %v12082, %v12080
  %v12103 = vpack.c.bf16 %v12085, %v12083
  %v12104 = vpack.c.bf16 %v12086, %v12084
  %v12105 = vpack.c.bf16 %v12089, %v12087
  %v12106 = vpack.c.bf16 %v12090, %v12088
  %v12107 = vld [vmem:[%s12] sm:$0xff]
  %v12108 = vld [vmem:[%s12 + $0x8] sm:$0xff]
  %v12109 = vld [vmem:[%s12 + $0x10] sm:$0xff]
  %v12110 = vld [vmem:[%s12 + $0x18] sm:$0xff]
  %v12111 = vld [vmem:[%s12 + $0x20] sm:$0xff]
  %v12112 = vld [vmem:[%s12 + $0x28] sm:$0xff]
  %v12113 = vld [vmem:[%s12 + $0x30] sm:$0xff]
  %v12114 = vld [vmem:[%s12 + $0x38] sm:$0xff]
  %v12115 = vld [vmem:[%s12 + $0x40] sm:$0xff]
  %v12116 = vld [vmem:[%s12 + $0x48] sm:$0xff]
  %v12117 = vld [vmem:[%s12 + $0x50] sm:$0xff]
  %v12118 = vld [vmem:[%s12 + $0x58] sm:$0xff]
  %v12119 = vld [vmem:[%s12 + $0x60] sm:$0xff]
  %v12120 = vld [vmem:[%s12 + $0x68] sm:$0xff]
  %v12121 = vld [vmem:[%s12 + $0x70] sm:$0xff]
  %v12122 = vld [vmem:[%s12 + $0x78] sm:$0xff]
  %v12123 = vld [vmem:[%s12 + $0x80] sm:$0xff]
  %v12124 = vld [vmem:[%s12 + $0x88] sm:$0xff]
  %v12125 = vld [vmem:[%s12 + $0x90] sm:$0xff]
  %v12126 = vld [vmem:[%s12 + $0x98] sm:$0xff]
  %v12127 = vld [vmem:[%s12 + $0xa0] sm:$0xff]
  %v12128 = vld [vmem:[%s12 + $0xa8] sm:$0xff]
  %v12129 = vld [vmem:[%s12 + $0xb0] sm:$0xff]
  %v12130 = vld [vmem:[%s12 + $0xb8] sm:$0xff]
  %v12131 = vld [vmem:[%s12 + $0xc0] sm:$0xff]
  %v12132 = vld [vmem:[%s12 + $0xc8] sm:$0xff]
  %v12133 = vld [vmem:[%s12 + $0xd0] sm:$0xff]
  %v12134 = vld [vmem:[%s12 + $0xd8] sm:$0xff]
  %v12135 = vld [vmem:[%s12 + $0xe0] sm:$0xff]
  %v12136 = vld [vmem:[%s12 + $0xe8] sm:$0xff]
  %v12137 = vld [vmem:[%s12 + $0xf0] sm:$0xff]
  %v12138 = vld [vmem:[%s12 + $0xf8] sm:$0xff]
  %v12139 = vpack.c.bf16 %v12108, %v12107
  %v12140 = vpack.c.bf16 %v12110, %v12109
  %v12141 = vpack.c.bf16 %v12112, %v12111
  %v12142 = vpack.c.bf16 %v12114, %v12113
  %v12143 = vpack.c.bf16 %v12116, %v12115
  %v12144 = vpack.c.bf16 %v12118, %v12117
  %v12145 = vpack.c.bf16 %v12120, %v12119
  %v12146 = vpack.c.bf16 %v12122, %v12121
  %v12147 = vpack.c.bf16 %v12124, %v12123
  %v12148 = vpack.c.bf16 %v12126, %v12125
  %v12149 = vpack.c.bf16 %v12128, %v12127
  %v12150 = vpack.c.bf16 %v12130, %v12129
  %v12151 = vpack.c.bf16 %v12132, %v12131
  %v12152 = vpack.c.bf16 %v12134, %v12133
  %v12153 = vpack.c.bf16 %v12136, %v12135
  %v12154 = vpack.c.bf16 %v12138, %v12137
  %v12155 = vld [vmem:[%s13] sm:$0x1]
  %v12157 = vlaneseq
  %v12158 = vshrl.u32 %v12157, 7
  %v12159 = vsub.s32 0, %v12158
  %v12160 = vrot.slane %v12155, %v12159
  %12162 = vmatprep.subr.bf16.mxu0 0
  %12163 = vmatpush1.bf16.msra.mxu0 %v12139
  %12164 = vmatprep.subr.bf16.mxu0 0
  %12165 = vmatpush1.bf16.msra.mxu0 %v12140
  %12166 = vmatprep.subr.bf16.mxu0 0
  %12167 = vmatpush1.bf16.msra.mxu0 %v12141
  %12168 = vmatprep.subr.bf16.mxu0 0
  %12169 = vmatpush1.bf16.msra.mxu0 %v12142
  %12170 = vmatprep.subr.bf16.mxu0 0
  %12171 = vmatpush1.bf16.msra.mxu0 %v12143
  %12172 = vmatprep.subr.bf16.mxu0 0
  %12173 = vmatpush1.bf16.msra.mxu0 %v12144
  %12174 = vmatprep.subr.bf16.mxu0 0
  %12175 = vmatpush1.bf16.msra.mxu0 %v12145
  %12176 = vmatprep.subr.bf16.mxu0 0
  %12177 = vmatpush1.bf16.msra.mxu0 %v12146
  %12178 = vmatprep.subr.bf16.mxu0 0
  %12179 = vmatpush1.bf16.msra.mxu0 %v12147
  %12180 = vmatprep.subr.bf16.mxu0 0
  %12181 = vmatpush1.bf16.msra.mxu0 %v12148
  %12182 = vmatprep.subr.bf16.mxu0 0
  %12183 = vmatpush1.bf16.msra.mxu0 %v12149
  %12184 = vmatprep.subr.bf16.mxu0 0
  %12185 = vmatpush1.bf16.msra.mxu0 %v12150
  %12186 = vmatprep.subr.bf16.mxu0 0
  %12187 = vmatpush1.bf16.msra.mxu0 %v12151
  %12188 = vmatprep.subr.bf16.mxu0 0
  %12189 = vmatpush1.bf16.msra.mxu0 %v12152
  %12190 = vmatprep.subr.bf16.mxu0 0
  %12191 = vmatpush1.bf16.msra.mxu0 %v12153
  %12192 = vmatprep.subr.bf16.mxu0 0
  %12193 = vmatpush1.bf16.msra.mxu0 %v12154
  %12194 = vmatprep.mubr.bf16.mxu0 %v12092
  %12195 = vmatmul.mubr.bf16.gmra.mrb[0].mxu0 %v12091
  %v12196 = vpop.f32.mrb[0].mxu0
  %v12197 = vadd.f32 %v12160, %v12196
  %v12198 = vpop.f32.mrb[0].mxu0
  %v12199 = vpop.f32.mrb[0].mxu0
  %v12200 = vadd.f32 %v12160, %v12199
  %v12201 = vpop.f32.mrb[0].mxu0
  %12202 = vmatprep.mubr.bf16.mxu0 %v12094
  %12203 = vmatmul.mubr.bf16.gmra.mrb[0].mxu0 %v12093
  %v12204 = vpop.f32.mrb[0].mxu0
  %v12205 = vadd.f32 %v12160, %v12204
  %v12206 = vpop.f32.mrb[0].mxu0
  %v12207 = vpop.f32.mrb[0].mxu0
  %v12208 = vadd.f32 %v12160, %v12207
  %v12209 = vpop.f32.mrb[0].mxu0
  %12210 = vmatprep.mubr.bf16.mxu0 %v12096
  %12211 = vmatmul.mubr.bf16.gmra.mrb[0].mxu0 %v12095
  %v12212 = vpop.f32.mrb[0].mxu0
  %v12213 = vadd.f32 %v12160, %v12212
  %v12214 = vpop.f32.mrb[0].mxu0
  %v12215 = vpop.f32.mrb[0].mxu0
  %v12216 = vadd.f32 %v12160, %v12215
  %v12217 = vpop.f32.mrb[0].mxu0
  %12218 = vmatprep.mubr.bf16.mxu0 %v12098
  %12219 = vmatmul.mubr.bf16.gmra.mrb[0].mxu0 %v12097
  %v12220 = vpop.f32.mrb[0].mxu0
  %v12221 = vadd.f32 %v12160, %v12220
  %v12222 = vpop.f32.mrb[0].mxu0
  %v12223 = vpop.f32.mrb[0].mxu0
  %v12224 = vadd.f32 %v12160, %v12223
  %v12225 = vpop.f32.mrb[0].mxu0
  %12226 = vmatprep.mubr.bf16.mxu0 %v12100
  %12227 = vmatmul.mubr.bf16.gmra.mrb[0].mxu0 %v12099
  %v12228 = vpop.f32.mrb[0].mxu0
  %v12229 = vadd.f32 %v12160, %v12228
  %v12230 = vpop.f32.mrb[0].mxu0
  %v12231 = vpop.f32.mrb[0].mxu0
  %v12232 = vadd.f32 %v12160, %v12231
  %v12233 = vpop.f32.mrb[0].mxu0
  %12234 = vmatprep.mubr.bf16.mxu0 %v12102
  %12235 = vmatmul.mubr.bf16.gmra.mrb[0].mxu0 %v12101
  %v12236 = vpop.f32.mrb[0].mxu0
  %v12237 = vadd.f32 %v12160, %v12236
  %v12238 = vpop.f32.mrb[0].mxu0
  %v12239 = vpop.f32.mrb[0].mxu0
  %v12240 = vadd.f32 %v12160, %v12239
  %v12241 = vpop.f32.mrb[0].mxu0
  %12242 = vmatprep.mubr.bf16.mxu0 %v12104
  %12243 = vmatmul.mubr.bf16.gmra.mrb[0].mxu0 %v12103
  %v12244 = vpop.f32.mrb[0].mxu0
  %v12245 = vadd.f32 %v12160, %v12244
  %v12246 = vpop.f32.mrb[0].mxu0
  %v12247 = vpop.f32.mrb[0].mxu0
  %v12248 = vadd.f32 %v12160, %v12247
  %v12249 = vpop.f32.mrb[0].mxu0
  %12250 = vmatprep.mubr.bf16.mxu0 %v12106
  %12251 = vmatmul.mubr.bf16.gmra.mrb[0].mxu0 %v12105
  %v12252 = vpop.f32.mrb[0].mxu0
  %v12253 = vadd.f32 %v12160, %v12252
  %v12254 = vpop.f32.mrb[0].mxu0
  %v12255 = vpop.f32.mrb[0].mxu0
  %v12256 = vadd.f32 %v12160, %v12255
  %v12257 = vpop.f32.mrb[0].mxu0
  %12258 = vdwg.mxu0
  %v12259 = vld [vmem:[%s15] sm:$0x1]
  %v12261 = vlaneseq
  %v12262 = vshrl.u32 %v12261, 7
  %v12263 = vsub.s32 0, %v12262
  %v12264 = vrot.slane %v12259, %v12263
  %v12266 = vmul.f32 %v12264, %v12197
  %v12267 = vmul.f32 %v12264, %v12200
  %v12268 = vmul.f32 %v12264, %v12205
  %v12269 = vmul.f32 %v12264, %v12208
  %v12270 = vmul.f32 %v12264, %v12213
  %v12271 = vmul.f32 %v12264, %v12216
  %v12272 = vmul.f32 %v12264, %v12221
  %v12273 = vmul.f32 %v12264, %v12224
  %v12274 = vmul.f32 %v12264, %v12229
  %v12275 = vmul.f32 %v12264, %v12232
  %v12276 = vmul.f32 %v12264, %v12237
  %v12277 = vmul.f32 %v12264, %v12240
  %v12278 = vmul.f32 %v12264, %v12245
  %v12279 = vmul.f32 %v12264, %v12248
  %v12280 = vmul.f32 %v12264, %v12253
  %v12281 = vmul.f32 %v12264, %v12256
  %v12298 = vcombine.high %v12266, %v12266
  %v12299 = vcombine.high %v12267, %v12267
  %v12300 = vcombine.high %v12268, %v12268
  %v12301 = vcombine.high %v12269, %v12269
  %v12302 = vcombine.high %v12270, %v12270
  %v12303 = vcombine.high %v12271, %v12271
  %v12304 = vcombine.high %v12272, %v12272
  %v12305 = vcombine.high %v12273, %v12273
  %v12306 = vcombine.high %v12274, %v12274
  %v12307 = vcombine.high %v12275, %v12275
  %v12308 = vcombine.high %v12276, %v12276
  %v12309 = vcombine.high %v12277, %v12277
  %v12310 = vcombine.high %v12278, %v12278
  %v12311 = vcombine.high %v12279, %v12279
  %v12312 = vcombine.high %v12280, %v12280
  %v12313 = vcombine.high %v12281, %v12281
  %v12330 = vadd.f32 %v10644, %v12266
  %v12331 = vadd.f32 %v10645, %v12298
  %v12332 = vadd.f32 %v10646, %v12267
  %v12333 = vadd.f32 %v10647, %v12299
  %v12334 = vadd.f32 %v10648, %v12268
  %v12335 = vadd.f32 %v10649, %v12300
  %v12336 = vadd.f32 %v10650, %v12269
  %v12337 = vadd.f32 %v10651, %v12301
  %v12338 = vadd.f32 %v10652, %v12270
  %v12339 = vadd.f32 %v10653, %v12302
  %v12340 = vadd.f32 %v10654, %v12271
  %v12341 = vadd.f32 %v10655, %v12303
  %v12342 = vadd.f32 %v10656, %v12272
  %v12343 = vadd.f32 %v10657, %v12304
  %v12344 = vadd.f32 %v10658, %v12273
  %v12345 = vadd.f32 %v10659, %v12305
  %v12346 = vadd.f32 %v10660, %v12274
  %v12347 = vadd.f32 %v10661, %v12306
  %v12348 = vadd.f32 %v10662, %v12275
  %v12349 = vadd.f32 %v10663, %v12307
  %v12350 = vadd.f32 %v10664, %v12276
  %v12351 = vadd.f32 %v10665, %v12308
  %v12352 = vadd.f32 %v10666, %v12277
  %v12353 = vadd.f32 %v10667, %v12309
  %v12354 = vadd.f32 %v10668, %v12278
  %v12355 = vadd.f32 %v10669, %v12310
  %v12356 = vadd.f32 %v10670, %v12279
  %v12357 = vadd.f32 %v10671, %v12311
  %v12358 = vadd.f32 %v10672, %v12280
  %v12359 = vadd.f32 %v10673, %v12312
  %v12360 = vadd.f32 %v10674, %v12281
  %v12361 = vadd.f32 %v10675, %v12313
  %v12394 = vcombine.low %v12330, %v12331
  %v12395 = vcombine.low %v12332, %v12333
  %v12396 = vcombine.low %v12334, %v12335
  %v12397 = vcombine.low %v12336, %v12337
  %v12398 = vcombine.low %v12338, %v12339
  %v12399 = vcombine.low %v12340, %v12341
  %v12400 = vcombine.low %v12342, %v12343
  %v12401 = vcombine.low %v12344, %v12345
  %v12402 = vcombine.low %v12346, %v12347
  %v12403 = vcombine.low %v12348, %v12349
  %v12404 = vcombine.low %v12350, %v12351
  %v12405 = vcombine.low %v12352, %v12353
  %v12406 = vcombine.low %v12354, %v12355
  %v12407 = vcombine.low %v12356, %v12357
  %v12408 = vcombine.low %v12358, %v12359
  %v12409 = vcombine.low %v12360, %v12361
  %12426 = vst.msk [vmem:[%s16] sm:$0xff] %vm3950, %v12394
  %12427 = vst.msk [vmem:[%s16 + $0x8] sm:$0xff] %vm3950, %v12395
  %12428 = vst.msk [vmem:[%s16 + $0x10] sm:$0xff] %vm3950, %v12396
  %12429 = vst.msk [vmem:[%s16 + $0x18] sm:$0xff] %vm3950, %v12397
  %12430 = vst.msk [vmem:[%s16 + $0x20] sm:$0xff] %vm3950, %v12398
  %12431 = vst.msk [vmem:[%s16 + $0x28] sm:$0xff] %vm3950, %v12399
  %12432 = vst.msk [vmem:[%s16 + $0x30] sm:$0xff] %vm3950, %v12400
  %12433 = vst.msk [vmem:[%s16 + $0x38] sm:$0xff] %vm3950, %v12401
  %12434 = vst.msk [vmem:[%s16 + $0x40] sm:$0xff] %vm3950, %v12402
  %12435 = vst.msk [vmem:[%s16 + $0x48] sm:$0xff] %vm3950, %v12403
  %12436 = vst.msk [vmem:[%s16 + $0x50] sm:$0xff] %vm3950, %v12404
  %12437 = vst.msk [vmem:[%s16 + $0x58] sm:$0xff] %vm3950, %v12405
  %12438 = vst.msk [vmem:[%s16 + $0x60] sm:$0xff] %vm3950, %v12406
  %12439 = vst.msk [vmem:[%s16 + $0x68] sm:$0xff] %vm3950, %v12407
  %12440 = vst.msk [vmem:[%s16 + $0x70] sm:$0xff] %vm3950, %v12408
  %12441 = vst.msk [vmem:[%s16 + $0x78] sm:$0xff] %vm3950, %v12409
  // Predicated region
  $region66: #{tpu_custom_call.1} parent=0 // pred_check
    _
  $region67: #{tpu_custom_call.1} parent=0 // pred_check_branch
    %12443 = sbr.rel (0) target = $region69
  $region68: #{tpu_custom_call.1} parent=0 // pred_region
    _
  $region69: #{tpu_custom_call.1} parent=0 // pred_fallthru
    _
  // Predicated region
  $region70: #{tpu_custom_call.1} parent=0 // pred_check
    _
  $region71: #{tpu_custom_call.1} parent=0 // pred_check_branch
    %12445 = sbr.rel (0) target = $region73
  $region72: #{tpu_custom_call.1} parent=0 // pred_region
    _
  $region73: #{tpu_custom_call.1} parent=0 // pred_fallthru
    _

</llo_original>
